<compile_context>
chip_gen: v6e
topology: v6e:2x2x1
jax: 0.10.0
libtpu: 0.0.40
codegen_flags: <defaults>
</compile_context>

<pallas_src>
import jax
import jax.numpy as jnp
from jax import lax
from jax.experimental import pallas as pl
from jax.experimental.pallas import tpu as pltpu

H = W = 28                  # spatial size implied by the 14*14*128 flatten
PH = PW = 14                # after 2x2 pool
C1 = 64                     # conv1 out channels (fixed by the module: conv2 in = 64)
C2 = 128                    # conv2 out channels
HIDDEN = 1024
NUM_CLASSES = 10
KDIM = PH * PW * C2         # 25088
TK = 3584                   # 25088 / 3584 = 7 K-chunks
NSPLIT = 2                  # hidden-dim split (v7x: one half per TensorCore)
HALF = HIDDEN // NSPLIT
PAD_OUT = 128               # logits padded to a full lane width


# --------------------------------------------------------------------------
# Conv1: im2col patches (784, 9*Cin) @ (9*Cin, 64) + bias + ReLU, per image.
# --------------------------------------------------------------------------
def _conv1_kernel(p_ref, w_ref, b_ref, o_ref):
    y = jnp.dot(p_ref[0], w_ref[...], preferred_element_type=jnp.float32)
    o_ref[0] = jnp.maximum(y + b_ref[...], 0.0)


def conv1_im2col_relu(patches, wmat, b):
    n, m, kf = patches.shape
    cout = wmat.shape[-1]
    return pl.pallas_call(
        _conv1_kernel,
        out_shape=jax.ShapeDtypeStruct((n, m, cout), jnp.float32),
        grid_spec=pltpu.PrefetchScalarGridSpec(
            num_scalar_prefetch=0,
            grid=(n,),
            in_specs=[
                pl.BlockSpec((1, m, kf), lambda i: (i, 0, 0)),
                pl.BlockSpec((kf, cout), lambda i: (0, 0)),
                pl.BlockSpec((1, cout), lambda i: (0, 0)),
            ],
            out_specs=pl.BlockSpec((1, m, cout), lambda i: (i, 0, 0)),
        ),
        compiler_params=pltpu.CompilerParams(
            dimension_semantics=("parallel",)),
    )(patches, wmat, b.reshape(1, cout))


# --------------------------------------------------------------------------
# Conv2 + ReLU + 2x2 MaxPool, fused.  Input is 4 pool-tap im2col groups
# (4, 196, 576) per image; kernel does 4 matmuls with a running max, then
# bias + ReLU (bias is constant across taps; ReLU commutes with max).
# Output is emitted directly in the NHWC-flatten (h, w, c) order and in bf16
# (it feeds the bf16 dense matmul).
# --------------------------------------------------------------------------
def _conv2_pool_kernel(p_ref, w_ref, b_ref, o_ref):
    m = jnp.dot(p_ref[0, 0], w_ref[...], preferred_element_type=jnp.float32)
    for q in range(1, 4):
        m = jnp.maximum(
            m, jnp.dot(p_ref[0, q], w_ref[...],
                       preferred_element_type=jnp.float32))
    o_ref[0] = jnp.maximum(m + b_ref[...], 0.0).astype(o_ref.dtype)


def conv2_pool_relu(patches, wmat, b):
    n = patches.shape[0]
    return pl.pallas_call(
        _conv2_pool_kernel,
        out_shape=jax.ShapeDtypeStruct((n, PH * PW, C2), jnp.bfloat16),
        grid_spec=pltpu.PrefetchScalarGridSpec(
            num_scalar_prefetch=0,
            grid=(n,),
            in_specs=[
                pl.BlockSpec((1, 4, PH * PW, 9 * C1), lambda i: (i, 0, 0, 0)),
                pl.BlockSpec((9 * C1, C2), lambda i: (0, 0)),
                pl.BlockSpec((1, C2), lambda i: (0, 0)),
            ],
            out_specs=pl.BlockSpec((1, PH * PW, C2), lambda i: (i, 0, 0)),
        ),
        compiler_params=pltpu.CompilerParams(
            dimension_semantics=("parallel",)),
    )(patches, wmat, b.reshape(1, C2))


# --------------------------------------------------------------------------
# Fused dense head: Linear(25088 -> 1024) + ReLU + Linear(1024 -> 10).
# Grid = (NSPLIT, K-chunks): leading "parallel" axis splits the hidden dim
# (each half streams a disjoint half of wd1 -> ~2x on v7x's two TCs), the
# trailing "arbitrary" axis is the K reduction with a resident f32 VMEM
# accumulator.  wd1 / x are bf16; accumulation is f32.
# --------------------------------------------------------------------------
def _dense_kernel(x_ref, w1_ref, b1_ref, w2_ref, o_ref, acc_ref):
    k = pl.program_id(1)

    @pl.when(k == 0)
    def _():
        acc_ref[...] = jnp.zeros_like(acc_ref)

    acc_ref[...] += jnp.dot(x_ref[...], w1_ref[...],
                            preferred_element_type=jnp.float32)

    @pl.when(k == pl.num_programs(1) - 1)
    def _():
        h = jnp.maximum(acc_ref[...] + b1_ref[...], 0.0)   # ReLU (+ Dropout=id)
        o_ref[0] = jnp.dot(h, w2_ref[...],
                           preferred_element_type=jnp.float32)


def dense_head(x_flat_bf16, w1_bf16, b1, w2_pad):
    n, kdim = x_flat_bf16.shape
    assert kdim % TK == 0 and HIDDEN % NSPLIT == 0
    partial = pl.pallas_call(
        _dense_kernel,
        out_shape=jax.ShapeDtypeStruct((NSPLIT, n, PAD_OUT), jnp.float32),
        grid_spec=pltpu.PrefetchScalarGridSpec(
            num_scalar_prefetch=0,
            grid=(NSPLIT, kdim // TK),
            in_specs=[
                pl.BlockSpec((n, TK), lambda j, k: (0, k)),
                pl.BlockSpec((TK, HALF), lambda j, k: (k, j)),
                pl.BlockSpec((1, HALF), lambda j, k: (0, j)),
                pl.BlockSpec((HALF, PAD_OUT), lambda j, k: (j, 0)),
            ],
            out_specs=pl.BlockSpec((1, n, PAD_OUT), lambda j, k: (j, 0, 0)),
            scratch_shapes=[pltpu.VMEM((n, HALF), jnp.float32)],
        ),
        compiler_params=pltpu.CompilerParams(
            dimension_semantics=("parallel", "arbitrary")),
    )(x_flat_bf16, w1_bf16, b1.reshape(1, HIDDEN), w2_pad)
    return partial.sum(axis=0)                              # (n, PAD_OUT)


# --------------------------------------------------------------------------
# Wrapper-side im2col glue (pure XLA, small tensors).
# --------------------------------------------------------------------------
def _im2col_conv1(x_nhwc):
    n, _, _, cin = x_nhwc.shape
    xp = jnp.pad(x_nhwc, ((0, 0), (1, 1), (1, 1), (0, 0)))
    cols = [xp[:, kh:kh + H, kw:kw + W, :]
            for kh in range(3) for kw in range(3)]
    return jnp.concatenate(cols, axis=-1).reshape(n, H * W, 9 * cin)


def _im2col_conv2_pooled(y1_nhwc):
    # (N,28,28,64) -> (N, 4, 196, 576): for each 2x2-pool tap (dy,dx), the
    # im2col patches of the 14x14 pooled output grid.
    n = y1_nhwc.shape[0]
    yp = jnp.pad(y1_nhwc, ((0, 0), (1, 1), (1, 1), (0, 0)))
    groups = []
    for dy in range(2):
        for dx in range(2):
            cols = [yp[:, dy + kh:dy + kh + H:2, dx + kw:dx + kw + W:2, :]
                    for kh in range(3) for kw in range(3)]
            groups.append(jnp.concatenate(cols, axis=-1)
                          .reshape(n, PH * PW, 9 * C1))
    return jnp.stack(groups, axis=1)


# --------------------------------------------------------------------------
# One-time (host-side) parameter preparation: im2col weight matrices, wd1
# permuted to NHWC flatten order + bf16, wd2/logits padded to 128 lanes.
# --------------------------------------------------------------------------
def prepare_params(tp):
    cin = tp["w1c"].shape[2]
    w1mat = tp["w1c"].reshape(9 * cin, C1)
    w2mat = tp["w2c"].reshape(9 * C1, C2)
    # PyTorch flatten order is (c, h, w); our activations are (h, w, c).
    wd1_nhwc = (tp["wd1"].reshape(C2, PH, PW, HIDDEN)
                .transpose(1, 2, 0, 3).reshape(KDIM, HIDDEN))
    wd2_pad = jnp.zeros((HIDDEN, PAD_OUT), jnp.float32)
    wd2_pad = wd2_pad.at[:, :NUM_CLASSES].set(tp["wd2"])
    return {
        "w1mat": w1mat, "b1c": tp["b1c"],
        "w2mat": w2mat, "b2c": tp["b2c"],
        "wd1_bf16": wd1_nhwc.astype(jnp.bfloat16),
        "bd1": tp["bd1"],
        "wd2_pad": wd2_pad,
        "bd2": tp["bd2"],
    }


# --------------------------------------------------------------------------
# Full forward (accepts PyTorch-style NCHW input).
# --------------------------------------------------------------------------
@jax.jit
def model_forward(x_nchw, p):
    n = x_nchw.shape[0]
    x = jnp.transpose(x_nchw, (0, 2, 3, 1))                  # NCHW -> NHWC
    y1 = conv1_im2col_relu(_im2col_conv1(x), p["w1mat"], p["b1c"])
    y1 = y1.reshape(n, H, W, C1)
    y2 = conv2_pool_relu(_im2col_conv2_pooled(y1), p["w2mat"], p["b2c"])
    x_flat = y2.reshape(n, KDIM)                             # bf16, NHWC order
    logits_pad = dense_head(x_flat, p["wd1_bf16"], p["bd1"], p["wd2_pad"])
    return logits_pad[:, :NUM_CLASSES] + p["bd2"]
    # TODO(synk): Dropout(0.5) is inference-mode identity (no RNG in forward).


# --------------------------------------------------------------------------
# Pure-JAX f32 reference (PyTorch-layout params) for correctness checking.
# --------------------------------------------------------------------------
def reference_forward(x_nchw, params):
    dn = ("NCHW", "HWIO", "NCHW")
    x = lax.conv_general_dilated(x_nchw, params["w1c"], (1, 1),
                                 [(1, 1), (1, 1)], dimension_numbers=dn)
    x = jnp.maximum(x + params["b1c"].reshape(1, -1, 1, 1), 0.0)
    x = lax.conv_general_dilated(x, params["w2c"], (1, 1),
                                 [(1, 1), (1, 1)], dimension_numbers=dn)
    x = jnp.maximum(x + params["b2c"].reshape(1, -1, 1, 1), 0.0)
    x = lax.reduce_window(x, -jnp.inf, lax.max,
                          (1, 1, 2, 2), (1, 1, 2, 2), "VALID")
    x = x.reshape(x.shape[0], -1)
    h = jnp.maximum(x @ params["wd1"] + params["bd1"], 0.0)
    return h @ params["wd2"] + params["bd2"]


if __name__ == "__main__":
    in_channels, out_channels = 4, 64   # module requires conv1 out == 64
    batch = 2

    key = jax.random.PRNGKey(0)
    ks = jax.random.split(key, 9)
    torch_params = {
        "w1c": jax.random.normal(ks[0], (3, 3, in_channels, out_channels),
                                 jnp.float32) * 0.1,
        "b1c": jax.random.normal(ks[1], (out_channels,), jnp.float32) * 0.1,
        "w2c": jax.random.normal(ks[2], (3, 3, C1, C2), jnp.float32) * 0.05,
        "b2c": jax.random.normal(ks[3], (C2,), jnp.float32) * 0.1,
        "wd1": jax.random.normal(ks[4], (KDIM, HIDDEN), jnp.float32) * 0.01,
        "bd1": jax.random.normal(ks[5], (HIDDEN,), jnp.float32) * 0.1,
        "wd2": jax.random.normal(ks[6], (HIDDEN, NUM_CLASSES),
                                 jnp.float32) * 0.02,
        "bd2": jax.random.normal(ks[7], (NUM_CLASSES,), jnp.float32) * 0.1,
    }
    pallas_params = prepare_params(torch_params)

    x = jax.random.normal(ks[8], (batch, in_channels, H, W), jnp.float32)

    out = jax.block_until_ready(model_forward(x, pallas_params))
    assert out.shape == (batch, NUM_CLASSES), out.shape

    ref = jax.block_until_ready(reference_forward(x, torch_params))
    # wd1/x_flat are bf16 in the Pallas path (f32 accumulation) -> loose tol.
    if not jnp.allclose(out, ref, rtol=2e-2, atol=2e-2):
        raise AssertionError("Pallas output does not match JAX reference")

    print("KERNEL_OK")
</pallas_src>

<mosaic_0001>
module attributes {stable_mosaic.version = 11 : i64} {
  func.func @_conv1_kernel(%arg0: i32, %arg1: memref<1x784x36xf32, #tpu.memory_space<vmem>>, %arg2: memref<36x64xf32, #tpu.memory_space<vmem>>, %arg3: memref<1x64xf32, #tpu.memory_space<vmem>>, %arg4: memref<1x784x64xf32, #tpu.memory_space<vmem>>) attributes {dimension_semantics = [#tpu.dimension_semantics<parallel>], iteration_bounds = array<i64: 2>, scalar_prefetch = 0 : i64, scratch_operands = 0 : i64, tpu.core_type = #tpu.core_type<tc>, window_params = [{transform_indices = @transform_0, window_bounds = array<i64: 1, 784, 36>}, {pipeline_mode = #tpu.pipeline_mode<synchronous>, transform_indices = @transform_1, window_bounds = array<i64: 36, 64>}, {pipeline_mode = #tpu.pipeline_mode<synchronous>, transform_indices = @transform_2, window_bounds = array<i64: 1, 64>}, {transform_indices = @transform_3, window_bounds = array<i64: 1, 784, 64>}]} {
    %c0 = arith.constant 0 : index
    %c0_0 = arith.constant 0 : index
    %c0_1 = arith.constant 0 : index
    %0 = vector.load %arg1[%c0, %c0_0, %c0_1] : memref<1x784x36xf32, #tpu.memory_space<vmem>>, vector<1x784x36xf32>
    %1 = vector.shape_cast %0 : vector<1x784x36xf32> to vector<784x36xf32>
    %c0_2 = arith.constant 0 : index
    %c0_3 = arith.constant 0 : index
    %2 = vector.load %arg2[%c0_2, %c0_3] : memref<36x64xf32, #tpu.memory_space<vmem>>, vector<36x64xf32>
    %cst = arith.constant dense<0.000000e+00> : vector<784x64xf32>
    %3 = tpu.matmul %1, %2, %cst {dimension_numbers = #tpu.dot_dimension_numbers<[1], [0], [0], [1], [0, 0, 1, 1], [], []>} : vector<784x36xf32>, vector<36x64xf32>, vector<784x64xf32> -> vector<784x64xf32>
    %c0_4 = arith.constant 0 : index
    %c0_5 = arith.constant 0 : index
    %4 = vector.load %arg3[%c0_4, %c0_5] : memref<1x64xf32, #tpu.memory_space<vmem>>, vector<1x64xf32>
    %5 = vector.broadcast %4 : vector<1x64xf32> to vector<784x64xf32>
    %6 = arith.addf %3, %5 : vector<784x64xf32>
    %cst_6 = arith.constant 0.000000e+00 : f32
    %7 = vector.broadcast %cst_6 : f32 to vector<784x64xf32>
    %8 = arith.maximumf %6, %7 : vector<784x64xf32>
    %c0_7 = arith.constant 0 : index
    %c0_8 = arith.constant 0 : index
    %c0_9 = arith.constant 0 : index
    %9 = vector.load %arg4[%c0_7, %c0_8, %c0_9] : memref<1x784x64xf32, #tpu.memory_space<vmem>>, vector<1x784x64xf32>
    %10 = vector.shape_cast %9 : vector<1x784x64xf32> to vector<784x64xf32>
    %11 = vector.shape_cast %8 : vector<784x64xf32> to vector<1x784x64xf32>
    tpu.vector_store %arg4[%c0_7, %c0_8, %c0_9], %11 {strides = array<i32>} : memref<1x784x64xf32, #tpu.memory_space<vmem>>, vector<1x784x64xf32>,
    return
  }
  func.func @transform_0(%arg0: i32) -> (i32, i32, i32) {
    %c0_i32 = arith.constant 0 : i32
    %c0_i32_0 = arith.constant 0 : i32
    %c0_i32_1 = arith.constant 0 : i32
    return %arg0, %c0_i32, %c0_i32_0 : i32, i32, i32
  }
  func.func @transform_1(%arg0: i32) -> (i32, i32) {
    %c0_i32 = arith.constant 0 : i32
    %c0_i32_0 = arith.constant 0 : i32
    %c0_i32_1 = arith.constant 0 : i32
    return %c0_i32, %c0_i32_0 : i32, i32
  }
  func.func @transform_2(%arg0: i32) -> (i32, i32) {
    %c0_i32 = arith.constant 0 : i32
    %c0_i32_0 = arith.constant 0 : i32
    %c0_i32_1 = arith.constant 0 : i32
    return %c0_i32, %c0_i32_0 : i32, i32
  }
  func.func @transform_3(%arg0: i32) -> (i32, i32, i32) {
    %c0_i32 = arith.constant 0 : i32
    %c0_i32_0 = arith.constant 0 : i32
    %c0_i32_1 = arith.constant 0 : i32
    return %arg0, %c0_i32, %c0_i32_0 : i32, i32, i32
  }
}

module attributes {stable_mosaic.version = 11 : i64} {
  func.func @_conv2_pool_kernel(%arg0: i32, %arg1: memref<1x4x196x576xf32, #tpu.memory_space<vmem>>, %arg2: memref<576x128xf32, #tpu.memory_space<vmem>>, %arg3: memref<1x128xf32, #tpu.memory_space<vmem>>, %arg4: memref<1x196x128xbf16, #tpu.memory_space<vmem>>) attributes {dimension_semantics = [#tpu.dimension_semantics<parallel>], iteration_bounds = array<i64: 2>, scalar_prefetch = 0 : i64, scratch_operands = 0 : i64, tpu.core_type = #tpu.core_type<tc>, window_params = [{transform_indices = @transform_0, window_bounds = array<i64: 1, 4, 196, 576>}, {pipeline_mode = #tpu.pipeline_mode<synchronous>, transform_indices = @transform_1, window_bounds = array<i64: 576, 128>}, {pipeline_mode = #tpu.pipeline_mode<synchronous>, transform_indices = @transform_2, window_bounds = array<i64: 1, 128>}, {transform_indices = @transform_3, window_bounds = array<i64: 1, 196, 128>}]} {
    %c0 = arith.constant 0 : index
    %c0_0 = arith.constant 0 : index
    %c0_1 = arith.constant 0 : index
    %c0_2 = arith.constant 0 : index
    %0 = vector.load %arg1[%c0, %c0_0, %c0_1, %c0_2] : memref<1x4x196x576xf32, #tpu.memory_space<vmem>>, vector<1x1x196x576xf32>
    %1 = vector.shape_cast %0 : vector<1x1x196x576xf32> to vector<196x576xf32>
    %c0_3 = arith.constant 0 : index
    %c0_4 = arith.constant 0 : index
    %2 = vector.load %arg2[%c0_3, %c0_4] : memref<576x128xf32, #tpu.memory_space<vmem>>, vector<576x128xf32>
    %cst = arith.constant dense<0.000000e+00> : vector<196x128xf32>
    %3 = tpu.matmul %1, %2, %cst {dimension_numbers = #tpu.dot_dimension_numbers<[1], [0], [0], [1], [0, 0, 1, 1], [], []>} : vector<196x576xf32>, vector<576x128xf32>, vector<196x128xf32> -> vector<196x128xf32>
    %c0_5 = arith.constant 0 : index
    %c1 = arith.constant 1 : index
    %c0_6 = arith.constant 0 : index
    %c0_7 = arith.constant 0 : index
    %4 = vector.load %arg1[%c0_5, %c1, %c0_6, %c0_7] : memref<1x4x196x576xf32, #tpu.memory_space<vmem>>, vector<1x1x196x576xf32>
    %5 = vector.shape_cast %4 : vector<1x1x196x576xf32> to vector<196x576xf32>
    %c0_8 = arith.constant 0 : index
    %c0_9 = arith.constant 0 : index
    %6 = vector.load %arg2[%c0_8, %c0_9] : memref<576x128xf32, #tpu.memory_space<vmem>>, vector<576x128xf32>
    %cst_10 = arith.constant dense<0.000000e+00> : vector<196x128xf32>
    %7 = tpu.matmul %5, %6, %cst_10 {dimension_numbers = #tpu.dot_dimension_numbers<[1], [0], [0], [1], [0, 0, 1, 1], [], []>} : vector<196x576xf32>, vector<576x128xf32>, vector<196x128xf32> -> vector<196x128xf32>
    %8 = arith.maximumf %3, %7 : vector<196x128xf32>
    %c0_11 = arith.constant 0 : index
    %c2 = arith.constant 2 : index
    %c0_12 = arith.constant 0 : index
    %c0_13 = arith.constant 0 : index
    %9 = vector.load %arg1[%c0_11, %c2, %c0_12, %c0_13] : memref<1x4x196x576xf32, #tpu.memory_space<vmem>>, vector<1x1x196x576xf32>
    %10 = vector.shape_cast %9 : vector<1x1x196x576xf32> to vector<196x576xf32>
    %c0_14 = arith.constant 0 : index
    %c0_15 = arith.constant 0 : index
    %11 = vector.load %arg2[%c0_14, %c0_15] : memref<576x128xf32, #tpu.memory_space<vmem>>, vector<576x128xf32>
    %cst_16 = arith.constant dense<0.000000e+00> : vector<196x128xf32>
    %12 = tpu.matmul %10, %11, %cst_16 {dimension_numbers = #tpu.dot_dimension_numbers<[1], [0], [0], [1], [0, 0, 1, 1], [], []>} : vector<196x576xf32>, vector<576x128xf32>, vector<196x128xf32> -> vector<196x128xf32>
    %13 = arith.maximumf %8, %12 : vector<196x128xf32>
    %c0_17 = arith.constant 0 : index
    %c3 = arith.constant 3 : index
    %c0_18 = arith.constant 0 : index
    %c0_19 = arith.constant 0 : index
    %14 = vector.load %arg1[%c0_17, %c3, %c0_18, %c0_19] : memref<1x4x196x576xf32, #tpu.memory_space<vmem>>, vector<1x1x196x576xf32>
    %15 = vector.shape_cast %14 : vector<1x1x196x576xf32> to vector<196x576xf32>
    %c0_20 = arith.constant 0 : index
    %c0_21 = arith.constant 0 : index
    %16 = vector.load %arg2[%c0_20, %c0_21] : memref<576x128xf32, #tpu.memory_space<vmem>>, vector<576x128xf32>
    %cst_22 = arith.constant dense<0.000000e+00> : vector<196x128xf32>
    %17 = tpu.matmul %15, %16, %cst_22 {dimension_numbers = #tpu.dot_dimension_numbers<[1], [0], [0], [1], [0, 0, 1, 1], [], []>} : vector<196x576xf32>, vector<576x128xf32>, vector<196x128xf32> -> vector<196x128xf32>
    %18 = arith.maximumf %13, %17 : vector<196x128xf32>
    %c0_23 = arith.constant 0 : index
    %c0_24 = arith.constant 0 : index
    %19 = vector.load %arg3[%c0_23, %c0_24] : memref<1x128xf32, #tpu.memory_space<vmem>>, vector<1x128xf32>
    %20 = vector.broadcast %19 : vector<1x128xf32> to vector<196x128xf32>
    %21 = arith.addf %18, %20 : vector<196x128xf32>
    %cst_25 = arith.constant 0.000000e+00 : f32
    %22 = vector.broadcast %cst_25 : f32 to vector<196x128xf32>
    %23 = arith.maximumf %21, %22 : vector<196x128xf32>
    %24 = arith.truncf %23 : vector<196x128xf32> to vector<196x128xbf16>
    %c0_26 = arith.constant 0 : index
    %c0_27 = arith.constant 0 : index
    %c0_28 = arith.constant 0 : index
    %25 = vector.load %arg4[%c0_26, %c0_27, %c0_28] : memref<1x196x128xbf16, #tpu.memory_space<vmem>>, vector<1x196x128xbf16>
    %26 = vector.shape_cast %25 : vector<1x196x128xbf16> to vector<196x128xbf16>
    %27 = vector.shape_cast %24 : vector<196x128xbf16> to vector<1x196x128xbf16>
    tpu.vector_store %arg4[%c0_26, %c0_27, %c0_28], %27 {strides = array<i32>} : memref<1x196x128xbf16, #tpu.memory_space<vmem>>, vector<1x196x128xbf16>,
    return
  }
  func.func @transform_0(%arg0: i32) -> (i32, i32, i32, i32) {
    %c0_i32 = arith.constant 0 : i32
    %c0_i32_0 = arith.constant 0 : i32
    %c0_i32_1 = arith.constant 0 : i32
    %c0_i32_2 = arith.constant 0 : i32
    return %arg0, %c0_i32, %c0_i32_0, %c0_i32_1 : i32, i32, i32, i32
  }
  func.func @transform_1(%arg0: i32) -> (i32, i32) {
    %c0_i32 = arith.constant 0 : i32
    %c0_i32_0 = arith.constant 0 : i32
    %c0_i32_1 = arith.constant 0 : i32
    return %c0_i32, %c0_i32_0 : i32, i32
  }
  func.func @transform_2(%arg0: i32) -> (i32, i32) {
    %c0_i32 = arith.constant 0 : i32
    %c0_i32_0 = arith.constant 0 : i32
    %c0_i32_1 = arith.constant 0 : i32
    return %c0_i32, %c0_i32_0 : i32, i32
  }
  func.func @transform_3(%arg0: i32) -> (i32, i32, i32) {
    %c0_i32 = arith.constant 0 : i32
    %c0_i32_0 = arith.constant 0 : i32
    %c0_i32_1 = arith.constant 0 : i32
    return %arg0, %c0_i32, %c0_i32_0 : i32, i32, i32
  }
}

module attributes {stable_mosaic.version = 11 : i64} {
  func.func @_dense_kernel(%arg0: i32, %arg1: i32, %arg2: memref<2x3584xbf16, #tpu.memory_space<vmem>>, %arg3: memref<3584x512xbf16, #tpu.memory_space<vmem>>, %arg4: memref<1x512xf32, #tpu.memory_space<vmem>>, %arg5: memref<512x128xf32, #tpu.memory_space<vmem>>, %arg6: memref<1x2x128xf32, #tpu.memory_space<vmem>>, %arg7: memref<2x512xf32, #tpu.memory_space<vmem>>) attributes {dimension_semantics = [#tpu.dimension_semantics<parallel>, #tpu.dimension_semantics<arbitrary>], iteration_bounds = array<i64: 2, 7>, scalar_prefetch = 0 : i64, scratch_operands = 1 : i64, tpu.core_type = #tpu.core_type<tc>, window_params = [{transform_indices = @transform_0, window_bounds = array<i64: 2, 3584>}, {transform_indices = @transform_1, window_bounds = array<i64: 3584, 512>}, {transform_indices = @transform_2, window_bounds = array<i64: 1, 512>}, {transform_indices = @transform_3, window_bounds = array<i64: 512, 128>}, {transform_indices = @transform_4, window_bounds = array<i64: 1, 2, 128>}]} {
    %c0_i32 = arith.constant 0 : i32
    %0 = arith.cmpi eq, %arg1, %c0_i32 : i32
    %1 = arith.extui %0 : i1 to i32
    %c0_i32_0 = arith.constant 0 : i32
    %2 = arith.cmpi ne, %1, %c0_i32_0 : i32
    scf.if %2 {
      %cst_9 = arith.constant 0.000000e+00 : f32
      %12 = vector.broadcast %cst_9 : f32 to vector<2x512xf32>
      %c0_10 = arith.constant 0 : index
      %c0_11 = arith.constant 0 : index
      %13 = vector.load %arg7[%c0_10, %c0_11] : memref<2x512xf32, #tpu.memory_space<vmem>>, vector<2x512xf32>
      tpu.vector_store %arg7[%c0_10, %c0_11], %12 {strides = array<i32>} : memref<2x512xf32, #tpu.memory_space<vmem>>, vector<2x512xf32>,
    } else {
    }
    %c0 = arith.constant 0 : index
    %c0_1 = arith.constant 0 : index
    %3 = vector.load %arg7[%c0, %c0_1] : memref<2x512xf32, #tpu.memory_space<vmem>>, vector<2x512xf32>
    %c0_2 = arith.constant 0 : index
    %c0_3 = arith.constant 0 : index
    %4 = vector.load %arg2[%c0_2, %c0_3] : memref<2x3584xbf16, #tpu.memory_space<vmem>>, vector<2x3584xbf16>
    %c0_4 = arith.constant 0 : index
    %c0_5 = arith.constant 0 : index
    %5 = vector.load %arg3[%c0_4, %c0_5] : memref<3584x512xbf16, #tpu.memory_space<vmem>>, vector<3584x512xbf16>
    %cst = arith.constant dense<0.000000e+00> : vector<2x512xf32>
    %6 = tpu.matmul %4, %5, %cst {dimension_numbers = #tpu.dot_dimension_numbers<[1], [0], [0], [1], [0, 0, 1, 1], [], []>} : vector<2x3584xbf16>, vector<3584x512xbf16>, vector<2x512xf32> -> vector<2x512xf32>
    %7 = arith.addf %3, %6 : vector<2x512xf32>
    %c0_6 = arith.constant 0 : index
    %c0_7 = arith.constant 0 : index
    %8 = vector.load %arg7[%c0_6, %c0_7] : memref<2x512xf32, #tpu.memory_space<vmem>>, vector<2x512xf32>
    tpu.vector_store %arg7[%c0_6, %c0_7], %7 {strides = array<i32>} : memref<2x512xf32, #tpu.memory_space<vmem>>, vector<2x512xf32>,
    %c6_i32 = arith.constant 6 : i32
    %9 = arith.cmpi eq, %arg1, %c6_i32 : i32
    %10 = arith.extui %9 : i1 to i32
    %c0_i32_8 = arith.constant 0 : i32
    %11 = arith.cmpi ne, %10, %c0_i32_8 : i32
    scf.if %11 {
      %c0_9 = arith.constant 0 : index
      %c0_10 = arith.constant 0 : index
      %12 = vector.load %arg7[%c0_9, %c0_10] : memref<2x512xf32, #tpu.memory_space<vmem>>, vector<2x512xf32>
      %c0_11 = arith.constant 0 : index
      %c0_12 = arith.constant 0 : index
      %13 = vector.load %arg4[%c0_11, %c0_12] : memref<1x512xf32, #tpu.memory_space<vmem>>, vector<1x512xf32>
      %14 = vector.broadcast %13 : vector<1x512xf32> to vector<2x512xf32>
      %15 = arith.addf %12, %14 : vector<2x512xf32>
      %cst_13 = arith.constant 0.000000e+00 : f32
      %16 = vector.broadcast %cst_13 : f32 to vector<2x512xf32>
      %17 = arith.maximumf %15, %16 : vector<2x512xf32>
      %c0_14 = arith.constant 0 : index
      %c0_15 = arith.constant 0 : index
      %18 = vector.load %arg5[%c0_14, %c0_15] : memref<512x128xf32, #tpu.memory_space<vmem>>, vector<512x128xf32>
      %cst_16 = arith.constant dense<0.000000e+00> : vector<2x128xf32>
      %19 = tpu.matmul %17, %18, %cst_16 {dimension_numbers = #tpu.dot_dimension_numbers<[1], [0], [0], [1], [0, 0, 1, 1], [], []>} : vector<2x512xf32>, vector<512x128xf32>, vector<2x128xf32> -> vector<2x128xf32>
      %c0_17 = arith.constant 0 : index
      %c0_18 = arith.constant 0 : index
      %c0_19 = arith.constant 0 : index
      %20 = vector.load %arg6[%c0_17, %c0_18, %c0_19] : memref<1x2x128xf32, #tpu.memory_space<vmem>>, vector<1x2x128xf32>
      %21 = vector.shape_cast %20 : vector<1x2x128xf32> to vector<2x128xf32>
      %22 = vector.shape_cast %19 : vector<2x128xf32> to vector<1x2x128xf32>
      tpu.vector_store %arg6[%c0_17, %c0_18, %c0_19], %22 {strides = array<i32>} : memref<1x2x128xf32, #tpu.memory_space<vmem>>, vector<1x2x128xf32>,
    } else {
    }
    return
  }
  func.func @transform_0(%arg0: i32, %arg1: i32) -> (i32, i32) {
    %c0_i32 = arith.constant 0 : i32
    %c0_i32_0 = arith.constant 0 : i32
    return %c0_i32, %arg1 : i32, i32
  }
  func.func @transform_1(%arg0: i32, %arg1: i32) -> (i32, i32) {
    %c0_i32 = arith.constant 0 : i32
    return %arg1, %arg0 : i32, i32
  }
  func.func @transform_2(%arg0: i32, %arg1: i32) -> (i32, i32) {
    %c0_i32 = arith.constant 0 : i32
    %c0_i32_0 = arith.constant 0 : i32
    return %c0_i32, %arg0 : i32, i32
  }
  func.func @transform_3(%arg0: i32, %arg1: i32) -> (i32, i32) {
    %c0_i32 = arith.constant 0 : i32
    %c0_i32_0 = arith.constant 0 : i32
    return %arg0, %c0_i32 : i32, i32
  }
  func.func @transform_4(%arg0: i32, %arg1: i32) -> (i32, i32, i32) {
    %c0_i32 = arith.constant 0 : i32
    %c0_i32_0 = arith.constant 0 : i32
    %c0_i32_1 = arith.constant 0 : i32
    return %arg0, %c0_i32, %c0_i32_0 : i32, i32, i32
  }
}

</mosaic_0001>

<llo_original>
// kernel: model_forward.3
$region0: #{model_forward.3}
  #allocation0 [shape = 'u32[]', space=smem, size = 0x4, offset = 0x4, fixed_abs, tag = 'smem constant byte address 0x4 - core index']
  #allocation1 [shape = 'u32[144,128]{1,0:T(1,128)}', space=vmem, size = 0x12000, scoped, tag = 'internal scratch']
  %s0 = inlined_call_operand.vmem [shape: f32[2,784,36], index: 0, kind: input, shape index: {}]
  %s1 = inlined_call_operand.vmem [shape: f32[36,64], index: 1, kind: input, shape index: {}]
  %s2 = inlined_call_operand.vmem [shape: f32[1,64], index: 2, kind: input, shape index: {}]
  %s3 = inlined_call_operand.vmem [shape: f32[2,784,64], index: 3, kind: output, shape index: {}]
  %s4 = sld [smem:[#allocation0]]
  $region45: #{model_forward.3} parent=0
    _
  %s6 = ssub.s32 1, %s4
  %s7 = scalar_select 0, %s6, %s4
  loop: start=0, step=1, limit=4
  $region2: #{model_forward.3} parent=0 // loop_pre_header
    _
  $region3: #{model_forward.3} parent=0 // loop_header
    %s9 = sphi 0, %s13
    %p10 = scmp.ge.s32.totalorder %s9, 4
    %s19 = sphi 0, %s21
    %s22 = sphi 0, %s19
    %s23 = sphi 0, %s22
    %s39 = sphi 0, %s23
    %s43 = sphi 0, %s43
    %s45 = sphi 0, %s43
    %s46 = sphi 0, %s45
    %s60 = sphi 0, %s46
    %s64 = sphi 0, %s64
    %s66 = sphi 0, %s64
    %s67 = sphi 0, %s66
    %s81 = sphi 0, %s67
    %s87 = sphi 0, %s89
    %s90 = sphi 0, %s87
    %s91 = sphi 0, %s90
    %s107 = sphi 0, %s91
  $region4: #{model_forward.3} parent=0 // loop_header_branch
    %12 = sbr.rel (%p10) target = $region8
  $region5: #{model_forward.3} parent=0 // loop_body
    %s14 = ssub.s32 %s9, 1
    %s15 = ssub.s32 %s9, 2
    %s16 = sadd.s32 %s9, 1
    %s17 = ssub.s32 %s9, %s16
    %p18 = scmp.eq.s32.totalorder %s17, 0
    %s20 = sadd.s32 %s19, 1
    %s21 = scalar_select %p18, %s19, %s20
    %p24 = pneg %p18
    %p25 = scmp.eq.s32.totalorder %s9, 1
    %p26 = por %p24, %p25
    %p27 = scmp.ne.s32.totalorder %s19, %s22
    %p28 = scmp.eq.s32.totalorder %s9, 0
    %p29 = por %p27, %p28
    %p30 = scmp.ne.s32.totalorder %s19, %s22
    %p31 = scmp.eq.s32.totalorder %s14, 1
    %p32 = por %p30, %p31
    %p33 = scmp.ne.s32.totalorder %s22, %s23
    %p34 = scmp.eq.s32.totalorder %s14, 0
    %p35 = por %p33, %p34
    %p36 = scmp.ne.s32.totalorder %s22, %s23
    %p37 = scmp.eq.s32.totalorder %s15, 1
    %p38 = por %p36, %p37
    %p40 = scmp.ne.s32.totalorder %s23, %s39
    %p41 = scmp.eq.s32.totalorder %s15, 0
    %p42 = por %p40, %p41
    %s44 = sadd.s32 %s43, 1
    %p47 = scmp.eq.s32.totalorder %s9, 1
    %p48 = scmp.ne.s32.totalorder %s43, %s45
    %p49 = scmp.eq.s32.totalorder %s9, 0
    %p50 = por %p48, %p49
    %p51 = scmp.ne.s32.totalorder %s43, %s45
    %p52 = scmp.eq.s32.totalorder %s14, 1
    %p53 = por %p51, %p52
    %p54 = scmp.ne.s32.totalorder %s45, %s46
    %p55 = scmp.eq.s32.totalorder %s14, 0
    %p56 = por %p54, %p55
    %p57 = scmp.ne.s32.totalorder %s45, %s46
    %p58 = scmp.eq.s32.totalorder %s15, 1
    %p59 = por %p57, %p58
    %p61 = scmp.ne.s32.totalorder %s46, %s60
    %p62 = scmp.eq.s32.totalorder %s15, 0
    %p63 = por %p61, %p62
    %s65 = sadd.s32 %s64, 1
    %p68 = scmp.eq.s32.totalorder %s9, 1
    %p69 = scmp.ne.s32.totalorder %s64, %s66
    %p70 = scmp.eq.s32.totalorder %s9, 0
    %p71 = por %p69, %p70
    %p72 = scmp.ne.s32.totalorder %s64, %s66
    %p73 = scmp.eq.s32.totalorder %s14, 1
    %p74 = por %p72, %p73
    %p75 = scmp.ne.s32.totalorder %s66, %s67
    %p76 = scmp.eq.s32.totalorder %s14, 0
    %p77 = por %p75, %p76
    %p78 = scmp.ne.s32.totalorder %s66, %s67
    %p79 = scmp.eq.s32.totalorder %s15, 1
    %p80 = por %p78, %p79
    %p82 = scmp.ne.s32.totalorder %s67, %s81
    %p83 = scmp.eq.s32.totalorder %s15, 0
    %p84 = por %p82, %p83
    %s85 = ssub.s32 %s9, %s16
    %p86 = scmp.eq.s32.totalorder %s85, 0
    %s88 = sadd.s32 %s87, 1
    %s89 = scalar_select %p86, %s87, %s88
    %p92 = pneg %p86
    %p93 = scmp.eq.s32.totalorder %s9, 1
    %p94 = por %p92, %p93
    %p95 = scmp.ne.s32.totalorder %s87, %s90
    %p96 = scmp.eq.s32.totalorder %s9, 0
    %p97 = por %p95, %p96
    %p98 = scmp.ne.s32.totalorder %s87, %s90
    %p99 = scmp.eq.s32.totalorder %s14, 1
    %p100 = por %p98, %p99
    %p101 = scmp.ne.s32.totalorder %s90, %s91
    %p102 = scmp.eq.s32.totalorder %s14, 0
    %p103 = por %p101, %p102
    %p104 = scmp.ne.s32.totalorder %s90, %s91
    %p105 = scmp.eq.s32.totalorder %s15, 1
    %p106 = por %p104, %p105
    %p108 = scmp.ne.s32.totalorder %s91, %s107
    %p109 = scmp.eq.s32.totalorder %s15, 0
    %p110 = por %p108, %p109
    %p111 = scmp.le.s32.totalorder 1, %s9
    %p112 = scmp.lt.s32.totalorder %s9, 3
    %p113 = pnand %p111, %p112
    %p114 = pneg %p113
    // Predicated region
    $region9: #{model_forward.3} parent=5 // pred_check
      _
    $region10: #{model_forward.3} parent=5 // pred_check_branch
      %116 = sbr.rel (%p113) target = $region12
    $region11: #{model_forward.3} parent=5 // pred_region
      %s117 = ssub.s32 %s9, 1
      // Predicated region
      $region13: #{model_forward.3} parent=11 // pred_check
        %p118 = pneg %p56
      $region14: #{model_forward.3} parent=11 // pred_check_branch
        %120 = sbr.rel (%p118) target = $region16
      $region15: #{model_forward.3} parent=11 // pred_region
        _
      $region16: #{model_forward.3} parent=11 // pred_fallthru
        _
      // Predicated region
      $region17: #{model_forward.3} parent=11 // pred_check
        %p121 = pneg %p77
      $region18: #{model_forward.3} parent=11 // pred_check_branch
        %123 = sbr.rel (%p121) target = $region20
      $region19: #{model_forward.3} parent=11 // pred_region
        _
      $region20: #{model_forward.3} parent=11 // pred_fallthru
        _
    $region12: #{model_forward.3} parent=5 // pred_fallthru
      _
    %p124 = scmp.lt.s32.totalorder %s9, 2
    // Predicated region
    $region21: #{model_forward.3} parent=5 // pred_check
      %p125 = pneg %p124
    $region22: #{model_forward.3} parent=5 // pred_check_branch
      %127 = sbr.rel (%p125) target = $region24
    $region23: #{model_forward.3} parent=5 // pred_region
      // Predicated region
      $region25: #{model_forward.3} parent=23 // pred_check
        %p128 = pneg %p29
      $region26: #{model_forward.3} parent=23 // pred_check_branch
        %130 = sbr.rel (%p128) target = $region28
      $region27: #{model_forward.3} parent=23 // pred_region
        %p131 = scmp.lt.s32.totalorder %s9, 1
        %s132 = scalar_select %p131, %s9, 1
        %s133 = smul.addr %s132, 98
        %s134 = smul.addr %s133, 8
        %s135 = scalar_lea.vmem %s0, %s134
      $region28: #{model_forward.3} parent=23 // pred_fallthru
        _
    $region24: #{model_forward.3} parent=5 // pred_fallthru
      _
    %p136 = scmp.le.s32.totalorder 1, %s9
    %p137 = scmp.lt.s32.totalorder %s9, 3
    %p138 = pnand %p136, %p137
    %p139 = pneg %p138
    // Predicated region
    $region29: #{model_forward.3} parent=5 // pred_check
      _
    $region30: #{model_forward.3} parent=5 // pred_check_branch
      %141 = sbr.rel (%p138) target = $region32
    $region31: #{model_forward.3} parent=5 // pred_region
      %s142 = ssub.s32 %s9, 1
      %p143 = scmp.lt.s32.totalorder %s14, 1
      %s144 = scalar_select %p143, %s14, 1
      %s145 = smul.addr %s144, 98
      %s146 = smul.addr %s145, 8
      %s147 = scalar_lea.vmem %s0, %s146
      %p148 = pneg %p35
      %p149 = pneg %p32
      %p150 = pneg %p56
      %p151 = pneg %p53
      %p152 = pneg %p77
      %p153 = pneg %p74
      %p154 = pneg %p103
      %p155 = pneg %p100
      %p156 = scmp.lt.s32.totalorder %s14, 1
      %s157 = scalar_select %p156, %s14, 1
      %s158 = smul.addr %s157, 98
      %s159 = smul.addr %s158, 8
      %s160 = scalar_lea.vmem %s3, %s159
      %p161 = scmp.lt.s32.totalorder %s14, 1
      %s162 = scalar_select %p161, %s14, 1
      %s163 = smul.addr %s162, 98
      %s164 = smul.addr %s163, 8
      %s165 = scalar_lea.vmem %s0, %s164
      %p166 = scmp.lt.s32.totalorder %s14, 1
      %s167 = scalar_select %p166, %s14, 1
      %s168 = smul.addr %s167, 98
      %s169 = smul.addr %s168, 8
      %s170 = scalar_lea.vmem %s3, %s169
      %v171 = vld [vmem:[%s165] sm:$0xff]
      %v172 = vld [vmem:[%s165 + $0x8] sm:$0xff]
      %v173 = vld [vmem:[%s165 + $0x10] sm:$0xff]
      %v174 = vld [vmem:[%s165 + $0x18] sm:$0xff]
      %v175 = vld [vmem:[%s165 + $0x20] sm:$0xff]
      %v176 = vld [vmem:[%s165 + $0x28] sm:$0xff]
      %v177 = vld [vmem:[%s165 + $0x30] sm:$0xff]
      %v178 = vld [vmem:[%s165 + $0x38] sm:$0xff]
      %v179 = vld [vmem:[%s165 + $0x40] sm:$0xff]
      %v180 = vld [vmem:[%s165 + $0x48] sm:$0xff]
      %v181 = vld [vmem:[%s165 + $0x50] sm:$0xff]
      %v182 = vld [vmem:[%s165 + $0x58] sm:$0xff]
      %v183 = vld [vmem:[%s165 + $0x60] sm:$0xff]
      %v184 = vld [vmem:[%s165 + $0x68] sm:$0xff]
      %v185 = vld [vmem:[%s165 + $0x70] sm:$0xff]
      %v186 = vld [vmem:[%s165 + $0x78] sm:$0xff]
      %v187 = vld [vmem:[%s165 + $0x80] sm:$0xff]
      %v188 = vld [vmem:[%s165 + $0x88] sm:$0xff]
      %v189 = vld [vmem:[%s165 + $0x90] sm:$0xff]
      %v190 = vld [vmem:[%s165 + $0x98] sm:$0xff]
      %v191 = vld [vmem:[%s165 + $0xa0] sm:$0xff]
      %v192 = vld [vmem:[%s165 + $0xa8] sm:$0xff]
      %v193 = vld [vmem:[%s165 + $0xb0] sm:$0xff]
      %v194 = vld [vmem:[%s165 + $0xb8] sm:$0xff]
      %v195 = vld [vmem:[%s165 + $0xc0] sm:$0xff]
      %v196 = vld [vmem:[%s165 + $0xc8] sm:$0xff]
      %v197 = vld [vmem:[%s165 + $0xd0] sm:$0xff]
      %v198 = vld [vmem:[%s165 + $0xd8] sm:$0xff]
      %v199 = vld [vmem:[%s165 + $0xe0] sm:$0xff]
      %v200 = vld [vmem:[%s165 + $0xe8] sm:$0xff]
      %v201 = vld [vmem:[%s165 + $0xf0] sm:$0xff]
      %v202 = vld [vmem:[%s165 + $0xf8] sm:$0xff]
      %v203 = vld [vmem:[%s165 + $0x100] sm:$0xff]
      %v204 = vld [vmem:[%s165 + $0x108] sm:$0xff]
      %v205 = vld [vmem:[%s165 + $0x110] sm:$0xff]
      %v206 = vld [vmem:[%s165 + $0x118] sm:$0xff]
      %v207 = vld [vmem:[%s165 + $0x120] sm:$0xff]
      %v208 = vld [vmem:[%s165 + $0x128] sm:$0xff]
      %v209 = vld [vmem:[%s165 + $0x130] sm:$0xff]
      %v210 = vld [vmem:[%s165 + $0x138] sm:$0xff]
      %v211 = vld [vmem:[%s165 + $0x140] sm:$0xff]
      %v212 = vld [vmem:[%s165 + $0x148] sm:$0xff]
      %v213 = vld [vmem:[%s165 + $0x150] sm:$0xff]
      %v214 = vld [vmem:[%s165 + $0x158] sm:$0xff]
      %v215 = vld [vmem:[%s165 + $0x160] sm:$0xff]
      %v216 = vld [vmem:[%s165 + $0x168] sm:$0xff]
      %v217 = vld [vmem:[%s165 + $0x170] sm:$0xff]
      %v218 = vld [vmem:[%s165 + $0x178] sm:$0xff]
      %v219 = vld [vmem:[%s165 + $0x180] sm:$0xff]
      %v220 = vld [vmem:[%s165 + $0x188] sm:$0xff]
      %v221 = vld [vmem:[%s165 + $0x190] sm:$0xff]
      %v222 = vld [vmem:[%s165 + $0x198] sm:$0xff]
      %v223 = vld [vmem:[%s165 + $0x1a0] sm:$0xff]
      %v224 = vld [vmem:[%s165 + $0x1a8] sm:$0xff]
      %v225 = vld [vmem:[%s165 + $0x1b0] sm:$0xff]
      %v226 = vld [vmem:[%s165 + $0x1b8] sm:$0xff]
      %v227 = vld [vmem:[%s165 + $0x1c0] sm:$0xff]
      %v228 = vld [vmem:[%s165 + $0x1c8] sm:$0xff]
      %v229 = vld [vmem:[%s165 + $0x1d0] sm:$0xff]
      %v230 = vld [vmem:[%s165 + $0x1d8] sm:$0xff]
      %v231 = vld [vmem:[%s165 + $0x1e0] sm:$0xff]
      %v232 = vld [vmem:[%s165 + $0x1e8] sm:$0xff]
      %v233 = vld [vmem:[%s165 + $0x1f0] sm:$0xff]
      %v234 = vld [vmem:[%s165 + $0x1f8] sm:$0xff]
      %v235 = vld [vmem:[%s165 + $0x200] sm:$0xff]
      %v236 = vld [vmem:[%s165 + $0x208] sm:$0xff]
      %v237 = vld [vmem:[%s165 + $0x210] sm:$0xff]
      %v238 = vld [vmem:[%s165 + $0x218] sm:$0xff]
      %v239 = vld [vmem:[%s165 + $0x220] sm:$0xff]
      %v240 = vld [vmem:[%s165 + $0x228] sm:$0xff]
      %v241 = vld [vmem:[%s165 + $0x230] sm:$0xff]
      %v242 = vld [vmem:[%s165 + $0x238] sm:$0xff]
      %v243 = vld [vmem:[%s165 + $0x240] sm:$0xff]
      %v244 = vld [vmem:[%s165 + $0x248] sm:$0xff]
      %v245 = vld [vmem:[%s165 + $0x250] sm:$0xff]
      %v246 = vld [vmem:[%s165 + $0x258] sm:$0xff]
      %v247 = vld [vmem:[%s165 + $0x260] sm:$0xff]
      %v248 = vld [vmem:[%s165 + $0x268] sm:$0xff]
      %v249 = vld [vmem:[%s165 + $0x270] sm:$0xff]
      %v250 = vld [vmem:[%s165 + $0x278] sm:$0xff]
      %v251 = vld [vmem:[%s165 + $0x280] sm:$0xff]
      %v252 = vld [vmem:[%s165 + $0x288] sm:$0xff]
      %v253 = vld [vmem:[%s165 + $0x290] sm:$0xff]
      %v254 = vld [vmem:[%s165 + $0x298] sm:$0xff]
      %v255 = vld [vmem:[%s165 + $0x2a0] sm:$0xff]
      %v256 = vld [vmem:[%s165 + $0x2a8] sm:$0xff]
      %v257 = vld [vmem:[%s165 + $0x2b0] sm:$0xff]
      %v258 = vld [vmem:[%s165 + $0x2b8] sm:$0xff]
      %v259 = vld [vmem:[%s165 + $0x2c0] sm:$0xff]
      %v260 = vld [vmem:[%s165 + $0x2c8] sm:$0xff]
      %v261 = vld [vmem:[%s165 + $0x2d0] sm:$0xff]
      %v262 = vld [vmem:[%s165 + $0x2d8] sm:$0xff]
      %v263 = vld [vmem:[%s165 + $0x2e0] sm:$0xff]
      %v264 = vld [vmem:[%s165 + $0x2e8] sm:$0xff]
      %v265 = vld [vmem:[%s165 + $0x2f0] sm:$0xff]
      %v266 = vld [vmem:[%s165 + $0x2f8] sm:$0xff]
      %v267 = vld [vmem:[%s165 + $0x300] sm:$0xff]
      %v268 = vld [vmem:[%s165 + $0x308] sm:$0xff]
      %v269 = vld [vmem:[%s1] sm:$0xff]
      %v270 = vld [vmem:[%s1 + $0x8] sm:$0xff]
      %v271 = vld [vmem:[%s1 + $0x10] sm:$0xff]
      %v272 = vld [vmem:[%s1 + $0x18] sm:$0xff]
      %v273 = vld [vmem:[%s1 + $0x20] sm:$0xf]
      %v274 = vld [vmem:[%s2] sm:$0x1]
      %v276 = vlaneseq
      %v277 = vshrl.u32 %v276, 7
      %v278 = vsub.s32 0, %v277
      %v279 = vrot.slane %v274, %v278
      %vm281 = vcmask 293888
      %v283 = vsel %vm281, %v171, 0
      %v286 = vsel %vm281, %v172, 0
      %v289 = vsel %vm281, %v173, 0
      %v292 = vsel %vm281, %v174, 0
      %v295 = vsel %vm281, %v175, 0
      %v298 = vsel %vm281, %v176, 0
      %v301 = vsel %vm281, %v177, 0
      %v304 = vsel %vm281, %v178, 0
      %v307 = vsel %vm281, %v179, 0
      %v310 = vsel %vm281, %v180, 0
      %v313 = vsel %vm281, %v181, 0
      %v316 = vsel %vm281, %v182, 0
      %v319 = vsel %vm281, %v183, 0
      %v322 = vsel %vm281, %v184, 0
      %v325 = vsel %vm281, %v185, 0
      %v328 = vsel %vm281, %v186, 0
      %v331 = vsel %vm281, %v187, 0
      %v334 = vsel %vm281, %v188, 0
      %v337 = vsel %vm281, %v189, 0
      %v340 = vsel %vm281, %v190, 0
      %v343 = vsel %vm281, %v191, 0
      %v346 = vsel %vm281, %v192, 0
      %v349 = vsel %vm281, %v193, 0
      %v352 = vsel %vm281, %v194, 0
      %v355 = vsel %vm281, %v195, 0
      %v358 = vsel %vm281, %v196, 0
      %v361 = vsel %vm281, %v197, 0
      %v364 = vsel %vm281, %v198, 0
      %v367 = vsel %vm281, %v199, 0
      %v370 = vsel %vm281, %v200, 0
      %v373 = vsel %vm281, %v201, 0
      %v376 = vsel %vm281, %v202, 0
      %v379 = vsel %vm281, %v203, 0
      %v382 = vsel %vm281, %v204, 0
      %v385 = vsel %vm281, %v205, 0
      %v388 = vsel %vm281, %v206, 0
      %v391 = vsel %vm281, %v207, 0
      %v394 = vsel %vm281, %v208, 0
      %v397 = vsel %vm281, %v209, 0
      %v400 = vsel %vm281, %v210, 0
      %v403 = vsel %vm281, %v211, 0
      %v406 = vsel %vm281, %v212, 0
      %v409 = vsel %vm281, %v213, 0
      %v412 = vsel %vm281, %v214, 0
      %v415 = vsel %vm281, %v215, 0
      %v418 = vsel %vm281, %v216, 0
      %v421 = vsel %vm281, %v217, 0
      %v424 = vsel %vm281, %v218, 0
      %v427 = vsel %vm281, %v219, 0
      %v430 = vsel %vm281, %v220, 0
      %v433 = vsel %vm281, %v221, 0
      %v436 = vsel %vm281, %v222, 0
      %v439 = vsel %vm281, %v223, 0
      %v442 = vsel %vm281, %v224, 0
      %v445 = vsel %vm281, %v225, 0
      %v448 = vsel %vm281, %v226, 0
      %v451 = vsel %vm281, %v227, 0
      %v454 = vsel %vm281, %v228, 0
      %v457 = vsel %vm281, %v229, 0
      %v460 = vsel %vm281, %v230, 0
      %v463 = vsel %vm281, %v231, 0
      %v466 = vsel %vm281, %v232, 0
      %v469 = vsel %vm281, %v233, 0
      %v472 = vsel %vm281, %v234, 0
      %v475 = vsel %vm281, %v235, 0
      %v478 = vsel %vm281, %v236, 0
      %v481 = vsel %vm281, %v237, 0
      %v484 = vsel %vm281, %v238, 0
      %v487 = vsel %vm281, %v239, 0
      %v490 = vsel %vm281, %v240, 0
      %v493 = vsel %vm281, %v241, 0
      %v496 = vsel %vm281, %v242, 0
      %v499 = vsel %vm281, %v243, 0
      %v502 = vsel %vm281, %v244, 0
      %v505 = vsel %vm281, %v245, 0
      %v508 = vsel %vm281, %v246, 0
      %v511 = vsel %vm281, %v247, 0
      %v514 = vsel %vm281, %v248, 0
      %v517 = vsel %vm281, %v249, 0
      %v520 = vsel %vm281, %v250, 0
      %v523 = vsel %vm281, %v251, 0
      %v526 = vsel %vm281, %v252, 0
      %v529 = vsel %vm281, %v253, 0
      %v532 = vsel %vm281, %v254, 0
      %v535 = vsel %vm281, %v255, 0
      %v538 = vsel %vm281, %v256, 0
      %v541 = vsel %vm281, %v257, 0
      %v544 = vsel %vm281, %v258, 0
      %v547 = vsel %vm281, %v259, 0
      %v550 = vsel %vm281, %v260, 0
      %v553 = vsel %vm281, %v261, 0
      %v556 = vsel %vm281, %v262, 0
      %v559 = vsel %vm281, %v263, 0
      %v562 = vsel %vm281, %v264, 0
      %v565 = vsel %vm281, %v265, 0
      %v568 = vsel %vm281, %v266, 0
      %v571 = vsel %vm281, %v267, 0
      %v574 = vsel %vm281, %v268, 0
      %vm576 = vcmask 1043456
      %v578 = vsel %vm576, %v273, 0
      %580 = vmatprep.subr.mxu0 0.0
      %581 = vmatpush1.msra.mxu0 0.0
      %582 = vmatprep.subr.mxu0 0.0
      %583 = vmatpush1.msra.mxu0 0.0
      %584 = vmatprep.subr.mxu0 0.0
      %585 = vmatpush1.msra.mxu0 0.0
      %586 = vmatprep.subr.mxu0 0.0
      %587 = vmatpush1.msra.mxu0 0.0
      %588 = vmatprep.subr.mxu0 0.0
      %589 = vmatpush1.msra.mxu0 0.0
      %590 = vmatprep.subr.mxu0 0.0
      %591 = vmatpush1.msra.mxu0 0.0
      %592 = vmatprep.subr.mxu0 0.0
      %593 = vmatpush1.msra.mxu0 0.0
      %594 = vmatprep.subr.mxu0 0.0
      %595 = vmatpush1.msra.mxu0 0.0
      %596 = vmatprep.subr.mxu0 0.0
      %597 = vmatpush1.msra.mxu0 0.0
      %598 = vmatprep.subr.mxu0 0.0
      %599 = vmatpush1.msra.mxu0 0.0
      %600 = vmatprep.subr.mxu0 0.0
      %601 = vmatpush1.msra.mxu0 0.0
      %602 = vmatprep.subr.mxu0 0.0
      %603 = vmatpush1.msra.mxu0 %v578
      %604 = vmatprep.subr.mxu0 0.0
      %605 = vmatpush1.msra.mxu0 %v272
      %606 = vmatprep.subr.mxu0 0.0
      %607 = vmatpush1.msra.mxu0 %v271
      %608 = vmatprep.subr.mxu0 0.0
      %609 = vmatpush1.msra.mxu0 %v270
      %610 = vmatprep.subr.mxu0 0.0
      %611 = vmatpush1.msra.mxu0 %v269
      %612 = vmatprep.subr.mxu0 0.0
      %613 = vmatpush2.msra.mxu0 0.0
      %614 = vmatprep.subr.mxu0 0.0
      %615 = vmatpush2.msra.mxu0 0.0
      %616 = vmatprep.subr.mxu0 0.0
      %617 = vmatpush2.msra.mxu0 0.0
      %618 = vmatprep.subr.mxu0 0.0
      %619 = vmatpush2.msra.mxu0 0.0
      %620 = vmatprep.subr.mxu0 0.0
      %621 = vmatpush2.msra.mxu0 0.0
      %622 = vmatprep.subr.mxu0 0.0
      %623 = vmatpush2.msra.mxu0 0.0
      %624 = vmatprep.subr.mxu0 0.0
      %625 = vmatpush2.msra.mxu0 0.0
      %626 = vmatprep.subr.mxu0 0.0
      %627 = vmatpush2.msra.mxu0 0.0
      %628 = vmatprep.subr.mxu0 0.0
      %629 = vmatpush2.msra.mxu0 0.0
      %630 = vmatprep.subr.mxu0 0.0
      %631 = vmatpush2.msra.mxu0 0.0
      %632 = vmatprep.subr.mxu0 0.0
      %633 = vmatpush2.msra.mxu0 0.0
      %634 = vmatprep.subr.mxu0 0.0
      %635 = vmatpush2.msra.mxu0 0.0
      %636 = vmatprep.subr.mxu0 0.0
      %637 = vmatpush2.msra.mxu0 0.0
      %638 = vmatprep.subr.mxu0 0.0
      %639 = vmatpush2.msra.mxu0 0.0
      %640 = vmatprep.subr.mxu0 0.0
      %641 = vmatpush2.msra.mxu0 0.0
      %642 = vmatprep.subr.mxu0 0.0
      %643 = vmatpush2.msra.mxu0 0.0
      %644 = vmatprep.mubr.f32.mxu0 0.0
      %645 = vmatmul.mubr.f32.gmra.mxu0 %v283
      %v646 = vpop.f32.mrf.mxu0
      %v647 = vadd.f32 %v279, %v646
      %v648 = vpop.f32.mrf.mxu0
      %649 = vmatprep.mubr.f32.mxu0 0.0
      %650 = vmatmul.mubr.f32.gmra.mxu0 %v286
      %v651 = vpop.f32.mrf.mxu0
      %v652 = vadd.f32 %v279, %v651
      %v653 = vpop.f32.mrf.mxu0
      %654 = vmatprep.mubr.f32.mxu0 0.0
      %655 = vmatmul.mubr.f32.gmra.mxu0 %v289
      %v656 = vpop.f32.mrf.mxu0
      %v657 = vadd.f32 %v279, %v656
      %v658 = vpop.f32.mrf.mxu0
      %659 = vmatprep.mubr.f32.mxu0 0.0
      %660 = vmatmul.mubr.f32.gmra.mxu0 %v292
      %v661 = vpop.f32.mrf.mxu0
      %v662 = vadd.f32 %v279, %v661
      %v663 = vpop.f32.mrf.mxu0
      %664 = vmatprep.mubr.f32.mxu0 0.0
      %665 = vmatmul.mubr.f32.gmra.mxu0 %v295
      %v666 = vpop.f32.mrf.mxu0
      %v667 = vadd.f32 %v279, %v666
      %v668 = vpop.f32.mrf.mxu0
      %669 = vmatprep.mubr.f32.mxu0 0.0
      %670 = vmatmul.mubr.f32.gmra.mxu0 %v298
      %v671 = vpop.f32.mrf.mxu0
      %v672 = vadd.f32 %v279, %v671
      %v673 = vpop.f32.mrf.mxu0
      %674 = vmatprep.mubr.f32.mxu0 0.0
      %675 = vmatmul.mubr.f32.gmra.mxu0 %v301
      %v676 = vpop.f32.mrf.mxu0
      %v677 = vadd.f32 %v279, %v676
      %v678 = vpop.f32.mrf.mxu0
      %679 = vmatprep.mubr.f32.mxu0 0.0
      %680 = vmatmul.mubr.f32.gmra.mxu0 %v304
      %v681 = vpop.f32.mrf.mxu0
      %v682 = vadd.f32 %v279, %v681
      %v683 = vpop.f32.mrf.mxu0
      %684 = vmatprep.mubr.f32.mxu0 0.0
      %685 = vmatmul.mubr.f32.gmra.mxu0 %v307
      %v686 = vpop.f32.mrf.mxu0
      %v687 = vadd.f32 %v279, %v686
      %v688 = vpop.f32.mrf.mxu0
      %689 = vmatprep.mubr.f32.mxu0 0.0
      %690 = vmatmul.mubr.f32.gmra.mxu0 %v310
      %v691 = vpop.f32.mrf.mxu0
      %v692 = vadd.f32 %v279, %v691
      %v693 = vpop.f32.mrf.mxu0
      %694 = vmatprep.mubr.f32.mxu0 0.0
      %695 = vmatmul.mubr.f32.gmra.mxu0 %v313
      %v696 = vpop.f32.mrf.mxu0
      %v697 = vadd.f32 %v279, %v696
      %v698 = vpop.f32.mrf.mxu0
      %699 = vmatprep.mubr.f32.mxu0 0.0
      %700 = vmatmul.mubr.f32.gmra.mxu0 %v316
      %v701 = vpop.f32.mrf.mxu0
      %v702 = vadd.f32 %v279, %v701
      %v703 = vpop.f32.mrf.mxu0
      %704 = vmatprep.mubr.f32.mxu0 0.0
      %705 = vmatmul.mubr.f32.gmra.mxu0 %v319
      %v706 = vpop.f32.mrf.mxu0
      %v707 = vadd.f32 %v279, %v706
      %v708 = vpop.f32.mrf.mxu0
      %709 = vmatprep.mubr.f32.mxu0 0.0
      %710 = vmatmul.mubr.f32.gmra.mxu0 %v322
      %v711 = vpop.f32.mrf.mxu0
      %v712 = vadd.f32 %v279, %v711
      %v713 = vpop.f32.mrf.mxu0
      %714 = vmatprep.mubr.f32.mxu0 0.0
      %715 = vmatmul.mubr.f32.gmra.mxu0 %v325
      %v716 = vpop.f32.mrf.mxu0
      %v717 = vadd.f32 %v279, %v716
      %v718 = vpop.f32.mrf.mxu0
      %719 = vmatprep.mubr.f32.mxu0 0.0
      %720 = vmatmul.mubr.f32.gmra.mxu0 %v328
      %v721 = vpop.f32.mrf.mxu0
      %v722 = vadd.f32 %v279, %v721
      %v723 = vpop.f32.mrf.mxu0
      %724 = vmatprep.mubr.f32.mxu0 0.0
      %725 = vmatmul.mubr.f32.gmra.mxu0 %v331
      %v726 = vpop.f32.mrf.mxu0
      %v727 = vadd.f32 %v279, %v726
      %v728 = vpop.f32.mrf.mxu0
      %729 = vmatprep.mubr.f32.mxu0 0.0
      %730 = vmatmul.mubr.f32.gmra.mxu0 %v334
      %v731 = vpop.f32.mrf.mxu0
      %v732 = vadd.f32 %v279, %v731
      %v733 = vpop.f32.mrf.mxu0
      %734 = vmatprep.mubr.f32.mxu0 0.0
      %735 = vmatmul.mubr.f32.gmra.mxu0 %v337
      %v736 = vpop.f32.mrf.mxu0
      %v737 = vadd.f32 %v279, %v736
      %v738 = vpop.f32.mrf.mxu0
      %739 = vmatprep.mubr.f32.mxu0 0.0
      %740 = vmatmul.mubr.f32.gmra.mxu0 %v340
      %v741 = vpop.f32.mrf.mxu0
      %v742 = vadd.f32 %v279, %v741
      %v743 = vpop.f32.mrf.mxu0
      %744 = vmatprep.mubr.f32.mxu0 0.0
      %745 = vmatmul.mubr.f32.gmra.mxu0 %v343
      %v746 = vpop.f32.mrf.mxu0
      %v747 = vadd.f32 %v279, %v746
      %v748 = vpop.f32.mrf.mxu0
      %749 = vmatprep.mubr.f32.mxu0 0.0
      %750 = vmatmul.mubr.f32.gmra.mxu0 %v346
      %v751 = vpop.f32.mrf.mxu0
      %v752 = vadd.f32 %v279, %v751
      %v753 = vpop.f32.mrf.mxu0
      %754 = vmatprep.mubr.f32.mxu0 0.0
      %755 = vmatmul.mubr.f32.gmra.mxu0 %v349
      %v756 = vpop.f32.mrf.mxu0
      %v757 = vadd.f32 %v279, %v756
      %v758 = vpop.f32.mrf.mxu0
      %759 = vmatprep.mubr.f32.mxu0 0.0
      %760 = vmatmul.mubr.f32.gmra.mxu0 %v352
      %v761 = vpop.f32.mrf.mxu0
      %v762 = vadd.f32 %v279, %v761
      %v763 = vpop.f32.mrf.mxu0
      %764 = vmatprep.mubr.f32.mxu0 0.0
      %765 = vmatmul.mubr.f32.gmra.mxu0 %v355
      %v766 = vpop.f32.mrf.mxu0
      %v767 = vadd.f32 %v279, %v766
      %v768 = vpop.f32.mrf.mxu0
      %769 = vmatprep.mubr.f32.mxu0 0.0
      %770 = vmatmul.mubr.f32.gmra.mxu0 %v358
      %v771 = vpop.f32.mrf.mxu0
      %v772 = vadd.f32 %v279, %v771
      %v773 = vpop.f32.mrf.mxu0
      %774 = vmatprep.mubr.f32.mxu0 0.0
      %775 = vmatmul.mubr.f32.gmra.mxu0 %v361
      %v776 = vpop.f32.mrf.mxu0
      %v777 = vadd.f32 %v279, %v776
      %v778 = vpop.f32.mrf.mxu0
      %779 = vmatprep.mubr.f32.mxu0 0.0
      %780 = vmatmul.mubr.f32.gmra.mxu0 %v364
      %v781 = vpop.f32.mrf.mxu0
      %v782 = vadd.f32 %v279, %v781
      %v783 = vpop.f32.mrf.mxu0
      %784 = vmatprep.mubr.f32.mxu0 0.0
      %785 = vmatmul.mubr.f32.gmra.mxu0 %v367
      %v786 = vpop.f32.mrf.mxu0
      %v787 = vadd.f32 %v279, %v786
      %v788 = vpop.f32.mrf.mxu0
      %789 = vmatprep.mubr.f32.mxu0 0.0
      %790 = vmatmul.mubr.f32.gmra.mxu0 %v370
      %v791 = vpop.f32.mrf.mxu0
      %v792 = vadd.f32 %v279, %v791
      %v793 = vpop.f32.mrf.mxu0
      %794 = vmatprep.mubr.f32.mxu0 0.0
      %795 = vmatmul.mubr.f32.gmra.mxu0 %v373
      %v796 = vpop.f32.mrf.mxu0
      %v797 = vadd.f32 %v279, %v796
      %v798 = vpop.f32.mrf.mxu0
      %799 = vmatprep.mubr.f32.mxu0 0.0
      %800 = vmatmul.mubr.f32.gmra.mxu0 %v376
      %v801 = vpop.f32.mrf.mxu0
      %v802 = vadd.f32 %v279, %v801
      %v803 = vpop.f32.mrf.mxu0
      %804 = vmatprep.mubr.f32.mxu0 0.0
      %805 = vmatmul.mubr.f32.gmra.mxu0 %v379
      %v806 = vpop.f32.mrf.mxu0
      %v807 = vadd.f32 %v279, %v806
      %v808 = vpop.f32.mrf.mxu0
      %809 = vmatprep.mubr.f32.mxu0 0.0
      %810 = vmatmul.mubr.f32.gmra.mxu0 %v382
      %v811 = vpop.f32.mrf.mxu0
      %v812 = vadd.f32 %v279, %v811
      %v813 = vpop.f32.mrf.mxu0
      %814 = vmatprep.mubr.f32.mxu0 0.0
      %815 = vmatmul.mubr.f32.gmra.mxu0 %v385
      %v816 = vpop.f32.mrf.mxu0
      %v817 = vadd.f32 %v279, %v816
      %v818 = vpop.f32.mrf.mxu0
      %819 = vmatprep.mubr.f32.mxu0 0.0
      %820 = vmatmul.mubr.f32.gmra.mxu0 %v388
      %v821 = vpop.f32.mrf.mxu0
      %v822 = vadd.f32 %v279, %v821
      %v823 = vpop.f32.mrf.mxu0
      %824 = vmatprep.mubr.f32.mxu0 0.0
      %825 = vmatmul.mubr.f32.gmra.mxu0 %v391
      %v826 = vpop.f32.mrf.mxu0
      %v827 = vadd.f32 %v279, %v826
      %v828 = vpop.f32.mrf.mxu0
      %829 = vmatprep.mubr.f32.mxu0 0.0
      %830 = vmatmul.mubr.f32.gmra.mxu0 %v394
      %v831 = vpop.f32.mrf.mxu0
      %v832 = vadd.f32 %v279, %v831
      %v833 = vpop.f32.mrf.mxu0
      %834 = vmatprep.mubr.f32.mxu0 0.0
      %835 = vmatmul.mubr.f32.gmra.mxu0 %v397
      %v836 = vpop.f32.mrf.mxu0
      %v837 = vadd.f32 %v279, %v836
      %v838 = vpop.f32.mrf.mxu0
      %839 = vmatprep.mubr.f32.mxu0 0.0
      %840 = vmatmul.mubr.f32.gmra.mxu0 %v400
      %v841 = vpop.f32.mrf.mxu0
      %v842 = vadd.f32 %v279, %v841
      %v843 = vpop.f32.mrf.mxu0
      %844 = vmatprep.mubr.f32.mxu0 0.0
      %845 = vmatmul.mubr.f32.gmra.mxu0 %v403
      %v846 = vpop.f32.mrf.mxu0
      %v847 = vadd.f32 %v279, %v846
      %v848 = vpop.f32.mrf.mxu0
      %849 = vmatprep.mubr.f32.mxu0 0.0
      %850 = vmatmul.mubr.f32.gmra.mxu0 %v406
      %v851 = vpop.f32.mrf.mxu0
      %v852 = vadd.f32 %v279, %v851
      %v853 = vpop.f32.mrf.mxu0
      %854 = vmatprep.mubr.f32.mxu0 0.0
      %855 = vmatmul.mubr.f32.gmra.mxu0 %v409
      %v856 = vpop.f32.mrf.mxu0
      %v857 = vadd.f32 %v279, %v856
      %v858 = vpop.f32.mrf.mxu0
      %859 = vmatprep.mubr.f32.mxu0 0.0
      %860 = vmatmul.mubr.f32.gmra.mxu0 %v412
      %v861 = vpop.f32.mrf.mxu0
      %v862 = vadd.f32 %v279, %v861
      %v863 = vpop.f32.mrf.mxu0
      %864 = vmatprep.mubr.f32.mxu0 0.0
      %865 = vmatmul.mubr.f32.gmra.mxu0 %v415
      %v866 = vpop.f32.mrf.mxu0
      %v867 = vadd.f32 %v279, %v866
      %v868 = vpop.f32.mrf.mxu0
      %869 = vmatprep.mubr.f32.mxu0 0.0
      %870 = vmatmul.mubr.f32.gmra.mxu0 %v418
      %v871 = vpop.f32.mrf.mxu0
      %v872 = vadd.f32 %v279, %v871
      %v873 = vpop.f32.mrf.mxu0
      %874 = vmatprep.mubr.f32.mxu0 0.0
      %875 = vmatmul.mubr.f32.gmra.mxu0 %v421
      %v876 = vpop.f32.mrf.mxu0
      %v877 = vadd.f32 %v279, %v876
      %v878 = vpop.f32.mrf.mxu0
      %879 = vmatprep.mubr.f32.mxu0 0.0
      %880 = vmatmul.mubr.f32.gmra.mxu0 %v424
      %v881 = vpop.f32.mrf.mxu0
      %v882 = vadd.f32 %v279, %v881
      %v883 = vpop.f32.mrf.mxu0
      %884 = vmatprep.mubr.f32.mxu0 0.0
      %885 = vmatmul.mubr.f32.gmra.mxu0 %v427
      %v886 = vpop.f32.mrf.mxu0
      %v887 = vadd.f32 %v279, %v886
      %v888 = vpop.f32.mrf.mxu0
      %889 = vmatprep.mubr.f32.mxu0 0.0
      %890 = vmatmul.mubr.f32.gmra.mxu0 %v430
      %v891 = vpop.f32.mrf.mxu0
      %v892 = vadd.f32 %v279, %v891
      %v893 = vpop.f32.mrf.mxu0
      %894 = vmatprep.mubr.f32.mxu0 0.0
      %895 = vmatmul.mubr.f32.gmra.mxu0 %v433
      %v896 = vpop.f32.mrf.mxu0
      %v897 = vadd.f32 %v279, %v896
      %v898 = vpop.f32.mrf.mxu0
      %899 = vmatprep.mubr.f32.mxu0 0.0
      %900 = vmatmul.mubr.f32.gmra.mxu0 %v436
      %v901 = vpop.f32.mrf.mxu0
      %v902 = vadd.f32 %v279, %v901
      %v903 = vpop.f32.mrf.mxu0
      %904 = vmatprep.mubr.f32.mxu0 0.0
      %905 = vmatmul.mubr.f32.gmra.mxu0 %v439
      %v906 = vpop.f32.mrf.mxu0
      %v907 = vadd.f32 %v279, %v906
      %v908 = vpop.f32.mrf.mxu0
      %909 = vmatprep.mubr.f32.mxu0 0.0
      %910 = vmatmul.mubr.f32.gmra.mxu0 %v442
      %v911 = vpop.f32.mrf.mxu0
      %v912 = vadd.f32 %v279, %v911
      %v913 = vpop.f32.mrf.mxu0
      %914 = vmatprep.mubr.f32.mxu0 0.0
      %915 = vmatmul.mubr.f32.gmra.mxu0 %v445
      %v916 = vpop.f32.mrf.mxu0
      %v917 = vadd.f32 %v279, %v916
      %v918 = vpop.f32.mrf.mxu0
      %919 = vmatprep.mubr.f32.mxu0 0.0
      %920 = vmatmul.mubr.f32.gmra.mxu0 %v448
      %v921 = vpop.f32.mrf.mxu0
      %v922 = vadd.f32 %v279, %v921
      %v923 = vpop.f32.mrf.mxu0
      %924 = vmatprep.mubr.f32.mxu0 0.0
      %925 = vmatmul.mubr.f32.gmra.mxu0 %v451
      %v926 = vpop.f32.mrf.mxu0
      %v927 = vadd.f32 %v279, %v926
      %v928 = vpop.f32.mrf.mxu0
      %929 = vmatprep.mubr.f32.mxu0 0.0
      %930 = vmatmul.mubr.f32.gmra.mxu0 %v454
      %v931 = vpop.f32.mrf.mxu0
      %v932 = vadd.f32 %v279, %v931
      %v933 = vpop.f32.mrf.mxu0
      %934 = vmatprep.mubr.f32.mxu0 0.0
      %935 = vmatmul.mubr.f32.gmra.mxu0 %v457
      %v936 = vpop.f32.mrf.mxu0
      %v937 = vadd.f32 %v279, %v936
      %v938 = vpop.f32.mrf.mxu0
      %939 = vmatprep.mubr.f32.mxu0 0.0
      %940 = vmatmul.mubr.f32.gmra.mxu0 %v460
      %v941 = vpop.f32.mrf.mxu0
      %v942 = vadd.f32 %v279, %v941
      %v943 = vpop.f32.mrf.mxu0
      %944 = vmatprep.mubr.f32.mxu0 0.0
      %945 = vmatmul.mubr.f32.gmra.mxu0 %v463
      %v946 = vpop.f32.mrf.mxu0
      %v947 = vadd.f32 %v279, %v946
      %v948 = vpop.f32.mrf.mxu0
      %949 = vmatprep.mubr.f32.mxu0 0.0
      %950 = vmatmul.mubr.f32.gmra.mxu0 %v466
      %v951 = vpop.f32.mrf.mxu0
      %v952 = vadd.f32 %v279, %v951
      %v953 = vpop.f32.mrf.mxu0
      %954 = vmatprep.mubr.f32.mxu0 0.0
      %955 = vmatmul.mubr.f32.gmra.mxu0 %v469
      %v956 = vpop.f32.mrf.mxu0
      %v957 = vadd.f32 %v279, %v956
      %v958 = vpop.f32.mrf.mxu0
      %959 = vmatprep.mubr.f32.mxu0 0.0
      %960 = vmatmul.mubr.f32.gmra.mxu0 %v472
      %v961 = vpop.f32.mrf.mxu0
      %v962 = vadd.f32 %v279, %v961
      %v963 = vpop.f32.mrf.mxu0
      %964 = vmatprep.mubr.f32.mxu0 0.0
      %965 = vmatmul.mubr.f32.gmra.mxu0 %v475
      %v966 = vpop.f32.mrf.mxu0
      %v967 = vadd.f32 %v279, %v966
      %v968 = vpop.f32.mrf.mxu0
      %969 = vmatprep.mubr.f32.mxu0 0.0
      %970 = vmatmul.mubr.f32.gmra.mxu0 %v478
      %v971 = vpop.f32.mrf.mxu0
      %v972 = vadd.f32 %v279, %v971
      %v973 = vpop.f32.mrf.mxu0
      %974 = vmatprep.mubr.f32.mxu0 0.0
      %975 = vmatmul.mubr.f32.gmra.mxu0 %v481
      %v976 = vpop.f32.mrf.mxu0
      %v977 = vadd.f32 %v279, %v976
      %v978 = vpop.f32.mrf.mxu0
      %979 = vmatprep.mubr.f32.mxu0 0.0
      %980 = vmatmul.mubr.f32.gmra.mxu0 %v484
      %v981 = vpop.f32.mrf.mxu0
      %v982 = vadd.f32 %v279, %v981
      %v983 = vpop.f32.mrf.mxu0
      %984 = vmatprep.mubr.f32.mxu0 0.0
      %985 = vmatmul.mubr.f32.gmra.mxu0 %v487
      %v986 = vpop.f32.mrf.mxu0
      %v987 = vadd.f32 %v279, %v986
      %v988 = vpop.f32.mrf.mxu0
      %989 = vmatprep.mubr.f32.mxu0 0.0
      %990 = vmatmul.mubr.f32.gmra.mxu0 %v490
      %v991 = vpop.f32.mrf.mxu0
      %v992 = vadd.f32 %v279, %v991
      %v993 = vpop.f32.mrf.mxu0
      %994 = vmatprep.mubr.f32.mxu0 0.0
      %995 = vmatmul.mubr.f32.gmra.mxu0 %v493
      %v996 = vpop.f32.mrf.mxu0
      %v997 = vadd.f32 %v279, %v996
      %v998 = vpop.f32.mrf.mxu0
      %999 = vmatprep.mubr.f32.mxu0 0.0
      %1000 = vmatmul.mubr.f32.gmra.mxu0 %v496
      %v1001 = vpop.f32.mrf.mxu0
      %v1002 = vadd.f32 %v279, %v1001
      %v1003 = vpop.f32.mrf.mxu0
      %1004 = vmatprep.mubr.f32.mxu0 0.0
      %1005 = vmatmul.mubr.f32.gmra.mxu0 %v499
      %v1006 = vpop.f32.mrf.mxu0
      %v1007 = vadd.f32 %v279, %v1006
      %v1008 = vpop.f32.mrf.mxu0
      %1009 = vmatprep.mubr.f32.mxu0 0.0
      %1010 = vmatmul.mubr.f32.gmra.mxu0 %v502
      %v1011 = vpop.f32.mrf.mxu0
      %v1012 = vadd.f32 %v279, %v1011
      %v1013 = vpop.f32.mrf.mxu0
      %1014 = vmatprep.mubr.f32.mxu0 0.0
      %1015 = vmatmul.mubr.f32.gmra.mxu0 %v505
      %v1016 = vpop.f32.mrf.mxu0
      %v1017 = vadd.f32 %v279, %v1016
      %v1018 = vpop.f32.mrf.mxu0
      %1019 = vmatprep.mubr.f32.mxu0 0.0
      %1020 = vmatmul.mubr.f32.gmra.mxu0 %v508
      %v1021 = vpop.f32.mrf.mxu0
      %v1022 = vadd.f32 %v279, %v1021
      %v1023 = vpop.f32.mrf.mxu0
      %1024 = vmatprep.mubr.f32.mxu0 0.0
      %1025 = vmatmul.mubr.f32.gmra.mxu0 %v511
      %v1026 = vpop.f32.mrf.mxu0
      %v1027 = vadd.f32 %v279, %v1026
      %v1028 = vpop.f32.mrf.mxu0
      %1029 = vmatprep.mubr.f32.mxu0 0.0
      %1030 = vmatmul.mubr.f32.gmra.mxu0 %v514
      %v1031 = vpop.f32.mrf.mxu0
      %v1032 = vadd.f32 %v279, %v1031
      %v1033 = vpop.f32.mrf.mxu0
      %1034 = vmatprep.mubr.f32.mxu0 0.0
      %1035 = vmatmul.mubr.f32.gmra.mxu0 %v517
      %v1036 = vpop.f32.mrf.mxu0
      %v1037 = vadd.f32 %v279, %v1036
      %v1038 = vpop.f32.mrf.mxu0
      %1039 = vmatprep.mubr.f32.mxu0 0.0
      %1040 = vmatmul.mubr.f32.gmra.mxu0 %v520
      %v1041 = vpop.f32.mrf.mxu0
      %v1042 = vadd.f32 %v279, %v1041
      %v1043 = vpop.f32.mrf.mxu0
      %1044 = vmatprep.mubr.f32.mxu0 0.0
      %1045 = vmatmul.mubr.f32.gmra.mxu0 %v523
      %v1046 = vpop.f32.mrf.mxu0
      %v1047 = vadd.f32 %v279, %v1046
      %v1048 = vpop.f32.mrf.mxu0
      %1049 = vmatprep.mubr.f32.mxu0 0.0
      %1050 = vmatmul.mubr.f32.gmra.mxu0 %v526
      %v1051 = vpop.f32.mrf.mxu0
      %v1052 = vadd.f32 %v279, %v1051
      %v1053 = vpop.f32.mrf.mxu0
      %1054 = vmatprep.mubr.f32.mxu0 0.0
      %1055 = vmatmul.mubr.f32.gmra.mxu0 %v529
      %v1056 = vpop.f32.mrf.mxu0
      %v1057 = vadd.f32 %v279, %v1056
      %v1058 = vpop.f32.mrf.mxu0
      %1059 = vmatprep.mubr.f32.mxu0 0.0
      %1060 = vmatmul.mubr.f32.gmra.mxu0 %v532
      %v1061 = vpop.f32.mrf.mxu0
      %v1062 = vadd.f32 %v279, %v1061
      %v1063 = vpop.f32.mrf.mxu0
      %1064 = vmatprep.mubr.f32.mxu0 0.0
      %1065 = vmatmul.mubr.f32.gmra.mxu0 %v535
      %v1066 = vpop.f32.mrf.mxu0
      %v1067 = vadd.f32 %v279, %v1066
      %v1068 = vpop.f32.mrf.mxu0
      %1069 = vmatprep.mubr.f32.mxu0 0.0
      %1070 = vmatmul.mubr.f32.gmra.mxu0 %v538
      %v1071 = vpop.f32.mrf.mxu0
      %v1072 = vadd.f32 %v279, %v1071
      %v1073 = vpop.f32.mrf.mxu0
      %1074 = vmatprep.mubr.f32.mxu0 0.0
      %1075 = vmatmul.mubr.f32.gmra.mxu0 %v541
      %v1076 = vpop.f32.mrf.mxu0
      %v1077 = vadd.f32 %v279, %v1076
      %v1078 = vpop.f32.mrf.mxu0
      %1079 = vmatprep.mubr.f32.mxu0 0.0
      %1080 = vmatmul.mubr.f32.gmra.mxu0 %v544
      %v1081 = vpop.f32.mrf.mxu0
      %v1082 = vadd.f32 %v279, %v1081
      %v1083 = vpop.f32.mrf.mxu0
      %1084 = vmatprep.mubr.f32.mxu0 0.0
      %1085 = vmatmul.mubr.f32.gmra.mxu0 %v547
      %v1086 = vpop.f32.mrf.mxu0
      %v1087 = vadd.f32 %v279, %v1086
      %v1088 = vpop.f32.mrf.mxu0
      %1089 = vmatprep.mubr.f32.mxu0 0.0
      %1090 = vmatmul.mubr.f32.gmra.mxu0 %v550
      %v1091 = vpop.f32.mrf.mxu0
      %v1092 = vadd.f32 %v279, %v1091
      %v1093 = vpop.f32.mrf.mxu0
      %1094 = vmatprep.mubr.f32.mxu0 0.0
      %1095 = vmatmul.mubr.f32.gmra.mxu0 %v553
      %v1096 = vpop.f32.mrf.mxu0
      %v1097 = vadd.f32 %v279, %v1096
      %v1098 = vpop.f32.mrf.mxu0
      %1099 = vmatprep.mubr.f32.mxu0 0.0
      %1100 = vmatmul.mubr.f32.gmra.mxu0 %v556
      %v1101 = vpop.f32.mrf.mxu0
      %v1102 = vadd.f32 %v279, %v1101
      %v1103 = vpop.f32.mrf.mxu0
      %1104 = vmatprep.mubr.f32.mxu0 0.0
      %1105 = vmatmul.mubr.f32.gmra.mxu0 %v559
      %v1106 = vpop.f32.mrf.mxu0
      %v1107 = vadd.f32 %v279, %v1106
      %v1108 = vpop.f32.mrf.mxu0
      %1109 = vmatprep.mubr.f32.mxu0 0.0
      %1110 = vmatmul.mubr.f32.gmra.mxu0 %v562
      %v1111 = vpop.f32.mrf.mxu0
      %v1112 = vadd.f32 %v279, %v1111
      %v1113 = vpop.f32.mrf.mxu0
      %1114 = vmatprep.mubr.f32.mxu0 0.0
      %1115 = vmatmul.mubr.f32.gmra.mxu0 %v565
      %v1116 = vpop.f32.mrf.mxu0
      %v1117 = vadd.f32 %v279, %v1116
      %v1118 = vpop.f32.mrf.mxu0
      %1119 = vmatprep.mubr.f32.mxu0 0.0
      %1120 = vmatmul.mubr.f32.gmra.mxu0 %v568
      %v1121 = vpop.f32.mrf.mxu0
      %v1122 = vadd.f32 %v279, %v1121
      %v1123 = vpop.f32.mrf.mxu0
      %1124 = vmatprep.mubr.f32.mxu0 0.0
      %1125 = vmatmul.mubr.f32.gmra.mxu0 %v571
      %v1126 = vpop.f32.mrf.mxu0
      %v1127 = vadd.f32 %v279, %v1126
      %v1128 = vpop.f32.mrf.mxu0
      %1129 = vmatprep.mubr.f32.mxu0 0.0
      %1130 = vmatmul.mubr.f32.gmra.mxu0 %v574
      %v1131 = vpop.f32.mrf.mxu0
      %v1132 = vadd.f32 %v279, %v1131
      %v1133 = vpop.f32.mrf.mxu0
      %1134 = vdwg.mxu0
      %v1135 = vmax.f32 %v647, 0.0
      %v1136 = vmax.f32 %v652, 0.0
      %v1137 = vmax.f32 %v657, 0.0
      %v1138 = vmax.f32 %v662, 0.0
      %v1139 = vmax.f32 %v667, 0.0
      %v1140 = vmax.f32 %v672, 0.0
      %v1141 = vmax.f32 %v677, 0.0
      %v1142 = vmax.f32 %v682, 0.0
      %v1143 = vmax.f32 %v687, 0.0
      %v1144 = vmax.f32 %v692, 0.0
      %v1145 = vmax.f32 %v697, 0.0
      %v1146 = vmax.f32 %v702, 0.0
      %v1147 = vmax.f32 %v707, 0.0
      %v1148 = vmax.f32 %v712, 0.0
      %v1149 = vmax.f32 %v717, 0.0
      %v1150 = vmax.f32 %v722, 0.0
      %v1151 = vmax.f32 %v727, 0.0
      %v1152 = vmax.f32 %v732, 0.0
      %v1153 = vmax.f32 %v737, 0.0
      %v1154 = vmax.f32 %v742, 0.0
      %v1155 = vmax.f32 %v747, 0.0
      %v1156 = vmax.f32 %v752, 0.0
      %v1157 = vmax.f32 %v757, 0.0
      %v1158 = vmax.f32 %v762, 0.0
      %v1159 = vmax.f32 %v767, 0.0
      %v1160 = vmax.f32 %v772, 0.0
      %v1161 = vmax.f32 %v777, 0.0
      %v1162 = vmax.f32 %v782, 0.0
      %v1163 = vmax.f32 %v787, 0.0
      %v1164 = vmax.f32 %v792, 0.0
      %v1165 = vmax.f32 %v797, 0.0
      %v1166 = vmax.f32 %v802, 0.0
      %v1167 = vmax.f32 %v807, 0.0
      %v1168 = vmax.f32 %v812, 0.0
      %v1169 = vmax.f32 %v817, 0.0
      %v1170 = vmax.f32 %v822, 0.0
      %v1171 = vmax.f32 %v827, 0.0
      %v1172 = vmax.f32 %v832, 0.0
      %v1173 = vmax.f32 %v837, 0.0
      %v1174 = vmax.f32 %v842, 0.0
      %v1175 = vmax.f32 %v847, 0.0
      %v1176 = vmax.f32 %v852, 0.0
      %v1177 = vmax.f32 %v857, 0.0
      %v1178 = vmax.f32 %v862, 0.0
      %v1179 = vmax.f32 %v867, 0.0
      %v1180 = vmax.f32 %v872, 0.0
      %v1181 = vmax.f32 %v877, 0.0
      %v1182 = vmax.f32 %v882, 0.0
      %v1183 = vmax.f32 %v887, 0.0
      %v1184 = vmax.f32 %v892, 0.0
      %v1185 = vmax.f32 %v897, 0.0
      %v1186 = vmax.f32 %v902, 0.0
      %v1187 = vmax.f32 %v907, 0.0
      %v1188 = vmax.f32 %v912, 0.0
      %v1189 = vmax.f32 %v917, 0.0
      %v1190 = vmax.f32 %v922, 0.0
      %v1191 = vmax.f32 %v927, 0.0
      %v1192 = vmax.f32 %v932, 0.0
      %v1193 = vmax.f32 %v937, 0.0
      %v1194 = vmax.f32 %v942, 0.0
      %v1195 = vmax.f32 %v947, 0.0
      %v1196 = vmax.f32 %v952, 0.0
      %v1197 = vmax.f32 %v957, 0.0
      %v1198 = vmax.f32 %v962, 0.0
      %v1199 = vmax.f32 %v967, 0.0
      %v1200 = vmax.f32 %v972, 0.0
      %v1201 = vmax.f32 %v977, 0.0
      %v1202 = vmax.f32 %v982, 0.0
      %v1203 = vmax.f32 %v987, 0.0
      %v1204 = vmax.f32 %v992, 0.0
      %v1205 = vmax.f32 %v997, 0.0
      %v1206 = vmax.f32 %v1002, 0.0
      %v1207 = vmax.f32 %v1007, 0.0
      %v1208 = vmax.f32 %v1012, 0.0
      %v1209 = vmax.f32 %v1017, 0.0
      %v1210 = vmax.f32 %v1022, 0.0
      %v1211 = vmax.f32 %v1027, 0.0
      %v1212 = vmax.f32 %v1032, 0.0
      %v1213 = vmax.f32 %v1037, 0.0
      %v1214 = vmax.f32 %v1042, 0.0
      %v1215 = vmax.f32 %v1047, 0.0
      %v1216 = vmax.f32 %v1052, 0.0
      %v1217 = vmax.f32 %v1057, 0.0
      %v1218 = vmax.f32 %v1062, 0.0
      %v1219 = vmax.f32 %v1067, 0.0
      %v1220 = vmax.f32 %v1072, 0.0
      %v1221 = vmax.f32 %v1077, 0.0
      %v1222 = vmax.f32 %v1082, 0.0
      %v1223 = vmax.f32 %v1087, 0.0
      %v1224 = vmax.f32 %v1092, 0.0
      %v1225 = vmax.f32 %v1097, 0.0
      %v1226 = vmax.f32 %v1102, 0.0
      %v1227 = vmax.f32 %v1107, 0.0
      %v1228 = vmax.f32 %v1112, 0.0
      %v1229 = vmax.f32 %v1117, 0.0
      %v1230 = vmax.f32 %v1122, 0.0
      %v1231 = vmax.f32 %v1127, 0.0
      %v1232 = vmax.f32 %v1132, 0.0
      %vm1233 = vcmask 523264
      %1234 = vst.msk [vmem:[%s170] sm:$0xff] %vm1233, %v1135
      %1235 = vst.msk [vmem:[%s170 + $0x8] sm:$0xff] %vm1233, %v1136
      %1236 = vst.msk [vmem:[%s170 + $0x10] sm:$0xff] %vm1233, %v1137
      %1237 = vst.msk [vmem:[%s170 + $0x18] sm:$0xff] %vm1233, %v1138
      %1238 = vst.msk [vmem:[%s170 + $0x20] sm:$0xff] %vm1233, %v1139
      %1239 = vst.msk [vmem:[%s170 + $0x28] sm:$0xff] %vm1233, %v1140
      %1240 = vst.msk [vmem:[%s170 + $0x30] sm:$0xff] %vm1233, %v1141
      %1241 = vst.msk [vmem:[%s170 + $0x38] sm:$0xff] %vm1233, %v1142
      %1242 = vst.msk [vmem:[%s170 + $0x40] sm:$0xff] %vm1233, %v1143
      %1243 = vst.msk [vmem:[%s170 + $0x48] sm:$0xff] %vm1233, %v1144
      %1244 = vst.msk [vmem:[%s170 + $0x50] sm:$0xff] %vm1233, %v1145
      %1245 = vst.msk [vmem:[%s170 + $0x58] sm:$0xff] %vm1233, %v1146
      %1246 = vst.msk [vmem:[%s170 + $0x60] sm:$0xff] %vm1233, %v1147
      %1247 = vst.msk [vmem:[%s170 + $0x68] sm:$0xff] %vm1233, %v1148
      %1248 = vst.msk [vmem:[%s170 + $0x70] sm:$0xff] %vm1233, %v1149
      %1249 = vst.msk [vmem:[%s170 + $0x78] sm:$0xff] %vm1233, %v1150
      %1250 = vst.msk [vmem:[%s170 + $0x80] sm:$0xff] %vm1233, %v1151
      %1251 = vst.msk [vmem:[%s170 + $0x88] sm:$0xff] %vm1233, %v1152
      %1252 = vst.msk [vmem:[%s170 + $0x90] sm:$0xff] %vm1233, %v1153
      %1253 = vst.msk [vmem:[%s170 + $0x98] sm:$0xff] %vm1233, %v1154
      %1254 = vst.msk [vmem:[%s170 + $0xa0] sm:$0xff] %vm1233, %v1155
      %1255 = vst.msk [vmem:[%s170 + $0xa8] sm:$0xff] %vm1233, %v1156
      %1256 = vst.msk [vmem:[%s170 + $0xb0] sm:$0xff] %vm1233, %v1157
      %1257 = vst.msk [vmem:[%s170 + $0xb8] sm:$0xff] %vm1233, %v1158
      %1258 = vst.msk [vmem:[%s170 + $0xc0] sm:$0xff] %vm1233, %v1159
      %1259 = vst.msk [vmem:[%s170 + $0xc8] sm:$0xff] %vm1233, %v1160
      %1260 = vst.msk [vmem:[%s170 + $0xd0] sm:$0xff] %vm1233, %v1161
      %1261 = vst.msk [vmem:[%s170 + $0xd8] sm:$0xff] %vm1233, %v1162
      %1262 = vst.msk [vmem:[%s170 + $0xe0] sm:$0xff] %vm1233, %v1163
      %1263 = vst.msk [vmem:[%s170 + $0xe8] sm:$0xff] %vm1233, %v1164
      %1264 = vst.msk [vmem:[%s170 + $0xf0] sm:$0xff] %vm1233, %v1165
      %1265 = vst.msk [vmem:[%s170 + $0xf8] sm:$0xff] %vm1233, %v1166
      %1266 = vst.msk [vmem:[%s170 + $0x100] sm:$0xff] %vm1233, %v1167
      %1267 = vst.msk [vmem:[%s170 + $0x108] sm:$0xff] %vm1233, %v1168
      %1268 = vst.msk [vmem:[%s170 + $0x110] sm:$0xff] %vm1233, %v1169
      %1269 = vst.msk [vmem:[%s170 + $0x118] sm:$0xff] %vm1233, %v1170
      %1270 = vst.msk [vmem:[%s170 + $0x120] sm:$0xff] %vm1233, %v1171
      %1271 = vst.msk [vmem:[%s170 + $0x128] sm:$0xff] %vm1233, %v1172
      %1272 = vst.msk [vmem:[%s170 + $0x130] sm:$0xff] %vm1233, %v1173
      %1273 = vst.msk [vmem:[%s170 + $0x138] sm:$0xff] %vm1233, %v1174
      %1274 = vst.msk [vmem:[%s170 + $0x140] sm:$0xff] %vm1233, %v1175
      %1275 = vst.msk [vmem:[%s170 + $0x148] sm:$0xff] %vm1233, %v1176
      %1276 = vst.msk [vmem:[%s170 + $0x150] sm:$0xff] %vm1233, %v1177
      %1277 = vst.msk [vmem:[%s170 + $0x158] sm:$0xff] %vm1233, %v1178
      %1278 = vst.msk [vmem:[%s170 + $0x160] sm:$0xff] %vm1233, %v1179
      %1279 = vst.msk [vmem:[%s170 + $0x168] sm:$0xff] %vm1233, %v1180
      %1280 = vst.msk [vmem:[%s170 + $0x170] sm:$0xff] %vm1233, %v1181
      %1281 = vst.msk [vmem:[%s170 + $0x178] sm:$0xff] %vm1233, %v1182
      %1282 = vst.msk [vmem:[%s170 + $0x180] sm:$0xff] %vm1233, %v1183
      %1283 = vst.msk [vmem:[%s170 + $0x188] sm:$0xff] %vm1233, %v1184
      %1284 = vst.msk [vmem:[%s170 + $0x190] sm:$0xff] %vm1233, %v1185
      %1285 = vst.msk [vmem:[%s170 + $0x198] sm:$0xff] %vm1233, %v1186
      %1286 = vst.msk [vmem:[%s170 + $0x1a0] sm:$0xff] %vm1233, %v1187
      %1287 = vst.msk [vmem:[%s170 + $0x1a8] sm:$0xff] %vm1233, %v1188
      %1288 = vst.msk [vmem:[%s170 + $0x1b0] sm:$0xff] %vm1233, %v1189
      %1289 = vst.msk [vmem:[%s170 + $0x1b8] sm:$0xff] %vm1233, %v1190
      %1290 = vst.msk [vmem:[%s170 + $0x1c0] sm:$0xff] %vm1233, %v1191
      %1291 = vst.msk [vmem:[%s170 + $0x1c8] sm:$0xff] %vm1233, %v1192
      %1292 = vst.msk [vmem:[%s170 + $0x1d0] sm:$0xff] %vm1233, %v1193
      %1293 = vst.msk [vmem:[%s170 + $0x1d8] sm:$0xff] %vm1233, %v1194
      %1294 = vst.msk [vmem:[%s170 + $0x1e0] sm:$0xff] %vm1233, %v1195
      %1295 = vst.msk [vmem:[%s170 + $0x1e8] sm:$0xff] %vm1233, %v1196
      %1296 = vst.msk [vmem:[%s170 + $0x1f0] sm:$0xff] %vm1233, %v1197
      %1297 = vst.msk [vmem:[%s170 + $0x1f8] sm:$0xff] %vm1233, %v1198
      %1298 = vst.msk [vmem:[%s170 + $0x200] sm:$0xff] %vm1233, %v1199
      %1299 = vst.msk [vmem:[%s170 + $0x208] sm:$0xff] %vm1233, %v1200
      %1300 = vst.msk [vmem:[%s170 + $0x210] sm:$0xff] %vm1233, %v1201
      %1301 = vst.msk [vmem:[%s170 + $0x218] sm:$0xff] %vm1233, %v1202
      %1302 = vst.msk [vmem:[%s170 + $0x220] sm:$0xff] %vm1233, %v1203
      %1303 = vst.msk [vmem:[%s170 + $0x228] sm:$0xff] %vm1233, %v1204
      %1304 = vst.msk [vmem:[%s170 + $0x230] sm:$0xff] %vm1233, %v1205
      %1305 = vst.msk [vmem:[%s170 + $0x238] sm:$0xff] %vm1233, %v1206
      %1306 = vst.msk [vmem:[%s170 + $0x240] sm:$0xff] %vm1233, %v1207
      %1307 = vst.msk [vmem:[%s170 + $0x248] sm:$0xff] %vm1233, %v1208
      %1308 = vst.msk [vmem:[%s170 + $0x250] sm:$0xff] %vm1233, %v1209
      %1309 = vst.msk [vmem:[%s170 + $0x258] sm:$0xff] %vm1233, %v1210
      %1310 = vst.msk [vmem:[%s170 + $0x260] sm:$0xff] %vm1233, %v1211
      %1311 = vst.msk [vmem:[%s170 + $0x268] sm:$0xff] %vm1233, %v1212
      %1312 = vst.msk [vmem:[%s170 + $0x270] sm:$0xff] %vm1233, %v1213
      %1313 = vst.msk [vmem:[%s170 + $0x278] sm:$0xff] %vm1233, %v1214
      %1314 = vst.msk [vmem:[%s170 + $0x280] sm:$0xff] %vm1233, %v1215
      %1315 = vst.msk [vmem:[%s170 + $0x288] sm:$0xff] %vm1233, %v1216
      %1316 = vst.msk [vmem:[%s170 + $0x290] sm:$0xff] %vm1233, %v1217
      %1317 = vst.msk [vmem:[%s170 + $0x298] sm:$0xff] %vm1233, %v1218
      %1318 = vst.msk [vmem:[%s170 + $0x2a0] sm:$0xff] %vm1233, %v1219
      %1319 = vst.msk [vmem:[%s170 + $0x2a8] sm:$0xff] %vm1233, %v1220
      %1320 = vst.msk [vmem:[%s170 + $0x2b0] sm:$0xff] %vm1233, %v1221
      %1321 = vst.msk [vmem:[%s170 + $0x2b8] sm:$0xff] %vm1233, %v1222
      %1322 = vst.msk [vmem:[%s170 + $0x2c0] sm:$0xff] %vm1233, %v1223
      %1323 = vst.msk [vmem:[%s170 + $0x2c8] sm:$0xff] %vm1233, %v1224
      %1324 = vst.msk [vmem:[%s170 + $0x2d0] sm:$0xff] %vm1233, %v1225
      %1325 = vst.msk [vmem:[%s170 + $0x2d8] sm:$0xff] %vm1233, %v1226
      %1326 = vst.msk [vmem:[%s170 + $0x2e0] sm:$0xff] %vm1233, %v1227
      %1327 = vst.msk [vmem:[%s170 + $0x2e8] sm:$0xff] %vm1233, %v1228
      %1328 = vst.msk [vmem:[%s170 + $0x2f0] sm:$0xff] %vm1233, %v1229
      %1329 = vst.msk [vmem:[%s170 + $0x2f8] sm:$0xff] %vm1233, %v1230
      %1330 = vst.msk [vmem:[%s170 + $0x300] sm:$0xff] %vm1233, %v1231
      %1331 = vst.msk [vmem:[%s170 + $0x308] sm:$0xff] %vm1233, %v1232
      %p1332 = scmp.lt.s32.totalorder %s14, 1
      %s1333 = scalar_select %p1332, %s14, 1
      %s1334 = smul.addr %s1333, 98
      %s1335 = smul.addr %s1334, 8
      %s1336 = scalar_lea.vmem %s3, %s1335
      // Predicated region
      $region33: #{model_forward.3} parent=31 // pred_check
        %p1337 = pneg %p100
      $region34: #{model_forward.3} parent=31 // pred_check_branch
        %1339 = sbr.rel (%p1337) target = $region36
      $region35: #{model_forward.3} parent=31 // pred_region
        _
      $region36: #{model_forward.3} parent=31 // pred_fallthru
        _
    $region32: #{model_forward.3} parent=5 // pred_fallthru
      _
    %p1340 = scmp.le.s32.totalorder 2, %s9
    // Predicated region
    $region37: #{model_forward.3} parent=5 // pred_check
      %p1341 = pneg %p1340
    $region38: #{model_forward.3} parent=5 // pred_check_branch
      %1343 = sbr.rel (%p1341) target = $region40
    $region39: #{model_forward.3} parent=5 // pred_region
      %s1344 = ssub.s32 %s9, 2
      // Predicated region
      $region41: #{model_forward.3} parent=39 // pred_check
        %p1345 = pneg %p106
      $region42: #{model_forward.3} parent=39 // pred_check_branch
        %1347 = sbr.rel (%p1345) target = $region44
      $region43: #{model_forward.3} parent=39 // pred_region
        %p1348 = scmp.lt.s32.totalorder %s15, 1
        %s1349 = scalar_select %p1348, %s15, 1
        %s1350 = smul.addr %s1349, 98
        %s1351 = smul.addr %s1350, 8
        %s1352 = scalar_lea.vmem %s3, %s1351
      $region44: #{model_forward.3} parent=39 // pred_fallthru
        _
    $region40: #{model_forward.3} parent=5 // pred_fallthru
      _
  $region6: #{model_forward.3} parent=0 // loop_footer
    %s13 = sadd.s32 1, %s9
  $region7: #{model_forward.3} parent=0 // loop_footer_branch
    %8 = sbr.rel target = $region3
  $region8: #{model_forward.3} parent=0 // loop_exit
    _

// kernel: model_forward.4
$region0: #{model_forward.4}
  #allocation0 [shape = 'u32[]', space=smem, size = 0x4, offset = 0x4, fixed_abs, tag = 'smem constant byte address 0x4 - core index']
  #allocation1 [shape = 'u32[144,128]{1,0:T(1,128)}', space=vmem, size = 0x12000, scoped, tag = 'internal scratch']
  %s0 = inlined_call_operand.vmem [shape: f32[2,4,196,576], index: 0, kind: input, shape index: {}]
  %s1 = inlined_call_operand.vmem [shape: f32[576,128], index: 1, kind: input, shape index: {}]
  %s2 = inlined_call_operand.vmem [shape: f32[1,128], index: 2, kind: input, shape index: {}]
  %s3 = inlined_call_operand.vmem [shape: bf16[2,196,128], index: 3, kind: output, shape index: {}]
  %s4 = sld [smem:[#allocation0]]
  $region45: #{model_forward.4} parent=0
    _
  %s6 = ssub.s32 1, %s4
  %s7 = scalar_select 0, %s6, %s4
  loop: start=0, step=1, limit=4
  $region2: #{model_forward.4} parent=0 // loop_pre_header
    _
  $region3: #{model_forward.4} parent=0 // loop_header
    %s9 = sphi 0, %s13
    %p10 = scmp.ge.s32.totalorder %s9, 4
    %s19 = sphi 0, %s21
    %s22 = sphi 0, %s19
    %s23 = sphi 0, %s22
    %s39 = sphi 0, %s23
    %s43 = sphi 0, %s43
    %s45 = sphi 0, %s43
    %s46 = sphi 0, %s45
    %s60 = sphi 0, %s46
    %s64 = sphi 0, %s64
    %s66 = sphi 0, %s64
    %s67 = sphi 0, %s66
    %s81 = sphi 0, %s67
    %s87 = sphi 0, %s89
    %s90 = sphi 0, %s87
    %s91 = sphi 0, %s90
    %s107 = sphi 0, %s91
  $region4: #{model_forward.4} parent=0 // loop_header_branch
    %12 = sbr.rel (%p10) target = $region8
  $region5: #{model_forward.4} parent=0 // loop_body
    %s14 = ssub.s32 %s9, 1
    %s15 = ssub.s32 %s9, 2
    %s16 = sadd.s32 %s9, 1
    %s17 = ssub.s32 %s9, %s16
    %p18 = scmp.eq.s32.totalorder %s17, 0
    %s20 = sadd.s32 %s19, 1
    %s21 = scalar_select %p18, %s19, %s20
    %p24 = pneg %p18
    %p25 = scmp.eq.s32.totalorder %s9, 1
    %p26 = por %p24, %p25
    %p27 = scmp.ne.s32.totalorder %s19, %s22
    %p28 = scmp.eq.s32.totalorder %s9, 0
    %p29 = por %p27, %p28
    %p30 = scmp.ne.s32.totalorder %s19, %s22
    %p31 = scmp.eq.s32.totalorder %s14, 1
    %p32 = por %p30, %p31
    %p33 = scmp.ne.s32.totalorder %s22, %s23
    %p34 = scmp.eq.s32.totalorder %s14, 0
    %p35 = por %p33, %p34
    %p36 = scmp.ne.s32.totalorder %s22, %s23
    %p37 = scmp.eq.s32.totalorder %s15, 1
    %p38 = por %p36, %p37
    %p40 = scmp.ne.s32.totalorder %s23, %s39
    %p41 = scmp.eq.s32.totalorder %s15, 0
    %p42 = por %p40, %p41
    %s44 = sadd.s32 %s43, 1
    %p47 = scmp.eq.s32.totalorder %s9, 1
    %p48 = scmp.ne.s32.totalorder %s43, %s45
    %p49 = scmp.eq.s32.totalorder %s9, 0
    %p50 = por %p48, %p49
    %p51 = scmp.ne.s32.totalorder %s43, %s45
    %p52 = scmp.eq.s32.totalorder %s14, 1
    %p53 = por %p51, %p52
    %p54 = scmp.ne.s32.totalorder %s45, %s46
    %p55 = scmp.eq.s32.totalorder %s14, 0
    %p56 = por %p54, %p55
    %p57 = scmp.ne.s32.totalorder %s45, %s46
    %p58 = scmp.eq.s32.totalorder %s15, 1
    %p59 = por %p57, %p58
    %p61 = scmp.ne.s32.totalorder %s46, %s60
    %p62 = scmp.eq.s32.totalorder %s15, 0
    %p63 = por %p61, %p62
    %s65 = sadd.s32 %s64, 1
    %p68 = scmp.eq.s32.totalorder %s9, 1
    %p69 = scmp.ne.s32.totalorder %s64, %s66
    %p70 = scmp.eq.s32.totalorder %s9, 0
    %p71 = por %p69, %p70
    %p72 = scmp.ne.s32.totalorder %s64, %s66
    %p73 = scmp.eq.s32.totalorder %s14, 1
    %p74 = por %p72, %p73
    %p75 = scmp.ne.s32.totalorder %s66, %s67
    %p76 = scmp.eq.s32.totalorder %s14, 0
    %p77 = por %p75, %p76
    %p78 = scmp.ne.s32.totalorder %s66, %s67
    %p79 = scmp.eq.s32.totalorder %s15, 1
    %p80 = por %p78, %p79
    %p82 = scmp.ne.s32.totalorder %s67, %s81
    %p83 = scmp.eq.s32.totalorder %s15, 0
    %p84 = por %p82, %p83
    %s85 = ssub.s32 %s9, %s16
    %p86 = scmp.eq.s32.totalorder %s85, 0
    %s88 = sadd.s32 %s87, 1
    %s89 = scalar_select %p86, %s87, %s88
    %p92 = pneg %p86
    %p93 = scmp.eq.s32.totalorder %s9, 1
    %p94 = por %p92, %p93
    %p95 = scmp.ne.s32.totalorder %s87, %s90
    %p96 = scmp.eq.s32.totalorder %s9, 0
    %p97 = por %p95, %p96
    %p98 = scmp.ne.s32.totalorder %s87, %s90
    %p99 = scmp.eq.s32.totalorder %s14, 1
    %p100 = por %p98, %p99
    %p101 = scmp.ne.s32.totalorder %s90, %s91
    %p102 = scmp.eq.s32.totalorder %s14, 0
    %p103 = por %p101, %p102
    %p104 = scmp.ne.s32.totalorder %s90, %s91
    %p105 = scmp.eq.s32.totalorder %s15, 1
    %p106 = por %p104, %p105
    %p108 = scmp.ne.s32.totalorder %s91, %s107
    %p109 = scmp.eq.s32.totalorder %s15, 0
    %p110 = por %p108, %p109
    %p111 = scmp.le.s32.totalorder 1, %s9
    %p112 = scmp.lt.s32.totalorder %s9, 3
    %p113 = pnand %p111, %p112
    %p114 = pneg %p113
    // Predicated region
    $region9: #{model_forward.4} parent=5 // pred_check
      _
    $region10: #{model_forward.4} parent=5 // pred_check_branch
      %116 = sbr.rel (%p113) target = $region12
    $region11: #{model_forward.4} parent=5 // pred_region
      %s117 = ssub.s32 %s9, 1
      // Predicated region
      $region13: #{model_forward.4} parent=11 // pred_check
        %p118 = pneg %p56
      $region14: #{model_forward.4} parent=11 // pred_check_branch
        %120 = sbr.rel (%p118) target = $region16
      $region15: #{model_forward.4} parent=11 // pred_region
        _
      $region16: #{model_forward.4} parent=11 // pred_fallthru
        _
      // Predicated region
      $region17: #{model_forward.4} parent=11 // pred_check
        %p121 = pneg %p77
      $region18: #{model_forward.4} parent=11 // pred_check_branch
        %123 = sbr.rel (%p121) target = $region20
      $region19: #{model_forward.4} parent=11 // pred_region
        _
      $region20: #{model_forward.4} parent=11 // pred_fallthru
        _
    $region12: #{model_forward.4} parent=5 // pred_fallthru
      _
    %p124 = scmp.lt.s32.totalorder %s9, 2
    // Predicated region
    $region21: #{model_forward.4} parent=5 // pred_check
      %p125 = pneg %p124
    $region22: #{model_forward.4} parent=5 // pred_check_branch
      %127 = sbr.rel (%p125) target = $region24
    $region23: #{model_forward.4} parent=5 // pred_region
      // Predicated region
      $region25: #{model_forward.4} parent=23 // pred_check
        %p128 = pneg %p29
      $region26: #{model_forward.4} parent=23 // pred_check_branch
        %130 = sbr.rel (%p128) target = $region28
      $region27: #{model_forward.4} parent=23 // pred_region
        %p131 = scmp.lt.s32.totalorder %s9, 1
        %s132 = scalar_select %p131, %s9, 1
        %s133 = smul.addr %s132, 500
        %s134 = smul.addr %s133, 8
        %s135 = scalar_lea.vmem %s0, %s134
      $region28: #{model_forward.4} parent=23 // pred_fallthru
        _
    $region24: #{model_forward.4} parent=5 // pred_fallthru
      _
    %p136 = scmp.le.s32.totalorder 1, %s9
    %p137 = scmp.lt.s32.totalorder %s9, 3
    %p138 = pnand %p136, %p137
    %p139 = pneg %p138
    // Predicated region
    $region29: #{model_forward.4} parent=5 // pred_check
      _
    $region30: #{model_forward.4} parent=5 // pred_check_branch
      %141 = sbr.rel (%p138) target = $region32
    $region31: #{model_forward.4} parent=5 // pred_region
      %s142 = ssub.s32 %s9, 1
      %p143 = scmp.lt.s32.totalorder %s14, 1
      %s144 = scalar_select %p143, %s14, 1
      %s145 = smul.addr %s144, 500
      %s146 = smul.addr %s145, 8
      %s147 = scalar_lea.vmem %s0, %s146
      %p148 = pneg %p35
      %p149 = pneg %p32
      %p150 = pneg %p56
      %p151 = pneg %p53
      %p152 = pneg %p77
      %p153 = pneg %p74
      %p154 = pneg %p103
      %p155 = pneg %p100
      %p156 = scmp.lt.s32.totalorder %s14, 1
      %s157 = scalar_select %p156, %s14, 1
      %s158 = smul.addr %s157, 25
      %s159 = smul.addr %s158, 4
      %s160 = scalar_lea.vmem %s3, %s159
      %p161 = scmp.lt.s32.totalorder %s14, 1
      %s162 = scalar_select %p161, %s14, 1
      %s163 = smul.addr %s162, 500
      %s164 = smul.addr %s163, 8
      %s165 = scalar_lea.vmem %s0, %s164
      %p166 = scmp.lt.s32.totalorder %s14, 1
      %s167 = scalar_select %p166, %s14, 1
      %s168 = smul.addr %s167, 25
      %s169 = smul.addr %s168, 4
      %s170 = scalar_lea.vmem %s3, %s169
      %v171 = vld [vmem:[%s165] sm:$0xff]
      %v172 = vld [vmem:[%s165 + $0x8] sm:$0xff]
      %v173 = vld [vmem:[%s165 + $0x10] sm:$0xff]
      %v174 = vld [vmem:[%s165 + $0x18] sm:$0xff]
      %v175 = vld [vmem:[%s165 + $0x20] sm:$0xff]
      %v176 = vld [vmem:[%s165 + $0x28] sm:$0xff]
      %v177 = vld [vmem:[%s165 + $0x30] sm:$0xff]
      %v178 = vld [vmem:[%s165 + $0x38] sm:$0xff]
      %v179 = vld [vmem:[%s165 + $0x40] sm:$0xff]
      %v180 = vld [vmem:[%s165 + $0x48] sm:$0xff]
      %v181 = vld [vmem:[%s165 + $0x50] sm:$0xff]
      %v182 = vld [vmem:[%s165 + $0x58] sm:$0xff]
      %v183 = vld [vmem:[%s165 + $0x60] sm:$0xff]
      %v184 = vld [vmem:[%s165 + $0x68] sm:$0xff]
      %v185 = vld [vmem:[%s165 + $0x70] sm:$0xff]
      %v186 = vld [vmem:[%s165 + $0x78] sm:$0xff]
      %v187 = vld [vmem:[%s165 + $0x80] sm:$0xff]
      %v188 = vld [vmem:[%s165 + $0x88] sm:$0xff]
      %v189 = vld [vmem:[%s165 + $0x90] sm:$0xff]
      %v190 = vld [vmem:[%s165 + $0x98] sm:$0xff]
      %v191 = vld [vmem:[%s165 + $0xa0] sm:$0xff]
      %v192 = vld [vmem:[%s165 + $0xa8] sm:$0xff]
      %v193 = vld [vmem:[%s165 + $0xb0] sm:$0xff]
      %v194 = vld [vmem:[%s165 + $0xb8] sm:$0xff]
      %v195 = vld [vmem:[%s165 + $0xc0] sm:$0xff]
      %v196 = vld [vmem:[%s165 + $0xc8] sm:$0xff]
      %v197 = vld [vmem:[%s165 + $0xd0] sm:$0xff]
      %v198 = vld [vmem:[%s165 + $0xd8] sm:$0xff]
      %v199 = vld [vmem:[%s165 + $0xe0] sm:$0xff]
      %v200 = vld [vmem:[%s165 + $0xe8] sm:$0xff]
      %v201 = vld [vmem:[%s165 + $0xf0] sm:$0xff]
      %v202 = vld [vmem:[%s165 + $0xf8] sm:$0xff]
      %v203 = vld [vmem:[%s165 + $0x100] sm:$0xff]
      %v204 = vld [vmem:[%s165 + $0x108] sm:$0xff]
      %v205 = vld [vmem:[%s165 + $0x110] sm:$0xff]
      %v206 = vld [vmem:[%s165 + $0x118] sm:$0xff]
      %v207 = vld [vmem:[%s165 + $0x120] sm:$0xff]
      %v208 = vld [vmem:[%s165 + $0x128] sm:$0xff]
      %v209 = vld [vmem:[%s165 + $0x130] sm:$0xff]
      %v210 = vld [vmem:[%s165 + $0x138] sm:$0xff]
      %v211 = vld [vmem:[%s165 + $0x140] sm:$0xff]
      %v212 = vld [vmem:[%s165 + $0x148] sm:$0xff]
      %v213 = vld [vmem:[%s165 + $0x150] sm:$0xff]
      %v214 = vld [vmem:[%s165 + $0x158] sm:$0xff]
      %v215 = vld [vmem:[%s165 + $0x160] sm:$0xff]
      %v216 = vld [vmem:[%s165 + $0x168] sm:$0xff]
      %v217 = vld [vmem:[%s165 + $0x170] sm:$0xff]
      %v218 = vld [vmem:[%s165 + $0x178] sm:$0xff]
      %v219 = vld [vmem:[%s165 + $0x180] sm:$0xff]
      %v220 = vld [vmem:[%s165 + $0x188] sm:$0xff]
      %v221 = vld [vmem:[%s165 + $0x190] sm:$0xff]
      %v222 = vld [vmem:[%s165 + $0x198] sm:$0xff]
      %v223 = vld [vmem:[%s165 + $0x1a0] sm:$0xff]
      %v224 = vld [vmem:[%s165 + $0x1a8] sm:$0xff]
      %v225 = vld [vmem:[%s165 + $0x1b0] sm:$0xff]
      %v226 = vld [vmem:[%s165 + $0x1b8] sm:$0xff]
      %v227 = vld [vmem:[%s165 + $0x1c0] sm:$0xff]
      %v228 = vld [vmem:[%s165 + $0x1c8] sm:$0xff]
      %v229 = vld [vmem:[%s165 + $0x1d0] sm:$0xff]
      %v230 = vld [vmem:[%s165 + $0x1d8] sm:$0xff]
      %v231 = vld [vmem:[%s165 + $0x1e0] sm:$0xff]
      %v232 = vld [vmem:[%s165 + $0x1e8] sm:$0xff]
      %v233 = vld [vmem:[%s165 + $0x1f0] sm:$0xff]
      %v234 = vld [vmem:[%s165 + $0x1f8] sm:$0xff]
      %v235 = vld [vmem:[%s165 + $0x200] sm:$0xff]
      %v236 = vld [vmem:[%s165 + $0x208] sm:$0xff]
      %v237 = vld [vmem:[%s165 + $0x210] sm:$0xff]
      %v238 = vld [vmem:[%s165 + $0x218] sm:$0xff]
      %v239 = vld [vmem:[%s165 + $0x220] sm:$0xff]
      %v240 = vld [vmem:[%s165 + $0x228] sm:$0xff]
      %v241 = vld [vmem:[%s165 + $0x230] sm:$0xff]
      %v242 = vld [vmem:[%s165 + $0x238] sm:$0xff]
      %v243 = vld [vmem:[%s165 + $0x240] sm:$0xff]
      %v244 = vld [vmem:[%s165 + $0x248] sm:$0xff]
      %v245 = vld [vmem:[%s165 + $0x250] sm:$0xff]
      %v246 = vld [vmem:[%s165 + $0x258] sm:$0xff]
      %v247 = vld [vmem:[%s165 + $0x260] sm:$0xff]
      %v248 = vld [vmem:[%s165 + $0x268] sm:$0xff]
      %v249 = vld [vmem:[%s165 + $0x270] sm:$0xff]
      %v250 = vld [vmem:[%s165 + $0x278] sm:$0xff]
      %v251 = vld [vmem:[%s165 + $0x280] sm:$0xff]
      %v252 = vld [vmem:[%s165 + $0x288] sm:$0xff]
      %v253 = vld [vmem:[%s165 + $0x290] sm:$0xff]
      %v254 = vld [vmem:[%s165 + $0x298] sm:$0xff]
      %v255 = vld [vmem:[%s165 + $0x2a0] sm:$0xff]
      %v256 = vld [vmem:[%s165 + $0x2a8] sm:$0xff]
      %v257 = vld [vmem:[%s165 + $0x2b0] sm:$0xff]
      %v258 = vld [vmem:[%s165 + $0x2b8] sm:$0xff]
      %v259 = vld [vmem:[%s165 + $0x2c0] sm:$0xff]
      %v260 = vld [vmem:[%s165 + $0x2c8] sm:$0xff]
      %v261 = vld [vmem:[%s165 + $0x2d0] sm:$0xff]
      %v262 = vld [vmem:[%s165 + $0x2d8] sm:$0xff]
      %v263 = vld [vmem:[%s165 + $0x2e0] sm:$0xff]
      %v264 = vld [vmem:[%s165 + $0x2e8] sm:$0xff]
      %v265 = vld [vmem:[%s165 + $0x2f0] sm:$0xff]
      %v266 = vld [vmem:[%s165 + $0x2f8] sm:$0xff]
      %v267 = vld [vmem:[%s165 + $0x300] sm:$0xff]
      %v268 = vld [vmem:[%s165 + $0x308] sm:$0xff]
      %v269 = vld [vmem:[%s165 + $0x310] sm:$0xff]
      %v270 = vld [vmem:[%s165 + $0x318] sm:$0xff]
      %v271 = vld [vmem:[%s165 + $0x320] sm:$0xff]
      %v272 = vld [vmem:[%s165 + $0x328] sm:$0xff]
      %v273 = vld [vmem:[%s165 + $0x330] sm:$0xff]
      %v274 = vld [vmem:[%s165 + $0x338] sm:$0xff]
      %v275 = vld [vmem:[%s165 + $0x340] sm:$0xff]
      %v276 = vld [vmem:[%s165 + $0x348] sm:$0xff]
      %v277 = vld [vmem:[%s165 + $0x350] sm:$0xff]
      %v278 = vld [vmem:[%s165 + $0x358] sm:$0xff]
      %v279 = vld [vmem:[%s165 + $0x360] sm:$0xff]
      %v280 = vld [vmem:[%s165 + $0x368] sm:$0xff]
      %v281 = vld [vmem:[%s165 + $0x370] sm:$0xff]
      %v282 = vld [vmem:[%s165 + $0x378] sm:$0xff]
      %v283 = vld [vmem:[%s165 + $0x380] sm:$0xff]
      %v284 = vld [vmem:[%s165 + $0x388] sm:$0xff]
      %v285 = vld [vmem:[%s165 + $0x390] sm:$0xff]
      %v286 = vld [vmem:[%s165 + $0x398] sm:$0xff]
      %v287 = vld [vmem:[%s165 + $0x3a0] sm:$0xff]
      %v288 = vld [vmem:[%s165 + $0x3a8] sm:$0xff]
      %v289 = vld [vmem:[%s165 + $0x3b0] sm:$0xff]
      %v290 = vld [vmem:[%s165 + $0x3b8] sm:$0xff]
      %v291 = vld [vmem:[%s165 + $0x3c0] sm:$0xf]
      %v292 = vld [vmem:[%s165 + $0x3c8] sm:$0xf]
      %v293 = vld [vmem:[%s165 + $0x3d0] sm:$0xf]
      %v294 = vld [vmem:[%s165 + $0x3d8] sm:$0xf]
      %v295 = vld [vmem:[%s165 + $0x3e0] sm:$0xf]
      %v296 = vld [vmem:[%s1] sm:$0xff]
      %v297 = vld [vmem:[%s1 + $0x8] sm:$0xff]
      %v298 = vld [vmem:[%s1 + $0x10] sm:$0xff]
      %v299 = vld [vmem:[%s1 + $0x18] sm:$0xff]
      %v300 = vld [vmem:[%s1 + $0x20] sm:$0xff]
      %v301 = vld [vmem:[%s1 + $0x28] sm:$0xff]
      %v302 = vld [vmem:[%s1 + $0x30] sm:$0xff]
      %v303 = vld [vmem:[%s1 + $0x38] sm:$0xff]
      %v304 = vld [vmem:[%s1 + $0x40] sm:$0xff]
      %v305 = vld [vmem:[%s1 + $0x48] sm:$0xff]
      %v306 = vld [vmem:[%s1 + $0x50] sm:$0xff]
      %v307 = vld [vmem:[%s1 + $0x58] sm:$0xff]
      %v308 = vld [vmem:[%s1 + $0x60] sm:$0xff]
      %v309 = vld [vmem:[%s1 + $0x68] sm:$0xff]
      %v310 = vld [vmem:[%s1 + $0x70] sm:$0xff]
      %v311 = vld [vmem:[%s1 + $0x78] sm:$0xff]
      %v312 = vld [vmem:[%s1 + $0x80] sm:$0xff]
      %v313 = vld [vmem:[%s1 + $0x88] sm:$0xff]
      %v314 = vld [vmem:[%s1 + $0x90] sm:$0xff]
      %v315 = vld [vmem:[%s1 + $0x98] sm:$0xff]
      %v316 = vld [vmem:[%s1 + $0xa0] sm:$0xff]
      %v317 = vld [vmem:[%s1 + $0xa8] sm:$0xff]
      %v318 = vld [vmem:[%s1 + $0xb0] sm:$0xff]
      %v319 = vld [vmem:[%s1 + $0xb8] sm:$0xff]
      %v320 = vld [vmem:[%s1 + $0xc0] sm:$0xff]
      %v321 = vld [vmem:[%s1 + $0xc8] sm:$0xff]
      %v322 = vld [vmem:[%s1 + $0xd0] sm:$0xff]
      %v323 = vld [vmem:[%s1 + $0xd8] sm:$0xff]
      %v324 = vld [vmem:[%s1 + $0xe0] sm:$0xff]
      %v325 = vld [vmem:[%s1 + $0xe8] sm:$0xff]
      %v326 = vld [vmem:[%s1 + $0xf0] sm:$0xff]
      %v327 = vld [vmem:[%s1 + $0xf8] sm:$0xff]
      %v328 = vld [vmem:[%s1 + $0x100] sm:$0xff]
      %v329 = vld [vmem:[%s1 + $0x108] sm:$0xff]
      %v330 = vld [vmem:[%s1 + $0x110] sm:$0xff]
      %v331 = vld [vmem:[%s1 + $0x118] sm:$0xff]
      %v332 = vld [vmem:[%s1 + $0x120] sm:$0xff]
      %v333 = vld [vmem:[%s1 + $0x128] sm:$0xff]
      %v334 = vld [vmem:[%s1 + $0x130] sm:$0xff]
      %v335 = vld [vmem:[%s1 + $0x138] sm:$0xff]
      %v336 = vld [vmem:[%s1 + $0x140] sm:$0xff]
      %v337 = vld [vmem:[%s1 + $0x148] sm:$0xff]
      %v338 = vld [vmem:[%s1 + $0x150] sm:$0xff]
      %v339 = vld [vmem:[%s1 + $0x158] sm:$0xff]
      %v340 = vld [vmem:[%s1 + $0x160] sm:$0xff]
      %v341 = vld [vmem:[%s1 + $0x168] sm:$0xff]
      %v342 = vld [vmem:[%s1 + $0x170] sm:$0xff]
      %v343 = vld [vmem:[%s1 + $0x178] sm:$0xff]
      %v344 = vld [vmem:[%s1 + $0x180] sm:$0xff]
      %v345 = vld [vmem:[%s1 + $0x188] sm:$0xff]
      %v346 = vld [vmem:[%s1 + $0x190] sm:$0xff]
      %v347 = vld [vmem:[%s1 + $0x198] sm:$0xff]
      %v348 = vld [vmem:[%s1 + $0x1a0] sm:$0xff]
      %v349 = vld [vmem:[%s1 + $0x1a8] sm:$0xff]
      %v350 = vld [vmem:[%s1 + $0x1b0] sm:$0xff]
      %v351 = vld [vmem:[%s1 + $0x1b8] sm:$0xff]
      %v352 = vld [vmem:[%s1 + $0x1c0] sm:$0xff]
      %v353 = vld [vmem:[%s1 + $0x1c8] sm:$0xff]
      %v354 = vld [vmem:[%s1 + $0x1d0] sm:$0xff]
      %v355 = vld [vmem:[%s1 + $0x1d8] sm:$0xff]
      %v356 = vld [vmem:[%s1 + $0x1e0] sm:$0xff]
      %v357 = vld [vmem:[%s1 + $0x1e8] sm:$0xff]
      %v358 = vld [vmem:[%s1 + $0x1f0] sm:$0xff]
      %v359 = vld [vmem:[%s1 + $0x1f8] sm:$0xff]
      %v360 = vld [vmem:[%s1 + $0x200] sm:$0xff]
      %v361 = vld [vmem:[%s1 + $0x208] sm:$0xff]
      %v362 = vld [vmem:[%s1 + $0x210] sm:$0xff]
      %v363 = vld [vmem:[%s1 + $0x218] sm:$0xff]
      %v364 = vld [vmem:[%s1 + $0x220] sm:$0xff]
      %v365 = vld [vmem:[%s1 + $0x228] sm:$0xff]
      %v366 = vld [vmem:[%s1 + $0x230] sm:$0xff]
      %v367 = vld [vmem:[%s1 + $0x238] sm:$0xff]
      %vm368 = vcmask 523264
      %v370 = vsel %vm368, %v175, 0
      %v373 = vsel %vm368, %v180, 0
      %v376 = vsel %vm368, %v185, 0
      %v379 = vsel %vm368, %v190, 0
      %v382 = vsel %vm368, %v195, 0
      %v385 = vsel %vm368, %v200, 0
      %v388 = vsel %vm368, %v205, 0
      %v391 = vsel %vm368, %v210, 0
      %v394 = vsel %vm368, %v215, 0
      %v397 = vsel %vm368, %v220, 0
      %v400 = vsel %vm368, %v225, 0
      %v403 = vsel %vm368, %v230, 0
      %v406 = vsel %vm368, %v235, 0
      %v409 = vsel %vm368, %v240, 0
      %v412 = vsel %vm368, %v245, 0
      %v415 = vsel %vm368, %v250, 0
      %v418 = vsel %vm368, %v255, 0
      %v421 = vsel %vm368, %v260, 0
      %v424 = vsel %vm368, %v265, 0
      %v427 = vsel %vm368, %v270, 0
      %v430 = vsel %vm368, %v275, 0
      %v433 = vsel %vm368, %v280, 0
      %v436 = vsel %vm368, %v285, 0
      %v439 = vsel %vm368, %v290, 0
      %v442 = vsel %vm368, %v295, 0
      %444 = vmatprep.subr.mxu0 0.0
      %445 = vmatpush1.msra.mxu0 %v311
      %446 = vmatprep.subr.mxu0 0.0
      %447 = vmatpush1.msra.mxu0 %v310
      %448 = vmatprep.subr.mxu0 0.0
      %449 = vmatpush1.msra.mxu0 %v309
      %450 = vmatprep.subr.mxu0 0.0
      %451 = vmatpush1.msra.mxu0 %v308
      %452 = vmatprep.subr.mxu0 0.0
      %453 = vmatpush1.msra.mxu0 %v307
      %454 = vmatprep.subr.mxu0 0.0
      %455 = vmatpush1.msra.mxu0 %v306
      %456 = vmatprep.subr.mxu0 0.0
      %457 = vmatpush1.msra.mxu0 %v305
      %458 = vmatprep.subr.mxu0 0.0
      %459 = vmatpush1.msra.mxu0 %v304
      %460 = vmatprep.subr.mxu0 0.0
      %461 = vmatpush1.msra.mxu0 %v303
      %462 = vmatprep.subr.mxu0 0.0
      %463 = vmatpush1.msra.mxu0 %v302
      %464 = vmatprep.subr.mxu0 0.0
      %465 = vmatpush1.msra.mxu0 %v301
      %466 = vmatprep.subr.mxu0 0.0
      %467 = vmatpush1.msra.mxu0 %v300
      %468 = vmatprep.subr.mxu0 0.0
      %469 = vmatpush1.msra.mxu0 %v299
      %470 = vmatprep.subr.mxu0 0.0
      %471 = vmatpush1.msra.mxu0 %v298
      %472 = vmatprep.subr.mxu0 0.0
      %473 = vmatpush1.msra.mxu0 %v297
      %474 = vmatprep.subr.mxu0 0.0
      %475 = vmatpush1.msra.mxu0 %v296
      %476 = vmatprep.subr.mxu0 0.0
      %477 = vmatpush2.msra.mxu0 %v327
      %478 = vmatprep.subr.mxu0 0.0
      %479 = vmatpush2.msra.mxu0 %v326
      %480 = vmatprep.subr.mxu0 0.0
      %481 = vmatpush2.msra.mxu0 %v325
      %482 = vmatprep.subr.mxu0 0.0
      %483 = vmatpush2.msra.mxu0 %v324
      %484 = vmatprep.subr.mxu0 0.0
      %485 = vmatpush2.msra.mxu0 %v323
      %486 = vmatprep.subr.mxu0 0.0
      %487 = vmatpush2.msra.mxu0 %v322
      %488 = vmatprep.subr.mxu0 0.0
      %489 = vmatpush2.msra.mxu0 %v321
      %490 = vmatprep.subr.mxu0 0.0
      %491 = vmatpush2.msra.mxu0 %v320
      %492 = vmatprep.subr.mxu0 0.0
      %493 = vmatpush2.msra.mxu0 %v319
      %494 = vmatprep.subr.mxu0 0.0
      %495 = vmatpush2.msra.mxu0 %v318
      %496 = vmatprep.subr.mxu0 0.0
      %497 = vmatpush2.msra.mxu0 %v317
      %498 = vmatprep.subr.mxu0 0.0
      %499 = vmatpush2.msra.mxu0 %v316
      %500 = vmatprep.subr.mxu0 0.0
      %501 = vmatpush2.msra.mxu0 %v315
      %502 = vmatprep.subr.mxu0 0.0
      %503 = vmatpush2.msra.mxu0 %v314
      %504 = vmatprep.subr.mxu0 0.0
      %505 = vmatpush2.msra.mxu0 %v313
      %506 = vmatprep.subr.mxu0 0.0
      %507 = vmatpush2.msra.mxu0 %v312
      %508 = vmatprep.mubr.f32.mxu0 %v172
      %509 = vmatmul.mubr.f32.gmra.mxu0 %v171
      %v510 = vpop.f32.mrf.mxu0
      %v511 = vadd.f32 0.0, %v510
      %v512 = vpop.f32.mrf.mxu0
      %513 = vmatprep.mubr.f32.mxu0 %v177
      %514 = vmatmul.mubr.f32.gmra.mxu0 %v176
      %v515 = vpop.f32.mrf.mxu0
      %v516 = vadd.f32 0.0, %v515
      %v517 = vpop.f32.mrf.mxu0
      %518 = vmatprep.mubr.f32.mxu0 %v182
      %519 = vmatmul.mubr.f32.gmra.mxu0 %v181
      %v520 = vpop.f32.mrf.mxu0
      %v521 = vadd.f32 0.0, %v520
      %v522 = vpop.f32.mrf.mxu0
      %523 = vmatprep.mubr.f32.mxu0 %v187
      %524 = vmatmul.mubr.f32.gmra.mxu0 %v186
      %v525 = vpop.f32.mrf.mxu0
      %v526 = vadd.f32 0.0, %v525
      %v527 = vpop.f32.mrf.mxu0
      %528 = vmatprep.mubr.f32.mxu0 %v192
      %529 = vmatmul.mubr.f32.gmra.mxu0 %v191
      %v530 = vpop.f32.mrf.mxu0
      %v531 = vadd.f32 0.0, %v530
      %v532 = vpop.f32.mrf.mxu0
      %533 = vmatprep.mubr.f32.mxu0 %v197
      %534 = vmatmul.mubr.f32.gmra.mxu0 %v196
      %v535 = vpop.f32.mrf.mxu0
      %v536 = vadd.f32 0.0, %v535
      %v537 = vpop.f32.mrf.mxu0
      %538 = vmatprep.mubr.f32.mxu0 %v202
      %539 = vmatmul.mubr.f32.gmra.mxu0 %v201
      %v540 = vpop.f32.mrf.mxu0
      %v541 = vadd.f32 0.0, %v540
      %v542 = vpop.f32.mrf.mxu0
      %543 = vmatprep.mubr.f32.mxu0 %v207
      %544 = vmatmul.mubr.f32.gmra.mxu0 %v206
      %v545 = vpop.f32.mrf.mxu0
      %v546 = vadd.f32 0.0, %v545
      %v547 = vpop.f32.mrf.mxu0
      %548 = vmatprep.mubr.f32.mxu0 %v212
      %549 = vmatmul.mubr.f32.gmra.mxu0 %v211
      %v550 = vpop.f32.mrf.mxu0
      %v551 = vadd.f32 0.0, %v550
      %v552 = vpop.f32.mrf.mxu0
      %553 = vmatprep.mubr.f32.mxu0 %v217
      %554 = vmatmul.mubr.f32.gmra.mxu0 %v216
      %v555 = vpop.f32.mrf.mxu0
      %v556 = vadd.f32 0.0, %v555
      %v557 = vpop.f32.mrf.mxu0
      %558 = vmatprep.mubr.f32.mxu0 %v222
      %559 = vmatmul.mubr.f32.gmra.mxu0 %v221
      %v560 = vpop.f32.mrf.mxu0
      %v561 = vadd.f32 0.0, %v560
      %v562 = vpop.f32.mrf.mxu0
      %563 = vmatprep.mubr.f32.mxu0 %v227
      %564 = vmatmul.mubr.f32.gmra.mxu0 %v226
      %v565 = vpop.f32.mrf.mxu0
      %v566 = vadd.f32 0.0, %v565
      %v567 = vpop.f32.mrf.mxu0
      %568 = vmatprep.mubr.f32.mxu0 %v232
      %569 = vmatmul.mubr.f32.gmra.mxu0 %v231
      %v570 = vpop.f32.mrf.mxu0
      %v571 = vadd.f32 0.0, %v570
      %v572 = vpop.f32.mrf.mxu0
      %573 = vmatprep.mubr.f32.mxu0 %v237
      %574 = vmatmul.mubr.f32.gmra.mxu0 %v236
      %v575 = vpop.f32.mrf.mxu0
      %v576 = vadd.f32 0.0, %v575
      %v577 = vpop.f32.mrf.mxu0
      %578 = vmatprep.mubr.f32.mxu0 %v242
      %579 = vmatmul.mubr.f32.gmra.mxu0 %v241
      %v580 = vpop.f32.mrf.mxu0
      %v581 = vadd.f32 0.0, %v580
      %v582 = vpop.f32.mrf.mxu0
      %583 = vmatprep.mubr.f32.mxu0 %v247
      %584 = vmatmul.mubr.f32.gmra.mxu0 %v246
      %v585 = vpop.f32.mrf.mxu0
      %v586 = vadd.f32 0.0, %v585
      %v587 = vpop.f32.mrf.mxu0
      %588 = vmatprep.mubr.f32.mxu0 %v252
      %589 = vmatmul.mubr.f32.gmra.mxu0 %v251
      %v590 = vpop.f32.mrf.mxu0
      %v591 = vadd.f32 0.0, %v590
      %v592 = vpop.f32.mrf.mxu0
      %593 = vmatprep.mubr.f32.mxu0 %v257
      %594 = vmatmul.mubr.f32.gmra.mxu0 %v256
      %v595 = vpop.f32.mrf.mxu0
      %v596 = vadd.f32 0.0, %v595
      %v597 = vpop.f32.mrf.mxu0
      %598 = vmatprep.mubr.f32.mxu0 %v262
      %599 = vmatmul.mubr.f32.gmra.mxu0 %v261
      %v600 = vpop.f32.mrf.mxu0
      %v601 = vadd.f32 0.0, %v600
      %v602 = vpop.f32.mrf.mxu0
      %603 = vmatprep.mubr.f32.mxu0 %v267
      %604 = vmatmul.mubr.f32.gmra.mxu0 %v266
      %v605 = vpop.f32.mrf.mxu0
      %v606 = vadd.f32 0.0, %v605
      %v607 = vpop.f32.mrf.mxu0
      %608 = vmatprep.mubr.f32.mxu0 %v272
      %609 = vmatmul.mubr.f32.gmra.mxu0 %v271
      %v610 = vpop.f32.mrf.mxu0
      %v611 = vadd.f32 0.0, %v610
      %v612 = vpop.f32.mrf.mxu0
      %613 = vmatprep.mubr.f32.mxu0 %v277
      %614 = vmatmul.mubr.f32.gmra.mxu0 %v276
      %v615 = vpop.f32.mrf.mxu0
      %v616 = vadd.f32 0.0, %v615
      %v617 = vpop.f32.mrf.mxu0
      %618 = vmatprep.mubr.f32.mxu0 %v282
      %619 = vmatmul.mubr.f32.gmra.mxu0 %v281
      %v620 = vpop.f32.mrf.mxu0
      %v621 = vadd.f32 0.0, %v620
      %v622 = vpop.f32.mrf.mxu0
      %623 = vmatprep.mubr.f32.mxu0 %v287
      %624 = vmatmul.mubr.f32.gmra.mxu0 %v286
      %v625 = vpop.f32.mrf.mxu0
      %v626 = vadd.f32 0.0, %v625
      %v627 = vpop.f32.mrf.mxu0
      %628 = vmatprep.mubr.f32.mxu0 %v292
      %629 = vmatmul.mubr.f32.gmra.mxu0 %v291
      %v630 = vpop.f32.mrf.mxu0
      %v631 = vadd.f32 0.0, %v630
      %v632 = vpop.f32.mrf.mxu0
      %633 = vdwg.mxu0
      %634 = vmatprep.subr.mxu0 0.0
      %635 = vmatpush1.msra.mxu0 %v343
      %636 = vmatprep.subr.mxu0 0.0
      %637 = vmatpush1.msra.mxu0 %v342
      %638 = vmatprep.subr.mxu0 0.0
      %639 = vmatpush1.msra.mxu0 %v341
      %640 = vmatprep.subr.mxu0 0.0
      %641 = vmatpush1.msra.mxu0 %v340
      %642 = vmatprep.subr.mxu0 0.0
      %643 = vmatpush1.msra.mxu0 %v339
      %644 = vmatprep.subr.mxu0 0.0
      %645 = vmatpush1.msra.mxu0 %v338
      %646 = vmatprep.subr.mxu0 0.0
      %647 = vmatpush1.msra.mxu0 %v337
      %648 = vmatprep.subr.mxu0 0.0
      %649 = vmatpush1.msra.mxu0 %v336
      %650 = vmatprep.subr.mxu0 0.0
      %651 = vmatpush1.msra.mxu0 %v335
      %652 = vmatprep.subr.mxu0 0.0
      %653 = vmatpush1.msra.mxu0 %v334
      %654 = vmatprep.subr.mxu0 0.0
      %655 = vmatpush1.msra.mxu0 %v333
      %656 = vmatprep.subr.mxu0 0.0
      %657 = vmatpush1.msra.mxu0 %v332
      %658 = vmatprep.subr.mxu0 0.0
      %659 = vmatpush1.msra.mxu0 %v331
      %660 = vmatprep.subr.mxu0 0.0
      %661 = vmatpush1.msra.mxu0 %v330
      %662 = vmatprep.subr.mxu0 0.0
      %663 = vmatpush1.msra.mxu0 %v329
      %664 = vmatprep.subr.mxu0 0.0
      %665 = vmatpush1.msra.mxu0 %v328
      %666 = vmatprep.subr.mxu0 0.0
      %667 = vmatpush2.msra.mxu0 %v359
      %668 = vmatprep.subr.mxu0 0.0
      %669 = vmatpush2.msra.mxu0 %v358
      %670 = vmatprep.subr.mxu0 0.0
      %671 = vmatpush2.msra.mxu0 %v357
      %672 = vmatprep.subr.mxu0 0.0
      %673 = vmatpush2.msra.mxu0 %v356
      %674 = vmatprep.subr.mxu0 0.0
      %675 = vmatpush2.msra.mxu0 %v355
      %676 = vmatprep.subr.mxu0 0.0
      %677 = vmatpush2.msra.mxu0 %v354
      %678 = vmatprep.subr.mxu0 0.0
      %679 = vmatpush2.msra.mxu0 %v353
      %680 = vmatprep.subr.mxu0 0.0
      %681 = vmatpush2.msra.mxu0 %v352
      %682 = vmatprep.subr.mxu0 0.0
      %683 = vmatpush2.msra.mxu0 %v351
      %684 = vmatprep.subr.mxu0 0.0
      %685 = vmatpush2.msra.mxu0 %v350
      %686 = vmatprep.subr.mxu0 0.0
      %687 = vmatpush2.msra.mxu0 %v349
      %688 = vmatprep.subr.mxu0 0.0
      %689 = vmatpush2.msra.mxu0 %v348
      %690 = vmatprep.subr.mxu0 0.0
      %691 = vmatpush2.msra.mxu0 %v347
      %692 = vmatprep.subr.mxu0 0.0
      %693 = vmatpush2.msra.mxu0 %v346
      %694 = vmatprep.subr.mxu0 0.0
      %695 = vmatpush2.msra.mxu0 %v345
      %696 = vmatprep.subr.mxu0 0.0
      %697 = vmatpush2.msra.mxu0 %v344
      %698 = vmatprep.mubr.f32.mxu0 %v174
      %699 = vmatmul.mubr.f32.gmra.mxu0 %v173
      %v700 = vpop.f32.mrf.mxu0
      %v701 = vadd.f32 %v511, %v700
      %v702 = vpop.f32.mrf.mxu0
      %703 = vmatprep.mubr.f32.mxu0 %v179
      %704 = vmatmul.mubr.f32.gmra.mxu0 %v178
      %v705 = vpop.f32.mrf.mxu0
      %v706 = vadd.f32 %v516, %v705
      %v707 = vpop.f32.mrf.mxu0
      %708 = vmatprep.mubr.f32.mxu0 %v184
      %709 = vmatmul.mubr.f32.gmra.mxu0 %v183
      %v710 = vpop.f32.mrf.mxu0
      %v711 = vadd.f32 %v521, %v710
      %v712 = vpop.f32.mrf.mxu0
      %713 = vmatprep.mubr.f32.mxu0 %v189
      %714 = vmatmul.mubr.f32.gmra.mxu0 %v188
      %v715 = vpop.f32.mrf.mxu0
      %v716 = vadd.f32 %v526, %v715
      %v717 = vpop.f32.mrf.mxu0
      %718 = vmatprep.mubr.f32.mxu0 %v194
      %719 = vmatmul.mubr.f32.gmra.mxu0 %v193
      %v720 = vpop.f32.mrf.mxu0
      %v721 = vadd.f32 %v531, %v720
      %v722 = vpop.f32.mrf.mxu0
      %723 = vmatprep.mubr.f32.mxu0 %v199
      %724 = vmatmul.mubr.f32.gmra.mxu0 %v198
      %v725 = vpop.f32.mrf.mxu0
      %v726 = vadd.f32 %v536, %v725
      %v727 = vpop.f32.mrf.mxu0
      %728 = vmatprep.mubr.f32.mxu0 %v204
      %729 = vmatmul.mubr.f32.gmra.mxu0 %v203
      %v730 = vpop.f32.mrf.mxu0
      %v731 = vadd.f32 %v541, %v730
      %v732 = vpop.f32.mrf.mxu0
      %733 = vmatprep.mubr.f32.mxu0 %v209
      %734 = vmatmul.mubr.f32.gmra.mxu0 %v208
      %v735 = vpop.f32.mrf.mxu0
      %v736 = vadd.f32 %v546, %v735
      %v737 = vpop.f32.mrf.mxu0
      %738 = vmatprep.mubr.f32.mxu0 %v214
      %739 = vmatmul.mubr.f32.gmra.mxu0 %v213
      %v740 = vpop.f32.mrf.mxu0
      %v741 = vadd.f32 %v551, %v740
      %v742 = vpop.f32.mrf.mxu0
      %743 = vmatprep.mubr.f32.mxu0 %v219
      %744 = vmatmul.mubr.f32.gmra.mxu0 %v218
      %v745 = vpop.f32.mrf.mxu0
      %v746 = vadd.f32 %v556, %v745
      %v747 = vpop.f32.mrf.mxu0
      %748 = vmatprep.mubr.f32.mxu0 %v224
      %749 = vmatmul.mubr.f32.gmra.mxu0 %v223
      %v750 = vpop.f32.mrf.mxu0
      %v751 = vadd.f32 %v561, %v750
      %v752 = vpop.f32.mrf.mxu0
      %753 = vmatprep.mubr.f32.mxu0 %v229
      %754 = vmatmul.mubr.f32.gmra.mxu0 %v228
      %v755 = vpop.f32.mrf.mxu0
      %v756 = vadd.f32 %v566, %v755
      %v757 = vpop.f32.mrf.mxu0
      %758 = vmatprep.mubr.f32.mxu0 %v234
      %759 = vmatmul.mubr.f32.gmra.mxu0 %v233
      %v760 = vpop.f32.mrf.mxu0
      %v761 = vadd.f32 %v571, %v760
      %v762 = vpop.f32.mrf.mxu0
      %763 = vmatprep.mubr.f32.mxu0 %v239
      %764 = vmatmul.mubr.f32.gmra.mxu0 %v238
      %v765 = vpop.f32.mrf.mxu0
      %v766 = vadd.f32 %v576, %v765
      %v767 = vpop.f32.mrf.mxu0
      %768 = vmatprep.mubr.f32.mxu0 %v244
      %769 = vmatmul.mubr.f32.gmra.mxu0 %v243
      %v770 = vpop.f32.mrf.mxu0
      %v771 = vadd.f32 %v581, %v770
      %v772 = vpop.f32.mrf.mxu0
      %773 = vmatprep.mubr.f32.mxu0 %v249
      %774 = vmatmul.mubr.f32.gmra.mxu0 %v248
      %v775 = vpop.f32.mrf.mxu0
      %v776 = vadd.f32 %v586, %v775
      %v777 = vpop.f32.mrf.mxu0
      %778 = vmatprep.mubr.f32.mxu0 %v254
      %779 = vmatmul.mubr.f32.gmra.mxu0 %v253
      %v780 = vpop.f32.mrf.mxu0
      %v781 = vadd.f32 %v591, %v780
      %v782 = vpop.f32.mrf.mxu0
      %783 = vmatprep.mubr.f32.mxu0 %v259
      %784 = vmatmul.mubr.f32.gmra.mxu0 %v258
      %v785 = vpop.f32.mrf.mxu0
      %v786 = vadd.f32 %v596, %v785
      %v787 = vpop.f32.mrf.mxu0
      %788 = vmatprep.mubr.f32.mxu0 %v264
      %789 = vmatmul.mubr.f32.gmra.mxu0 %v263
      %v790 = vpop.f32.mrf.mxu0
      %v791 = vadd.f32 %v601, %v790
      %v792 = vpop.f32.mrf.mxu0
      %793 = vmatprep.mubr.f32.mxu0 %v269
      %794 = vmatmul.mubr.f32.gmra.mxu0 %v268
      %v795 = vpop.f32.mrf.mxu0
      %v796 = vadd.f32 %v606, %v795
      %v797 = vpop.f32.mrf.mxu0
      %798 = vmatprep.mubr.f32.mxu0 %v274
      %799 = vmatmul.mubr.f32.gmra.mxu0 %v273
      %v800 = vpop.f32.mrf.mxu0
      %v801 = vadd.f32 %v611, %v800
      %v802 = vpop.f32.mrf.mxu0
      %803 = vmatprep.mubr.f32.mxu0 %v279
      %804 = vmatmul.mubr.f32.gmra.mxu0 %v278
      %v805 = vpop.f32.mrf.mxu0
      %v806 = vadd.f32 %v616, %v805
      %v807 = vpop.f32.mrf.mxu0
      %808 = vmatprep.mubr.f32.mxu0 %v284
      %809 = vmatmul.mubr.f32.gmra.mxu0 %v283
      %v810 = vpop.f32.mrf.mxu0
      %v811 = vadd.f32 %v621, %v810
      %v812 = vpop.f32.mrf.mxu0
      %813 = vmatprep.mubr.f32.mxu0 %v289
      %814 = vmatmul.mubr.f32.gmra.mxu0 %v288
      %v815 = vpop.f32.mrf.mxu0
      %v816 = vadd.f32 %v626, %v815
      %v817 = vpop.f32.mrf.mxu0
      %818 = vmatprep.mubr.f32.mxu0 %v294
      %819 = vmatmul.mubr.f32.gmra.mxu0 %v293
      %v820 = vpop.f32.mrf.mxu0
      %v821 = vadd.f32 %v631, %v820
      %v822 = vpop.f32.mrf.mxu0
      %823 = vdwg.mxu0
      %824 = vmatprep.subr.mxu0 0.0
      %825 = vmatpush1.msra.mxu0 0.0
      %826 = vmatprep.subr.mxu0 0.0
      %827 = vmatpush1.msra.mxu0 0.0
      %828 = vmatprep.subr.mxu0 0.0
      %829 = vmatpush1.msra.mxu0 0.0
      %830 = vmatprep.subr.mxu0 0.0
      %831 = vmatpush1.msra.mxu0 0.0
      %832 = vmatprep.subr.mxu0 0.0
      %833 = vmatpush1.msra.mxu0 0.0
      %834 = vmatprep.subr.mxu0 0.0
      %835 = vmatpush1.msra.mxu0 0.0
      %836 = vmatprep.subr.mxu0 0.0
      %837 = vmatpush1.msra.mxu0 0.0
      %838 = vmatprep.subr.mxu0 0.0
      %839 = vmatpush1.msra.mxu0 0.0
      %840 = vmatprep.subr.mxu0 0.0
      %841 = vmatpush1.msra.mxu0 %v367
      %842 = vmatprep.subr.mxu0 0.0
      %843 = vmatpush1.msra.mxu0 %v366
      %844 = vmatprep.subr.mxu0 0.0
      %845 = vmatpush1.msra.mxu0 %v365
      %846 = vmatprep.subr.mxu0 0.0
      %847 = vmatpush1.msra.mxu0 %v364
      %848 = vmatprep.subr.mxu0 0.0
      %849 = vmatpush1.msra.mxu0 %v363
      %850 = vmatprep.subr.mxu0 0.0
      %851 = vmatpush1.msra.mxu0 %v362
      %852 = vmatprep.subr.mxu0 0.0
      %853 = vmatpush1.msra.mxu0 %v361
      %854 = vmatprep.subr.mxu0 0.0
      %855 = vmatpush1.msra.mxu0 %v360
      %856 = vmatprep.subr.mxu0 0.0
      %857 = vmatpush2.msra.mxu0 0.0
      %858 = vmatprep.subr.mxu0 0.0
      %859 = vmatpush2.msra.mxu0 0.0
      %860 = vmatprep.subr.mxu0 0.0
      %861 = vmatpush2.msra.mxu0 0.0
      %862 = vmatprep.subr.mxu0 0.0
      %863 = vmatpush2.msra.mxu0 0.0
      %864 = vmatprep.subr.mxu0 0.0
      %865 = vmatpush2.msra.mxu0 0.0
      %866 = vmatprep.subr.mxu0 0.0
      %867 = vmatpush2.msra.mxu0 0.0
      %868 = vmatprep.subr.mxu0 0.0
      %869 = vmatpush2.msra.mxu0 0.0
      %870 = vmatprep.subr.mxu0 0.0
      %871 = vmatpush2.msra.mxu0 0.0
      %872 = vmatprep.subr.mxu0 0.0
      %873 = vmatpush2.msra.mxu0 0.0
      %874 = vmatprep.subr.mxu0 0.0
      %875 = vmatpush2.msra.mxu0 0.0
      %876 = vmatprep.subr.mxu0 0.0
      %877 = vmatpush2.msra.mxu0 0.0
      %878 = vmatprep.subr.mxu0 0.0
      %879 = vmatpush2.msra.mxu0 0.0
      %880 = vmatprep.subr.mxu0 0.0
      %881 = vmatpush2.msra.mxu0 0.0
      %882 = vmatprep.subr.mxu0 0.0
      %883 = vmatpush2.msra.mxu0 0.0
      %884 = vmatprep.subr.mxu0 0.0
      %885 = vmatpush2.msra.mxu0 0.0
      %886 = vmatprep.subr.mxu0 0.0
      %887 = vmatpush2.msra.mxu0 0.0
      %888 = vmatprep.mubr.f32.mxu0 0.0
      %889 = vmatmul.mubr.f32.gmra.mxu0 %v370
      %v890 = vpop.f32.mrf.mxu0
      %v891 = vadd.f32 %v701, %v890
      %v892 = vpop.f32.mrf.mxu0
      %893 = vmatprep.mubr.f32.mxu0 0.0
      %894 = vmatmul.mubr.f32.gmra.mxu0 %v373
      %v895 = vpop.f32.mrf.mxu0
      %v896 = vadd.f32 %v706, %v895
      %v897 = vpop.f32.mrf.mxu0
      %898 = vmatprep.mubr.f32.mxu0 0.0
      %899 = vmatmul.mubr.f32.gmra.mxu0 %v376
      %v900 = vpop.f32.mrf.mxu0
      %v901 = vadd.f32 %v711, %v900
      %v902 = vpop.f32.mrf.mxu0
      %903 = vmatprep.mubr.f32.mxu0 0.0
      %904 = vmatmul.mubr.f32.gmra.mxu0 %v379
      %v905 = vpop.f32.mrf.mxu0
      %v906 = vadd.f32 %v716, %v905
      %v907 = vpop.f32.mrf.mxu0
      %908 = vmatprep.mubr.f32.mxu0 0.0
      %909 = vmatmul.mubr.f32.gmra.mxu0 %v382
      %v910 = vpop.f32.mrf.mxu0
      %v911 = vadd.f32 %v721, %v910
      %v912 = vpop.f32.mrf.mxu0
      %913 = vmatprep.mubr.f32.mxu0 0.0
      %914 = vmatmul.mubr.f32.gmra.mxu0 %v385
      %v915 = vpop.f32.mrf.mxu0
      %v916 = vadd.f32 %v726, %v915
      %v917 = vpop.f32.mrf.mxu0
      %918 = vmatprep.mubr.f32.mxu0 0.0
      %919 = vmatmul.mubr.f32.gmra.mxu0 %v388
      %v920 = vpop.f32.mrf.mxu0
      %v921 = vadd.f32 %v731, %v920
      %v922 = vpop.f32.mrf.mxu0
      %923 = vmatprep.mubr.f32.mxu0 0.0
      %924 = vmatmul.mubr.f32.gmra.mxu0 %v391
      %v925 = vpop.f32.mrf.mxu0
      %v926 = vadd.f32 %v736, %v925
      %v927 = vpop.f32.mrf.mxu0
      %928 = vmatprep.mubr.f32.mxu0 0.0
      %929 = vmatmul.mubr.f32.gmra.mxu0 %v394
      %v930 = vpop.f32.mrf.mxu0
      %v931 = vadd.f32 %v741, %v930
      %v932 = vpop.f32.mrf.mxu0
      %933 = vmatprep.mubr.f32.mxu0 0.0
      %934 = vmatmul.mubr.f32.gmra.mxu0 %v397
      %v935 = vpop.f32.mrf.mxu0
      %v936 = vadd.f32 %v746, %v935
      %v937 = vpop.f32.mrf.mxu0
      %938 = vmatprep.mubr.f32.mxu0 0.0
      %939 = vmatmul.mubr.f32.gmra.mxu0 %v400
      %v940 = vpop.f32.mrf.mxu0
      %v941 = vadd.f32 %v751, %v940
      %v942 = vpop.f32.mrf.mxu0
      %943 = vmatprep.mubr.f32.mxu0 0.0
      %944 = vmatmul.mubr.f32.gmra.mxu0 %v403
      %v945 = vpop.f32.mrf.mxu0
      %v946 = vadd.f32 %v756, %v945
      %v947 = vpop.f32.mrf.mxu0
      %948 = vmatprep.mubr.f32.mxu0 0.0
      %949 = vmatmul.mubr.f32.gmra.mxu0 %v406
      %v950 = vpop.f32.mrf.mxu0
      %v951 = vadd.f32 %v761, %v950
      %v952 = vpop.f32.mrf.mxu0
      %953 = vmatprep.mubr.f32.mxu0 0.0
      %954 = vmatmul.mubr.f32.gmra.mxu0 %v409
      %v955 = vpop.f32.mrf.mxu0
      %v956 = vadd.f32 %v766, %v955
      %v957 = vpop.f32.mrf.mxu0
      %958 = vmatprep.mubr.f32.mxu0 0.0
      %959 = vmatmul.mubr.f32.gmra.mxu0 %v412
      %v960 = vpop.f32.mrf.mxu0
      %v961 = vadd.f32 %v771, %v960
      %v962 = vpop.f32.mrf.mxu0
      %963 = vmatprep.mubr.f32.mxu0 0.0
      %964 = vmatmul.mubr.f32.gmra.mxu0 %v415
      %v965 = vpop.f32.mrf.mxu0
      %v966 = vadd.f32 %v776, %v965
      %v967 = vpop.f32.mrf.mxu0
      %968 = vmatprep.mubr.f32.mxu0 0.0
      %969 = vmatmul.mubr.f32.gmra.mxu0 %v418
      %v970 = vpop.f32.mrf.mxu0
      %v971 = vadd.f32 %v781, %v970
      %v972 = vpop.f32.mrf.mxu0
      %973 = vmatprep.mubr.f32.mxu0 0.0
      %974 = vmatmul.mubr.f32.gmra.mxu0 %v421
      %v975 = vpop.f32.mrf.mxu0
      %v976 = vadd.f32 %v786, %v975
      %v977 = vpop.f32.mrf.mxu0
      %978 = vmatprep.mubr.f32.mxu0 0.0
      %979 = vmatmul.mubr.f32.gmra.mxu0 %v424
      %v980 = vpop.f32.mrf.mxu0
      %v981 = vadd.f32 %v791, %v980
      %v982 = vpop.f32.mrf.mxu0
      %983 = vmatprep.mubr.f32.mxu0 0.0
      %984 = vmatmul.mubr.f32.gmra.mxu0 %v427
      %v985 = vpop.f32.mrf.mxu0
      %v986 = vadd.f32 %v796, %v985
      %v987 = vpop.f32.mrf.mxu0
      %988 = vmatprep.mubr.f32.mxu0 0.0
      %989 = vmatmul.mubr.f32.gmra.mxu0 %v430
      %v990 = vpop.f32.mrf.mxu0
      %v991 = vadd.f32 %v801, %v990
      %v992 = vpop.f32.mrf.mxu0
      %993 = vmatprep.mubr.f32.mxu0 0.0
      %994 = vmatmul.mubr.f32.gmra.mxu0 %v433
      %v995 = vpop.f32.mrf.mxu0
      %v996 = vadd.f32 %v806, %v995
      %v997 = vpop.f32.mrf.mxu0
      %998 = vmatprep.mubr.f32.mxu0 0.0
      %999 = vmatmul.mubr.f32.gmra.mxu0 %v436
      %v1000 = vpop.f32.mrf.mxu0
      %v1001 = vadd.f32 %v811, %v1000
      %v1002 = vpop.f32.mrf.mxu0
      %1003 = vmatprep.mubr.f32.mxu0 0.0
      %1004 = vmatmul.mubr.f32.gmra.mxu0 %v439
      %v1005 = vpop.f32.mrf.mxu0
      %v1006 = vadd.f32 %v816, %v1005
      %v1007 = vpop.f32.mrf.mxu0
      %1008 = vmatprep.mubr.f32.mxu0 0.0
      %1009 = vmatmul.mubr.f32.gmra.mxu0 %v442
      %v1010 = vpop.f32.mrf.mxu0
      %v1011 = vadd.f32 %v821, %v1010
      %v1012 = vpop.f32.mrf.mxu0
      %1013 = vdwg.mxu0
      %s1014 = scalar_lea.vmem %s165, 1000
      %v1015 = vld [vmem:[%s1014] sm:$0xff]
      %v1016 = vld [vmem:[%s1014 + $0x8] sm:$0xff]
      %v1017 = vld [vmem:[%s1014 + $0x10] sm:$0xff]
      %v1018 = vld [vmem:[%s1014 + $0x18] sm:$0xff]
      %v1019 = vld [vmem:[%s1014 + $0x20] sm:$0xff]
      %v1020 = vld [vmem:[%s1014 + $0x28] sm:$0xff]
      %v1021 = vld [vmem:[%s1014 + $0x30] sm:$0xff]
      %v1022 = vld [vmem:[%s1014 + $0x38] sm:$0xff]
      %v1023 = vld [vmem:[%s1014 + $0x40] sm:$0xff]
      %v1024 = vld [vmem:[%s1014 + $0x48] sm:$0xff]
      %v1025 = vld [vmem:[%s1014 + $0x50] sm:$0xff]
      %v1026 = vld [vmem:[%s1014 + $0x58] sm:$0xff]
      %v1027 = vld [vmem:[%s1014 + $0x60] sm:$0xff]
      %v1028 = vld [vmem:[%s1014 + $0x68] sm:$0xff]
      %v1029 = vld [vmem:[%s1014 + $0x70] sm:$0xff]
      %v1030 = vld [vmem:[%s1014 + $0x78] sm:$0xff]
      %v1031 = vld [vmem:[%s1014 + $0x80] sm:$0xff]
      %v1032 = vld [vmem:[%s1014 + $0x88] sm:$0xff]
      %v1033 = vld [vmem:[%s1014 + $0x90] sm:$0xff]
      %v1034 = vld [vmem:[%s1014 + $0x98] sm:$0xff]
      %v1035 = vld [vmem:[%s1014 + $0xa0] sm:$0xff]
      %v1036 = vld [vmem:[%s1014 + $0xa8] sm:$0xff]
      %v1037 = vld [vmem:[%s1014 + $0xb0] sm:$0xff]
      %v1038 = vld [vmem:[%s1014 + $0xb8] sm:$0xff]
      %v1039 = vld [vmem:[%s1014 + $0xc0] sm:$0xff]
      %v1040 = vld [vmem:[%s1014 + $0xc8] sm:$0xff]
      %v1041 = vld [vmem:[%s1014 + $0xd0] sm:$0xff]
      %v1042 = vld [vmem:[%s1014 + $0xd8] sm:$0xff]
      %v1043 = vld [vmem:[%s1014 + $0xe0] sm:$0xff]
      %v1044 = vld [vmem:[%s1014 + $0xe8] sm:$0xff]
      %v1045 = vld [vmem:[%s1014 + $0xf0] sm:$0xff]
      %v1046 = vld [vmem:[%s1014 + $0xf8] sm:$0xff]
      %v1047 = vld [vmem:[%s1014 + $0x100] sm:$0xff]
      %v1048 = vld [vmem:[%s1014 + $0x108] sm:$0xff]
      %v1049 = vld [vmem:[%s1014 + $0x110] sm:$0xff]
      %v1050 = vld [vmem:[%s1014 + $0x118] sm:$0xff]
      %v1051 = vld [vmem:[%s1014 + $0x120] sm:$0xff]
      %v1052 = vld [vmem:[%s1014 + $0x128] sm:$0xff]
      %v1053 = vld [vmem:[%s1014 + $0x130] sm:$0xff]
      %v1054 = vld [vmem:[%s1014 + $0x138] sm:$0xff]
      %v1055 = vld [vmem:[%s1014 + $0x140] sm:$0xff]
      %v1056 = vld [vmem:[%s1014 + $0x148] sm:$0xff]
      %v1057 = vld [vmem:[%s1014 + $0x150] sm:$0xff]
      %v1058 = vld [vmem:[%s1014 + $0x158] sm:$0xff]
      %v1059 = vld [vmem:[%s1014 + $0x160] sm:$0xff]
      %v1060 = vld [vmem:[%s1014 + $0x168] sm:$0xff]
      %v1061 = vld [vmem:[%s1014 + $0x170] sm:$0xff]
      %v1062 = vld [vmem:[%s1014 + $0x178] sm:$0xff]
      %v1063 = vld [vmem:[%s1014 + $0x180] sm:$0xff]
      %v1064 = vld [vmem:[%s1014 + $0x188] sm:$0xff]
      %v1065 = vld [vmem:[%s1014 + $0x190] sm:$0xff]
      %v1066 = vld [vmem:[%s1014 + $0x198] sm:$0xff]
      %v1067 = vld [vmem:[%s1014 + $0x1a0] sm:$0xff]
      %v1068 = vld [vmem:[%s1014 + $0x1a8] sm:$0xff]
      %v1069 = vld [vmem:[%s1014 + $0x1b0] sm:$0xff]
      %v1070 = vld [vmem:[%s1014 + $0x1b8] sm:$0xff]
      %v1071 = vld [vmem:[%s1014 + $0x1c0] sm:$0xff]
      %v1072 = vld [vmem:[%s1014 + $0x1c8] sm:$0xff]
      %v1073 = vld [vmem:[%s1014 + $0x1d0] sm:$0xff]
      %v1074 = vld [vmem:[%s1014 + $0x1d8] sm:$0xff]
      %v1075 = vld [vmem:[%s1014 + $0x1e0] sm:$0xff]
      %v1076 = vld [vmem:[%s1014 + $0x1e8] sm:$0xff]
      %v1077 = vld [vmem:[%s1014 + $0x1f0] sm:$0xff]
      %v1078 = vld [vmem:[%s1014 + $0x1f8] sm:$0xff]
      %v1079 = vld [vmem:[%s1014 + $0x200] sm:$0xff]
      %v1080 = vld [vmem:[%s1014 + $0x208] sm:$0xff]
      %v1081 = vld [vmem:[%s1014 + $0x210] sm:$0xff]
      %v1082 = vld [vmem:[%s1014 + $0x218] sm:$0xff]
      %v1083 = vld [vmem:[%s1014 + $0x220] sm:$0xff]
      %v1084 = vld [vmem:[%s1014 + $0x228] sm:$0xff]
      %v1085 = vld [vmem:[%s1014 + $0x230] sm:$0xff]
      %v1086 = vld [vmem:[%s1014 + $0x238] sm:$0xff]
      %v1087 = vld [vmem:[%s1014 + $0x240] sm:$0xff]
      %v1088 = vld [vmem:[%s1014 + $0x248] sm:$0xff]
      %v1089 = vld [vmem:[%s1014 + $0x250] sm:$0xff]
      %v1090 = vld [vmem:[%s1014 + $0x258] sm:$0xff]
      %v1091 = vld [vmem:[%s1014 + $0x260] sm:$0xff]
      %v1092 = vld [vmem:[%s1014 + $0x268] sm:$0xff]
      %v1093 = vld [vmem:[%s1014 + $0x270] sm:$0xff]
      %v1094 = vld [vmem:[%s1014 + $0x278] sm:$0xff]
      %v1095 = vld [vmem:[%s1014 + $0x280] sm:$0xff]
      %v1096 = vld [vmem:[%s1014 + $0x288] sm:$0xff]
      %v1097 = vld [vmem:[%s1014 + $0x290] sm:$0xff]
      %v1098 = vld [vmem:[%s1014 + $0x298] sm:$0xff]
      %v1099 = vld [vmem:[%s1014 + $0x2a0] sm:$0xff]
      %v1100 = vld [vmem:[%s1014 + $0x2a8] sm:$0xff]
      %v1101 = vld [vmem:[%s1014 + $0x2b0] sm:$0xff]
      %v1102 = vld [vmem:[%s1014 + $0x2b8] sm:$0xff]
      %v1103 = vld [vmem:[%s1014 + $0x2c0] sm:$0xff]
      %v1104 = vld [vmem:[%s1014 + $0x2c8] sm:$0xff]
      %v1105 = vld [vmem:[%s1014 + $0x2d0] sm:$0xff]
      %v1106 = vld [vmem:[%s1014 + $0x2d8] sm:$0xff]
      %v1107 = vld [vmem:[%s1014 + $0x2e0] sm:$0xff]
      %v1108 = vld [vmem:[%s1014 + $0x2e8] sm:$0xff]
      %v1109 = vld [vmem:[%s1014 + $0x2f0] sm:$0xff]
      %v1110 = vld [vmem:[%s1014 + $0x2f8] sm:$0xff]
      %v1111 = vld [vmem:[%s1014 + $0x300] sm:$0xff]
      %v1112 = vld [vmem:[%s1014 + $0x308] sm:$0xff]
      %v1113 = vld [vmem:[%s1014 + $0x310] sm:$0xff]
      %v1114 = vld [vmem:[%s1014 + $0x318] sm:$0xff]
      %v1115 = vld [vmem:[%s1014 + $0x320] sm:$0xff]
      %v1116 = vld [vmem:[%s1014 + $0x328] sm:$0xff]
      %v1117 = vld [vmem:[%s1014 + $0x330] sm:$0xff]
      %v1118 = vld [vmem:[%s1014 + $0x338] sm:$0xff]
      %v1119 = vld [vmem:[%s1014 + $0x340] sm:$0xff]
      %v1120 = vld [vmem:[%s1014 + $0x348] sm:$0xff]
      %v1121 = vld [vmem:[%s1014 + $0x350] sm:$0xff]
      %v1122 = vld [vmem:[%s1014 + $0x358] sm:$0xff]
      %v1123 = vld [vmem:[%s1014 + $0x360] sm:$0xff]
      %v1124 = vld [vmem:[%s1014 + $0x368] sm:$0xff]
      %v1125 = vld [vmem:[%s1014 + $0x370] sm:$0xff]
      %v1126 = vld [vmem:[%s1014 + $0x378] sm:$0xff]
      %v1127 = vld [vmem:[%s1014 + $0x380] sm:$0xff]
      %v1128 = vld [vmem:[%s1014 + $0x388] sm:$0xff]
      %v1129 = vld [vmem:[%s1014 + $0x390] sm:$0xff]
      %v1130 = vld [vmem:[%s1014 + $0x398] sm:$0xff]
      %v1131 = vld [vmem:[%s1014 + $0x3a0] sm:$0xff]
      %v1132 = vld [vmem:[%s1014 + $0x3a8] sm:$0xff]
      %v1133 = vld [vmem:[%s1014 + $0x3b0] sm:$0xff]
      %v1134 = vld [vmem:[%s1014 + $0x3b8] sm:$0xff]
      %v1135 = vld [vmem:[%s1014 + $0x3c0] sm:$0xf]
      %v1136 = vld [vmem:[%s1014 + $0x3c8] sm:$0xf]
      %v1137 = vld [vmem:[%s1014 + $0x3d0] sm:$0xf]
      %v1138 = vld [vmem:[%s1014 + $0x3d8] sm:$0xf]
      %v1139 = vld [vmem:[%s1014 + $0x3e0] sm:$0xf]
      %v1141 = vsel %vm368, %v1019, 0
      %v1144 = vsel %vm368, %v1024, 0
      %v1147 = vsel %vm368, %v1029, 0
      %v1150 = vsel %vm368, %v1034, 0
      %v1153 = vsel %vm368, %v1039, 0
      %v1156 = vsel %vm368, %v1044, 0
      %v1159 = vsel %vm368, %v1049, 0
      %v1162 = vsel %vm368, %v1054, 0
      %v1165 = vsel %vm368, %v1059, 0
      %v1168 = vsel %vm368, %v1064, 0
      %v1171 = vsel %vm368, %v1069, 0
      %v1174 = vsel %vm368, %v1074, 0
      %v1177 = vsel %vm368, %v1079, 0
      %v1180 = vsel %vm368, %v1084, 0
      %v1183 = vsel %vm368, %v1089, 0
      %v1186 = vsel %vm368, %v1094, 0
      %v1189 = vsel %vm368, %v1099, 0
      %v1192 = vsel %vm368, %v1104, 0
      %v1195 = vsel %vm368, %v1109, 0
      %v1198 = vsel %vm368, %v1114, 0
      %v1201 = vsel %vm368, %v1119, 0
      %v1204 = vsel %vm368, %v1124, 0
      %v1207 = vsel %vm368, %v1129, 0
      %v1210 = vsel %vm368, %v1134, 0
      %v1213 = vsel %vm368, %v1139, 0
      %1215 = vmatprep.subr.mxu0 0.0
      %1216 = vmatpush1.msra.mxu0 %v311
      %1217 = vmatprep.subr.mxu0 0.0
      %1218 = vmatpush1.msra.mxu0 %v310
      %1219 = vmatprep.subr.mxu0 0.0
      %1220 = vmatpush1.msra.mxu0 %v309
      %1221 = vmatprep.subr.mxu0 0.0
      %1222 = vmatpush1.msra.mxu0 %v308
      %1223 = vmatprep.subr.mxu0 0.0
      %1224 = vmatpush1.msra.mxu0 %v307
      %1225 = vmatprep.subr.mxu0 0.0
      %1226 = vmatpush1.msra.mxu0 %v306
      %1227 = vmatprep.subr.mxu0 0.0
      %1228 = vmatpush1.msra.mxu0 %v305
      %1229 = vmatprep.subr.mxu0 0.0
      %1230 = vmatpush1.msra.mxu0 %v304
      %1231 = vmatprep.subr.mxu0 0.0
      %1232 = vmatpush1.msra.mxu0 %v303
      %1233 = vmatprep.subr.mxu0 0.0
      %1234 = vmatpush1.msra.mxu0 %v302
      %1235 = vmatprep.subr.mxu0 0.0
      %1236 = vmatpush1.msra.mxu0 %v301
      %1237 = vmatprep.subr.mxu0 0.0
      %1238 = vmatpush1.msra.mxu0 %v300
      %1239 = vmatprep.subr.mxu0 0.0
      %1240 = vmatpush1.msra.mxu0 %v299
      %1241 = vmatprep.subr.mxu0 0.0
      %1242 = vmatpush1.msra.mxu0 %v298
      %1243 = vmatprep.subr.mxu0 0.0
      %1244 = vmatpush1.msra.mxu0 %v297
      %1245 = vmatprep.subr.mxu0 0.0
      %1246 = vmatpush1.msra.mxu0 %v296
      %1247 = vmatprep.subr.mxu0 0.0
      %1248 = vmatpush2.msra.mxu0 %v327
      %1249 = vmatprep.subr.mxu0 0.0
      %1250 = vmatpush2.msra.mxu0 %v326
      %1251 = vmatprep.subr.mxu0 0.0
      %1252 = vmatpush2.msra.mxu0 %v325
      %1253 = vmatprep.subr.mxu0 0.0
      %1254 = vmatpush2.msra.mxu0 %v324
      %1255 = vmatprep.subr.mxu0 0.0
      %1256 = vmatpush2.msra.mxu0 %v323
      %1257 = vmatprep.subr.mxu0 0.0
      %1258 = vmatpush2.msra.mxu0 %v322
      %1259 = vmatprep.subr.mxu0 0.0
      %1260 = vmatpush2.msra.mxu0 %v321
      %1261 = vmatprep.subr.mxu0 0.0
      %1262 = vmatpush2.msra.mxu0 %v320
      %1263 = vmatprep.subr.mxu0 0.0
      %1264 = vmatpush2.msra.mxu0 %v319
      %1265 = vmatprep.subr.mxu0 0.0
      %1266 = vmatpush2.msra.mxu0 %v318
      %1267 = vmatprep.subr.mxu0 0.0
      %1268 = vmatpush2.msra.mxu0 %v317
      %1269 = vmatprep.subr.mxu0 0.0
      %1270 = vmatpush2.msra.mxu0 %v316
      %1271 = vmatprep.subr.mxu0 0.0
      %1272 = vmatpush2.msra.mxu0 %v315
      %1273 = vmatprep.subr.mxu0 0.0
      %1274 = vmatpush2.msra.mxu0 %v314
      %1275 = vmatprep.subr.mxu0 0.0
      %1276 = vmatpush2.msra.mxu0 %v313
      %1277 = vmatprep.subr.mxu0 0.0
      %1278 = vmatpush2.msra.mxu0 %v312
      %1279 = vmatprep.mubr.f32.mxu0 %v1016
      %1280 = vmatmul.mubr.f32.gmra.mxu0 %v1015
      %v1281 = vpop.f32.mrf.mxu0
      %v1282 = vadd.f32 0.0, %v1281
      %v1283 = vpop.f32.mrf.mxu0
      %1284 = vmatprep.mubr.f32.mxu0 %v1021
      %1285 = vmatmul.mubr.f32.gmra.mxu0 %v1020
      %v1286 = vpop.f32.mrf.mxu0
      %v1287 = vadd.f32 0.0, %v1286
      %v1288 = vpop.f32.mrf.mxu0
      %1289 = vmatprep.mubr.f32.mxu0 %v1026
      %1290 = vmatmul.mubr.f32.gmra.mxu0 %v1025
      %v1291 = vpop.f32.mrf.mxu0
      %v1292 = vadd.f32 0.0, %v1291
      %v1293 = vpop.f32.mrf.mxu0
      %1294 = vmatprep.mubr.f32.mxu0 %v1031
      %1295 = vmatmul.mubr.f32.gmra.mxu0 %v1030
      %v1296 = vpop.f32.mrf.mxu0
      %v1297 = vadd.f32 0.0, %v1296
      %v1298 = vpop.f32.mrf.mxu0
      %1299 = vmatprep.mubr.f32.mxu0 %v1036
      %1300 = vmatmul.mubr.f32.gmra.mxu0 %v1035
      %v1301 = vpop.f32.mrf.mxu0
      %v1302 = vadd.f32 0.0, %v1301
      %v1303 = vpop.f32.mrf.mxu0
      %1304 = vmatprep.mubr.f32.mxu0 %v1041
      %1305 = vmatmul.mubr.f32.gmra.mxu0 %v1040
      %v1306 = vpop.f32.mrf.mxu0
      %v1307 = vadd.f32 0.0, %v1306
      %v1308 = vpop.f32.mrf.mxu0
      %1309 = vmatprep.mubr.f32.mxu0 %v1046
      %1310 = vmatmul.mubr.f32.gmra.mxu0 %v1045
      %v1311 = vpop.f32.mrf.mxu0
      %v1312 = vadd.f32 0.0, %v1311
      %v1313 = vpop.f32.mrf.mxu0
      %1314 = vmatprep.mubr.f32.mxu0 %v1051
      %1315 = vmatmul.mubr.f32.gmra.mxu0 %v1050
      %v1316 = vpop.f32.mrf.mxu0
      %v1317 = vadd.f32 0.0, %v1316
      %v1318 = vpop.f32.mrf.mxu0
      %1319 = vmatprep.mubr.f32.mxu0 %v1056
      %1320 = vmatmul.mubr.f32.gmra.mxu0 %v1055
      %v1321 = vpop.f32.mrf.mxu0
      %v1322 = vadd.f32 0.0, %v1321
      %v1323 = vpop.f32.mrf.mxu0
      %1324 = vmatprep.mubr.f32.mxu0 %v1061
      %1325 = vmatmul.mubr.f32.gmra.mxu0 %v1060
      %v1326 = vpop.f32.mrf.mxu0
      %v1327 = vadd.f32 0.0, %v1326
      %v1328 = vpop.f32.mrf.mxu0
      %1329 = vmatprep.mubr.f32.mxu0 %v1066
      %1330 = vmatmul.mubr.f32.gmra.mxu0 %v1065
      %v1331 = vpop.f32.mrf.mxu0
      %v1332 = vadd.f32 0.0, %v1331
      %v1333 = vpop.f32.mrf.mxu0
      %1334 = vmatprep.mubr.f32.mxu0 %v1071
      %1335 = vmatmul.mubr.f32.gmra.mxu0 %v1070
      %v1336 = vpop.f32.mrf.mxu0
      %v1337 = vadd.f32 0.0, %v1336
      %v1338 = vpop.f32.mrf.mxu0
      %1339 = vmatprep.mubr.f32.mxu0 %v1076
      %1340 = vmatmul.mubr.f32.gmra.mxu0 %v1075
      %v1341 = vpop.f32.mrf.mxu0
      %v1342 = vadd.f32 0.0, %v1341
      %v1343 = vpop.f32.mrf.mxu0
      %1344 = vmatprep.mubr.f32.mxu0 %v1081
      %1345 = vmatmul.mubr.f32.gmra.mxu0 %v1080
      %v1346 = vpop.f32.mrf.mxu0
      %v1347 = vadd.f32 0.0, %v1346
      %v1348 = vpop.f32.mrf.mxu0
      %1349 = vmatprep.mubr.f32.mxu0 %v1086
      %1350 = vmatmul.mubr.f32.gmra.mxu0 %v1085
      %v1351 = vpop.f32.mrf.mxu0
      %v1352 = vadd.f32 0.0, %v1351
      %v1353 = vpop.f32.mrf.mxu0
      %1354 = vmatprep.mubr.f32.mxu0 %v1091
      %1355 = vmatmul.mubr.f32.gmra.mxu0 %v1090
      %v1356 = vpop.f32.mrf.mxu0
      %v1357 = vadd.f32 0.0, %v1356
      %v1358 = vpop.f32.mrf.mxu0
      %1359 = vmatprep.mubr.f32.mxu0 %v1096
      %1360 = vmatmul.mubr.f32.gmra.mxu0 %v1095
      %v1361 = vpop.f32.mrf.mxu0
      %v1362 = vadd.f32 0.0, %v1361
      %v1363 = vpop.f32.mrf.mxu0
      %1364 = vmatprep.mubr.f32.mxu0 %v1101
      %1365 = vmatmul.mubr.f32.gmra.mxu0 %v1100
      %v1366 = vpop.f32.mrf.mxu0
      %v1367 = vadd.f32 0.0, %v1366
      %v1368 = vpop.f32.mrf.mxu0
      %1369 = vmatprep.mubr.f32.mxu0 %v1106
      %1370 = vmatmul.mubr.f32.gmra.mxu0 %v1105
      %v1371 = vpop.f32.mrf.mxu0
      %v1372 = vadd.f32 0.0, %v1371
      %v1373 = vpop.f32.mrf.mxu0
      %1374 = vmatprep.mubr.f32.mxu0 %v1111
      %1375 = vmatmul.mubr.f32.gmra.mxu0 %v1110
      %v1376 = vpop.f32.mrf.mxu0
      %v1377 = vadd.f32 0.0, %v1376
      %v1378 = vpop.f32.mrf.mxu0
      %1379 = vmatprep.mubr.f32.mxu0 %v1116
      %1380 = vmatmul.mubr.f32.gmra.mxu0 %v1115
      %v1381 = vpop.f32.mrf.mxu0
      %v1382 = vadd.f32 0.0, %v1381
      %v1383 = vpop.f32.mrf.mxu0
      %1384 = vmatprep.mubr.f32.mxu0 %v1121
      %1385 = vmatmul.mubr.f32.gmra.mxu0 %v1120
      %v1386 = vpop.f32.mrf.mxu0
      %v1387 = vadd.f32 0.0, %v1386
      %v1388 = vpop.f32.mrf.mxu0
      %1389 = vmatprep.mubr.f32.mxu0 %v1126
      %1390 = vmatmul.mubr.f32.gmra.mxu0 %v1125
      %v1391 = vpop.f32.mrf.mxu0
      %v1392 = vadd.f32 0.0, %v1391
      %v1393 = vpop.f32.mrf.mxu0
      %1394 = vmatprep.mubr.f32.mxu0 %v1131
      %1395 = vmatmul.mubr.f32.gmra.mxu0 %v1130
      %v1396 = vpop.f32.mrf.mxu0
      %v1397 = vadd.f32 0.0, %v1396
      %v1398 = vpop.f32.mrf.mxu0
      %1399 = vmatprep.mubr.f32.mxu0 %v1136
      %1400 = vmatmul.mubr.f32.gmra.mxu0 %v1135
      %v1401 = vpop.f32.mrf.mxu0
      %v1402 = vadd.f32 0.0, %v1401
      %v1403 = vpop.f32.mrf.mxu0
      %1404 = vdwg.mxu0
      %1405 = vmatprep.subr.mxu0 0.0
      %1406 = vmatpush1.msra.mxu0 %v343
      %1407 = vmatprep.subr.mxu0 0.0
      %1408 = vmatpush1.msra.mxu0 %v342
      %1409 = vmatprep.subr.mxu0 0.0
      %1410 = vmatpush1.msra.mxu0 %v341
      %1411 = vmatprep.subr.mxu0 0.0
      %1412 = vmatpush1.msra.mxu0 %v340
      %1413 = vmatprep.subr.mxu0 0.0
      %1414 = vmatpush1.msra.mxu0 %v339
      %1415 = vmatprep.subr.mxu0 0.0
      %1416 = vmatpush1.msra.mxu0 %v338
      %1417 = vmatprep.subr.mxu0 0.0
      %1418 = vmatpush1.msra.mxu0 %v337
      %1419 = vmatprep.subr.mxu0 0.0
      %1420 = vmatpush1.msra.mxu0 %v336
      %1421 = vmatprep.subr.mxu0 0.0
      %1422 = vmatpush1.msra.mxu0 %v335
      %1423 = vmatprep.subr.mxu0 0.0
      %1424 = vmatpush1.msra.mxu0 %v334
      %1425 = vmatprep.subr.mxu0 0.0
      %1426 = vmatpush1.msra.mxu0 %v333
      %1427 = vmatprep.subr.mxu0 0.0
      %1428 = vmatpush1.msra.mxu0 %v332
      %1429 = vmatprep.subr.mxu0 0.0
      %1430 = vmatpush1.msra.mxu0 %v331
      %1431 = vmatprep.subr.mxu0 0.0
      %1432 = vmatpush1.msra.mxu0 %v330
      %1433 = vmatprep.subr.mxu0 0.0
      %1434 = vmatpush1.msra.mxu0 %v329
      %1435 = vmatprep.subr.mxu0 0.0
      %1436 = vmatpush1.msra.mxu0 %v328
      %1437 = vmatprep.subr.mxu0 0.0
      %1438 = vmatpush2.msra.mxu0 %v359
      %1439 = vmatprep.subr.mxu0 0.0
      %1440 = vmatpush2.msra.mxu0 %v358
      %1441 = vmatprep.subr.mxu0 0.0
      %1442 = vmatpush2.msra.mxu0 %v357
      %1443 = vmatprep.subr.mxu0 0.0
      %1444 = vmatpush2.msra.mxu0 %v356
      %1445 = vmatprep.subr.mxu0 0.0
      %1446 = vmatpush2.msra.mxu0 %v355
      %1447 = vmatprep.subr.mxu0 0.0
      %1448 = vmatpush2.msra.mxu0 %v354
      %1449 = vmatprep.subr.mxu0 0.0
      %1450 = vmatpush2.msra.mxu0 %v353
      %1451 = vmatprep.subr.mxu0 0.0
      %1452 = vmatpush2.msra.mxu0 %v352
      %1453 = vmatprep.subr.mxu0 0.0
      %1454 = vmatpush2.msra.mxu0 %v351
      %1455 = vmatprep.subr.mxu0 0.0
      %1456 = vmatpush2.msra.mxu0 %v350
      %1457 = vmatprep.subr.mxu0 0.0
      %1458 = vmatpush2.msra.mxu0 %v349
      %1459 = vmatprep.subr.mxu0 0.0
      %1460 = vmatpush2.msra.mxu0 %v348
      %1461 = vmatprep.subr.mxu0 0.0
      %1462 = vmatpush2.msra.mxu0 %v347
      %1463 = vmatprep.subr.mxu0 0.0
      %1464 = vmatpush2.msra.mxu0 %v346
      %1465 = vmatprep.subr.mxu0 0.0
      %1466 = vmatpush2.msra.mxu0 %v345
      %1467 = vmatprep.subr.mxu0 0.0
      %1468 = vmatpush2.msra.mxu0 %v344
      %1469 = vmatprep.mubr.f32.mxu0 %v1018
      %1470 = vmatmul.mubr.f32.gmra.mxu0 %v1017
      %v1471 = vpop.f32.mrf.mxu0
      %v1472 = vadd.f32 %v1282, %v1471
      %v1473 = vpop.f32.mrf.mxu0
      %1474 = vmatprep.mubr.f32.mxu0 %v1023
      %1475 = vmatmul.mubr.f32.gmra.mxu0 %v1022
      %v1476 = vpop.f32.mrf.mxu0
      %v1477 = vadd.f32 %v1287, %v1476
      %v1478 = vpop.f32.mrf.mxu0
      %1479 = vmatprep.mubr.f32.mxu0 %v1028
      %1480 = vmatmul.mubr.f32.gmra.mxu0 %v1027
      %v1481 = vpop.f32.mrf.mxu0
      %v1482 = vadd.f32 %v1292, %v1481
      %v1483 = vpop.f32.mrf.mxu0
      %1484 = vmatprep.mubr.f32.mxu0 %v1033
      %1485 = vmatmul.mubr.f32.gmra.mxu0 %v1032
      %v1486 = vpop.f32.mrf.mxu0
      %v1487 = vadd.f32 %v1297, %v1486
      %v1488 = vpop.f32.mrf.mxu0
      %1489 = vmatprep.mubr.f32.mxu0 %v1038
      %1490 = vmatmul.mubr.f32.gmra.mxu0 %v1037
      %v1491 = vpop.f32.mrf.mxu0
      %v1492 = vadd.f32 %v1302, %v1491
      %v1493 = vpop.f32.mrf.mxu0
      %1494 = vmatprep.mubr.f32.mxu0 %v1043
      %1495 = vmatmul.mubr.f32.gmra.mxu0 %v1042
      %v1496 = vpop.f32.mrf.mxu0
      %v1497 = vadd.f32 %v1307, %v1496
      %v1498 = vpop.f32.mrf.mxu0
      %1499 = vmatprep.mubr.f32.mxu0 %v1048
      %1500 = vmatmul.mubr.f32.gmra.mxu0 %v1047
      %v1501 = vpop.f32.mrf.mxu0
      %v1502 = vadd.f32 %v1312, %v1501
      %v1503 = vpop.f32.mrf.mxu0
      %1504 = vmatprep.mubr.f32.mxu0 %v1053
      %1505 = vmatmul.mubr.f32.gmra.mxu0 %v1052
      %v1506 = vpop.f32.mrf.mxu0
      %v1507 = vadd.f32 %v1317, %v1506
      %v1508 = vpop.f32.mrf.mxu0
      %1509 = vmatprep.mubr.f32.mxu0 %v1058
      %1510 = vmatmul.mubr.f32.gmra.mxu0 %v1057
      %v1511 = vpop.f32.mrf.mxu0
      %v1512 = vadd.f32 %v1322, %v1511
      %v1513 = vpop.f32.mrf.mxu0
      %1514 = vmatprep.mubr.f32.mxu0 %v1063
      %1515 = vmatmul.mubr.f32.gmra.mxu0 %v1062
      %v1516 = vpop.f32.mrf.mxu0
      %v1517 = vadd.f32 %v1327, %v1516
      %v1518 = vpop.f32.mrf.mxu0
      %1519 = vmatprep.mubr.f32.mxu0 %v1068
      %1520 = vmatmul.mubr.f32.gmra.mxu0 %v1067
      %v1521 = vpop.f32.mrf.mxu0
      %v1522 = vadd.f32 %v1332, %v1521
      %v1523 = vpop.f32.mrf.mxu0
      %1524 = vmatprep.mubr.f32.mxu0 %v1073
      %1525 = vmatmul.mubr.f32.gmra.mxu0 %v1072
      %v1526 = vpop.f32.mrf.mxu0
      %v1527 = vadd.f32 %v1337, %v1526
      %v1528 = vpop.f32.mrf.mxu0
      %1529 = vmatprep.mubr.f32.mxu0 %v1078
      %1530 = vmatmul.mubr.f32.gmra.mxu0 %v1077
      %v1531 = vpop.f32.mrf.mxu0
      %v1532 = vadd.f32 %v1342, %v1531
      %v1533 = vpop.f32.mrf.mxu0
      %1534 = vmatprep.mubr.f32.mxu0 %v1083
      %1535 = vmatmul.mubr.f32.gmra.mxu0 %v1082
      %v1536 = vpop.f32.mrf.mxu0
      %v1537 = vadd.f32 %v1347, %v1536
      %v1538 = vpop.f32.mrf.mxu0
      %1539 = vmatprep.mubr.f32.mxu0 %v1088
      %1540 = vmatmul.mubr.f32.gmra.mxu0 %v1087
      %v1541 = vpop.f32.mrf.mxu0
      %v1542 = vadd.f32 %v1352, %v1541
      %v1543 = vpop.f32.mrf.mxu0
      %1544 = vmatprep.mubr.f32.mxu0 %v1093
      %1545 = vmatmul.mubr.f32.gmra.mxu0 %v1092
      %v1546 = vpop.f32.mrf.mxu0
      %v1547 = vadd.f32 %v1357, %v1546
      %v1548 = vpop.f32.mrf.mxu0
      %1549 = vmatprep.mubr.f32.mxu0 %v1098
      %1550 = vmatmul.mubr.f32.gmra.mxu0 %v1097
      %v1551 = vpop.f32.mrf.mxu0
      %v1552 = vadd.f32 %v1362, %v1551
      %v1553 = vpop.f32.mrf.mxu0
      %1554 = vmatprep.mubr.f32.mxu0 %v1103
      %1555 = vmatmul.mubr.f32.gmra.mxu0 %v1102
      %v1556 = vpop.f32.mrf.mxu0
      %v1557 = vadd.f32 %v1367, %v1556
      %v1558 = vpop.f32.mrf.mxu0
      %1559 = vmatprep.mubr.f32.mxu0 %v1108
      %1560 = vmatmul.mubr.f32.gmra.mxu0 %v1107
      %v1561 = vpop.f32.mrf.mxu0
      %v1562 = vadd.f32 %v1372, %v1561
      %v1563 = vpop.f32.mrf.mxu0
      %1564 = vmatprep.mubr.f32.mxu0 %v1113
      %1565 = vmatmul.mubr.f32.gmra.mxu0 %v1112
      %v1566 = vpop.f32.mrf.mxu0
      %v1567 = vadd.f32 %v1377, %v1566
      %v1568 = vpop.f32.mrf.mxu0
      %1569 = vmatprep.mubr.f32.mxu0 %v1118
      %1570 = vmatmul.mubr.f32.gmra.mxu0 %v1117
      %v1571 = vpop.f32.mrf.mxu0
      %v1572 = vadd.f32 %v1382, %v1571
      %v1573 = vpop.f32.mrf.mxu0
      %1574 = vmatprep.mubr.f32.mxu0 %v1123
      %1575 = vmatmul.mubr.f32.gmra.mxu0 %v1122
      %v1576 = vpop.f32.mrf.mxu0
      %v1577 = vadd.f32 %v1387, %v1576
      %v1578 = vpop.f32.mrf.mxu0
      %1579 = vmatprep.mubr.f32.mxu0 %v1128
      %1580 = vmatmul.mubr.f32.gmra.mxu0 %v1127
      %v1581 = vpop.f32.mrf.mxu0
      %v1582 = vadd.f32 %v1392, %v1581
      %v1583 = vpop.f32.mrf.mxu0
      %1584 = vmatprep.mubr.f32.mxu0 %v1133
      %1585 = vmatmul.mubr.f32.gmra.mxu0 %v1132
      %v1586 = vpop.f32.mrf.mxu0
      %v1587 = vadd.f32 %v1397, %v1586
      %v1588 = vpop.f32.mrf.mxu0
      %1589 = vmatprep.mubr.f32.mxu0 %v1138
      %1590 = vmatmul.mubr.f32.gmra.mxu0 %v1137
      %v1591 = vpop.f32.mrf.mxu0
      %v1592 = vadd.f32 %v1402, %v1591
      %v1593 = vpop.f32.mrf.mxu0
      %1594 = vdwg.mxu0
      %1595 = vmatprep.subr.mxu0 0.0
      %1596 = vmatpush1.msra.mxu0 0.0
      %1597 = vmatprep.subr.mxu0 0.0
      %1598 = vmatpush1.msra.mxu0 0.0
      %1599 = vmatprep.subr.mxu0 0.0
      %1600 = vmatpush1.msra.mxu0 0.0
      %1601 = vmatprep.subr.mxu0 0.0
      %1602 = vmatpush1.msra.mxu0 0.0
      %1603 = vmatprep.subr.mxu0 0.0
      %1604 = vmatpush1.msra.mxu0 0.0
      %1605 = vmatprep.subr.mxu0 0.0
      %1606 = vmatpush1.msra.mxu0 0.0
      %1607 = vmatprep.subr.mxu0 0.0
      %1608 = vmatpush1.msra.mxu0 0.0
      %1609 = vmatprep.subr.mxu0 0.0
      %1610 = vmatpush1.msra.mxu0 0.0
      %1611 = vmatprep.subr.mxu0 0.0
      %1612 = vmatpush1.msra.mxu0 %v367
      %1613 = vmatprep.subr.mxu0 0.0
      %1614 = vmatpush1.msra.mxu0 %v366
      %1615 = vmatprep.subr.mxu0 0.0
      %1616 = vmatpush1.msra.mxu0 %v365
      %1617 = vmatprep.subr.mxu0 0.0
      %1618 = vmatpush1.msra.mxu0 %v364
      %1619 = vmatprep.subr.mxu0 0.0
      %1620 = vmatpush1.msra.mxu0 %v363
      %1621 = vmatprep.subr.mxu0 0.0
      %1622 = vmatpush1.msra.mxu0 %v362
      %1623 = vmatprep.subr.mxu0 0.0
      %1624 = vmatpush1.msra.mxu0 %v361
      %1625 = vmatprep.subr.mxu0 0.0
      %1626 = vmatpush1.msra.mxu0 %v360
      %1627 = vmatprep.subr.mxu0 0.0
      %1628 = vmatpush2.msra.mxu0 0.0
      %1629 = vmatprep.subr.mxu0 0.0
      %1630 = vmatpush2.msra.mxu0 0.0
      %1631 = vmatprep.subr.mxu0 0.0
      %1632 = vmatpush2.msra.mxu0 0.0
      %1633 = vmatprep.subr.mxu0 0.0
      %1634 = vmatpush2.msra.mxu0 0.0
      %1635 = vmatprep.subr.mxu0 0.0
      %1636 = vmatpush2.msra.mxu0 0.0
      %1637 = vmatprep.subr.mxu0 0.0
      %1638 = vmatpush2.msra.mxu0 0.0
      %1639 = vmatprep.subr.mxu0 0.0
      %1640 = vmatpush2.msra.mxu0 0.0
      %1641 = vmatprep.subr.mxu0 0.0
      %1642 = vmatpush2.msra.mxu0 0.0
      %1643 = vmatprep.subr.mxu0 0.0
      %1644 = vmatpush2.msra.mxu0 0.0
      %1645 = vmatprep.subr.mxu0 0.0
      %1646 = vmatpush2.msra.mxu0 0.0
      %1647 = vmatprep.subr.mxu0 0.0
      %1648 = vmatpush2.msra.mxu0 0.0
      %1649 = vmatprep.subr.mxu0 0.0
      %1650 = vmatpush2.msra.mxu0 0.0
      %1651 = vmatprep.subr.mxu0 0.0
      %1652 = vmatpush2.msra.mxu0 0.0
      %1653 = vmatprep.subr.mxu0 0.0
      %1654 = vmatpush2.msra.mxu0 0.0
      %1655 = vmatprep.subr.mxu0 0.0
      %1656 = vmatpush2.msra.mxu0 0.0
      %1657 = vmatprep.subr.mxu0 0.0
      %1658 = vmatpush2.msra.mxu0 0.0
      %1659 = vmatprep.mubr.f32.mxu0 0.0
      %1660 = vmatmul.mubr.f32.gmra.mxu0 %v1141
      %v1661 = vpop.f32.mrf.mxu0
      %v1662 = vadd.f32 %v1472, %v1661
      %v1663 = vpop.f32.mrf.mxu0
      %1664 = vmatprep.mubr.f32.mxu0 0.0
      %1665 = vmatmul.mubr.f32.gmra.mxu0 %v1144
      %v1666 = vpop.f32.mrf.mxu0
      %v1667 = vadd.f32 %v1477, %v1666
      %v1668 = vpop.f32.mrf.mxu0
      %1669 = vmatprep.mubr.f32.mxu0 0.0
      %1670 = vmatmul.mubr.f32.gmra.mxu0 %v1147
      %v1671 = vpop.f32.mrf.mxu0
      %v1672 = vadd.f32 %v1482, %v1671
      %v1673 = vpop.f32.mrf.mxu0
      %1674 = vmatprep.mubr.f32.mxu0 0.0
      %1675 = vmatmul.mubr.f32.gmra.mxu0 %v1150
      %v1676 = vpop.f32.mrf.mxu0
      %v1677 = vadd.f32 %v1487, %v1676
      %v1678 = vpop.f32.mrf.mxu0
      %1679 = vmatprep.mubr.f32.mxu0 0.0
      %1680 = vmatmul.mubr.f32.gmra.mxu0 %v1153
      %v1681 = vpop.f32.mrf.mxu0
      %v1682 = vadd.f32 %v1492, %v1681
      %v1683 = vpop.f32.mrf.mxu0
      %1684 = vmatprep.mubr.f32.mxu0 0.0
      %1685 = vmatmul.mubr.f32.gmra.mxu0 %v1156
      %v1686 = vpop.f32.mrf.mxu0
      %v1687 = vadd.f32 %v1497, %v1686
      %v1688 = vpop.f32.mrf.mxu0
      %1689 = vmatprep.mubr.f32.mxu0 0.0
      %1690 = vmatmul.mubr.f32.gmra.mxu0 %v1159
      %v1691 = vpop.f32.mrf.mxu0
      %v1692 = vadd.f32 %v1502, %v1691
      %v1693 = vpop.f32.mrf.mxu0
      %1694 = vmatprep.mubr.f32.mxu0 0.0
      %1695 = vmatmul.mubr.f32.gmra.mxu0 %v1162
      %v1696 = vpop.f32.mrf.mxu0
      %v1697 = vadd.f32 %v1507, %v1696
      %v1698 = vpop.f32.mrf.mxu0
      %1699 = vmatprep.mubr.f32.mxu0 0.0
      %1700 = vmatmul.mubr.f32.gmra.mxu0 %v1165
      %v1701 = vpop.f32.mrf.mxu0
      %v1702 = vadd.f32 %v1512, %v1701
      %v1703 = vpop.f32.mrf.mxu0
      %1704 = vmatprep.mubr.f32.mxu0 0.0
      %1705 = vmatmul.mubr.f32.gmra.mxu0 %v1168
      %v1706 = vpop.f32.mrf.mxu0
      %v1707 = vadd.f32 %v1517, %v1706
      %v1708 = vpop.f32.mrf.mxu0
      %1709 = vmatprep.mubr.f32.mxu0 0.0
      %1710 = vmatmul.mubr.f32.gmra.mxu0 %v1171
      %v1711 = vpop.f32.mrf.mxu0
      %v1712 = vadd.f32 %v1522, %v1711
      %v1713 = vpop.f32.mrf.mxu0
      %1714 = vmatprep.mubr.f32.mxu0 0.0
      %1715 = vmatmul.mubr.f32.gmra.mxu0 %v1174
      %v1716 = vpop.f32.mrf.mxu0
      %v1717 = vadd.f32 %v1527, %v1716
      %v1718 = vpop.f32.mrf.mxu0
      %1719 = vmatprep.mubr.f32.mxu0 0.0
      %1720 = vmatmul.mubr.f32.gmra.mxu0 %v1177
      %v1721 = vpop.f32.mrf.mxu0
      %v1722 = vadd.f32 %v1532, %v1721
      %v1723 = vpop.f32.mrf.mxu0
      %1724 = vmatprep.mubr.f32.mxu0 0.0
      %1725 = vmatmul.mubr.f32.gmra.mxu0 %v1180
      %v1726 = vpop.f32.mrf.mxu0
      %v1727 = vadd.f32 %v1537, %v1726
      %v1728 = vpop.f32.mrf.mxu0
      %1729 = vmatprep.mubr.f32.mxu0 0.0
      %1730 = vmatmul.mubr.f32.gmra.mxu0 %v1183
      %v1731 = vpop.f32.mrf.mxu0
      %v1732 = vadd.f32 %v1542, %v1731
      %v1733 = vpop.f32.mrf.mxu0
      %1734 = vmatprep.mubr.f32.mxu0 0.0
      %1735 = vmatmul.mubr.f32.gmra.mxu0 %v1186
      %v1736 = vpop.f32.mrf.mxu0
      %v1737 = vadd.f32 %v1547, %v1736
      %v1738 = vpop.f32.mrf.mxu0
      %1739 = vmatprep.mubr.f32.mxu0 0.0
      %1740 = vmatmul.mubr.f32.gmra.mxu0 %v1189
      %v1741 = vpop.f32.mrf.mxu0
      %v1742 = vadd.f32 %v1552, %v1741
      %v1743 = vpop.f32.mrf.mxu0
      %1744 = vmatprep.mubr.f32.mxu0 0.0
      %1745 = vmatmul.mubr.f32.gmra.mxu0 %v1192
      %v1746 = vpop.f32.mrf.mxu0
      %v1747 = vadd.f32 %v1557, %v1746
      %v1748 = vpop.f32.mrf.mxu0
      %1749 = vmatprep.mubr.f32.mxu0 0.0
      %1750 = vmatmul.mubr.f32.gmra.mxu0 %v1195
      %v1751 = vpop.f32.mrf.mxu0
      %v1752 = vadd.f32 %v1562, %v1751
      %v1753 = vpop.f32.mrf.mxu0
      %1754 = vmatprep.mubr.f32.mxu0 0.0
      %1755 = vmatmul.mubr.f32.gmra.mxu0 %v1198
      %v1756 = vpop.f32.mrf.mxu0
      %v1757 = vadd.f32 %v1567, %v1756
      %v1758 = vpop.f32.mrf.mxu0
      %1759 = vmatprep.mubr.f32.mxu0 0.0
      %1760 = vmatmul.mubr.f32.gmra.mxu0 %v1201
      %v1761 = vpop.f32.mrf.mxu0
      %v1762 = vadd.f32 %v1572, %v1761
      %v1763 = vpop.f32.mrf.mxu0
      %1764 = vmatprep.mubr.f32.mxu0 0.0
      %1765 = vmatmul.mubr.f32.gmra.mxu0 %v1204
      %v1766 = vpop.f32.mrf.mxu0
      %v1767 = vadd.f32 %v1577, %v1766
      %v1768 = vpop.f32.mrf.mxu0
      %1769 = vmatprep.mubr.f32.mxu0 0.0
      %1770 = vmatmul.mubr.f32.gmra.mxu0 %v1207
      %v1771 = vpop.f32.mrf.mxu0
      %v1772 = vadd.f32 %v1582, %v1771
      %v1773 = vpop.f32.mrf.mxu0
      %1774 = vmatprep.mubr.f32.mxu0 0.0
      %1775 = vmatmul.mubr.f32.gmra.mxu0 %v1210
      %v1776 = vpop.f32.mrf.mxu0
      %v1777 = vadd.f32 %v1587, %v1776
      %v1778 = vpop.f32.mrf.mxu0
      %1779 = vmatprep.mubr.f32.mxu0 0.0
      %1780 = vmatmul.mubr.f32.gmra.mxu0 %v1213
      %v1781 = vpop.f32.mrf.mxu0
      %v1782 = vadd.f32 %v1592, %v1781
      %v1783 = vpop.f32.mrf.mxu0
      %1784 = vdwg.mxu0
      %v1785 = vmax.f32 %v891, %v1662
      %v1786 = vmax.f32 %v896, %v1667
      %v1787 = vmax.f32 %v901, %v1672
      %v1788 = vmax.f32 %v906, %v1677
      %v1789 = vmax.f32 %v911, %v1682
      %v1790 = vmax.f32 %v916, %v1687
      %v1791 = vmax.f32 %v921, %v1692
      %v1792 = vmax.f32 %v926, %v1697
      %v1793 = vmax.f32 %v931, %v1702
      %v1794 = vmax.f32 %v936, %v1707
      %v1795 = vmax.f32 %v941, %v1712
      %v1796 = vmax.f32 %v946, %v1717
      %v1797 = vmax.f32 %v951, %v1722
      %v1798 = vmax.f32 %v956, %v1727
      %v1799 = vmax.f32 %v961, %v1732
      %v1800 = vmax.f32 %v966, %v1737
      %v1801 = vmax.f32 %v971, %v1742
      %v1802 = vmax.f32 %v976, %v1747
      %v1803 = vmax.f32 %v981, %v1752
      %v1804 = vmax.f32 %v986, %v1757
      %v1805 = vmax.f32 %v991, %v1762
      %v1806 = vmax.f32 %v996, %v1767
      %v1807 = vmax.f32 %v1001, %v1772
      %v1808 = vmax.f32 %v1006, %v1777
      %v1809 = vmax.f32 %v1011, %v1782
      %s1810 = scalar_lea.vmem %s165, 2000
      %v1811 = vld [vmem:[%s1810] sm:$0xff]
      %v1812 = vld [vmem:[%s1810 + $0x8] sm:$0xff]
      %v1813 = vld [vmem:[%s1810 + $0x10] sm:$0xff]
      %v1814 = vld [vmem:[%s1810 + $0x18] sm:$0xff]
      %v1815 = vld [vmem:[%s1810 + $0x20] sm:$0xff]
      %v1816 = vld [vmem:[%s1810 + $0x28] sm:$0xff]
      %v1817 = vld [vmem:[%s1810 + $0x30] sm:$0xff]
      %v1818 = vld [vmem:[%s1810 + $0x38] sm:$0xff]
      %v1819 = vld [vmem:[%s1810 + $0x40] sm:$0xff]
      %v1820 = vld [vmem:[%s1810 + $0x48] sm:$0xff]
      %v1821 = vld [vmem:[%s1810 + $0x50] sm:$0xff]
      %v1822 = vld [vmem:[%s1810 + $0x58] sm:$0xff]
      %v1823 = vld [vmem:[%s1810 + $0x60] sm:$0xff]
      %v1824 = vld [vmem:[%s1810 + $0x68] sm:$0xff]
      %v1825 = vld [vmem:[%s1810 + $0x70] sm:$0xff]
      %v1826 = vld [vmem:[%s1810 + $0x78] sm:$0xff]
      %v1827 = vld [vmem:[%s1810 + $0x80] sm:$0xff]
      %v1828 = vld [vmem:[%s1810 + $0x88] sm:$0xff]
      %v1829 = vld [vmem:[%s1810 + $0x90] sm:$0xff]
      %v1830 = vld [vmem:[%s1810 + $0x98] sm:$0xff]
      %v1831 = vld [vmem:[%s1810 + $0xa0] sm:$0xff]
      %v1832 = vld [vmem:[%s1810 + $0xa8] sm:$0xff]
      %v1833 = vld [vmem:[%s1810 + $0xb0] sm:$0xff]
      %v1834 = vld [vmem:[%s1810 + $0xb8] sm:$0xff]
      %v1835 = vld [vmem:[%s1810 + $0xc0] sm:$0xff]
      %v1836 = vld [vmem:[%s1810 + $0xc8] sm:$0xff]
      %v1837 = vld [vmem:[%s1810 + $0xd0] sm:$0xff]
      %v1838 = vld [vmem:[%s1810 + $0xd8] sm:$0xff]
      %v1839 = vld [vmem:[%s1810 + $0xe0] sm:$0xff]
      %v1840 = vld [vmem:[%s1810 + $0xe8] sm:$0xff]
      %v1841 = vld [vmem:[%s1810 + $0xf0] sm:$0xff]
      %v1842 = vld [vmem:[%s1810 + $0xf8] sm:$0xff]
      %v1843 = vld [vmem:[%s1810 + $0x100] sm:$0xff]
      %v1844 = vld [vmem:[%s1810 + $0x108] sm:$0xff]
      %v1845 = vld [vmem:[%s1810 + $0x110] sm:$0xff]
      %v1846 = vld [vmem:[%s1810 + $0x118] sm:$0xff]
      %v1847 = vld [vmem:[%s1810 + $0x120] sm:$0xff]
      %v1848 = vld [vmem:[%s1810 + $0x128] sm:$0xff]
      %v1849 = vld [vmem:[%s1810 + $0x130] sm:$0xff]
      %v1850 = vld [vmem:[%s1810 + $0x138] sm:$0xff]
      %v1851 = vld [vmem:[%s1810 + $0x140] sm:$0xff]
      %v1852 = vld [vmem:[%s1810 + $0x148] sm:$0xff]
      %v1853 = vld [vmem:[%s1810 + $0x150] sm:$0xff]
      %v1854 = vld [vmem:[%s1810 + $0x158] sm:$0xff]
      %v1855 = vld [vmem:[%s1810 + $0x160] sm:$0xff]
      %v1856 = vld [vmem:[%s1810 + $0x168] sm:$0xff]
      %v1857 = vld [vmem:[%s1810 + $0x170] sm:$0xff]
      %v1858 = vld [vmem:[%s1810 + $0x178] sm:$0xff]
      %v1859 = vld [vmem:[%s1810 + $0x180] sm:$0xff]
      %v1860 = vld [vmem:[%s1810 + $0x188] sm:$0xff]
      %v1861 = vld [vmem:[%s1810 + $0x190] sm:$0xff]
      %v1862 = vld [vmem:[%s1810 + $0x198] sm:$0xff]
      %v1863 = vld [vmem:[%s1810 + $0x1a0] sm:$0xff]
      %v1864 = vld [vmem:[%s1810 + $0x1a8] sm:$0xff]
      %v1865 = vld [vmem:[%s1810 + $0x1b0] sm:$0xff]
      %v1866 = vld [vmem:[%s1810 + $0x1b8] sm:$0xff]
      %v1867 = vld [vmem:[%s1810 + $0x1c0] sm:$0xff]
      %v1868 = vld [vmem:[%s1810 + $0x1c8] sm:$0xff]
      %v1869 = vld [vmem:[%s1810 + $0x1d0] sm:$0xff]
      %v1870 = vld [vmem:[%s1810 + $0x1d8] sm:$0xff]
      %v1871 = vld [vmem:[%s1810 + $0x1e0] sm:$0xff]
      %v1872 = vld [vmem:[%s1810 + $0x1e8] sm:$0xff]
      %v1873 = vld [vmem:[%s1810 + $0x1f0] sm:$0xff]
      %v1874 = vld [vmem:[%s1810 + $0x1f8] sm:$0xff]
      %v1875 = vld [vmem:[%s1810 + $0x200] sm:$0xff]
      %v1876 = vld [vmem:[%s1810 + $0x208] sm:$0xff]
      %v1877 = vld [vmem:[%s1810 + $0x210] sm:$0xff]
      %v1878 = vld [vmem:[%s1810 + $0x218] sm:$0xff]
      %v1879 = vld [vmem:[%s1810 + $0x220] sm:$0xff]
      %v1880 = vld [vmem:[%s1810 + $0x228] sm:$0xff]
      %v1881 = vld [vmem:[%s1810 + $0x230] sm:$0xff]
      %v1882 = vld [vmem:[%s1810 + $0x238] sm:$0xff]
      %v1883 = vld [vmem:[%s1810 + $0x240] sm:$0xff]
      %v1884 = vld [vmem:[%s1810 + $0x248] sm:$0xff]
      %v1885 = vld [vmem:[%s1810 + $0x250] sm:$0xff]
      %v1886 = vld [vmem:[%s1810 + $0x258] sm:$0xff]
      %v1887 = vld [vmem:[%s1810 + $0x260] sm:$0xff]
      %v1888 = vld [vmem:[%s1810 + $0x268] sm:$0xff]
      %v1889 = vld [vmem:[%s1810 + $0x270] sm:$0xff]
      %v1890 = vld [vmem:[%s1810 + $0x278] sm:$0xff]
      %v1891 = vld [vmem:[%s1810 + $0x280] sm:$0xff]
      %v1892 = vld [vmem:[%s1810 + $0x288] sm:$0xff]
      %v1893 = vld [vmem:[%s1810 + $0x290] sm:$0xff]
      %v1894 = vld [vmem:[%s1810 + $0x298] sm:$0xff]
      %v1895 = vld [vmem:[%s1810 + $0x2a0] sm:$0xff]
      %v1896 = vld [vmem:[%s1810 + $0x2a8] sm:$0xff]
      %v1897 = vld [vmem:[%s1810 + $0x2b0] sm:$0xff]
      %v1898 = vld [vmem:[%s1810 + $0x2b8] sm:$0xff]
      %v1899 = vld [vmem:[%s1810 + $0x2c0] sm:$0xff]
      %v1900 = vld [vmem:[%s1810 + $0x2c8] sm:$0xff]
      %v1901 = vld [vmem:[%s1810 + $0x2d0] sm:$0xff]
      %v1902 = vld [vmem:[%s1810 + $0x2d8] sm:$0xff]
      %v1903 = vld [vmem:[%s1810 + $0x2e0] sm:$0xff]
      %v1904 = vld [vmem:[%s1810 + $0x2e8] sm:$0xff]
      %v1905 = vld [vmem:[%s1810 + $0x2f0] sm:$0xff]
      %v1906 = vld [vmem:[%s1810 + $0x2f8] sm:$0xff]
      %v1907 = vld [vmem:[%s1810 + $0x300] sm:$0xff]
      %v1908 = vld [vmem:[%s1810 + $0x308] sm:$0xff]
      %v1909 = vld [vmem:[%s1810 + $0x310] sm:$0xff]
      %v1910 = vld [vmem:[%s1810 + $0x318] sm:$0xff]
      %v1911 = vld [vmem:[%s1810 + $0x320] sm:$0xff]
      %v1912 = vld [vmem:[%s1810 + $0x328] sm:$0xff]
      %v1913 = vld [vmem:[%s1810 + $0x330] sm:$0xff]
      %v1914 = vld [vmem:[%s1810 + $0x338] sm:$0xff]
      %v1915 = vld [vmem:[%s1810 + $0x340] sm:$0xff]
      %v1916 = vld [vmem:[%s1810 + $0x348] sm:$0xff]
      %v1917 = vld [vmem:[%s1810 + $0x350] sm:$0xff]
      %v1918 = vld [vmem:[%s1810 + $0x358] sm:$0xff]
      %v1919 = vld [vmem:[%s1810 + $0x360] sm:$0xff]
      %v1920 = vld [vmem:[%s1810 + $0x368] sm:$0xff]
      %v1921 = vld [vmem:[%s1810 + $0x370] sm:$0xff]
      %v1922 = vld [vmem:[%s1810 + $0x378] sm:$0xff]
      %v1923 = vld [vmem:[%s1810 + $0x380] sm:$0xff]
      %v1924 = vld [vmem:[%s1810 + $0x388] sm:$0xff]
      %v1925 = vld [vmem:[%s1810 + $0x390] sm:$0xff]
      %v1926 = vld [vmem:[%s1810 + $0x398] sm:$0xff]
      %v1927 = vld [vmem:[%s1810 + $0x3a0] sm:$0xff]
      %v1928 = vld [vmem:[%s1810 + $0x3a8] sm:$0xff]
      %v1929 = vld [vmem:[%s1810 + $0x3b0] sm:$0xff]
      %v1930 = vld [vmem:[%s1810 + $0x3b8] sm:$0xff]
      %v1931 = vld [vmem:[%s1810 + $0x3c0] sm:$0xf]
      %v1932 = vld [vmem:[%s1810 + $0x3c8] sm:$0xf]
      %v1933 = vld [vmem:[%s1810 + $0x3d0] sm:$0xf]
      %v1934 = vld [vmem:[%s1810 + $0x3d8] sm:$0xf]
      %v1935 = vld [vmem:[%s1810 + $0x3e0] sm:$0xf]
      %v1937 = vsel %vm368, %v1815, 0
      %v1940 = vsel %vm368, %v1820, 0
      %v1943 = vsel %vm368, %v1825, 0
      %v1946 = vsel %vm368, %v1830, 0
      %v1949 = vsel %vm368, %v1835, 0
      %v1952 = vsel %vm368, %v1840, 0
      %v1955 = vsel %vm368, %v1845, 0
      %v1958 = vsel %vm368, %v1850, 0
      %v1961 = vsel %vm368, %v1855, 0
      %v1964 = vsel %vm368, %v1860, 0
      %v1967 = vsel %vm368, %v1865, 0
      %v1970 = vsel %vm368, %v1870, 0
      %v1973 = vsel %vm368, %v1875, 0
      %v1976 = vsel %vm368, %v1880, 0
      %v1979 = vsel %vm368, %v1885, 0
      %v1982 = vsel %vm368, %v1890, 0
      %v1985 = vsel %vm368, %v1895, 0
      %v1988 = vsel %vm368, %v1900, 0
      %v1991 = vsel %vm368, %v1905, 0
      %v1994 = vsel %vm368, %v1910, 0
      %v1997 = vsel %vm368, %v1915, 0
      %v2000 = vsel %vm368, %v1920, 0
      %v2003 = vsel %vm368, %v1925, 0
      %v2006 = vsel %vm368, %v1930, 0
      %v2009 = vsel %vm368, %v1935, 0
      %2011 = vmatprep.subr.mxu0 0.0
      %2012 = vmatpush1.msra.mxu0 %v311
      %2013 = vmatprep.subr.mxu0 0.0
      %2014 = vmatpush1.msra.mxu0 %v310
      %2015 = vmatprep.subr.mxu0 0.0
      %2016 = vmatpush1.msra.mxu0 %v309
      %2017 = vmatprep.subr.mxu0 0.0
      %2018 = vmatpush1.msra.mxu0 %v308
      %2019 = vmatprep.subr.mxu0 0.0
      %2020 = vmatpush1.msra.mxu0 %v307
      %2021 = vmatprep.subr.mxu0 0.0
      %2022 = vmatpush1.msra.mxu0 %v306
      %2023 = vmatprep.subr.mxu0 0.0
      %2024 = vmatpush1.msra.mxu0 %v305
      %2025 = vmatprep.subr.mxu0 0.0
      %2026 = vmatpush1.msra.mxu0 %v304
      %2027 = vmatprep.subr.mxu0 0.0
      %2028 = vmatpush1.msra.mxu0 %v303
      %2029 = vmatprep.subr.mxu0 0.0
      %2030 = vmatpush1.msra.mxu0 %v302
      %2031 = vmatprep.subr.mxu0 0.0
      %2032 = vmatpush1.msra.mxu0 %v301
      %2033 = vmatprep.subr.mxu0 0.0
      %2034 = vmatpush1.msra.mxu0 %v300
      %2035 = vmatprep.subr.mxu0 0.0
      %2036 = vmatpush1.msra.mxu0 %v299
      %2037 = vmatprep.subr.mxu0 0.0
      %2038 = vmatpush1.msra.mxu0 %v298
      %2039 = vmatprep.subr.mxu0 0.0
      %2040 = vmatpush1.msra.mxu0 %v297
      %2041 = vmatprep.subr.mxu0 0.0
      %2042 = vmatpush1.msra.mxu0 %v296
      %2043 = vmatprep.subr.mxu0 0.0
      %2044 = vmatpush2.msra.mxu0 %v327
      %2045 = vmatprep.subr.mxu0 0.0
      %2046 = vmatpush2.msra.mxu0 %v326
      %2047 = vmatprep.subr.mxu0 0.0
      %2048 = vmatpush2.msra.mxu0 %v325
      %2049 = vmatprep.subr.mxu0 0.0
      %2050 = vmatpush2.msra.mxu0 %v324
      %2051 = vmatprep.subr.mxu0 0.0
      %2052 = vmatpush2.msra.mxu0 %v323
      %2053 = vmatprep.subr.mxu0 0.0
      %2054 = vmatpush2.msra.mxu0 %v322
      %2055 = vmatprep.subr.mxu0 0.0
      %2056 = vmatpush2.msra.mxu0 %v321
      %2057 = vmatprep.subr.mxu0 0.0
      %2058 = vmatpush2.msra.mxu0 %v320
      %2059 = vmatprep.subr.mxu0 0.0
      %2060 = vmatpush2.msra.mxu0 %v319
      %2061 = vmatprep.subr.mxu0 0.0
      %2062 = vmatpush2.msra.mxu0 %v318
      %2063 = vmatprep.subr.mxu0 0.0
      %2064 = vmatpush2.msra.mxu0 %v317
      %2065 = vmatprep.subr.mxu0 0.0
      %2066 = vmatpush2.msra.mxu0 %v316
      %2067 = vmatprep.subr.mxu0 0.0
      %2068 = vmatpush2.msra.mxu0 %v315
      %2069 = vmatprep.subr.mxu0 0.0
      %2070 = vmatpush2.msra.mxu0 %v314
      %2071 = vmatprep.subr.mxu0 0.0
      %2072 = vmatpush2.msra.mxu0 %v313
      %2073 = vmatprep.subr.mxu0 0.0
      %2074 = vmatpush2.msra.mxu0 %v312
      %2075 = vmatprep.mubr.f32.mxu0 %v1812
      %2076 = vmatmul.mubr.f32.gmra.mxu0 %v1811
      %v2077 = vpop.f32.mrf.mxu0
      %v2078 = vadd.f32 0.0, %v2077
      %v2079 = vpop.f32.mrf.mxu0
      %2080 = vmatprep.mubr.f32.mxu0 %v1817
      %2081 = vmatmul.mubr.f32.gmra.mxu0 %v1816
      %v2082 = vpop.f32.mrf.mxu0
      %v2083 = vadd.f32 0.0, %v2082
      %v2084 = vpop.f32.mrf.mxu0
      %2085 = vmatprep.mubr.f32.mxu0 %v1822
      %2086 = vmatmul.mubr.f32.gmra.mxu0 %v1821
      %v2087 = vpop.f32.mrf.mxu0
      %v2088 = vadd.f32 0.0, %v2087
      %v2089 = vpop.f32.mrf.mxu0
      %2090 = vmatprep.mubr.f32.mxu0 %v1827
      %2091 = vmatmul.mubr.f32.gmra.mxu0 %v1826
      %v2092 = vpop.f32.mrf.mxu0
      %v2093 = vadd.f32 0.0, %v2092
      %v2094 = vpop.f32.mrf.mxu0
      %2095 = vmatprep.mubr.f32.mxu0 %v1832
      %2096 = vmatmul.mubr.f32.gmra.mxu0 %v1831
      %v2097 = vpop.f32.mrf.mxu0
      %v2098 = vadd.f32 0.0, %v2097
      %v2099 = vpop.f32.mrf.mxu0
      %2100 = vmatprep.mubr.f32.mxu0 %v1837
      %2101 = vmatmul.mubr.f32.gmra.mxu0 %v1836
      %v2102 = vpop.f32.mrf.mxu0
      %v2103 = vadd.f32 0.0, %v2102
      %v2104 = vpop.f32.mrf.mxu0
      %2105 = vmatprep.mubr.f32.mxu0 %v1842
      %2106 = vmatmul.mubr.f32.gmra.mxu0 %v1841
      %v2107 = vpop.f32.mrf.mxu0
      %v2108 = vadd.f32 0.0, %v2107
      %v2109 = vpop.f32.mrf.mxu0
      %2110 = vmatprep.mubr.f32.mxu0 %v1847
      %2111 = vmatmul.mubr.f32.gmra.mxu0 %v1846
      %v2112 = vpop.f32.mrf.mxu0
      %v2113 = vadd.f32 0.0, %v2112
      %v2114 = vpop.f32.mrf.mxu0
      %2115 = vmatprep.mubr.f32.mxu0 %v1852
      %2116 = vmatmul.mubr.f32.gmra.mxu0 %v1851
      %v2117 = vpop.f32.mrf.mxu0
      %v2118 = vadd.f32 0.0, %v2117
      %v2119 = vpop.f32.mrf.mxu0
      %2120 = vmatprep.mubr.f32.mxu0 %v1857
      %2121 = vmatmul.mubr.f32.gmra.mxu0 %v1856
      %v2122 = vpop.f32.mrf.mxu0
      %v2123 = vadd.f32 0.0, %v2122
      %v2124 = vpop.f32.mrf.mxu0
      %2125 = vmatprep.mubr.f32.mxu0 %v1862
      %2126 = vmatmul.mubr.f32.gmra.mxu0 %v1861
      %v2127 = vpop.f32.mrf.mxu0
      %v2128 = vadd.f32 0.0, %v2127
      %v2129 = vpop.f32.mrf.mxu0
      %2130 = vmatprep.mubr.f32.mxu0 %v1867
      %2131 = vmatmul.mubr.f32.gmra.mxu0 %v1866
      %v2132 = vpop.f32.mrf.mxu0
      %v2133 = vadd.f32 0.0, %v2132
      %v2134 = vpop.f32.mrf.mxu0
      %2135 = vmatprep.mubr.f32.mxu0 %v1872
      %2136 = vmatmul.mubr.f32.gmra.mxu0 %v1871
      %v2137 = vpop.f32.mrf.mxu0
      %v2138 = vadd.f32 0.0, %v2137
      %v2139 = vpop.f32.mrf.mxu0
      %2140 = vmatprep.mubr.f32.mxu0 %v1877
      %2141 = vmatmul.mubr.f32.gmra.mxu0 %v1876
      %v2142 = vpop.f32.mrf.mxu0
      %v2143 = vadd.f32 0.0, %v2142
      %v2144 = vpop.f32.mrf.mxu0
      %2145 = vmatprep.mubr.f32.mxu0 %v1882
      %2146 = vmatmul.mubr.f32.gmra.mxu0 %v1881
      %v2147 = vpop.f32.mrf.mxu0
      %v2148 = vadd.f32 0.0, %v2147
      %v2149 = vpop.f32.mrf.mxu0
      %2150 = vmatprep.mubr.f32.mxu0 %v1887
      %2151 = vmatmul.mubr.f32.gmra.mxu0 %v1886
      %v2152 = vpop.f32.mrf.mxu0
      %v2153 = vadd.f32 0.0, %v2152
      %v2154 = vpop.f32.mrf.mxu0
      %2155 = vmatprep.mubr.f32.mxu0 %v1892
      %2156 = vmatmul.mubr.f32.gmra.mxu0 %v1891
      %v2157 = vpop.f32.mrf.mxu0
      %v2158 = vadd.f32 0.0, %v2157
      %v2159 = vpop.f32.mrf.mxu0
      %2160 = vmatprep.mubr.f32.mxu0 %v1897
      %2161 = vmatmul.mubr.f32.gmra.mxu0 %v1896
      %v2162 = vpop.f32.mrf.mxu0
      %v2163 = vadd.f32 0.0, %v2162
      %v2164 = vpop.f32.mrf.mxu0
      %2165 = vmatprep.mubr.f32.mxu0 %v1902
      %2166 = vmatmul.mubr.f32.gmra.mxu0 %v1901
      %v2167 = vpop.f32.mrf.mxu0
      %v2168 = vadd.f32 0.0, %v2167
      %v2169 = vpop.f32.mrf.mxu0
      %2170 = vmatprep.mubr.f32.mxu0 %v1907
      %2171 = vmatmul.mubr.f32.gmra.mxu0 %v1906
      %v2172 = vpop.f32.mrf.mxu0
      %v2173 = vadd.f32 0.0, %v2172
      %v2174 = vpop.f32.mrf.mxu0
      %2175 = vmatprep.mubr.f32.mxu0 %v1912
      %2176 = vmatmul.mubr.f32.gmra.mxu0 %v1911
      %v2177 = vpop.f32.mrf.mxu0
      %v2178 = vadd.f32 0.0, %v2177
      %v2179 = vpop.f32.mrf.mxu0
      %2180 = vmatprep.mubr.f32.mxu0 %v1917
      %2181 = vmatmul.mubr.f32.gmra.mxu0 %v1916
      %v2182 = vpop.f32.mrf.mxu0
      %v2183 = vadd.f32 0.0, %v2182
      %v2184 = vpop.f32.mrf.mxu0
      %2185 = vmatprep.mubr.f32.mxu0 %v1922
      %2186 = vmatmul.mubr.f32.gmra.mxu0 %v1921
      %v2187 = vpop.f32.mrf.mxu0
      %v2188 = vadd.f32 0.0, %v2187
      %v2189 = vpop.f32.mrf.mxu0
      %2190 = vmatprep.mubr.f32.mxu0 %v1927
      %2191 = vmatmul.mubr.f32.gmra.mxu0 %v1926
      %v2192 = vpop.f32.mrf.mxu0
      %v2193 = vadd.f32 0.0, %v2192
      %v2194 = vpop.f32.mrf.mxu0
      %2195 = vmatprep.mubr.f32.mxu0 %v1932
      %2196 = vmatmul.mubr.f32.gmra.mxu0 %v1931
      %v2197 = vpop.f32.mrf.mxu0
      %v2198 = vadd.f32 0.0, %v2197
      %v2199 = vpop.f32.mrf.mxu0
      %2200 = vdwg.mxu0
      %2201 = vmatprep.subr.mxu0 0.0
      %2202 = vmatpush1.msra.mxu0 %v343
      %2203 = vmatprep.subr.mxu0 0.0
      %2204 = vmatpush1.msra.mxu0 %v342
      %2205 = vmatprep.subr.mxu0 0.0
      %2206 = vmatpush1.msra.mxu0 %v341
      %2207 = vmatprep.subr.mxu0 0.0
      %2208 = vmatpush1.msra.mxu0 %v340
      %2209 = vmatprep.subr.mxu0 0.0
      %2210 = vmatpush1.msra.mxu0 %v339
      %2211 = vmatprep.subr.mxu0 0.0
      %2212 = vmatpush1.msra.mxu0 %v338
      %2213 = vmatprep.subr.mxu0 0.0
      %2214 = vmatpush1.msra.mxu0 %v337
      %2215 = vmatprep.subr.mxu0 0.0
      %2216 = vmatpush1.msra.mxu0 %v336
      %2217 = vmatprep.subr.mxu0 0.0
      %2218 = vmatpush1.msra.mxu0 %v335
      %2219 = vmatprep.subr.mxu0 0.0
      %2220 = vmatpush1.msra.mxu0 %v334
      %2221 = vmatprep.subr.mxu0 0.0
      %2222 = vmatpush1.msra.mxu0 %v333
      %2223 = vmatprep.subr.mxu0 0.0
      %2224 = vmatpush1.msra.mxu0 %v332
      %2225 = vmatprep.subr.mxu0 0.0
      %2226 = vmatpush1.msra.mxu0 %v331
      %2227 = vmatprep.subr.mxu0 0.0
      %2228 = vmatpush1.msra.mxu0 %v330
      %2229 = vmatprep.subr.mxu0 0.0
      %2230 = vmatpush1.msra.mxu0 %v329
      %2231 = vmatprep.subr.mxu0 0.0
      %2232 = vmatpush1.msra.mxu0 %v328
      %2233 = vmatprep.subr.mxu0 0.0
      %2234 = vmatpush2.msra.mxu0 %v359
      %2235 = vmatprep.subr.mxu0 0.0
      %2236 = vmatpush2.msra.mxu0 %v358
      %2237 = vmatprep.subr.mxu0 0.0
      %2238 = vmatpush2.msra.mxu0 %v357
      %2239 = vmatprep.subr.mxu0 0.0
      %2240 = vmatpush2.msra.mxu0 %v356
      %2241 = vmatprep.subr.mxu0 0.0
      %2242 = vmatpush2.msra.mxu0 %v355
      %2243 = vmatprep.subr.mxu0 0.0
      %2244 = vmatpush2.msra.mxu0 %v354
      %2245 = vmatprep.subr.mxu0 0.0
      %2246 = vmatpush2.msra.mxu0 %v353
      %2247 = vmatprep.subr.mxu0 0.0
      %2248 = vmatpush2.msra.mxu0 %v352
      %2249 = vmatprep.subr.mxu0 0.0
      %2250 = vmatpush2.msra.mxu0 %v351
      %2251 = vmatprep.subr.mxu0 0.0
      %2252 = vmatpush2.msra.mxu0 %v350
      %2253 = vmatprep.subr.mxu0 0.0
      %2254 = vmatpush2.msra.mxu0 %v349
      %2255 = vmatprep.subr.mxu0 0.0
      %2256 = vmatpush2.msra.mxu0 %v348
      %2257 = vmatprep.subr.mxu0 0.0
      %2258 = vmatpush2.msra.mxu0 %v347
      %2259 = vmatprep.subr.mxu0 0.0
      %2260 = vmatpush2.msra.mxu0 %v346
      %2261 = vmatprep.subr.mxu0 0.0
      %2262 = vmatpush2.msra.mxu0 %v345
      %2263 = vmatprep.subr.mxu0 0.0
      %2264 = vmatpush2.msra.mxu0 %v344
      %2265 = vmatprep.mubr.f32.mxu0 %v1814
      %2266 = vmatmul.mubr.f32.gmra.mxu0 %v1813
      %v2267 = vpop.f32.mrf.mxu0
      %v2268 = vadd.f32 %v2078, %v2267
      %v2269 = vpop.f32.mrf.mxu0
      %2270 = vmatprep.mubr.f32.mxu0 %v1819
      %2271 = vmatmul.mubr.f32.gmra.mxu0 %v1818
      %v2272 = vpop.f32.mrf.mxu0
      %v2273 = vadd.f32 %v2083, %v2272
      %v2274 = vpop.f32.mrf.mxu0
      %2275 = vmatprep.mubr.f32.mxu0 %v1824
      %2276 = vmatmul.mubr.f32.gmra.mxu0 %v1823
      %v2277 = vpop.f32.mrf.mxu0
      %v2278 = vadd.f32 %v2088, %v2277
      %v2279 = vpop.f32.mrf.mxu0
      %2280 = vmatprep.mubr.f32.mxu0 %v1829
      %2281 = vmatmul.mubr.f32.gmra.mxu0 %v1828
      %v2282 = vpop.f32.mrf.mxu0
      %v2283 = vadd.f32 %v2093, %v2282
      %v2284 = vpop.f32.mrf.mxu0
      %2285 = vmatprep.mubr.f32.mxu0 %v1834
      %2286 = vmatmul.mubr.f32.gmra.mxu0 %v1833
      %v2287 = vpop.f32.mrf.mxu0
      %v2288 = vadd.f32 %v2098, %v2287
      %v2289 = vpop.f32.mrf.mxu0
      %2290 = vmatprep.mubr.f32.mxu0 %v1839
      %2291 = vmatmul.mubr.f32.gmra.mxu0 %v1838
      %v2292 = vpop.f32.mrf.mxu0
      %v2293 = vadd.f32 %v2103, %v2292
      %v2294 = vpop.f32.mrf.mxu0
      %2295 = vmatprep.mubr.f32.mxu0 %v1844
      %2296 = vmatmul.mubr.f32.gmra.mxu0 %v1843
      %v2297 = vpop.f32.mrf.mxu0
      %v2298 = vadd.f32 %v2108, %v2297
      %v2299 = vpop.f32.mrf.mxu0
      %2300 = vmatprep.mubr.f32.mxu0 %v1849
      %2301 = vmatmul.mubr.f32.gmra.mxu0 %v1848
      %v2302 = vpop.f32.mrf.mxu0
      %v2303 = vadd.f32 %v2113, %v2302
      %v2304 = vpop.f32.mrf.mxu0
      %2305 = vmatprep.mubr.f32.mxu0 %v1854
      %2306 = vmatmul.mubr.f32.gmra.mxu0 %v1853
      %v2307 = vpop.f32.mrf.mxu0
      %v2308 = vadd.f32 %v2118, %v2307
      %v2309 = vpop.f32.mrf.mxu0
      %2310 = vmatprep.mubr.f32.mxu0 %v1859
      %2311 = vmatmul.mubr.f32.gmra.mxu0 %v1858
      %v2312 = vpop.f32.mrf.mxu0
      %v2313 = vadd.f32 %v2123, %v2312
      %v2314 = vpop.f32.mrf.mxu0
      %2315 = vmatprep.mubr.f32.mxu0 %v1864
      %2316 = vmatmul.mubr.f32.gmra.mxu0 %v1863
      %v2317 = vpop.f32.mrf.mxu0
      %v2318 = vadd.f32 %v2128, %v2317
      %v2319 = vpop.f32.mrf.mxu0
      %2320 = vmatprep.mubr.f32.mxu0 %v1869
      %2321 = vmatmul.mubr.f32.gmra.mxu0 %v1868
      %v2322 = vpop.f32.mrf.mxu0
      %v2323 = vadd.f32 %v2133, %v2322
      %v2324 = vpop.f32.mrf.mxu0
      %2325 = vmatprep.mubr.f32.mxu0 %v1874
      %2326 = vmatmul.mubr.f32.gmra.mxu0 %v1873
      %v2327 = vpop.f32.mrf.mxu0
      %v2328 = vadd.f32 %v2138, %v2327
      %v2329 = vpop.f32.mrf.mxu0
      %2330 = vmatprep.mubr.f32.mxu0 %v1879
      %2331 = vmatmul.mubr.f32.gmra.mxu0 %v1878
      %v2332 = vpop.f32.mrf.mxu0
      %v2333 = vadd.f32 %v2143, %v2332
      %v2334 = vpop.f32.mrf.mxu0
      %2335 = vmatprep.mubr.f32.mxu0 %v1884
      %2336 = vmatmul.mubr.f32.gmra.mxu0 %v1883
      %v2337 = vpop.f32.mrf.mxu0
      %v2338 = vadd.f32 %v2148, %v2337
      %v2339 = vpop.f32.mrf.mxu0
      %2340 = vmatprep.mubr.f32.mxu0 %v1889
      %2341 = vmatmul.mubr.f32.gmra.mxu0 %v1888
      %v2342 = vpop.f32.mrf.mxu0
      %v2343 = vadd.f32 %v2153, %v2342
      %v2344 = vpop.f32.mrf.mxu0
      %2345 = vmatprep.mubr.f32.mxu0 %v1894
      %2346 = vmatmul.mubr.f32.gmra.mxu0 %v1893
      %v2347 = vpop.f32.mrf.mxu0
      %v2348 = vadd.f32 %v2158, %v2347
      %v2349 = vpop.f32.mrf.mxu0
      %2350 = vmatprep.mubr.f32.mxu0 %v1899
      %2351 = vmatmul.mubr.f32.gmra.mxu0 %v1898
      %v2352 = vpop.f32.mrf.mxu0
      %v2353 = vadd.f32 %v2163, %v2352
      %v2354 = vpop.f32.mrf.mxu0
      %2355 = vmatprep.mubr.f32.mxu0 %v1904
      %2356 = vmatmul.mubr.f32.gmra.mxu0 %v1903
      %v2357 = vpop.f32.mrf.mxu0
      %v2358 = vadd.f32 %v2168, %v2357
      %v2359 = vpop.f32.mrf.mxu0
      %2360 = vmatprep.mubr.f32.mxu0 %v1909
      %2361 = vmatmul.mubr.f32.gmra.mxu0 %v1908
      %v2362 = vpop.f32.mrf.mxu0
      %v2363 = vadd.f32 %v2173, %v2362
      %v2364 = vpop.f32.mrf.mxu0
      %2365 = vmatprep.mubr.f32.mxu0 %v1914
      %2366 = vmatmul.mubr.f32.gmra.mxu0 %v1913
      %v2367 = vpop.f32.mrf.mxu0
      %v2368 = vadd.f32 %v2178, %v2367
      %v2369 = vpop.f32.mrf.mxu0
      %2370 = vmatprep.mubr.f32.mxu0 %v1919
      %2371 = vmatmul.mubr.f32.gmra.mxu0 %v1918
      %v2372 = vpop.f32.mrf.mxu0
      %v2373 = vadd.f32 %v2183, %v2372
      %v2374 = vpop.f32.mrf.mxu0
      %2375 = vmatprep.mubr.f32.mxu0 %v1924
      %2376 = vmatmul.mubr.f32.gmra.mxu0 %v1923
      %v2377 = vpop.f32.mrf.mxu0
      %v2378 = vadd.f32 %v2188, %v2377
      %v2379 = vpop.f32.mrf.mxu0
      %2380 = vmatprep.mubr.f32.mxu0 %v1929
      %2381 = vmatmul.mubr.f32.gmra.mxu0 %v1928
      %v2382 = vpop.f32.mrf.mxu0
      %v2383 = vadd.f32 %v2193, %v2382
      %v2384 = vpop.f32.mrf.mxu0
      %2385 = vmatprep.mubr.f32.mxu0 %v1934
      %2386 = vmatmul.mubr.f32.gmra.mxu0 %v1933
      %v2387 = vpop.f32.mrf.mxu0
      %v2388 = vadd.f32 %v2198, %v2387
      %v2389 = vpop.f32.mrf.mxu0
      %2390 = vdwg.mxu0
      %2391 = vmatprep.subr.mxu0 0.0
      %2392 = vmatpush1.msra.mxu0 0.0
      %2393 = vmatprep.subr.mxu0 0.0
      %2394 = vmatpush1.msra.mxu0 0.0
      %2395 = vmatprep.subr.mxu0 0.0
      %2396 = vmatpush1.msra.mxu0 0.0
      %2397 = vmatprep.subr.mxu0 0.0
      %2398 = vmatpush1.msra.mxu0 0.0
      %2399 = vmatprep.subr.mxu0 0.0
      %2400 = vmatpush1.msra.mxu0 0.0
      %2401 = vmatprep.subr.mxu0 0.0
      %2402 = vmatpush1.msra.mxu0 0.0
      %2403 = vmatprep.subr.mxu0 0.0
      %2404 = vmatpush1.msra.mxu0 0.0
      %2405 = vmatprep.subr.mxu0 0.0
      %2406 = vmatpush1.msra.mxu0 0.0
      %2407 = vmatprep.subr.mxu0 0.0
      %2408 = vmatpush1.msra.mxu0 %v367
      %2409 = vmatprep.subr.mxu0 0.0
      %2410 = vmatpush1.msra.mxu0 %v366
      %2411 = vmatprep.subr.mxu0 0.0
      %2412 = vmatpush1.msra.mxu0 %v365
      %2413 = vmatprep.subr.mxu0 0.0
      %2414 = vmatpush1.msra.mxu0 %v364
      %2415 = vmatprep.subr.mxu0 0.0
      %2416 = vmatpush1.msra.mxu0 %v363
      %2417 = vmatprep.subr.mxu0 0.0
      %2418 = vmatpush1.msra.mxu0 %v362
      %2419 = vmatprep.subr.mxu0 0.0
      %2420 = vmatpush1.msra.mxu0 %v361
      %2421 = vmatprep.subr.mxu0 0.0
      %2422 = vmatpush1.msra.mxu0 %v360
      %2423 = vmatprep.subr.mxu0 0.0
      %2424 = vmatpush2.msra.mxu0 0.0
      %2425 = vmatprep.subr.mxu0 0.0
      %2426 = vmatpush2.msra.mxu0 0.0
      %2427 = vmatprep.subr.mxu0 0.0
      %2428 = vmatpush2.msra.mxu0 0.0
      %2429 = vmatprep.subr.mxu0 0.0
      %2430 = vmatpush2.msra.mxu0 0.0
      %2431 = vmatprep.subr.mxu0 0.0
      %2432 = vmatpush2.msra.mxu0 0.0
      %2433 = vmatprep.subr.mxu0 0.0
      %2434 = vmatpush2.msra.mxu0 0.0
      %2435 = vmatprep.subr.mxu0 0.0
      %2436 = vmatpush2.msra.mxu0 0.0
      %2437 = vmatprep.subr.mxu0 0.0
      %2438 = vmatpush2.msra.mxu0 0.0
      %2439 = vmatprep.subr.mxu0 0.0
      %2440 = vmatpush2.msra.mxu0 0.0
      %2441 = vmatprep.subr.mxu0 0.0
      %2442 = vmatpush2.msra.mxu0 0.0
      %2443 = vmatprep.subr.mxu0 0.0
      %2444 = vmatpush2.msra.mxu0 0.0
      %2445 = vmatprep.subr.mxu0 0.0
      %2446 = vmatpush2.msra.mxu0 0.0
      %2447 = vmatprep.subr.mxu0 0.0
      %2448 = vmatpush2.msra.mxu0 0.0
      %2449 = vmatprep.subr.mxu0 0.0
      %2450 = vmatpush2.msra.mxu0 0.0
      %2451 = vmatprep.subr.mxu0 0.0
      %2452 = vmatpush2.msra.mxu0 0.0
      %2453 = vmatprep.subr.mxu0 0.0
      %2454 = vmatpush2.msra.mxu0 0.0
      %2455 = vmatprep.mubr.f32.mxu0 0.0
      %2456 = vmatmul.mubr.f32.gmra.mxu0 %v1937
      %v2457 = vpop.f32.mrf.mxu0
      %v2458 = vadd.f32 %v2268, %v2457
      %v2459 = vpop.f32.mrf.mxu0
      %2460 = vmatprep.mubr.f32.mxu0 0.0
      %2461 = vmatmul.mubr.f32.gmra.mxu0 %v1940
      %v2462 = vpop.f32.mrf.mxu0
      %v2463 = vadd.f32 %v2273, %v2462
      %v2464 = vpop.f32.mrf.mxu0
      %2465 = vmatprep.mubr.f32.mxu0 0.0
      %2466 = vmatmul.mubr.f32.gmra.mxu0 %v1943
      %v2467 = vpop.f32.mrf.mxu0
      %v2468 = vadd.f32 %v2278, %v2467
      %v2469 = vpop.f32.mrf.mxu0
      %2470 = vmatprep.mubr.f32.mxu0 0.0
      %2471 = vmatmul.mubr.f32.gmra.mxu0 %v1946
      %v2472 = vpop.f32.mrf.mxu0
      %v2473 = vadd.f32 %v2283, %v2472
      %v2474 = vpop.f32.mrf.mxu0
      %2475 = vmatprep.mubr.f32.mxu0 0.0
      %2476 = vmatmul.mubr.f32.gmra.mxu0 %v1949
      %v2477 = vpop.f32.mrf.mxu0
      %v2478 = vadd.f32 %v2288, %v2477
      %v2479 = vpop.f32.mrf.mxu0
      %2480 = vmatprep.mubr.f32.mxu0 0.0
      %2481 = vmatmul.mubr.f32.gmra.mxu0 %v1952
      %v2482 = vpop.f32.mrf.mxu0
      %v2483 = vadd.f32 %v2293, %v2482
      %v2484 = vpop.f32.mrf.mxu0
      %2485 = vmatprep.mubr.f32.mxu0 0.0
      %2486 = vmatmul.mubr.f32.gmra.mxu0 %v1955
      %v2487 = vpop.f32.mrf.mxu0
      %v2488 = vadd.f32 %v2298, %v2487
      %v2489 = vpop.f32.mrf.mxu0
      %2490 = vmatprep.mubr.f32.mxu0 0.0
      %2491 = vmatmul.mubr.f32.gmra.mxu0 %v1958
      %v2492 = vpop.f32.mrf.mxu0
      %v2493 = vadd.f32 %v2303, %v2492
      %v2494 = vpop.f32.mrf.mxu0
      %2495 = vmatprep.mubr.f32.mxu0 0.0
      %2496 = vmatmul.mubr.f32.gmra.mxu0 %v1961
      %v2497 = vpop.f32.mrf.mxu0
      %v2498 = vadd.f32 %v2308, %v2497
      %v2499 = vpop.f32.mrf.mxu0
      %2500 = vmatprep.mubr.f32.mxu0 0.0
      %2501 = vmatmul.mubr.f32.gmra.mxu0 %v1964
      %v2502 = vpop.f32.mrf.mxu0
      %v2503 = vadd.f32 %v2313, %v2502
      %v2504 = vpop.f32.mrf.mxu0
      %2505 = vmatprep.mubr.f32.mxu0 0.0
      %2506 = vmatmul.mubr.f32.gmra.mxu0 %v1967
      %v2507 = vpop.f32.mrf.mxu0
      %v2508 = vadd.f32 %v2318, %v2507
      %v2509 = vpop.f32.mrf.mxu0
      %2510 = vmatprep.mubr.f32.mxu0 0.0
      %2511 = vmatmul.mubr.f32.gmra.mxu0 %v1970
      %v2512 = vpop.f32.mrf.mxu0
      %v2513 = vadd.f32 %v2323, %v2512
      %v2514 = vpop.f32.mrf.mxu0
      %2515 = vmatprep.mubr.f32.mxu0 0.0
      %2516 = vmatmul.mubr.f32.gmra.mxu0 %v1973
      %v2517 = vpop.f32.mrf.mxu0
      %v2518 = vadd.f32 %v2328, %v2517
      %v2519 = vpop.f32.mrf.mxu0
      %2520 = vmatprep.mubr.f32.mxu0 0.0
      %2521 = vmatmul.mubr.f32.gmra.mxu0 %v1976
      %v2522 = vpop.f32.mrf.mxu0
      %v2523 = vadd.f32 %v2333, %v2522
      %v2524 = vpop.f32.mrf.mxu0
      %2525 = vmatprep.mubr.f32.mxu0 0.0
      %2526 = vmatmul.mubr.f32.gmra.mxu0 %v1979
      %v2527 = vpop.f32.mrf.mxu0
      %v2528 = vadd.f32 %v2338, %v2527
      %v2529 = vpop.f32.mrf.mxu0
      %2530 = vmatprep.mubr.f32.mxu0 0.0
      %2531 = vmatmul.mubr.f32.gmra.mxu0 %v1982
      %v2532 = vpop.f32.mrf.mxu0
      %v2533 = vadd.f32 %v2343, %v2532
      %v2534 = vpop.f32.mrf.mxu0
      %2535 = vmatprep.mubr.f32.mxu0 0.0
      %2536 = vmatmul.mubr.f32.gmra.mxu0 %v1985
      %v2537 = vpop.f32.mrf.mxu0
      %v2538 = vadd.f32 %v2348, %v2537
      %v2539 = vpop.f32.mrf.mxu0
      %2540 = vmatprep.mubr.f32.mxu0 0.0
      %2541 = vmatmul.mubr.f32.gmra.mxu0 %v1988
      %v2542 = vpop.f32.mrf.mxu0
      %v2543 = vadd.f32 %v2353, %v2542
      %v2544 = vpop.f32.mrf.mxu0
      %2545 = vmatprep.mubr.f32.mxu0 0.0
      %2546 = vmatmul.mubr.f32.gmra.mxu0 %v1991
      %v2547 = vpop.f32.mrf.mxu0
      %v2548 = vadd.f32 %v2358, %v2547
      %v2549 = vpop.f32.mrf.mxu0
      %2550 = vmatprep.mubr.f32.mxu0 0.0
      %2551 = vmatmul.mubr.f32.gmra.mxu0 %v1994
      %v2552 = vpop.f32.mrf.mxu0
      %v2553 = vadd.f32 %v2363, %v2552
      %v2554 = vpop.f32.mrf.mxu0
      %2555 = vmatprep.mubr.f32.mxu0 0.0
      %2556 = vmatmul.mubr.f32.gmra.mxu0 %v1997
      %v2557 = vpop.f32.mrf.mxu0
      %v2558 = vadd.f32 %v2368, %v2557
      %v2559 = vpop.f32.mrf.mxu0
      %2560 = vmatprep.mubr.f32.mxu0 0.0
      %2561 = vmatmul.mubr.f32.gmra.mxu0 %v2000
      %v2562 = vpop.f32.mrf.mxu0
      %v2563 = vadd.f32 %v2373, %v2562
      %v2564 = vpop.f32.mrf.mxu0
      %2565 = vmatprep.mubr.f32.mxu0 0.0
      %2566 = vmatmul.mubr.f32.gmra.mxu0 %v2003
      %v2567 = vpop.f32.mrf.mxu0
      %v2568 = vadd.f32 %v2378, %v2567
      %v2569 = vpop.f32.mrf.mxu0
      %2570 = vmatprep.mubr.f32.mxu0 0.0
      %2571 = vmatmul.mubr.f32.gmra.mxu0 %v2006
      %v2572 = vpop.f32.mrf.mxu0
      %v2573 = vadd.f32 %v2383, %v2572
      %v2574 = vpop.f32.mrf.mxu0
      %2575 = vmatprep.mubr.f32.mxu0 0.0
      %2576 = vmatmul.mubr.f32.gmra.mxu0 %v2009
      %v2577 = vpop.f32.mrf.mxu0
      %v2578 = vadd.f32 %v2388, %v2577
      %v2579 = vpop.f32.mrf.mxu0
      %2580 = vdwg.mxu0
      %v2581 = vmax.f32 %v1785, %v2458
      %v2582 = vmax.f32 %v1786, %v2463
      %v2583 = vmax.f32 %v1787, %v2468
      %v2584 = vmax.f32 %v1788, %v2473
      %v2585 = vmax.f32 %v1789, %v2478
      %v2586 = vmax.f32 %v1790, %v2483
      %v2587 = vmax.f32 %v1791, %v2488
      %v2588 = vmax.f32 %v1792, %v2493
      %v2589 = vmax.f32 %v1793, %v2498
      %v2590 = vmax.f32 %v1794, %v2503
      %v2591 = vmax.f32 %v1795, %v2508
      %v2592 = vmax.f32 %v1796, %v2513
      %v2593 = vmax.f32 %v1797, %v2518
      %v2594 = vmax.f32 %v1798, %v2523
      %v2595 = vmax.f32 %v1799, %v2528
      %v2596 = vmax.f32 %v1800, %v2533
      %v2597 = vmax.f32 %v1801, %v2538
      %v2598 = vmax.f32 %v1802, %v2543
      %v2599 = vmax.f32 %v1803, %v2548
      %v2600 = vmax.f32 %v1804, %v2553
      %v2601 = vmax.f32 %v1805, %v2558
      %v2602 = vmax.f32 %v1806, %v2563
      %v2603 = vmax.f32 %v1807, %v2568
      %v2604 = vmax.f32 %v1808, %v2573
      %v2605 = vmax.f32 %v1809, %v2578
      %s2606 = scalar_lea.vmem %s165, 3000
      %v2607 = vld [vmem:[%s2606] sm:$0xff]
      %v2608 = vld [vmem:[%s2606 + $0x8] sm:$0xff]
      %v2609 = vld [vmem:[%s2606 + $0x10] sm:$0xff]
      %v2610 = vld [vmem:[%s2606 + $0x18] sm:$0xff]
      %v2611 = vld [vmem:[%s2606 + $0x20] sm:$0xff]
      %v2612 = vld [vmem:[%s2606 + $0x28] sm:$0xff]
      %v2613 = vld [vmem:[%s2606 + $0x30] sm:$0xff]
      %v2614 = vld [vmem:[%s2606 + $0x38] sm:$0xff]
      %v2615 = vld [vmem:[%s2606 + $0x40] sm:$0xff]
      %v2616 = vld [vmem:[%s2606 + $0x48] sm:$0xff]
      %v2617 = vld [vmem:[%s2606 + $0x50] sm:$0xff]
      %v2618 = vld [vmem:[%s2606 + $0x58] sm:$0xff]
      %v2619 = vld [vmem:[%s2606 + $0x60] sm:$0xff]
      %v2620 = vld [vmem:[%s2606 + $0x68] sm:$0xff]
      %v2621 = vld [vmem:[%s2606 + $0x70] sm:$0xff]
      %v2622 = vld [vmem:[%s2606 + $0x78] sm:$0xff]
      %v2623 = vld [vmem:[%s2606 + $0x80] sm:$0xff]
      %v2624 = vld [vmem:[%s2606 + $0x88] sm:$0xff]
      %v2625 = vld [vmem:[%s2606 + $0x90] sm:$0xff]
      %v2626 = vld [vmem:[%s2606 + $0x98] sm:$0xff]
      %v2627 = vld [vmem:[%s2606 + $0xa0] sm:$0xff]
      %v2628 = vld [vmem:[%s2606 + $0xa8] sm:$0xff]
      %v2629 = vld [vmem:[%s2606 + $0xb0] sm:$0xff]
      %v2630 = vld [vmem:[%s2606 + $0xb8] sm:$0xff]
      %v2631 = vld [vmem:[%s2606 + $0xc0] sm:$0xff]
      %v2632 = vld [vmem:[%s2606 + $0xc8] sm:$0xff]
      %v2633 = vld [vmem:[%s2606 + $0xd0] sm:$0xff]
      %v2634 = vld [vmem:[%s2606 + $0xd8] sm:$0xff]
      %v2635 = vld [vmem:[%s2606 + $0xe0] sm:$0xff]
      %v2636 = vld [vmem:[%s2606 + $0xe8] sm:$0xff]
      %v2637 = vld [vmem:[%s2606 + $0xf0] sm:$0xff]
      %v2638 = vld [vmem:[%s2606 + $0xf8] sm:$0xff]
      %v2639 = vld [vmem:[%s2606 + $0x100] sm:$0xff]
      %v2640 = vld [vmem:[%s2606 + $0x108] sm:$0xff]
      %v2641 = vld [vmem:[%s2606 + $0x110] sm:$0xff]
      %v2642 = vld [vmem:[%s2606 + $0x118] sm:$0xff]
      %v2643 = vld [vmem:[%s2606 + $0x120] sm:$0xff]
      %v2644 = vld [vmem:[%s2606 + $0x128] sm:$0xff]
      %v2645 = vld [vmem:[%s2606 + $0x130] sm:$0xff]
      %v2646 = vld [vmem:[%s2606 + $0x138] sm:$0xff]
      %v2647 = vld [vmem:[%s2606 + $0x140] sm:$0xff]
      %v2648 = vld [vmem:[%s2606 + $0x148] sm:$0xff]
      %v2649 = vld [vmem:[%s2606 + $0x150] sm:$0xff]
      %v2650 = vld [vmem:[%s2606 + $0x158] sm:$0xff]
      %v2651 = vld [vmem:[%s2606 + $0x160] sm:$0xff]
      %v2652 = vld [vmem:[%s2606 + $0x168] sm:$0xff]
      %v2653 = vld [vmem:[%s2606 + $0x170] sm:$0xff]
      %v2654 = vld [vmem:[%s2606 + $0x178] sm:$0xff]
      %v2655 = vld [vmem:[%s2606 + $0x180] sm:$0xff]
      %v2656 = vld [vmem:[%s2606 + $0x188] sm:$0xff]
      %v2657 = vld [vmem:[%s2606 + $0x190] sm:$0xff]
      %v2658 = vld [vmem:[%s2606 + $0x198] sm:$0xff]
      %v2659 = vld [vmem:[%s2606 + $0x1a0] sm:$0xff]
      %v2660 = vld [vmem:[%s2606 + $0x1a8] sm:$0xff]
      %v2661 = vld [vmem:[%s2606 + $0x1b0] sm:$0xff]
      %v2662 = vld [vmem:[%s2606 + $0x1b8] sm:$0xff]
      %v2663 = vld [vmem:[%s2606 + $0x1c0] sm:$0xff]
      %v2664 = vld [vmem:[%s2606 + $0x1c8] sm:$0xff]
      %v2665 = vld [vmem:[%s2606 + $0x1d0] sm:$0xff]
      %v2666 = vld [vmem:[%s2606 + $0x1d8] sm:$0xff]
      %v2667 = vld [vmem:[%s2606 + $0x1e0] sm:$0xff]
      %v2668 = vld [vmem:[%s2606 + $0x1e8] sm:$0xff]
      %v2669 = vld [vmem:[%s2606 + $0x1f0] sm:$0xff]
      %v2670 = vld [vmem:[%s2606 + $0x1f8] sm:$0xff]
      %v2671 = vld [vmem:[%s2606 + $0x200] sm:$0xff]
      %v2672 = vld [vmem:[%s2606 + $0x208] sm:$0xff]
      %v2673 = vld [vmem:[%s2606 + $0x210] sm:$0xff]
      %v2674 = vld [vmem:[%s2606 + $0x218] sm:$0xff]
      %v2675 = vld [vmem:[%s2606 + $0x220] sm:$0xff]
      %v2676 = vld [vmem:[%s2606 + $0x228] sm:$0xff]
      %v2677 = vld [vmem:[%s2606 + $0x230] sm:$0xff]
      %v2678 = vld [vmem:[%s2606 + $0x238] sm:$0xff]
      %v2679 = vld [vmem:[%s2606 + $0x240] sm:$0xff]
      %v2680 = vld [vmem:[%s2606 + $0x248] sm:$0xff]
      %v2681 = vld [vmem:[%s2606 + $0x250] sm:$0xff]
      %v2682 = vld [vmem:[%s2606 + $0x258] sm:$0xff]
      %v2683 = vld [vmem:[%s2606 + $0x260] sm:$0xff]
      %v2684 = vld [vmem:[%s2606 + $0x268] sm:$0xff]
      %v2685 = vld [vmem:[%s2606 + $0x270] sm:$0xff]
      %v2686 = vld [vmem:[%s2606 + $0x278] sm:$0xff]
      %v2687 = vld [vmem:[%s2606 + $0x280] sm:$0xff]
      %v2688 = vld [vmem:[%s2606 + $0x288] sm:$0xff]
      %v2689 = vld [vmem:[%s2606 + $0x290] sm:$0xff]
      %v2690 = vld [vmem:[%s2606 + $0x298] sm:$0xff]
      %v2691 = vld [vmem:[%s2606 + $0x2a0] sm:$0xff]
      %v2692 = vld [vmem:[%s2606 + $0x2a8] sm:$0xff]
      %v2693 = vld [vmem:[%s2606 + $0x2b0] sm:$0xff]
      %v2694 = vld [vmem:[%s2606 + $0x2b8] sm:$0xff]
      %v2695 = vld [vmem:[%s2606 + $0x2c0] sm:$0xff]
      %v2696 = vld [vmem:[%s2606 + $0x2c8] sm:$0xff]
      %v2697 = vld [vmem:[%s2606 + $0x2d0] sm:$0xff]
      %v2698 = vld [vmem:[%s2606 + $0x2d8] sm:$0xff]
      %v2699 = vld [vmem:[%s2606 + $0x2e0] sm:$0xff]
      %v2700 = vld [vmem:[%s2606 + $0x2e8] sm:$0xff]
      %v2701 = vld [vmem:[%s2606 + $0x2f0] sm:$0xff]
      %v2702 = vld [vmem:[%s2606 + $0x2f8] sm:$0xff]
      %v2703 = vld [vmem:[%s2606 + $0x300] sm:$0xff]
      %v2704 = vld [vmem:[%s2606 + $0x308] sm:$0xff]
      %v2705 = vld [vmem:[%s2606 + $0x310] sm:$0xff]
      %v2706 = vld [vmem:[%s2606 + $0x318] sm:$0xff]
      %v2707 = vld [vmem:[%s2606 + $0x320] sm:$0xff]
      %v2708 = vld [vmem:[%s2606 + $0x328] sm:$0xff]
      %v2709 = vld [vmem:[%s2606 + $0x330] sm:$0xff]
      %v2710 = vld [vmem:[%s2606 + $0x338] sm:$0xff]
      %v2711 = vld [vmem:[%s2606 + $0x340] sm:$0xff]
      %v2712 = vld [vmem:[%s2606 + $0x348] sm:$0xff]
      %v2713 = vld [vmem:[%s2606 + $0x350] sm:$0xff]
      %v2714 = vld [vmem:[%s2606 + $0x358] sm:$0xff]
      %v2715 = vld [vmem:[%s2606 + $0x360] sm:$0xff]
      %v2716 = vld [vmem:[%s2606 + $0x368] sm:$0xff]
      %v2717 = vld [vmem:[%s2606 + $0x370] sm:$0xff]
      %v2718 = vld [vmem:[%s2606 + $0x378] sm:$0xff]
      %v2719 = vld [vmem:[%s2606 + $0x380] sm:$0xff]
      %v2720 = vld [vmem:[%s2606 + $0x388] sm:$0xff]
      %v2721 = vld [vmem:[%s2606 + $0x390] sm:$0xff]
      %v2722 = vld [vmem:[%s2606 + $0x398] sm:$0xff]
      %v2723 = vld [vmem:[%s2606 + $0x3a0] sm:$0xff]
      %v2724 = vld [vmem:[%s2606 + $0x3a8] sm:$0xff]
      %v2725 = vld [vmem:[%s2606 + $0x3b0] sm:$0xff]
      %v2726 = vld [vmem:[%s2606 + $0x3b8] sm:$0xff]
      %v2727 = vld [vmem:[%s2606 + $0x3c0] sm:$0xf]
      %v2728 = vld [vmem:[%s2606 + $0x3c8] sm:$0xf]
      %v2729 = vld [vmem:[%s2606 + $0x3d0] sm:$0xf]
      %v2730 = vld [vmem:[%s2606 + $0x3d8] sm:$0xf]
      %v2731 = vld [vmem:[%s2606 + $0x3e0] sm:$0xf]
      %v2733 = vsel %vm368, %v2611, 0
      %v2736 = vsel %vm368, %v2616, 0
      %v2739 = vsel %vm368, %v2621, 0
      %v2742 = vsel %vm368, %v2626, 0
      %v2745 = vsel %vm368, %v2631, 0
      %v2748 = vsel %vm368, %v2636, 0
      %v2751 = vsel %vm368, %v2641, 0
      %v2754 = vsel %vm368, %v2646, 0
      %v2757 = vsel %vm368, %v2651, 0
      %v2760 = vsel %vm368, %v2656, 0
      %v2763 = vsel %vm368, %v2661, 0
      %v2766 = vsel %vm368, %v2666, 0
      %v2769 = vsel %vm368, %v2671, 0
      %v2772 = vsel %vm368, %v2676, 0
      %v2775 = vsel %vm368, %v2681, 0
      %v2778 = vsel %vm368, %v2686, 0
      %v2781 = vsel %vm368, %v2691, 0
      %v2784 = vsel %vm368, %v2696, 0
      %v2787 = vsel %vm368, %v2701, 0
      %v2790 = vsel %vm368, %v2706, 0
      %v2793 = vsel %vm368, %v2711, 0
      %v2796 = vsel %vm368, %v2716, 0
      %v2799 = vsel %vm368, %v2721, 0
      %v2802 = vsel %vm368, %v2726, 0
      %v2805 = vsel %vm368, %v2731, 0
      %2807 = vmatprep.subr.mxu0 0.0
      %2808 = vmatpush1.msra.mxu0 %v311
      %2809 = vmatprep.subr.mxu0 0.0
      %2810 = vmatpush1.msra.mxu0 %v310
      %2811 = vmatprep.subr.mxu0 0.0
      %2812 = vmatpush1.msra.mxu0 %v309
      %2813 = vmatprep.subr.mxu0 0.0
      %2814 = vmatpush1.msra.mxu0 %v308
      %2815 = vmatprep.subr.mxu0 0.0
      %2816 = vmatpush1.msra.mxu0 %v307
      %2817 = vmatprep.subr.mxu0 0.0
      %2818 = vmatpush1.msra.mxu0 %v306
      %2819 = vmatprep.subr.mxu0 0.0
      %2820 = vmatpush1.msra.mxu0 %v305
      %2821 = vmatprep.subr.mxu0 0.0
      %2822 = vmatpush1.msra.mxu0 %v304
      %2823 = vmatprep.subr.mxu0 0.0
      %2824 = vmatpush1.msra.mxu0 %v303
      %2825 = vmatprep.subr.mxu0 0.0
      %2826 = vmatpush1.msra.mxu0 %v302
      %2827 = vmatprep.subr.mxu0 0.0
      %2828 = vmatpush1.msra.mxu0 %v301
      %2829 = vmatprep.subr.mxu0 0.0
      %2830 = vmatpush1.msra.mxu0 %v300
      %2831 = vmatprep.subr.mxu0 0.0
      %2832 = vmatpush1.msra.mxu0 %v299
      %2833 = vmatprep.subr.mxu0 0.0
      %2834 = vmatpush1.msra.mxu0 %v298
      %2835 = vmatprep.subr.mxu0 0.0
      %2836 = vmatpush1.msra.mxu0 %v297
      %2837 = vmatprep.subr.mxu0 0.0
      %2838 = vmatpush1.msra.mxu0 %v296
      %2839 = vmatprep.subr.mxu0 0.0
      %2840 = vmatpush2.msra.mxu0 %v327
      %2841 = vmatprep.subr.mxu0 0.0
      %2842 = vmatpush2.msra.mxu0 %v326
      %2843 = vmatprep.subr.mxu0 0.0
      %2844 = vmatpush2.msra.mxu0 %v325
      %2845 = vmatprep.subr.mxu0 0.0
      %2846 = vmatpush2.msra.mxu0 %v324
      %2847 = vmatprep.subr.mxu0 0.0
      %2848 = vmatpush2.msra.mxu0 %v323
      %2849 = vmatprep.subr.mxu0 0.0
      %2850 = vmatpush2.msra.mxu0 %v322
      %2851 = vmatprep.subr.mxu0 0.0
      %2852 = vmatpush2.msra.mxu0 %v321
      %2853 = vmatprep.subr.mxu0 0.0
      %2854 = vmatpush2.msra.mxu0 %v320
      %2855 = vmatprep.subr.mxu0 0.0
      %2856 = vmatpush2.msra.mxu0 %v319
      %2857 = vmatprep.subr.mxu0 0.0
      %2858 = vmatpush2.msra.mxu0 %v318
      %2859 = vmatprep.subr.mxu0 0.0
      %2860 = vmatpush2.msra.mxu0 %v317
      %2861 = vmatprep.subr.mxu0 0.0
      %2862 = vmatpush2.msra.mxu0 %v316
      %2863 = vmatprep.subr.mxu0 0.0
      %2864 = vmatpush2.msra.mxu0 %v315
      %2865 = vmatprep.subr.mxu0 0.0
      %2866 = vmatpush2.msra.mxu0 %v314
      %2867 = vmatprep.subr.mxu0 0.0
      %2868 = vmatpush2.msra.mxu0 %v313
      %2869 = vmatprep.subr.mxu0 0.0
      %2870 = vmatpush2.msra.mxu0 %v312
      %2871 = vmatprep.mubr.f32.mxu0 %v2608
      %2872 = vmatmul.mubr.f32.gmra.mxu0 %v2607
      %v2873 = vpop.f32.mrf.mxu0
      %v2874 = vadd.f32 0.0, %v2873
      %v2875 = vpop.f32.mrf.mxu0
      %2876 = vmatprep.mubr.f32.mxu0 %v2613
      %2877 = vmatmul.mubr.f32.gmra.mxu0 %v2612
      %v2878 = vpop.f32.mrf.mxu0
      %v2879 = vadd.f32 0.0, %v2878
      %v2880 = vpop.f32.mrf.mxu0
      %2881 = vmatprep.mubr.f32.mxu0 %v2618
      %2882 = vmatmul.mubr.f32.gmra.mxu0 %v2617
      %v2883 = vpop.f32.mrf.mxu0
      %v2884 = vadd.f32 0.0, %v2883
      %v2885 = vpop.f32.mrf.mxu0
      %2886 = vmatprep.mubr.f32.mxu0 %v2623
      %2887 = vmatmul.mubr.f32.gmra.mxu0 %v2622
      %v2888 = vpop.f32.mrf.mxu0
      %v2889 = vadd.f32 0.0, %v2888
      %v2890 = vpop.f32.mrf.mxu0
      %2891 = vmatprep.mubr.f32.mxu0 %v2628
      %2892 = vmatmul.mubr.f32.gmra.mxu0 %v2627
      %v2893 = vpop.f32.mrf.mxu0
      %v2894 = vadd.f32 0.0, %v2893
      %v2895 = vpop.f32.mrf.mxu0
      %2896 = vmatprep.mubr.f32.mxu0 %v2633
      %2897 = vmatmul.mubr.f32.gmra.mxu0 %v2632
      %v2898 = vpop.f32.mrf.mxu0
      %v2899 = vadd.f32 0.0, %v2898
      %v2900 = vpop.f32.mrf.mxu0
      %2901 = vmatprep.mubr.f32.mxu0 %v2638
      %2902 = vmatmul.mubr.f32.gmra.mxu0 %v2637
      %v2903 = vpop.f32.mrf.mxu0
      %v2904 = vadd.f32 0.0, %v2903
      %v2905 = vpop.f32.mrf.mxu0
      %2906 = vmatprep.mubr.f32.mxu0 %v2643
      %2907 = vmatmul.mubr.f32.gmra.mxu0 %v2642
      %v2908 = vpop.f32.mrf.mxu0
      %v2909 = vadd.f32 0.0, %v2908
      %v2910 = vpop.f32.mrf.mxu0
      %2911 = vmatprep.mubr.f32.mxu0 %v2648
      %2912 = vmatmul.mubr.f32.gmra.mxu0 %v2647
      %v2913 = vpop.f32.mrf.mxu0
      %v2914 = vadd.f32 0.0, %v2913
      %v2915 = vpop.f32.mrf.mxu0
      %2916 = vmatprep.mubr.f32.mxu0 %v2653
      %2917 = vmatmul.mubr.f32.gmra.mxu0 %v2652
      %v2918 = vpop.f32.mrf.mxu0
      %v2919 = vadd.f32 0.0, %v2918
      %v2920 = vpop.f32.mrf.mxu0
      %2921 = vmatprep.mubr.f32.mxu0 %v2658
      %2922 = vmatmul.mubr.f32.gmra.mxu0 %v2657
      %v2923 = vpop.f32.mrf.mxu0
      %v2924 = vadd.f32 0.0, %v2923
      %v2925 = vpop.f32.mrf.mxu0
      %2926 = vmatprep.mubr.f32.mxu0 %v2663
      %2927 = vmatmul.mubr.f32.gmra.mxu0 %v2662
      %v2928 = vpop.f32.mrf.mxu0
      %v2929 = vadd.f32 0.0, %v2928
      %v2930 = vpop.f32.mrf.mxu0
      %2931 = vmatprep.mubr.f32.mxu0 %v2668
      %2932 = vmatmul.mubr.f32.gmra.mxu0 %v2667
      %v2933 = vpop.f32.mrf.mxu0
      %v2934 = vadd.f32 0.0, %v2933
      %v2935 = vpop.f32.mrf.mxu0
      %2936 = vmatprep.mubr.f32.mxu0 %v2673
      %2937 = vmatmul.mubr.f32.gmra.mxu0 %v2672
      %v2938 = vpop.f32.mrf.mxu0
      %v2939 = vadd.f32 0.0, %v2938
      %v2940 = vpop.f32.mrf.mxu0
      %2941 = vmatprep.mubr.f32.mxu0 %v2678
      %2942 = vmatmul.mubr.f32.gmra.mxu0 %v2677
      %v2943 = vpop.f32.mrf.mxu0
      %v2944 = vadd.f32 0.0, %v2943
      %v2945 = vpop.f32.mrf.mxu0
      %2946 = vmatprep.mubr.f32.mxu0 %v2683
      %2947 = vmatmul.mubr.f32.gmra.mxu0 %v2682
      %v2948 = vpop.f32.mrf.mxu0
      %v2949 = vadd.f32 0.0, %v2948
      %v2950 = vpop.f32.mrf.mxu0
      %2951 = vmatprep.mubr.f32.mxu0 %v2688
      %2952 = vmatmul.mubr.f32.gmra.mxu0 %v2687
      %v2953 = vpop.f32.mrf.mxu0
      %v2954 = vadd.f32 0.0, %v2953
      %v2955 = vpop.f32.mrf.mxu0
      %2956 = vmatprep.mubr.f32.mxu0 %v2693
      %2957 = vmatmul.mubr.f32.gmra.mxu0 %v2692
      %v2958 = vpop.f32.mrf.mxu0
      %v2959 = vadd.f32 0.0, %v2958
      %v2960 = vpop.f32.mrf.mxu0
      %2961 = vmatprep.mubr.f32.mxu0 %v2698
      %2962 = vmatmul.mubr.f32.gmra.mxu0 %v2697
      %v2963 = vpop.f32.mrf.mxu0
      %v2964 = vadd.f32 0.0, %v2963
      %v2965 = vpop.f32.mrf.mxu0
      %2966 = vmatprep.mubr.f32.mxu0 %v2703
      %2967 = vmatmul.mubr.f32.gmra.mxu0 %v2702
      %v2968 = vpop.f32.mrf.mxu0
      %v2969 = vadd.f32 0.0, %v2968
      %v2970 = vpop.f32.mrf.mxu0
      %2971 = vmatprep.mubr.f32.mxu0 %v2708
      %2972 = vmatmul.mubr.f32.gmra.mxu0 %v2707
      %v2973 = vpop.f32.mrf.mxu0
      %v2974 = vadd.f32 0.0, %v2973
      %v2975 = vpop.f32.mrf.mxu0
      %2976 = vmatprep.mubr.f32.mxu0 %v2713
      %2977 = vmatmul.mubr.f32.gmra.mxu0 %v2712
      %v2978 = vpop.f32.mrf.mxu0
      %v2979 = vadd.f32 0.0, %v2978
      %v2980 = vpop.f32.mrf.mxu0
      %2981 = vmatprep.mubr.f32.mxu0 %v2718
      %2982 = vmatmul.mubr.f32.gmra.mxu0 %v2717
      %v2983 = vpop.f32.mrf.mxu0
      %v2984 = vadd.f32 0.0, %v2983
      %v2985 = vpop.f32.mrf.mxu0
      %2986 = vmatprep.mubr.f32.mxu0 %v2723
      %2987 = vmatmul.mubr.f32.gmra.mxu0 %v2722
      %v2988 = vpop.f32.mrf.mxu0
      %v2989 = vadd.f32 0.0, %v2988
      %v2990 = vpop.f32.mrf.mxu0
      %2991 = vmatprep.mubr.f32.mxu0 %v2728
      %2992 = vmatmul.mubr.f32.gmra.mxu0 %v2727
      %v2993 = vpop.f32.mrf.mxu0
      %v2994 = vadd.f32 0.0, %v2993
      %v2995 = vpop.f32.mrf.mxu0
      %2996 = vdwg.mxu0
      %2997 = vmatprep.subr.mxu0 0.0
      %2998 = vmatpush1.msra.mxu0 %v343
      %2999 = vmatprep.subr.mxu0 0.0
      %3000 = vmatpush1.msra.mxu0 %v342
      %3001 = vmatprep.subr.mxu0 0.0
      %3002 = vmatpush1.msra.mxu0 %v341
      %3003 = vmatprep.subr.mxu0 0.0
      %3004 = vmatpush1.msra.mxu0 %v340
      %3005 = vmatprep.subr.mxu0 0.0
      %3006 = vmatpush1.msra.mxu0 %v339
      %3007 = vmatprep.subr.mxu0 0.0
      %3008 = vmatpush1.msra.mxu0 %v338
      %3009 = vmatprep.subr.mxu0 0.0
      %3010 = vmatpush1.msra.mxu0 %v337
      %3011 = vmatprep.subr.mxu0 0.0
      %3012 = vmatpush1.msra.mxu0 %v336
      %3013 = vmatprep.subr.mxu0 0.0
      %3014 = vmatpush1.msra.mxu0 %v335
      %3015 = vmatprep.subr.mxu0 0.0
      %3016 = vmatpush1.msra.mxu0 %v334
      %3017 = vmatprep.subr.mxu0 0.0
      %3018 = vmatpush1.msra.mxu0 %v333
      %3019 = vmatprep.subr.mxu0 0.0
      %3020 = vmatpush1.msra.mxu0 %v332
      %3021 = vmatprep.subr.mxu0 0.0
      %3022 = vmatpush1.msra.mxu0 %v331
      %3023 = vmatprep.subr.mxu0 0.0
      %3024 = vmatpush1.msra.mxu0 %v330
      %3025 = vmatprep.subr.mxu0 0.0
      %3026 = vmatpush1.msra.mxu0 %v329
      %3027 = vmatprep.subr.mxu0 0.0
      %3028 = vmatpush1.msra.mxu0 %v328
      %3029 = vmatprep.subr.mxu0 0.0
      %3030 = vmatpush2.msra.mxu0 %v359
      %3031 = vmatprep.subr.mxu0 0.0
      %3032 = vmatpush2.msra.mxu0 %v358
      %3033 = vmatprep.subr.mxu0 0.0
      %3034 = vmatpush2.msra.mxu0 %v357
      %3035 = vmatprep.subr.mxu0 0.0
      %3036 = vmatpush2.msra.mxu0 %v356
      %3037 = vmatprep.subr.mxu0 0.0
      %3038 = vmatpush2.msra.mxu0 %v355
      %3039 = vmatprep.subr.mxu0 0.0
      %3040 = vmatpush2.msra.mxu0 %v354
      %3041 = vmatprep.subr.mxu0 0.0
      %3042 = vmatpush2.msra.mxu0 %v353
      %3043 = vmatprep.subr.mxu0 0.0
      %3044 = vmatpush2.msra.mxu0 %v352
      %3045 = vmatprep.subr.mxu0 0.0
      %3046 = vmatpush2.msra.mxu0 %v351
      %3047 = vmatprep.subr.mxu0 0.0
      %3048 = vmatpush2.msra.mxu0 %v350
      %3049 = vmatprep.subr.mxu0 0.0
      %3050 = vmatpush2.msra.mxu0 %v349
      %3051 = vmatprep.subr.mxu0 0.0
      %3052 = vmatpush2.msra.mxu0 %v348
      %3053 = vmatprep.subr.mxu0 0.0
      %3054 = vmatpush2.msra.mxu0 %v347
      %3055 = vmatprep.subr.mxu0 0.0
      %3056 = vmatpush2.msra.mxu0 %v346
      %3057 = vmatprep.subr.mxu0 0.0
      %3058 = vmatpush2.msra.mxu0 %v345
      %3059 = vmatprep.subr.mxu0 0.0
      %3060 = vmatpush2.msra.mxu0 %v344
      %3061 = vmatprep.mubr.f32.mxu0 %v2610
      %3062 = vmatmul.mubr.f32.gmra.mxu0 %v2609
      %v3063 = vpop.f32.mrf.mxu0
      %v3064 = vadd.f32 %v2874, %v3063
      %v3065 = vpop.f32.mrf.mxu0
      %3066 = vmatprep.mubr.f32.mxu0 %v2615
      %3067 = vmatmul.mubr.f32.gmra.mxu0 %v2614
      %v3068 = vpop.f32.mrf.mxu0
      %v3069 = vadd.f32 %v2879, %v3068
      %v3070 = vpop.f32.mrf.mxu0
      %3071 = vmatprep.mubr.f32.mxu0 %v2620
      %3072 = vmatmul.mubr.f32.gmra.mxu0 %v2619
      %v3073 = vpop.f32.mrf.mxu0
      %v3074 = vadd.f32 %v2884, %v3073
      %v3075 = vpop.f32.mrf.mxu0
      %3076 = vmatprep.mubr.f32.mxu0 %v2625
      %3077 = vmatmul.mubr.f32.gmra.mxu0 %v2624
      %v3078 = vpop.f32.mrf.mxu0
      %v3079 = vadd.f32 %v2889, %v3078
      %v3080 = vpop.f32.mrf.mxu0
      %3081 = vmatprep.mubr.f32.mxu0 %v2630
      %3082 = vmatmul.mubr.f32.gmra.mxu0 %v2629
      %v3083 = vpop.f32.mrf.mxu0
      %v3084 = vadd.f32 %v2894, %v3083
      %v3085 = vpop.f32.mrf.mxu0
      %3086 = vmatprep.mubr.f32.mxu0 %v2635
      %3087 = vmatmul.mubr.f32.gmra.mxu0 %v2634
      %v3088 = vpop.f32.mrf.mxu0
      %v3089 = vadd.f32 %v2899, %v3088
      %v3090 = vpop.f32.mrf.mxu0
      %3091 = vmatprep.mubr.f32.mxu0 %v2640
      %3092 = vmatmul.mubr.f32.gmra.mxu0 %v2639
      %v3093 = vpop.f32.mrf.mxu0
      %v3094 = vadd.f32 %v2904, %v3093
      %v3095 = vpop.f32.mrf.mxu0
      %3096 = vmatprep.mubr.f32.mxu0 %v2645
      %3097 = vmatmul.mubr.f32.gmra.mxu0 %v2644
      %v3098 = vpop.f32.mrf.mxu0
      %v3099 = vadd.f32 %v2909, %v3098
      %v3100 = vpop.f32.mrf.mxu0
      %3101 = vmatprep.mubr.f32.mxu0 %v2650
      %3102 = vmatmul.mubr.f32.gmra.mxu0 %v2649
      %v3103 = vpop.f32.mrf.mxu0
      %v3104 = vadd.f32 %v2914, %v3103
      %v3105 = vpop.f32.mrf.mxu0
      %3106 = vmatprep.mubr.f32.mxu0 %v2655
      %3107 = vmatmul.mubr.f32.gmra.mxu0 %v2654
      %v3108 = vpop.f32.mrf.mxu0
      %v3109 = vadd.f32 %v2919, %v3108
      %v3110 = vpop.f32.mrf.mxu0
      %3111 = vmatprep.mubr.f32.mxu0 %v2660
      %3112 = vmatmul.mubr.f32.gmra.mxu0 %v2659
      %v3113 = vpop.f32.mrf.mxu0
      %v3114 = vadd.f32 %v2924, %v3113
      %v3115 = vpop.f32.mrf.mxu0
      %3116 = vmatprep.mubr.f32.mxu0 %v2665
      %3117 = vmatmul.mubr.f32.gmra.mxu0 %v2664
      %v3118 = vpop.f32.mrf.mxu0
      %v3119 = vadd.f32 %v2929, %v3118
      %v3120 = vpop.f32.mrf.mxu0
      %3121 = vmatprep.mubr.f32.mxu0 %v2670
      %3122 = vmatmul.mubr.f32.gmra.mxu0 %v2669
      %v3123 = vpop.f32.mrf.mxu0
      %v3124 = vadd.f32 %v2934, %v3123
      %v3125 = vpop.f32.mrf.mxu0
      %3126 = vmatprep.mubr.f32.mxu0 %v2675
      %3127 = vmatmul.mubr.f32.gmra.mxu0 %v2674
      %v3128 = vpop.f32.mrf.mxu0
      %v3129 = vadd.f32 %v2939, %v3128
      %v3130 = vpop.f32.mrf.mxu0
      %3131 = vmatprep.mubr.f32.mxu0 %v2680
      %3132 = vmatmul.mubr.f32.gmra.mxu0 %v2679
      %v3133 = vpop.f32.mrf.mxu0
      %v3134 = vadd.f32 %v2944, %v3133
      %v3135 = vpop.f32.mrf.mxu0
      %3136 = vmatprep.mubr.f32.mxu0 %v2685
      %3137 = vmatmul.mubr.f32.gmra.mxu0 %v2684
      %v3138 = vpop.f32.mrf.mxu0
      %v3139 = vadd.f32 %v2949, %v3138
      %v3140 = vpop.f32.mrf.mxu0
      %3141 = vmatprep.mubr.f32.mxu0 %v2690
      %3142 = vmatmul.mubr.f32.gmra.mxu0 %v2689
      %v3143 = vpop.f32.mrf.mxu0
      %v3144 = vadd.f32 %v2954, %v3143
      %v3145 = vpop.f32.mrf.mxu0
      %3146 = vmatprep.mubr.f32.mxu0 %v2695
      %3147 = vmatmul.mubr.f32.gmra.mxu0 %v2694
      %v3148 = vpop.f32.mrf.mxu0
      %v3149 = vadd.f32 %v2959, %v3148
      %v3150 = vpop.f32.mrf.mxu0
      %3151 = vmatprep.mubr.f32.mxu0 %v2700
      %3152 = vmatmul.mubr.f32.gmra.mxu0 %v2699
      %v3153 = vpop.f32.mrf.mxu0
      %v3154 = vadd.f32 %v2964, %v3153
      %v3155 = vpop.f32.mrf.mxu0
      %3156 = vmatprep.mubr.f32.mxu0 %v2705
      %3157 = vmatmul.mubr.f32.gmra.mxu0 %v2704
      %v3158 = vpop.f32.mrf.mxu0
      %v3159 = vadd.f32 %v2969, %v3158
      %v3160 = vpop.f32.mrf.mxu0
      %3161 = vmatprep.mubr.f32.mxu0 %v2710
      %3162 = vmatmul.mubr.f32.gmra.mxu0 %v2709
      %v3163 = vpop.f32.mrf.mxu0
      %v3164 = vadd.f32 %v2974, %v3163
      %v3165 = vpop.f32.mrf.mxu0
      %3166 = vmatprep.mubr.f32.mxu0 %v2715
      %3167 = vmatmul.mubr.f32.gmra.mxu0 %v2714
      %v3168 = vpop.f32.mrf.mxu0
      %v3169 = vadd.f32 %v2979, %v3168
      %v3170 = vpop.f32.mrf.mxu0
      %3171 = vmatprep.mubr.f32.mxu0 %v2720
      %3172 = vmatmul.mubr.f32.gmra.mxu0 %v2719
      %v3173 = vpop.f32.mrf.mxu0
      %v3174 = vadd.f32 %v2984, %v3173
      %v3175 = vpop.f32.mrf.mxu0
      %3176 = vmatprep.mubr.f32.mxu0 %v2725
      %3177 = vmatmul.mubr.f32.gmra.mxu0 %v2724
      %v3178 = vpop.f32.mrf.mxu0
      %v3179 = vadd.f32 %v2989, %v3178
      %v3180 = vpop.f32.mrf.mxu0
      %3181 = vmatprep.mubr.f32.mxu0 %v2730
      %3182 = vmatmul.mubr.f32.gmra.mxu0 %v2729
      %v3183 = vpop.f32.mrf.mxu0
      %v3184 = vadd.f32 %v2994, %v3183
      %v3185 = vpop.f32.mrf.mxu0
      %3186 = vdwg.mxu0
      %3187 = vmatprep.subr.mxu0 0.0
      %3188 = vmatpush1.msra.mxu0 0.0
      %3189 = vmatprep.subr.mxu0 0.0
      %3190 = vmatpush1.msra.mxu0 0.0
      %3191 = vmatprep.subr.mxu0 0.0
      %3192 = vmatpush1.msra.mxu0 0.0
      %3193 = vmatprep.subr.mxu0 0.0
      %3194 = vmatpush1.msra.mxu0 0.0
      %3195 = vmatprep.subr.mxu0 0.0
      %3196 = vmatpush1.msra.mxu0 0.0
      %3197 = vmatprep.subr.mxu0 0.0
      %3198 = vmatpush1.msra.mxu0 0.0
      %3199 = vmatprep.subr.mxu0 0.0
      %3200 = vmatpush1.msra.mxu0 0.0
      %3201 = vmatprep.subr.mxu0 0.0
      %3202 = vmatpush1.msra.mxu0 0.0
      %3203 = vmatprep.subr.mxu0 0.0
      %3204 = vmatpush1.msra.mxu0 %v367
      %3205 = vmatprep.subr.mxu0 0.0
      %3206 = vmatpush1.msra.mxu0 %v366
      %3207 = vmatprep.subr.mxu0 0.0
      %3208 = vmatpush1.msra.mxu0 %v365
      %3209 = vmatprep.subr.mxu0 0.0
      %3210 = vmatpush1.msra.mxu0 %v364
      %3211 = vmatprep.subr.mxu0 0.0
      %3212 = vmatpush1.msra.mxu0 %v363
      %3213 = vmatprep.subr.mxu0 0.0
      %3214 = vmatpush1.msra.mxu0 %v362
      %3215 = vmatprep.subr.mxu0 0.0
      %3216 = vmatpush1.msra.mxu0 %v361
      %3217 = vmatprep.subr.mxu0 0.0
      %3218 = vmatpush1.msra.mxu0 %v360
      %3219 = vmatprep.subr.mxu0 0.0
      %3220 = vmatpush2.msra.mxu0 0.0
      %3221 = vmatprep.subr.mxu0 0.0
      %3222 = vmatpush2.msra.mxu0 0.0
      %3223 = vmatprep.subr.mxu0 0.0
      %3224 = vmatpush2.msra.mxu0 0.0
      %3225 = vmatprep.subr.mxu0 0.0
      %3226 = vmatpush2.msra.mxu0 0.0
      %3227 = vmatprep.subr.mxu0 0.0
      %3228 = vmatpush2.msra.mxu0 0.0
      %3229 = vmatprep.subr.mxu0 0.0
      %3230 = vmatpush2.msra.mxu0 0.0
      %3231 = vmatprep.subr.mxu0 0.0
      %3232 = vmatpush2.msra.mxu0 0.0
      %3233 = vmatprep.subr.mxu0 0.0
      %3234 = vmatpush2.msra.mxu0 0.0
      %3235 = vmatprep.subr.mxu0 0.0
      %3236 = vmatpush2.msra.mxu0 0.0
      %3237 = vmatprep.subr.mxu0 0.0
      %3238 = vmatpush2.msra.mxu0 0.0
      %3239 = vmatprep.subr.mxu0 0.0
      %3240 = vmatpush2.msra.mxu0 0.0
      %3241 = vmatprep.subr.mxu0 0.0
      %3242 = vmatpush2.msra.mxu0 0.0
      %3243 = vmatprep.subr.mxu0 0.0
      %3244 = vmatpush2.msra.mxu0 0.0
      %3245 = vmatprep.subr.mxu0 0.0
      %3246 = vmatpush2.msra.mxu0 0.0
      %3247 = vmatprep.subr.mxu0 0.0
      %3248 = vmatpush2.msra.mxu0 0.0
      %3249 = vmatprep.subr.mxu0 0.0
      %3250 = vmatpush2.msra.mxu0 0.0
      %3251 = vmatprep.mubr.f32.mxu0 0.0
      %3252 = vmatmul.mubr.f32.gmra.mxu0 %v2733
      %v3253 = vpop.f32.mrf.mxu0
      %v3254 = vadd.f32 %v3064, %v3253
      %v3255 = vpop.f32.mrf.mxu0
      %3256 = vmatprep.mubr.f32.mxu0 0.0
      %3257 = vmatmul.mubr.f32.gmra.mxu0 %v2736
      %v3258 = vpop.f32.mrf.mxu0
      %v3259 = vadd.f32 %v3069, %v3258
      %v3260 = vpop.f32.mrf.mxu0
      %3261 = vmatprep.mubr.f32.mxu0 0.0
      %3262 = vmatmul.mubr.f32.gmra.mxu0 %v2739
      %v3263 = vpop.f32.mrf.mxu0
      %v3264 = vadd.f32 %v3074, %v3263
      %v3265 = vpop.f32.mrf.mxu0
      %3266 = vmatprep.mubr.f32.mxu0 0.0
      %3267 = vmatmul.mubr.f32.gmra.mxu0 %v2742
      %v3268 = vpop.f32.mrf.mxu0
      %v3269 = vadd.f32 %v3079, %v3268
      %v3270 = vpop.f32.mrf.mxu0
      %3271 = vmatprep.mubr.f32.mxu0 0.0
      %3272 = vmatmul.mubr.f32.gmra.mxu0 %v2745
      %v3273 = vpop.f32.mrf.mxu0
      %v3274 = vadd.f32 %v3084, %v3273
      %v3275 = vpop.f32.mrf.mxu0
      %3276 = vmatprep.mubr.f32.mxu0 0.0
      %3277 = vmatmul.mubr.f32.gmra.mxu0 %v2748
      %v3278 = vpop.f32.mrf.mxu0
      %v3279 = vadd.f32 %v3089, %v3278
      %v3280 = vpop.f32.mrf.mxu0
      %3281 = vmatprep.mubr.f32.mxu0 0.0
      %3282 = vmatmul.mubr.f32.gmra.mxu0 %v2751
      %v3283 = vpop.f32.mrf.mxu0
      %v3284 = vadd.f32 %v3094, %v3283
      %v3285 = vpop.f32.mrf.mxu0
      %3286 = vmatprep.mubr.f32.mxu0 0.0
      %3287 = vmatmul.mubr.f32.gmra.mxu0 %v2754
      %v3288 = vpop.f32.mrf.mxu0
      %v3289 = vadd.f32 %v3099, %v3288
      %v3290 = vpop.f32.mrf.mxu0
      %3291 = vmatprep.mubr.f32.mxu0 0.0
      %3292 = vmatmul.mubr.f32.gmra.mxu0 %v2757
      %v3293 = vpop.f32.mrf.mxu0
      %v3294 = vadd.f32 %v3104, %v3293
      %v3295 = vpop.f32.mrf.mxu0
      %3296 = vmatprep.mubr.f32.mxu0 0.0
      %3297 = vmatmul.mubr.f32.gmra.mxu0 %v2760
      %v3298 = vpop.f32.mrf.mxu0
      %v3299 = vadd.f32 %v3109, %v3298
      %v3300 = vpop.f32.mrf.mxu0
      %3301 = vmatprep.mubr.f32.mxu0 0.0
      %3302 = vmatmul.mubr.f32.gmra.mxu0 %v2763
      %v3303 = vpop.f32.mrf.mxu0
      %v3304 = vadd.f32 %v3114, %v3303
      %v3305 = vpop.f32.mrf.mxu0
      %3306 = vmatprep.mubr.f32.mxu0 0.0
      %3307 = vmatmul.mubr.f32.gmra.mxu0 %v2766
      %v3308 = vpop.f32.mrf.mxu0
      %v3309 = vadd.f32 %v3119, %v3308
      %v3310 = vpop.f32.mrf.mxu0
      %3311 = vmatprep.mubr.f32.mxu0 0.0
      %3312 = vmatmul.mubr.f32.gmra.mxu0 %v2769
      %v3313 = vpop.f32.mrf.mxu0
      %v3314 = vadd.f32 %v3124, %v3313
      %v3315 = vpop.f32.mrf.mxu0
      %3316 = vmatprep.mubr.f32.mxu0 0.0
      %3317 = vmatmul.mubr.f32.gmra.mxu0 %v2772
      %v3318 = vpop.f32.mrf.mxu0
      %v3319 = vadd.f32 %v3129, %v3318
      %v3320 = vpop.f32.mrf.mxu0
      %3321 = vmatprep.mubr.f32.mxu0 0.0
      %3322 = vmatmul.mubr.f32.gmra.mxu0 %v2775
      %v3323 = vpop.f32.mrf.mxu0
      %v3324 = vadd.f32 %v3134, %v3323
      %v3325 = vpop.f32.mrf.mxu0
      %3326 = vmatprep.mubr.f32.mxu0 0.0
      %3327 = vmatmul.mubr.f32.gmra.mxu0 %v2778
      %v3328 = vpop.f32.mrf.mxu0
      %v3329 = vadd.f32 %v3139, %v3328
      %v3330 = vpop.f32.mrf.mxu0
      %3331 = vmatprep.mubr.f32.mxu0 0.0
      %3332 = vmatmul.mubr.f32.gmra.mxu0 %v2781
      %v3333 = vpop.f32.mrf.mxu0
      %v3334 = vadd.f32 %v3144, %v3333
      %v3335 = vpop.f32.mrf.mxu0
      %3336 = vmatprep.mubr.f32.mxu0 0.0
      %3337 = vmatmul.mubr.f32.gmra.mxu0 %v2784
      %v3338 = vpop.f32.mrf.mxu0
      %v3339 = vadd.f32 %v3149, %v3338
      %v3340 = vpop.f32.mrf.mxu0
      %3341 = vmatprep.mubr.f32.mxu0 0.0
      %3342 = vmatmul.mubr.f32.gmra.mxu0 %v2787
      %v3343 = vpop.f32.mrf.mxu0
      %v3344 = vadd.f32 %v3154, %v3343
      %v3345 = vpop.f32.mrf.mxu0
      %3346 = vmatprep.mubr.f32.mxu0 0.0
      %3347 = vmatmul.mubr.f32.gmra.mxu0 %v2790
      %v3348 = vpop.f32.mrf.mxu0
      %v3349 = vadd.f32 %v3159, %v3348
      %v3350 = vpop.f32.mrf.mxu0
      %3351 = vmatprep.mubr.f32.mxu0 0.0
      %3352 = vmatmul.mubr.f32.gmra.mxu0 %v2793
      %v3353 = vpop.f32.mrf.mxu0
      %v3354 = vadd.f32 %v3164, %v3353
      %v3355 = vpop.f32.mrf.mxu0
      %3356 = vmatprep.mubr.f32.mxu0 0.0
      %3357 = vmatmul.mubr.f32.gmra.mxu0 %v2796
      %v3358 = vpop.f32.mrf.mxu0
      %v3359 = vadd.f32 %v3169, %v3358
      %v3360 = vpop.f32.mrf.mxu0
      %3361 = vmatprep.mubr.f32.mxu0 0.0
      %3362 = vmatmul.mubr.f32.gmra.mxu0 %v2799
      %v3363 = vpop.f32.mrf.mxu0
      %v3364 = vadd.f32 %v3174, %v3363
      %v3365 = vpop.f32.mrf.mxu0
      %3366 = vmatprep.mubr.f32.mxu0 0.0
      %3367 = vmatmul.mubr.f32.gmra.mxu0 %v2802
      %v3368 = vpop.f32.mrf.mxu0
      %v3369 = vadd.f32 %v3179, %v3368
      %v3370 = vpop.f32.mrf.mxu0
      %3371 = vmatprep.mubr.f32.mxu0 0.0
      %3372 = vmatmul.mubr.f32.gmra.mxu0 %v2805
      %v3373 = vpop.f32.mrf.mxu0
      %v3374 = vadd.f32 %v3184, %v3373
      %v3375 = vpop.f32.mrf.mxu0
      %3376 = vdwg.mxu0
      %v3377 = vmax.f32 %v2581, %v3254
      %v3378 = vmax.f32 %v2582, %v3259
      %v3379 = vmax.f32 %v2583, %v3264
      %v3380 = vmax.f32 %v2584, %v3269
      %v3381 = vmax.f32 %v2585, %v3274
      %v3382 = vmax.f32 %v2586, %v3279
      %v3383 = vmax.f32 %v2587, %v3284
      %v3384 = vmax.f32 %v2588, %v3289
      %v3385 = vmax.f32 %v2589, %v3294
      %v3386 = vmax.f32 %v2590, %v3299
      %v3387 = vmax.f32 %v2591, %v3304
      %v3388 = vmax.f32 %v2592, %v3309
      %v3389 = vmax.f32 %v2593, %v3314
      %v3390 = vmax.f32 %v2594, %v3319
      %v3391 = vmax.f32 %v2595, %v3324
      %v3392 = vmax.f32 %v2596, %v3329
      %v3393 = vmax.f32 %v2597, %v3334
      %v3394 = vmax.f32 %v2598, %v3339
      %v3395 = vmax.f32 %v2599, %v3344
      %v3396 = vmax.f32 %v2600, %v3349
      %v3397 = vmax.f32 %v2601, %v3354
      %v3398 = vmax.f32 %v2602, %v3359
      %v3399 = vmax.f32 %v2603, %v3364
      %v3400 = vmax.f32 %v2604, %v3369
      %v3401 = vmax.f32 %v2605, %v3374
      %v3402 = vld [vmem:[%s2] sm:$0x1]
      %v3404 = vlaneseq
      %v3405 = vshrl.u32 %v3404, 7
      %v3406 = vsub.s32 0, %v3405
      %v3407 = vrot.slane %v3402, %v3406
      %v3409 = vadd.f32 %v3377, %v3407
      %v3410 = vadd.f32 %v3378, %v3407
      %v3411 = vadd.f32 %v3379, %v3407
      %v3412 = vadd.f32 %v3380, %v3407
      %v3413 = vadd.f32 %v3381, %v3407
      %v3414 = vadd.f32 %v3382, %v3407
      %v3415 = vadd.f32 %v3383, %v3407
      %v3416 = vadd.f32 %v3384, %v3407
      %v3417 = vadd.f32 %v3385, %v3407
      %v3418 = vadd.f32 %v3386, %v3407
      %v3419 = vadd.f32 %v3387, %v3407
      %v3420 = vadd.f32 %v3388, %v3407
      %v3421 = vadd.f32 %v3389, %v3407
      %v3422 = vadd.f32 %v3390, %v3407
      %v3423 = vadd.f32 %v3391, %v3407
      %v3424 = vadd.f32 %v3392, %v3407
      %v3425 = vadd.f32 %v3393, %v3407
      %v3426 = vadd.f32 %v3394, %v3407
      %v3427 = vadd.f32 %v3395, %v3407
      %v3428 = vadd.f32 %v3396, %v3407
      %v3429 = vadd.f32 %v3397, %v3407
      %v3430 = vadd.f32 %v3398, %v3407
      %v3431 = vadd.f32 %v3399, %v3407
      %v3432 = vadd.f32 %v3400, %v3407
      %v3433 = vadd.f32 %v3401, %v3407
      %v3434 = vmax.f32 %v3409, 0.0
      %v3435 = vmax.f32 %v3410, 0.0
      %v3436 = vmax.f32 %v3411, 0.0
      %v3437 = vmax.f32 %v3412, 0.0
      %v3438 = vmax.f32 %v3413, 0.0
      %v3439 = vmax.f32 %v3414, 0.0
      %v3440 = vmax.f32 %v3415, 0.0
      %v3441 = vmax.f32 %v3416, 0.0
      %v3442 = vmax.f32 %v3417, 0.0
      %v3443 = vmax.f32 %v3418, 0.0
      %v3444 = vmax.f32 %v3419, 0.0
      %v3445 = vmax.f32 %v3420, 0.0
      %v3446 = vmax.f32 %v3421, 0.0
      %v3447 = vmax.f32 %v3422, 0.0
      %v3448 = vmax.f32 %v3423, 0.0
      %v3449 = vmax.f32 %v3424, 0.0
      %v3450 = vmax.f32 %v3425, 0.0
      %v3451 = vmax.f32 %v3426, 0.0
      %v3452 = vmax.f32 %v3427, 0.0
      %v3453 = vmax.f32 %v3428, 0.0
      %v3454 = vmax.f32 %v3429, 0.0
      %v3455 = vmax.f32 %v3430, 0.0
      %v3456 = vmax.f32 %v3431, 0.0
      %v3457 = vmax.f32 %v3432, 0.0
      %v3458 = vmax.f32 %v3433, 0.0
      %v3459 = vpack.c.bf16 %v3435, %v3434
      %v3460 = vpack.c.bf16 %v3437, %v3436
      %v3461 = vpack.c.bf16 %v3439, %v3438
      %v3462 = vpack.c.bf16 %v3441, %v3440
      %v3463 = vpack.c.bf16 %v3443, %v3442
      %v3464 = vpack.c.bf16 %v3445, %v3444
      %v3465 = vpack.c.bf16 %v3447, %v3446
      %v3466 = vpack.c.bf16 %v3449, %v3448
      %v3467 = vpack.c.bf16 %v3451, %v3450
      %v3468 = vpack.c.bf16 %v3453, %v3452
      %v3469 = vpack.c.bf16 %v3455, %v3454
      %v3470 = vpack.c.bf16 %v3457, %v3456
      %v3471 = vpack.c.bf16 %v3458, %v3458
      %v3485 = vunpack.c.l.b16 %v3459
      %v3486 = vunpack.c.h.b16 %v3459
      %v3487 = vunpack.c.l.b16 %v3460
      %v3488 = vunpack.c.h.b16 %v3460
      %v3489 = vunpack.c.l.b16 %v3461
      %v3490 = vunpack.c.h.b16 %v3461
      %v3491 = vunpack.c.l.b16 %v3462
      %v3492 = vunpack.c.h.b16 %v3462
      %v3493 = vunpack.c.l.b16 %v3463
      %v3494 = vunpack.c.h.b16 %v3463
      %v3495 = vunpack.c.l.b16 %v3464
      %v3496 = vunpack.c.h.b16 %v3464
      %v3497 = vunpack.c.l.b16 %v3465
      %v3498 = vunpack.c.h.b16 %v3465
      %v3499 = vunpack.c.l.b16 %v3466
      %v3500 = vunpack.c.h.b16 %v3466
      %v3501 = vunpack.c.l.b16 %v3467
      %v3502 = vunpack.c.h.b16 %v3467
      %v3503 = vunpack.c.l.b16 %v3468
      %v3504 = vunpack.c.h.b16 %v3468
      %v3505 = vunpack.c.l.b16 %v3469
      %v3506 = vunpack.c.h.b16 %v3469
      %v3507 = vunpack.c.l.b16 %v3470
      %v3508 = vunpack.c.h.b16 %v3470
      %v3509 = vunpack.c.l.b16 %v3471
      %v3510 = vpack.c.b16 %v3485, %v3485
      %v3511 = vpack.c.b16 %v3486, %v3486
      %v3512 = vpack.c.b16 %v3487, %v3487
      %v3513 = vpack.c.b16 %v3488, %v3488
      %v3514 = vpack.c.b16 %v3489, %v3489
      %v3515 = vpack.c.b16 %v3490, %v3490
      %v3516 = vpack.c.b16 %v3491, %v3491
      %v3517 = vpack.c.b16 %v3492, %v3492
      %v3518 = vpack.c.b16 %v3493, %v3493
      %v3519 = vpack.c.b16 %v3494, %v3494
      %v3520 = vpack.c.b16 %v3495, %v3495
      %v3521 = vpack.c.b16 %v3496, %v3496
      %v3522 = vpack.c.b16 %v3497, %v3497
      %v3523 = vpack.c.b16 %v3498, %v3498
      %v3524 = vpack.c.b16 %v3499, %v3499
      %v3525 = vpack.c.b16 %v3500, %v3500
      %v3526 = vpack.c.b16 %v3501, %v3501
      %v3527 = vpack.c.b16 %v3502, %v3502
      %v3528 = vpack.c.b16 %v3503, %v3503
      %v3529 = vpack.c.b16 %v3504, %v3504
      %v3530 = vpack.c.b16 %v3505, %v3505
      %v3531 = vpack.c.b16 %v3506, %v3506
      %v3532 = vpack.c.b16 %v3507, %v3507
      %v3533 = vpack.c.b16 %v3508, %v3508
      %v3534 = vpack.c.b16 %v3509, %v3509
      %3560 = vst [vmem:[%s170] sm:$0xf] %v3510
      %3561 = vst [vmem:[%s170 + $0x4] sm:$0xf] %v3511
      %3562 = vst [vmem:[%s170 + $0x8] sm:$0xf] %v3512
      %3563 = vst [vmem:[%s170 + $0xc] sm:$0xf] %v3513
      %3564 = vst [vmem:[%s170 + $0x10] sm:$0xf] %v3514
      %3565 = vst [vmem:[%s170 + $0x14] sm:$0xf] %v3515
      %3566 = vst [vmem:[%s170 + $0x18] sm:$0xf] %v3516
      %3567 = vst [vmem:[%s170 + $0x1c] sm:$0xf] %v3517
      %3568 = vst [vmem:[%s170 + $0x20] sm:$0xf] %v3518
      %3569 = vst [vmem:[%s170 + $0x24] sm:$0xf] %v3519
      %3570 = vst [vmem:[%s170 + $0x28] sm:$0xf] %v3520
      %3571 = vst [vmem:[%s170 + $0x2c] sm:$0xf] %v3521
      %3572 = vst [vmem:[%s170 + $0x30] sm:$0xf] %v3522
      %3573 = vst [vmem:[%s170 + $0x34] sm:$0xf] %v3523
      %3574 = vst [vmem:[%s170 + $0x38] sm:$0xf] %v3524
      %3575 = vst [vmem:[%s170 + $0x3c] sm:$0xf] %v3525
      %3576 = vst [vmem:[%s170 + $0x40] sm:$0xf] %v3526
      %3577 = vst [vmem:[%s170 + $0x44] sm:$0xf] %v3527
      %3578 = vst [vmem:[%s170 + $0x48] sm:$0xf] %v3528
      %3579 = vst [vmem:[%s170 + $0x4c] sm:$0xf] %v3529
      %3580 = vst [vmem:[%s170 + $0x50] sm:$0xf] %v3530
      %3581 = vst [vmem:[%s170 + $0x54] sm:$0xf] %v3531
      %3582 = vst [vmem:[%s170 + $0x58] sm:$0xf] %v3532
      %3583 = vst [vmem:[%s170 + $0x5c] sm:$0xf] %v3533
      %3584 = vst [vmem:[%s170 + $0x60] sm:$0x3] %v3534
      %p3585 = scmp.lt.s32.totalorder %s14, 1
      %s3586 = scalar_select %p3585, %s14, 1
      %s3587 = smul.addr %s3586, 25
      %s3588 = smul.addr %s3587, 4
      %s3589 = scalar_lea.vmem %s3, %s3588
      // Predicated region
      $region33: #{model_forward.4} parent=31 // pred_check
        %p3590 = pneg %p100
      $region34: #{model_forward.4} parent=31 // pred_check_branch
        %3592 = sbr.rel (%p3590) target = $region36
      $region35: #{model_forward.4} parent=31 // pred_region
        _
      $region36: #{model_forward.4} parent=31 // pred_fallthru
        _
    $region32: #{model_forward.4} parent=5 // pred_fallthru
      _
    %p3593 = scmp.le.s32.totalorder 2, %s9
    // Predicated region
    $region37: #{model_forward.4} parent=5 // pred_check
      %p3594 = pneg %p3593
    $region38: #{model_forward.4} parent=5 // pred_check_branch
      %3596 = sbr.rel (%p3594) target = $region40
    $region39: #{model_forward.4} parent=5 // pred_region
      %s3597 = ssub.s32 %s9, 2
      // Predicated region
      $region41: #{model_forward.4} parent=39 // pred_check
        %p3598 = pneg %p106
      $region42: #{model_forward.4} parent=39 // pred_check_branch
        %3600 = sbr.rel (%p3598) target = $region44
      $region43: #{model_forward.4} parent=39 // pred_region
        %p3601 = scmp.lt.s32.totalorder %s15, 1
        %s3602 = scalar_select %p3601, %s15, 1
        %s3603 = smul.addr %s3602, 25
        %s3604 = smul.addr %s3603, 4
        %s3605 = scalar_lea.vmem %s3, %s3604
      $region44: #{model_forward.4} parent=39 // pred_fallthru
        _
    $region40: #{model_forward.4} parent=5 // pred_fallthru
      _
  $region6: #{model_forward.4} parent=0 // loop_footer
    %s13 = sadd.s32 1, %s9
  $region7: #{model_forward.4} parent=0 // loop_footer_branch
    %8 = sbr.rel target = $region3
  $region8: #{model_forward.4} parent=0 // loop_exit
    _

// kernel: model_forward.5
$region0: #{model_forward.5}
  #allocation0 [shape = 'u32[]', space=smem, size = 0x4, offset = 0x4, fixed_abs, tag = 'smem constant byte address 0x4 - core index']
  #allocation1 [shape = 'u32[144,128]{1,0:T(1,128)}', space=vmem, size = 0x12000, scoped, tag = 'internal scratch']
  #allocation2 [shape = 'f32[2,512]{1,0:T(2,128)}', space=vmem, size = 0x1000, scoped, tag = 'scratch operand']
  %s0 = inlined_call_operand.vmem [shape: bf16[2,25088], index: 0, kind: input, shape index: {}]
  %s1 = inlined_call_operand.hbm [shape: bf16[25088,1024], index: 1, kind: input, shape index: {}]
  %s2 = inlined_call_operand.vmem [shape: f32[1,1024], index: 2, kind: input, shape index: {}]
  %s3 = inlined_call_operand.vmem [shape: f32[1024,128], index: 3, kind: input, shape index: {}]
  %s4 = inlined_call_operand.vmem [shape: f32[2,2,128], index: 4, kind: output, shape index: {}]
  %s5 = sld [smem:[#allocation0]]
  $region61: #{model_forward.5} parent=0
    _
  %s7 = ssub.s32 1, %s5
  %s8 = scalar_select 0, %s7, %s5
  $region1: #{model_forward.5} parent=0
    #allocation3 [shape = 'u8[7340032]{0}', space=vmem, size = 0x700000, scoped, tag = 'input window, operand 1']
    #allocation4 [shape = 's32[2]{0}', space=sflag, size = 0x8, scoped, tag = 'scoped memory for model_forward.5']
    %9 = vsyncpa [#allocation4], 0
    %s10 = scalar_lea.sflag [#allocation4], 1
    %11 = vsyncpa %s10, 0
    loop: start=0, step=1, limit=16
    $region2: #{model_forward.5} parent=1 // loop_pre_header
      _
    $region3: #{model_forward.5} parent=1 // loop_header
      %s13 = sphi 0, %s17
      %p14 = scmp.ge.s32.totalorder %s13, 16
      %s20 = sphi 0, %s32
      %s21 = sphi 0, %s28
      %s22 = sphi 0, %s20
      %s23 = sphi 0, %s21
      %s24 = sphi 0, %s22
      %s25 = sphi 0, %s23
      %s35 = sphi 0, %s37
      %s38 = sphi 0, %s35
      %s39 = sphi 0, %s38
      %s55 = sphi 0, %s39
      %s63 = sphi 0, %s65
      %s66 = sphi 0, %s63
      %s67 = sphi 0, %s66
      %s83 = sphi 0, %s67
      %s89 = sphi 0, %s91
      %s92 = sphi 0, %s89
      %s93 = sphi 0, %s92
      %s109 = sphi 0, %s93
      %s115 = sphi 0, %s117
      %s118 = sphi 0, %s115
      %s119 = sphi 0, %s118
      %s135 = sphi 0, %s119
      %s141 = sphi 0, %s143
      %s144 = sphi 0, %s141
      %s145 = sphi 0, %s144
      %s161 = sphi 0, %s145
    $region4: #{model_forward.5} parent=1 // loop_header_branch
      %16 = sbr.rel (%p14) target = $region8
    $region5: #{model_forward.5} parent=1 // loop_body
      %s18 = ssub.s32 %s13, 1
      %s19 = ssub.s32 %s13, 2
      %s26 = sadd.s32 1, %s21
      %p27 = scmp.ge.s32.totalorder %s26, 7
      %s28 = scalar_select %p27, 0, %s26
      %s29 = sadd.s32 1, %s20
      %s30 = scalar_select %p27, %s29, %s20
      %p31 = scmp.ge.s32.totalorder %s30, 2
      %s32 = scalar_select %p31, 0, %s30
      %s33 = ssub.s32 %s21, %s28
      %p34 = scmp.eq.s32.totalorder %s33, 0
      %s36 = sadd.s32 %s35, 1
      %s37 = scalar_select %p34, %s35, %s36
      %p40 = pneg %p34
      %p41 = scmp.eq.s32.totalorder %s13, 13
      %p42 = por %p40, %p41
      %p43 = scmp.ne.s32.totalorder %s35, %s38
      %p44 = scmp.eq.s32.totalorder %s13, 0
      %p45 = por %p43, %p44
      %p46 = scmp.ne.s32.totalorder %s35, %s38
      %p47 = scmp.eq.s32.totalorder %s18, 13
      %p48 = por %p46, %p47
      %p49 = scmp.ne.s32.totalorder %s38, %s39
      %p50 = scmp.eq.s32.totalorder %s18, 0
      %p51 = por %p49, %p50
      %p52 = scmp.ne.s32.totalorder %s38, %s39
      %p53 = scmp.eq.s32.totalorder %s19, 13
      %p54 = por %p52, %p53
      %p56 = scmp.ne.s32.totalorder %s39, %s55
      %p57 = scmp.eq.s32.totalorder %s19, 0
      %p58 = por %p56, %p57
      %s59 = ssub.s32 %s21, %s28
      %s60 = ssub.s32 %s20, %s32
      %s61 = sor.u32 %s59, %s60
      %p62 = scmp.eq.s32.totalorder %s61, 0
      %s64 = sadd.s32 %s63, 1
      %s65 = scalar_select %p62, %s63, %s64
      %p68 = pneg %p62
      %p69 = scmp.eq.s32.totalorder %s13, 13
      %p70 = por %p68, %p69
      %p71 = scmp.ne.s32.totalorder %s63, %s66
      %p72 = scmp.eq.s32.totalorder %s13, 0
      %p73 = por %p71, %p72
      %p74 = scmp.ne.s32.totalorder %s63, %s66
      %p75 = scmp.eq.s32.totalorder %s18, 13
      %p76 = por %p74, %p75
      %p77 = scmp.ne.s32.totalorder %s66, %s67
      %p78 = scmp.eq.s32.totalorder %s18, 0
      %p79 = por %p77, %p78
      %p80 = scmp.ne.s32.totalorder %s66, %s67
      %p81 = scmp.eq.s32.totalorder %s19, 13
      %p82 = por %p80, %p81
      %p84 = scmp.ne.s32.totalorder %s67, %s83
      %p85 = scmp.eq.s32.totalorder %s19, 0
      %p86 = por %p84, %p85
      %s87 = ssub.s32 %s20, %s32
      %p88 = scmp.eq.s32.totalorder %s87, 0
      %s90 = sadd.s32 %s89, 1
      %s91 = scalar_select %p88, %s89, %s90
      %p94 = pneg %p88
      %p95 = scmp.eq.s32.totalorder %s13, 13
      %p96 = por %p94, %p95
      %p97 = scmp.ne.s32.totalorder %s89, %s92
      %p98 = scmp.eq.s32.totalorder %s13, 0
      %p99 = por %p97, %p98
      %p100 = scmp.ne.s32.totalorder %s89, %s92
      %p101 = scmp.eq.s32.totalorder %s18, 13
      %p102 = por %p100, %p101
      %p103 = scmp.ne.s32.totalorder %s92, %s93
      %p104 = scmp.eq.s32.totalorder %s18, 0
      %p105 = por %p103, %p104
      %p106 = scmp.ne.s32.totalorder %s92, %s93
      %p107 = scmp.eq.s32.totalorder %s19, 13
      %p108 = por %p106, %p107
      %p110 = scmp.ne.s32.totalorder %s93, %s109
      %p111 = scmp.eq.s32.totalorder %s19, 0
      %p112 = por %p110, %p111
      %s113 = ssub.s32 %s20, %s32
      %p114 = scmp.eq.s32.totalorder %s113, 0
      %s116 = sadd.s32 %s115, 1
      %s117 = scalar_select %p114, %s115, %s116
      %p120 = pneg %p114
      %p121 = scmp.eq.s32.totalorder %s13, 13
      %p122 = por %p120, %p121
      %p123 = scmp.ne.s32.totalorder %s115, %s118
      %p124 = scmp.eq.s32.totalorder %s13, 0
      %p125 = por %p123, %p124
      %p126 = scmp.ne.s32.totalorder %s115, %s118
      %p127 = scmp.eq.s32.totalorder %s18, 13
      %p128 = por %p126, %p127
      %p129 = scmp.ne.s32.totalorder %s118, %s119
      %p130 = scmp.eq.s32.totalorder %s18, 0
      %p131 = por %p129, %p130
      %p132 = scmp.ne.s32.totalorder %s118, %s119
      %p133 = scmp.eq.s32.totalorder %s19, 13
      %p134 = por %p132, %p133
      %p136 = scmp.ne.s32.totalorder %s119, %s135
      %p137 = scmp.eq.s32.totalorder %s19, 0
      %p138 = por %p136, %p137
      %s139 = ssub.s32 %s20, %s32
      %p140 = scmp.eq.s32.totalorder %s139, 0
      %s142 = sadd.s32 %s141, 1
      %s143 = scalar_select %p140, %s141, %s142
      %p146 = pneg %p140
      %p147 = scmp.eq.s32.totalorder %s13, 13
      %p148 = por %p146, %p147
      %p149 = scmp.ne.s32.totalorder %s141, %s144
      %p150 = scmp.eq.s32.totalorder %s13, 0
      %p151 = por %p149, %p150
      %p152 = scmp.ne.s32.totalorder %s141, %s144
      %p153 = scmp.eq.s32.totalorder %s18, 13
      %p154 = por %p152, %p153
      %p155 = scmp.ne.s32.totalorder %s144, %s145
      %p156 = scmp.eq.s32.totalorder %s18, 0
      %p157 = por %p155, %p156
      %p158 = scmp.ne.s32.totalorder %s144, %s145
      %p159 = scmp.eq.s32.totalorder %s19, 13
      %p160 = por %p158, %p159
      %p162 = scmp.ne.s32.totalorder %s145, %s161
      %p163 = scmp.eq.s32.totalorder %s19, 0
      %p164 = por %p162, %p163
      %p165 = scmp.le.s32.totalorder 1, %s13
      %p166 = scmp.lt.s32.totalorder %s13, 15
      %p167 = pnand %p165, %p166
      %p168 = pneg %p167
      // Predicated region
      $region9: #{model_forward.5} parent=5 // pred_check
        _
      $region10: #{model_forward.5} parent=5 // pred_check_branch
        %170 = sbr.rel (%p167) target = $region12
      $region11: #{model_forward.5} parent=5 // pred_region
        %s171 = ssub.s32 %s13, 1
      $region12: #{model_forward.5} parent=5 // pred_fallthru
        _
      %p172 = scmp.lt.s32.totalorder %s13, 14
      // Predicated region
      $region13: #{model_forward.5} parent=5 // pred_check
        %p173 = pneg %p172
      $region14: #{model_forward.5} parent=5 // pred_check_branch
        %175 = sbr.rel (%p173) target = $region16
      $region15: #{model_forward.5} parent=5 // pred_region
        // Predicated region
        $region17: #{model_forward.5} parent=15 // pred_check
          %p176 = pneg %p45
        $region18: #{model_forward.5} parent=15 // pred_check_branch
          %178 = sbr.rel (%p176) target = $region20
        $region19: #{model_forward.5} parent=15 // pred_region
          %s179 = smul.u32 28, %s21
          %p180 = scmp.lt.s32.totalorder %s179, 195
          %s181 = scalar_select %p180, %s179, 195
          %s182 = scalar_lea.vmem %s0, %s181
          %s183 = smul.u32 28, %s21
        $region20: #{model_forward.5} parent=15 // pred_fallthru
          _
        // Predicated region
        $region21: #{model_forward.5} parent=15 // pred_check
          %p184 = pneg %p73
        $region22: #{model_forward.5} parent=15 // pred_check_branch
          %186 = sbr.rel (%p184) target = $region24
        $region23: #{model_forward.5} parent=15 // pred_region
          %s187 = sand.u32 %s63, 1
          %s188 = scalar_lea.sflag [#allocation4], %s187
          %s189 = sand.u32 %s63, 1
          %s190 = smul.addr %s189, 7168
          %s191 = scalar_lea.vmem [#allocation3], %s190
          %s192 = smul.u32 448, %s21
          %s193 = smul.u32 4, %s20
          %s195 = ssub.s32 114688, 114688
          %196 = vsyncadd %s188, %s195
          %s197 = smul.addr %s192, 8
          %s198 = sadd.s32 %s193, %s197
          %s199 = smul.addr %s198, 64
          %s200 = scalar_lea.hbm %s1, %s199
          %s201 = sshll.u32 %s191, 4
          %s202 = int_to_ptr.vmem [resolvable:$true] %s201
          %207 = dma.hbm_to_vmem [thread:$0]  %s200, 114688, %s202, %s188, 512, 256, 16
        $region24: #{model_forward.5} parent=15 // pred_fallthru
          _
        // Predicated region
        $region25: #{model_forward.5} parent=15 // pred_check
          %p208 = pneg %p99
        $region26: #{model_forward.5} parent=15 // pred_check_branch
          %210 = sbr.rel (%p208) target = $region28
        $region27: #{model_forward.5} parent=15 // pred_region
          %s211 = smul.u32 4, %s20
          %p212 = scmp.lt.s32.totalorder %s211, 7
          %s213 = scalar_select %p212, %s211, 7
          %s214 = scalar_lea.vmem %s2, %s213
          %s215 = smul.u32 4, %s20
        $region28: #{model_forward.5} parent=15 // pred_fallthru
          _
        // Predicated region
        $region29: #{model_forward.5} parent=15 // pred_check
          %p216 = pneg %p125
        $region30: #{model_forward.5} parent=15 // pred_check_branch
          %218 = sbr.rel (%p216) target = $region32
        $region31: #{model_forward.5} parent=15 // pred_region
          %s219 = smul.u32 64, %s20
          %p220 = scmp.lt.s32.totalorder %s219, 127
          %s221 = scalar_select %p220, %s219, 127
          %s222 = smul.addr %s221, 8
          %s223 = scalar_lea.vmem %s3, %s222
          %s224 = smul.u32 64, %s20
        $region32: #{model_forward.5} parent=15 // pred_fallthru
          _
      $region16: #{model_forward.5} parent=5 // pred_fallthru
        _
      %p225 = scmp.le.s32.totalorder 1, %s13
      %p226 = scmp.lt.s32.totalorder %s13, 15
      %p227 = pnand %p225, %p226
      %p228 = pneg %p227
      // Predicated region
      $region33: #{model_forward.5} parent=5 // pred_check
        _
      $region34: #{model_forward.5} parent=5 // pred_check_branch
        %230 = sbr.rel (%p227) target = $region36
      $region35: #{model_forward.5} parent=5 // pred_region
        %s231 = ssub.s32 %s13, 1
        %s232 = sand.u32 %s66, 1
        %s233 = scalar_lea.sflag [#allocation4], %s232
        %s234 = sand.u32 %s66, 1
        %s235 = smul.addr %s234, 7168
        %s236 = scalar_lea.vmem [#allocation3], %s235
        // Predicated region
        $region37: #{model_forward.5} parent=35 // pred_check
          %p237 = pneg %p79
        $region38: #{model_forward.5} parent=35 // pred_check_branch
          %239 = sbr.rel (%p237) target = $region40
        $region39: #{model_forward.5} parent=35 // pred_region
          %240 = dma.done %s233, 114688
        $region40: #{model_forward.5} parent=35 // pred_fallthru
          _
        %s241 = smul.u32 28, %s23
        %p242 = scmp.lt.s32.totalorder %s241, 195
        %s243 = scalar_select %p242, %s241, 195
        %s244 = scalar_lea.vmem %s0, %s243
        %p245 = pneg %p51
        %p246 = pneg %p48
        %s247 = sand.u32 %s66, 1
        %s248 = scalar_lea.sflag [#allocation4], %s247
        %s249 = sand.u32 %s66, 1
        %s250 = smul.addr %s249, 7168
        %s251 = scalar_lea.vmem [#allocation3], %s250
        %p252 = pneg %p79
        %p253 = pneg %p76
        %s254 = smul.u32 4, %s22
        %p255 = scmp.lt.s32.totalorder %s254, 7
        %s256 = scalar_select %p255, %s254, 7
        %s257 = scalar_lea.vmem %s2, %s256
        %p258 = pneg %p105
        %p259 = pneg %p102
        %s260 = smul.u32 64, %s22
        %p261 = scmp.lt.s32.totalorder %s260, 127
        %s262 = scalar_select %p261, %s260, 127
        %s263 = smul.addr %s262, 8
        %s264 = scalar_lea.vmem %s3, %s263
        %p265 = pneg %p131
        %p266 = pneg %p128
        %p267 = pneg %p157
        %p268 = pneg %p154
        %p269 = scmp.lt.s32.totalorder %s22, 1
        %s270 = scalar_select %p269, %s22, 1
        %s271 = smul.addr %s270, 2
        %s272 = scalar_lea.vmem %s4, %s271
        %s273 = smul.u32 28, %s23
        %p274 = scmp.lt.s32.totalorder %s273, 195
        %s275 = scalar_select %p274, %s273, 195
        %s276 = scalar_lea.vmem %s0, %s275
        %s277 = smul.u32 28, %s23
        %s278 = smul.u32 448, %s23
        %s279 = smul.u32 4, %s22
        %s280 = smul.u32 4, %s22
        %p281 = scmp.lt.s32.totalorder %s280, 7
        %s282 = scalar_select %p281, %s280, 7
        %s283 = scalar_lea.vmem %s2, %s282
        %s284 = smul.u32 4, %s22
        %s285 = smul.u32 64, %s22
        %p286 = scmp.lt.s32.totalorder %s285, 127
        %s287 = scalar_select %p286, %s285, 127
        %s288 = smul.addr %s287, 8
        %s289 = scalar_lea.vmem %s3, %s288
        %s290 = smul.u32 64, %s22
        %p291 = scmp.lt.s32.totalorder %s22, 1
        %s292 = scalar_select %p291, %s22, 1
        %s293 = smul.addr %s292, 2
        %s294 = scalar_lea.vmem %s4, %s293
        %p295 = scmp.eq.s32.totalorder %s23, 0
        // Predicated region
        $region41: #{model_forward.5} parent=35 // pred_check
          %p296 = pneg %p295
        $region42: #{model_forward.5} parent=35 // pred_check_branch
          %298 = sbr.rel (%p296) target = $region44
        $region43: #{model_forward.5} parent=35 // pred_region
          %299 = vst [vmem:[#allocation2] sm:$0xff] 0.0
        $region44: #{model_forward.5} parent=35 // pred_fallthru
          _
        %v300 = vld [vmem:[#allocation2] sm:$0xff]
        %v301 = vld [vmem:[%s276] sm:$0xff]
        %v302 = vld [vmem:[%s276 + $0x8] sm:$0xff]
        %v303 = vld [vmem:[%s276 + $0x10] sm:$0xff]
        %v304 = vld [vmem:[%s276 + $0x18] sm:$0xf]
        %v305 = vld [vmem:[%s236] sm:$0xff]
        %v306 = vld [vmem:[%s236 + $0x8] sm:$0xff]
        %v307 = vld [vmem:[%s236 + $0x10] sm:$0xff]
        %v308 = vld [vmem:[%s236 + $0x18] sm:$0xff]
        %v309 = vld [vmem:[%s236 + $0x20] sm:$0xff]
        %v310 = vld [vmem:[%s236 + $0x28] sm:$0xff]
        %v311 = vld [vmem:[%s236 + $0x30] sm:$0xff]
        %v312 = vld [vmem:[%s236 + $0x38] sm:$0xff]
        %v313 = vld [vmem:[%s236 + $0x40] sm:$0xff]
        %v314 = vld [vmem:[%s236 + $0x48] sm:$0xff]
        %v315 = vld [vmem:[%s236 + $0x50] sm:$0xff]
        %v316 = vld [vmem:[%s236 + $0x58] sm:$0xff]
        %v317 = vld [vmem:[%s236 + $0x60] sm:$0xff]
        %v318 = vld [vmem:[%s236 + $0x68] sm:$0xff]
        %v319 = vld [vmem:[%s236 + $0x70] sm:$0xff]
        %v320 = vld [vmem:[%s236 + $0x78] sm:$0xff]
        %v321 = vld [vmem:[%s236 + $0x80] sm:$0xff]
        %v322 = vld [vmem:[%s236 + $0x88] sm:$0xff]
        %v323 = vld [vmem:[%s236 + $0x90] sm:$0xff]
        %v324 = vld [vmem:[%s236 + $0x98] sm:$0xff]
        %v325 = vld [vmem:[%s236 + $0xa0] sm:$0xff]
        %v326 = vld [vmem:[%s236 + $0xa8] sm:$0xff]
        %v327 = vld [vmem:[%s236 + $0xb0] sm:$0xff]
        %v328 = vld [vmem:[%s236 + $0xb8] sm:$0xff]
        %v329 = vld [vmem:[%s236 + $0xc0] sm:$0xff]
        %v330 = vld [vmem:[%s236 + $0xc8] sm:$0xff]
        %v331 = vld [vmem:[%s236 + $0xd0] sm:$0xff]
        %v332 = vld [vmem:[%s236 + $0xd8] sm:$0xff]
        %v333 = vld [vmem:[%s236 + $0xe0] sm:$0xff]
        %v334 = vld [vmem:[%s236 + $0xe8] sm:$0xff]
        %v335 = vld [vmem:[%s236 + $0xf0] sm:$0xff]
        %v336 = vld [vmem:[%s236 + $0xf8] sm:$0xff]
        %v337 = vld [vmem:[%s236 + $0x100] sm:$0xff]
        %v338 = vld [vmem:[%s236 + $0x108] sm:$0xff]
        %v339 = vld [vmem:[%s236 + $0x110] sm:$0xff]
        %v340 = vld [vmem:[%s236 + $0x118] sm:$0xff]
        %v341 = vld [vmem:[%s236 + $0x120] sm:$0xff]
        %v342 = vld [vmem:[%s236 + $0x128] sm:$0xff]
        %v343 = vld [vmem:[%s236 + $0x130] sm:$0xff]
        %v344 = vld [vmem:[%s236 + $0x138] sm:$0xff]
        %v345 = vld [vmem:[%s236 + $0x140] sm:$0xff]
        %v346 = vld [vmem:[%s236 + $0x148] sm:$0xff]
        %v347 = vld [vmem:[%s236 + $0x150] sm:$0xff]
        %v348 = vld [vmem:[%s236 + $0x158] sm:$0xff]
        %v349 = vld [vmem:[%s236 + $0x160] sm:$0xff]
        %v350 = vld [vmem:[%s236 + $0x168] sm:$0xff]
        %v351 = vld [vmem:[%s236 + $0x170] sm:$0xff]
        %v352 = vld [vmem:[%s236 + $0x178] sm:$0xff]
        %v353 = vld [vmem:[%s236 + $0x180] sm:$0xff]
        %v354 = vld [vmem:[%s236 + $0x188] sm:$0xff]
        %v355 = vld [vmem:[%s236 + $0x190] sm:$0xff]
        %v356 = vld [vmem:[%s236 + $0x198] sm:$0xff]
        %v357 = vld [vmem:[%s236 + $0x1a0] sm:$0xff]
        %v358 = vld [vmem:[%s236 + $0x1a8] sm:$0xff]
        %v359 = vld [vmem:[%s236 + $0x1b0] sm:$0xff]
        %v360 = vld [vmem:[%s236 + $0x1b8] sm:$0xff]
        %v361 = vld [vmem:[%s236 + $0x1c0] sm:$0xff]
        %v362 = vld [vmem:[%s236 + $0x1c8] sm:$0xff]
        %v363 = vld [vmem:[%s236 + $0x1d0] sm:$0xff]
        %v364 = vld [vmem:[%s236 + $0x1d8] sm:$0xff]
        %v365 = vld [vmem:[%s236 + $0x1e0] sm:$0xff]
        %v366 = vld [vmem:[%s236 + $0x1e8] sm:$0xff]
        %v367 = vld [vmem:[%s236 + $0x1f0] sm:$0xff]
        %v368 = vld [vmem:[%s236 + $0x1f8] sm:$0xff]
        %v369 = vld [vmem:[%s236 + $0x200] sm:$0xff]
        %v370 = vld [vmem:[%s236 + $0x208] sm:$0xff]
        %v371 = vld [vmem:[%s236 + $0x210] sm:$0xff]
        %v372 = vld [vmem:[%s236 + $0x218] sm:$0xff]
        %v373 = vld [vmem:[%s236 + $0x220] sm:$0xff]
        %v374 = vld [vmem:[%s236 + $0x228] sm:$0xff]
        %v375 = vld [vmem:[%s236 + $0x230] sm:$0xff]
        %v376 = vld [vmem:[%s236 + $0x238] sm:$0xff]
        %v377 = vld [vmem:[%s236 + $0x240] sm:$0xff]
        %v378 = vld [vmem:[%s236 + $0x248] sm:$0xff]
        %v379 = vld [vmem:[%s236 + $0x250] sm:$0xff]
        %v380 = vld [vmem:[%s236 + $0x258] sm:$0xff]
        %v381 = vld [vmem:[%s236 + $0x260] sm:$0xff]
        %v382 = vld [vmem:[%s236 + $0x268] sm:$0xff]
        %v383 = vld [vmem:[%s236 + $0x270] sm:$0xff]
        %v384 = vld [vmem:[%s236 + $0x278] sm:$0xff]
        %v385 = vld [vmem:[%s236 + $0x280] sm:$0xff]
        %v386 = vld [vmem:[%s236 + $0x288] sm:$0xff]
        %v387 = vld [vmem:[%s236 + $0x290] sm:$0xff]
        %v388 = vld [vmem:[%s236 + $0x298] sm:$0xff]
        %v389 = vld [vmem:[%s236 + $0x2a0] sm:$0xff]
        %v390 = vld [vmem:[%s236 + $0x2a8] sm:$0xff]
        %v391 = vld [vmem:[%s236 + $0x2b0] sm:$0xff]
        %v392 = vld [vmem:[%s236 + $0x2b8] sm:$0xff]
        %v393 = vld [vmem:[%s236 + $0x2c0] sm:$0xff]
        %v394 = vld [vmem:[%s236 + $0x2c8] sm:$0xff]
        %v395 = vld [vmem:[%s236 + $0x2d0] sm:$0xff]
        %v396 = vld [vmem:[%s236 + $0x2d8] sm:$0xff]
        %v397 = vld [vmem:[%s236 + $0x2e0] sm:$0xff]
        %v398 = vld [vmem:[%s236 + $0x2e8] sm:$0xff]
        %v399 = vld [vmem:[%s236 + $0x2f0] sm:$0xff]
        %v400 = vld [vmem:[%s236 + $0x2f8] sm:$0xff]
        %v401 = vld [vmem:[%s236 + $0x300] sm:$0xff]
        %v402 = vld [vmem:[%s236 + $0x308] sm:$0xff]
        %v403 = vld [vmem:[%s236 + $0x310] sm:$0xff]
        %v404 = vld [vmem:[%s236 + $0x318] sm:$0xff]
        %v405 = vld [vmem:[%s236 + $0x320] sm:$0xff]
        %v406 = vld [vmem:[%s236 + $0x328] sm:$0xff]
        %v407 = vld [vmem:[%s236 + $0x330] sm:$0xff]
        %v408 = vld [vmem:[%s236 + $0x338] sm:$0xff]
        %v409 = vld [vmem:[%s236 + $0x340] sm:$0xff]
        %v410 = vld [vmem:[%s236 + $0x348] sm:$0xff]
        %v411 = vld [vmem:[%s236 + $0x350] sm:$0xff]
        %v412 = vld [vmem:[%s236 + $0x358] sm:$0xff]
        %v413 = vld [vmem:[%s236 + $0x360] sm:$0xff]
        %v414 = vld [vmem:[%s236 + $0x368] sm:$0xff]
        %v415 = vld [vmem:[%s236 + $0x370] sm:$0xff]
        %v416 = vld [vmem:[%s236 + $0x378] sm:$0xff]
        %v417 = vld [vmem:[%s236 + $0x380] sm:$0xff]
        %v418 = vld [vmem:[%s236 + $0x388] sm:$0xff]
        %v419 = vld [vmem:[%s236 + $0x390] sm:$0xff]
        %v420 = vld [vmem:[%s236 + $0x398] sm:$0xff]
        %v421 = vld [vmem:[%s236 + $0x3a0] sm:$0xff]
        %v422 = vld [vmem:[%s236 + $0x3a8] sm:$0xff]
        %v423 = vld [vmem:[%s236 + $0x3b0] sm:$0xff]
        %v424 = vld [vmem:[%s236 + $0x3b8] sm:$0xff]
        %v425 = vld [vmem:[%s236 + $0x3c0] sm:$0xff]
        %v426 = vld [vmem:[%s236 + $0x3c8] sm:$0xff]
        %v427 = vld [vmem:[%s236 + $0x3d0] sm:$0xff]
        %v428 = vld [vmem:[%s236 + $0x3d8] sm:$0xff]
        %v429 = vld [vmem:[%s236 + $0x3e0] sm:$0xff]
        %v430 = vld [vmem:[%s236 + $0x3e8] sm:$0xff]
        %v431 = vld [vmem:[%s236 + $0x3f0] sm:$0xff]
        %v432 = vld [vmem:[%s236 + $0x3f8] sm:$0xff]
        %v433 = vld [vmem:[%s236 + $0x400] sm:$0xff]
        %v434 = vld [vmem:[%s236 + $0x408] sm:$0xff]
        %v435 = vld [vmem:[%s236 + $0x410] sm:$0xff]
        %v436 = vld [vmem:[%s236 + $0x418] sm:$0xff]
        %v437 = vld [vmem:[%s236 + $0x420] sm:$0xff]
        %v438 = vld [vmem:[%s236 + $0x428] sm:$0xff]
        %v439 = vld [vmem:[%s236 + $0x430] sm:$0xff]
        %v440 = vld [vmem:[%s236 + $0x438] sm:$0xff]
        %v441 = vld [vmem:[%s236 + $0x440] sm:$0xff]
        %v442 = vld [vmem:[%s236 + $0x448] sm:$0xff]
        %v443 = vld [vmem:[%s236 + $0x450] sm:$0xff]
        %v444 = vld [vmem:[%s236 + $0x458] sm:$0xff]
        %v445 = vld [vmem:[%s236 + $0x460] sm:$0xff]
        %v446 = vld [vmem:[%s236 + $0x468] sm:$0xff]
        %v447 = vld [vmem:[%s236 + $0x470] sm:$0xff]
        %v448 = vld [vmem:[%s236 + $0x478] sm:$0xff]
        %v449 = vld [vmem:[%s236 + $0x480] sm:$0xff]
        %v450 = vld [vmem:[%s236 + $0x488] sm:$0xff]
        %v451 = vld [vmem:[%s236 + $0x490] sm:$0xff]
        %v452 = vld [vmem:[%s236 + $0x498] sm:$0xff]
        %v453 = vld [vmem:[%s236 + $0x4a0] sm:$0xff]
        %v454 = vld [vmem:[%s236 + $0x4a8] sm:$0xff]
        %v455 = vld [vmem:[%s236 + $0x4b0] sm:$0xff]
        %v456 = vld [vmem:[%s236 + $0x4b8] sm:$0xff]
        %v457 = vld [vmem:[%s236 + $0x4c0] sm:$0xff]
        %v458 = vld [vmem:[%s236 + $0x4c8] sm:$0xff]
        %v459 = vld [vmem:[%s236 + $0x4d0] sm:$0xff]
        %v460 = vld [vmem:[%s236 + $0x4d8] sm:$0xff]
        %v461 = vld [vmem:[%s236 + $0x4e0] sm:$0xff]
        %v462 = vld [vmem:[%s236 + $0x4e8] sm:$0xff]
        %v463 = vld [vmem:[%s236 + $0x4f0] sm:$0xff]
        %v464 = vld [vmem:[%s236 + $0x4f8] sm:$0xff]
        %v465 = vld [vmem:[%s236 + $0x500] sm:$0xff]
        %v466 = vld [vmem:[%s236 + $0x508] sm:$0xff]
        %v467 = vld [vmem:[%s236 + $0x510] sm:$0xff]
        %v468 = vld [vmem:[%s236 + $0x518] sm:$0xff]
        %v469 = vld [vmem:[%s236 + $0x520] sm:$0xff]
        %v470 = vld [vmem:[%s236 + $0x528] sm:$0xff]
        %v471 = vld [vmem:[%s236 + $0x530] sm:$0xff]
        %v472 = vld [vmem:[%s236 + $0x538] sm:$0xff]
        %v473 = vld [vmem:[%s236 + $0x540] sm:$0xff]
        %v474 = vld [vmem:[%s236 + $0x548] sm:$0xff]
        %v475 = vld [vmem:[%s236 + $0x550] sm:$0xff]
        %v476 = vld [vmem:[%s236 + $0x558] sm:$0xff]
        %v477 = vld [vmem:[%s236 + $0x560] sm:$0xff]
        %v478 = vld [vmem:[%s236 + $0x568] sm:$0xff]
        %v479 = vld [vmem:[%s236 + $0x570] sm:$0xff]
        %v480 = vld [vmem:[%s236 + $0x578] sm:$0xff]
        %v481 = vld [vmem:[%s236 + $0x580] sm:$0xff]
        %v482 = vld [vmem:[%s236 + $0x588] sm:$0xff]
        %v483 = vld [vmem:[%s236 + $0x590] sm:$0xff]
        %v484 = vld [vmem:[%s236 + $0x598] sm:$0xff]
        %v485 = vld [vmem:[%s236 + $0x5a0] sm:$0xff]
        %v486 = vld [vmem:[%s236 + $0x5a8] sm:$0xff]
        %v487 = vld [vmem:[%s236 + $0x5b0] sm:$0xff]
        %v488 = vld [vmem:[%s236 + $0x5b8] sm:$0xff]
        %v489 = vld [vmem:[%s236 + $0x5c0] sm:$0xff]
        %v490 = vld [vmem:[%s236 + $0x5c8] sm:$0xff]
        %v491 = vld [vmem:[%s236 + $0x5d0] sm:$0xff]
        %v492 = vld [vmem:[%s236 + $0x5d8] sm:$0xff]
        %v493 = vld [vmem:[%s236 + $0x5e0] sm:$0xff]
        %v494 = vld [vmem:[%s236 + $0x5e8] sm:$0xff]
        %v495 = vld [vmem:[%s236 + $0x5f0] sm:$0xff]
        %v496 = vld [vmem:[%s236 + $0x5f8] sm:$0xff]
        %v497 = vld [vmem:[%s236 + $0x600] sm:$0xff]
        %v498 = vld [vmem:[%s236 + $0x608] sm:$0xff]
        %v499 = vld [vmem:[%s236 + $0x610] sm:$0xff]
        %v500 = vld [vmem:[%s236 + $0x618] sm:$0xff]
        %v501 = vld [vmem:[%s236 + $0x620] sm:$0xff]
        %v502 = vld [vmem:[%s236 + $0x628] sm:$0xff]
        %v503 = vld [vmem:[%s236 + $0x630] sm:$0xff]
        %v504 = vld [vmem:[%s236 + $0x638] sm:$0xff]
        %v505 = vld [vmem:[%s236 + $0x640] sm:$0xff]
        %v506 = vld [vmem:[%s236 + $0x648] sm:$0xff]
        %v507 = vld [vmem:[%s236 + $0x650] sm:$0xff]
        %v508 = vld [vmem:[%s236 + $0x658] sm:$0xff]
        %v509 = vld [vmem:[%s236 + $0x660] sm:$0xff]
        %v510 = vld [vmem:[%s236 + $0x668] sm:$0xff]
        %v511 = vld [vmem:[%s236 + $0x670] sm:$0xff]
        %v512 = vld [vmem:[%s236 + $0x678] sm:$0xff]
        %v513 = vld [vmem:[%s236 + $0x680] sm:$0xff]
        %v514 = vld [vmem:[%s236 + $0x688] sm:$0xff]
        %v515 = vld [vmem:[%s236 + $0x690] sm:$0xff]
        %v516 = vld [vmem:[%s236 + $0x698] sm:$0xff]
        %v517 = vld [vmem:[%s236 + $0x6a0] sm:$0xff]
        %v518 = vld [vmem:[%s236 + $0x6a8] sm:$0xff]
        %v519 = vld [vmem:[%s236 + $0x6b0] sm:$0xff]
        %v520 = vld [vmem:[%s236 + $0x6b8] sm:$0xff]
        %v521 = vld [vmem:[%s236 + $0x6c0] sm:$0xff]
        %v522 = vld [vmem:[%s236 + $0x6c8] sm:$0xff]
        %v523 = vld [vmem:[%s236 + $0x6d0] sm:$0xff]
        %v524 = vld [vmem:[%s236 + $0x6d8] sm:$0xff]
        %v525 = vld [vmem:[%s236 + $0x6e0] sm:$0xff]
        %v526 = vld [vmem:[%s236 + $0x6e8] sm:$0xff]
        %v527 = vld [vmem:[%s236 + $0x6f0] sm:$0xff]
        %v528 = vld [vmem:[%s236 + $0x6f8] sm:$0xff]
        %v529 = vld [vmem:[%s236 + $0x700] sm:$0xff]
        %v530 = vld [vmem:[%s236 + $0x708] sm:$0xff]
        %v531 = vld [vmem:[%s236 + $0x710] sm:$0xff]
        %v532 = vld [vmem:[%s236 + $0x718] sm:$0xff]
        %v533 = vld [vmem:[%s236 + $0x720] sm:$0xff]
        %v534 = vld [vmem:[%s236 + $0x728] sm:$0xff]
        %v535 = vld [vmem:[%s236 + $0x730] sm:$0xff]
        %v536 = vld [vmem:[%s236 + $0x738] sm:$0xff]
        %v537 = vld [vmem:[%s236 + $0x740] sm:$0xff]
        %v538 = vld [vmem:[%s236 + $0x748] sm:$0xff]
        %v539 = vld [vmem:[%s236 + $0x750] sm:$0xff]
        %v540 = vld [vmem:[%s236 + $0x758] sm:$0xff]
        %v541 = vld [vmem:[%s236 + $0x760] sm:$0xff]
        %v542 = vld [vmem:[%s236 + $0x768] sm:$0xff]
        %v543 = vld [vmem:[%s236 + $0x770] sm:$0xff]
        %v544 = vld [vmem:[%s236 + $0x778] sm:$0xff]
        %v545 = vld [vmem:[%s236 + $0x780] sm:$0xff]
        %v546 = vld [vmem:[%s236 + $0x788] sm:$0xff]
        %v547 = vld [vmem:[%s236 + $0x790] sm:$0xff]
        %v548 = vld [vmem:[%s236 + $0x798] sm:$0xff]
        %v549 = vld [vmem:[%s236 + $0x7a0] sm:$0xff]
        %v550 = vld [vmem:[%s236 + $0x7a8] sm:$0xff]
        %v551 = vld [vmem:[%s236 + $0x7b0] sm:$0xff]
        %v552 = vld [vmem:[%s236 + $0x7b8] sm:$0xff]
        %v553 = vld [vmem:[%s236 + $0x7c0] sm:$0xff]
        %v554 = vld [vmem:[%s236 + $0x7c8] sm:$0xff]
        %v555 = vld [vmem:[%s236 + $0x7d0] sm:$0xff]
        %v556 = vld [vmem:[%s236 + $0x7d8] sm:$0xff]
        %v557 = vld [vmem:[%s236 + $0x7e0] sm:$0xff]
        %v558 = vld [vmem:[%s236 + $0x7e8] sm:$0xff]
        %v559 = vld [vmem:[%s236 + $0x7f0] sm:$0xff]
        %v560 = vld [vmem:[%s236 + $0x7f8] sm:$0xff]
        %v561 = vld [vmem:[%s236 + $0x800] sm:$0xff]
        %v562 = vld [vmem:[%s236 + $0x808] sm:$0xff]
        %v563 = vld [vmem:[%s236 + $0x810] sm:$0xff]
        %v564 = vld [vmem:[%s236 + $0x818] sm:$0xff]
        %v565 = vld [vmem:[%s236 + $0x820] sm:$0xff]
        %v566 = vld [vmem:[%s236 + $0x828] sm:$0xff]
        %v567 = vld [vmem:[%s236 + $0x830] sm:$0xff]
        %v568 = vld [vmem:[%s236 + $0x838] sm:$0xff]
        %v569 = vld [vmem:[%s236 + $0x840] sm:$0xff]
        %v570 = vld [vmem:[%s236 + $0x848] sm:$0xff]
        %v571 = vld [vmem:[%s236 + $0x850] sm:$0xff]
        %v572 = vld [vmem:[%s236 + $0x858] sm:$0xff]
        %v573 = vld [vmem:[%s236 + $0x860] sm:$0xff]
        %v574 = vld [vmem:[%s236 + $0x868] sm:$0xff]
        %v575 = vld [vmem:[%s236 + $0x870] sm:$0xff]
        %v576 = vld [vmem:[%s236 + $0x878] sm:$0xff]
        %v577 = vld [vmem:[%s236 + $0x880] sm:$0xff]
        %v578 = vld [vmem:[%s236 + $0x888] sm:$0xff]
        %v579 = vld [vmem:[%s236 + $0x890] sm:$0xff]
        %v580 = vld [vmem:[%s236 + $0x898] sm:$0xff]
        %v581 = vld [vmem:[%s236 + $0x8a0] sm:$0xff]
        %v582 = vld [vmem:[%s236 + $0x8a8] sm:$0xff]
        %v583 = vld [vmem:[%s236 + $0x8b0] sm:$0xff]
        %v584 = vld [vmem:[%s236 + $0x8b8] sm:$0xff]
        %v585 = vld [vmem:[%s236 + $0x8c0] sm:$0xff]
        %v586 = vld [vmem:[%s236 + $0x8c8] sm:$0xff]
        %v587 = vld [vmem:[%s236 + $0x8d0] sm:$0xff]
        %v588 = vld [vmem:[%s236 + $0x8d8] sm:$0xff]
        %v589 = vld [vmem:[%s236 + $0x8e0] sm:$0xff]
        %v590 = vld [vmem:[%s236 + $0x8e8] sm:$0xff]
        %v591 = vld [vmem:[%s236 + $0x8f0] sm:$0xff]
        %v592 = vld [vmem:[%s236 + $0x8f8] sm:$0xff]
        %v593 = vld [vmem:[%s236 + $0x900] sm:$0xff]
        %v594 = vld [vmem:[%s236 + $0x908] sm:$0xff]
        %v595 = vld [vmem:[%s236 + $0x910] sm:$0xff]
        %v596 = vld [vmem:[%s236 + $0x918] sm:$0xff]
        %v597 = vld [vmem:[%s236 + $0x920] sm:$0xff]
        %v598 = vld [vmem:[%s236 + $0x928] sm:$0xff]
        %v599 = vld [vmem:[%s236 + $0x930] sm:$0xff]
        %v600 = vld [vmem:[%s236 + $0x938] sm:$0xff]
        %v601 = vld [vmem:[%s236 + $0x940] sm:$0xff]
        %v602 = vld [vmem:[%s236 + $0x948] sm:$0xff]
        %v603 = vld [vmem:[%s236 + $0x950] sm:$0xff]
        %v604 = vld [vmem:[%s236 + $0x958] sm:$0xff]
        %v605 = vld [vmem:[%s236 + $0x960] sm:$0xff]
        %v606 = vld [vmem:[%s236 + $0x968] sm:$0xff]
        %v607 = vld [vmem:[%s236 + $0x970] sm:$0xff]
        %v608 = vld [vmem:[%s236 + $0x978] sm:$0xff]
        %v609 = vld [vmem:[%s236 + $0x980] sm:$0xff]
        %v610 = vld [vmem:[%s236 + $0x988] sm:$0xff]
        %v611 = vld [vmem:[%s236 + $0x990] sm:$0xff]
        %v612 = vld [vmem:[%s236 + $0x998] sm:$0xff]
        %v613 = vld [vmem:[%s236 + $0x9a0] sm:$0xff]
        %v614 = vld [vmem:[%s236 + $0x9a8] sm:$0xff]
        %v615 = vld [vmem:[%s236 + $0x9b0] sm:$0xff]
        %v616 = vld [vmem:[%s236 + $0x9b8] sm:$0xff]
        %v617 = vld [vmem:[%s236 + $0x9c0] sm:$0xff]
        %v618 = vld [vmem:[%s236 + $0x9c8] sm:$0xff]
        %v619 = vld [vmem:[%s236 + $0x9d0] sm:$0xff]
        %v620 = vld [vmem:[%s236 + $0x9d8] sm:$0xff]
        %v621 = vld [vmem:[%s236 + $0x9e0] sm:$0xff]
        %v622 = vld [vmem:[%s236 + $0x9e8] sm:$0xff]
        %v623 = vld [vmem:[%s236 + $0x9f0] sm:$0xff]
        %v624 = vld [vmem:[%s236 + $0x9f8] sm:$0xff]
        %v625 = vld [vmem:[%s236 + $0xa00] sm:$0xff]
        %v626 = vld [vmem:[%s236 + $0xa08] sm:$0xff]
        %v627 = vld [vmem:[%s236 + $0xa10] sm:$0xff]
        %v628 = vld [vmem:[%s236 + $0xa18] sm:$0xff]
        %v629 = vld [vmem:[%s236 + $0xa20] sm:$0xff]
        %v630 = vld [vmem:[%s236 + $0xa28] sm:$0xff]
        %v631 = vld [vmem:[%s236 + $0xa30] sm:$0xff]
        %v632 = vld [vmem:[%s236 + $0xa38] sm:$0xff]
        %v633 = vld [vmem:[%s236 + $0xa40] sm:$0xff]
        %v634 = vld [vmem:[%s236 + $0xa48] sm:$0xff]
        %v635 = vld [vmem:[%s236 + $0xa50] sm:$0xff]
        %v636 = vld [vmem:[%s236 + $0xa58] sm:$0xff]
        %v637 = vld [vmem:[%s236 + $0xa60] sm:$0xff]
        %v638 = vld [vmem:[%s236 + $0xa68] sm:$0xff]
        %v639 = vld [vmem:[%s236 + $0xa70] sm:$0xff]
        %v640 = vld [vmem:[%s236 + $0xa78] sm:$0xff]
        %v641 = vld [vmem:[%s236 + $0xa80] sm:$0xff]
        %v642 = vld [vmem:[%s236 + $0xa88] sm:$0xff]
        %v643 = vld [vmem:[%s236 + $0xa90] sm:$0xff]
        %v644 = vld [vmem:[%s236 + $0xa98] sm:$0xff]
        %v645 = vld [vmem:[%s236 + $0xaa0] sm:$0xff]
        %v646 = vld [vmem:[%s236 + $0xaa8] sm:$0xff]
        %v647 = vld [vmem:[%s236 + $0xab0] sm:$0xff]
        %v648 = vld [vmem:[%s236 + $0xab8] sm:$0xff]
        %v649 = vld [vmem:[%s236 + $0xac0] sm:$0xff]
        %v650 = vld [vmem:[%s236 + $0xac8] sm:$0xff]
        %v651 = vld [vmem:[%s236 + $0xad0] sm:$0xff]
        %v652 = vld [vmem:[%s236 + $0xad8] sm:$0xff]
        %v653 = vld [vmem:[%s236 + $0xae0] sm:$0xff]
        %v654 = vld [vmem:[%s236 + $0xae8] sm:$0xff]
        %v655 = vld [vmem:[%s236 + $0xaf0] sm:$0xff]
        %v656 = vld [vmem:[%s236 + $0xaf8] sm:$0xff]
        %v657 = vld [vmem:[%s236 + $0xb00] sm:$0xff]
        %v658 = vld [vmem:[%s236 + $0xb08] sm:$0xff]
        %v659 = vld [vmem:[%s236 + $0xb10] sm:$0xff]
        %v660 = vld [vmem:[%s236 + $0xb18] sm:$0xff]
        %v661 = vld [vmem:[%s236 + $0xb20] sm:$0xff]
        %v662 = vld [vmem:[%s236 + $0xb28] sm:$0xff]
        %v663 = vld [vmem:[%s236 + $0xb30] sm:$0xff]
        %v664 = vld [vmem:[%s236 + $0xb38] sm:$0xff]
        %v665 = vld [vmem:[%s236 + $0xb40] sm:$0xff]
        %v666 = vld [vmem:[%s236 + $0xb48] sm:$0xff]
        %v667 = vld [vmem:[%s236 + $0xb50] sm:$0xff]
        %v668 = vld [vmem:[%s236 + $0xb58] sm:$0xff]
        %v669 = vld [vmem:[%s236 + $0xb60] sm:$0xff]
        %v670 = vld [vmem:[%s236 + $0xb68] sm:$0xff]
        %v671 = vld [vmem:[%s236 + $0xb70] sm:$0xff]
        %v672 = vld [vmem:[%s236 + $0xb78] sm:$0xff]
        %v673 = vld [vmem:[%s236 + $0xb80] sm:$0xff]
        %v674 = vld [vmem:[%s236 + $0xb88] sm:$0xff]
        %v675 = vld [vmem:[%s236 + $0xb90] sm:$0xff]
        %v676 = vld [vmem:[%s236 + $0xb98] sm:$0xff]
        %v677 = vld [vmem:[%s236 + $0xba0] sm:$0xff]
        %v678 = vld [vmem:[%s236 + $0xba8] sm:$0xff]
        %v679 = vld [vmem:[%s236 + $0xbb0] sm:$0xff]
        %v680 = vld [vmem:[%s236 + $0xbb8] sm:$0xff]
        %v681 = vld [vmem:[%s236 + $0xbc0] sm:$0xff]
        %v682 = vld [vmem:[%s236 + $0xbc8] sm:$0xff]
        %v683 = vld [vmem:[%s236 + $0xbd0] sm:$0xff]
        %v684 = vld [vmem:[%s236 + $0xbd8] sm:$0xff]
        %v685 = vld [vmem:[%s236 + $0xbe0] sm:$0xff]
        %v686 = vld [vmem:[%s236 + $0xbe8] sm:$0xff]
        %v687 = vld [vmem:[%s236 + $0xbf0] sm:$0xff]
        %v688 = vld [vmem:[%s236 + $0xbf8] sm:$0xff]
        %v689 = vld [vmem:[%s236 + $0xc00] sm:$0xff]
        %v690 = vld [vmem:[%s236 + $0xc08] sm:$0xff]
        %v691 = vld [vmem:[%s236 + $0xc10] sm:$0xff]
        %v692 = vld [vmem:[%s236 + $0xc18] sm:$0xff]
        %v693 = vld [vmem:[%s236 + $0xc20] sm:$0xff]
        %v694 = vld [vmem:[%s236 + $0xc28] sm:$0xff]
        %v695 = vld [vmem:[%s236 + $0xc30] sm:$0xff]
        %v696 = vld [vmem:[%s236 + $0xc38] sm:$0xff]
        %v697 = vld [vmem:[%s236 + $0xc40] sm:$0xff]
        %v698 = vld [vmem:[%s236 + $0xc48] sm:$0xff]
        %v699 = vld [vmem:[%s236 + $0xc50] sm:$0xff]
        %v700 = vld [vmem:[%s236 + $0xc58] sm:$0xff]
        %v701 = vld [vmem:[%s236 + $0xc60] sm:$0xff]
        %v702 = vld [vmem:[%s236 + $0xc68] sm:$0xff]
        %v703 = vld [vmem:[%s236 + $0xc70] sm:$0xff]
        %v704 = vld [vmem:[%s236 + $0xc78] sm:$0xff]
        %v705 = vld [vmem:[%s236 + $0xc80] sm:$0xff]
        %v706 = vld [vmem:[%s236 + $0xc88] sm:$0xff]
        %v707 = vld [vmem:[%s236 + $0xc90] sm:$0xff]
        %v708 = vld [vmem:[%s236 + $0xc98] sm:$0xff]
        %v709 = vld [vmem:[%s236 + $0xca0] sm:$0xff]
        %v710 = vld [vmem:[%s236 + $0xca8] sm:$0xff]
        %v711 = vld [vmem:[%s236 + $0xcb0] sm:$0xff]
        %v712 = vld [vmem:[%s236 + $0xcb8] sm:$0xff]
        %v713 = vld [vmem:[%s236 + $0xcc0] sm:$0xff]
        %v714 = vld [vmem:[%s236 + $0xcc8] sm:$0xff]
        %v715 = vld [vmem:[%s236 + $0xcd0] sm:$0xff]
        %v716 = vld [vmem:[%s236 + $0xcd8] sm:$0xff]
        %v717 = vld [vmem:[%s236 + $0xce0] sm:$0xff]
        %v718 = vld [vmem:[%s236 + $0xce8] sm:$0xff]
        %v719 = vld [vmem:[%s236 + $0xcf0] sm:$0xff]
        %v720 = vld [vmem:[%s236 + $0xcf8] sm:$0xff]
        %v721 = vld [vmem:[%s236 + $0xd00] sm:$0xff]
        %v722 = vld [vmem:[%s236 + $0xd08] sm:$0xff]
        %v723 = vld [vmem:[%s236 + $0xd10] sm:$0xff]
        %v724 = vld [vmem:[%s236 + $0xd18] sm:$0xff]
        %v725 = vld [vmem:[%s236 + $0xd20] sm:$0xff]
        %v726 = vld [vmem:[%s236 + $0xd28] sm:$0xff]
        %v727 = vld [vmem:[%s236 + $0xd30] sm:$0xff]
        %v728 = vld [vmem:[%s236 + $0xd38] sm:$0xff]
        %v729 = vld [vmem:[%s236 + $0xd40] sm:$0xff]
        %v730 = vld [vmem:[%s236 + $0xd48] sm:$0xff]
        %v731 = vld [vmem:[%s236 + $0xd50] sm:$0xff]
        %v732 = vld [vmem:[%s236 + $0xd58] sm:$0xff]
        %v733 = vld [vmem:[%s236 + $0xd60] sm:$0xff]
        %v734 = vld [vmem:[%s236 + $0xd68] sm:$0xff]
        %v735 = vld [vmem:[%s236 + $0xd70] sm:$0xff]
        %v736 = vld [vmem:[%s236 + $0xd78] sm:$0xff]
        %v737 = vld [vmem:[%s236 + $0xd80] sm:$0xff]
        %v738 = vld [vmem:[%s236 + $0xd88] sm:$0xff]
        %v739 = vld [vmem:[%s236 + $0xd90] sm:$0xff]
        %v740 = vld [vmem:[%s236 + $0xd98] sm:$0xff]
        %v741 = vld [vmem:[%s236 + $0xda0] sm:$0xff]
        %v742 = vld [vmem:[%s236 + $0xda8] sm:$0xff]
        %v743 = vld [vmem:[%s236 + $0xdb0] sm:$0xff]
        %v744 = vld [vmem:[%s236 + $0xdb8] sm:$0xff]
        %v745 = vld [vmem:[%s236 + $0xdc0] sm:$0xff]
        %v746 = vld [vmem:[%s236 + $0xdc8] sm:$0xff]
        %v747 = vld [vmem:[%s236 + $0xdd0] sm:$0xff]
        %v748 = vld [vmem:[%s236 + $0xdd8] sm:$0xff]
        %v749 = vld [vmem:[%s236 + $0xde0] sm:$0xff]
        %v750 = vld [vmem:[%s236 + $0xde8] sm:$0xff]
        %v751 = vld [vmem:[%s236 + $0xdf0] sm:$0xff]
        %v752 = vld [vmem:[%s236 + $0xdf8] sm:$0xff]
        %v753 = vld [vmem:[%s236 + $0xe00] sm:$0xff]
        %v754 = vld [vmem:[%s236 + $0xe08] sm:$0xff]
        %v755 = vld [vmem:[%s236 + $0xe10] sm:$0xff]
        %v756 = vld [vmem:[%s236 + $0xe18] sm:$0xff]
        %v757 = vld [vmem:[%s236 + $0xe20] sm:$0xff]
        %v758 = vld [vmem:[%s236 + $0xe28] sm:$0xff]
        %v759 = vld [vmem:[%s236 + $0xe30] sm:$0xff]
        %v760 = vld [vmem:[%s236 + $0xe38] sm:$0xff]
        %v761 = vld [vmem:[%s236 + $0xe40] sm:$0xff]
        %v762 = vld [vmem:[%s236 + $0xe48] sm:$0xff]
        %v763 = vld [vmem:[%s236 + $0xe50] sm:$0xff]
        %v764 = vld [vmem:[%s236 + $0xe58] sm:$0xff]
        %v765 = vld [vmem:[%s236 + $0xe60] sm:$0xff]
        %v766 = vld [vmem:[%s236 + $0xe68] sm:$0xff]
        %v767 = vld [vmem:[%s236 + $0xe70] sm:$0xff]
        %v768 = vld [vmem:[%s236 + $0xe78] sm:$0xff]
        %v769 = vld [vmem:[%s236 + $0xe80] sm:$0xff]
        %v770 = vld [vmem:[%s236 + $0xe88] sm:$0xff]
        %v771 = vld [vmem:[%s236 + $0xe90] sm:$0xff]
        %v772 = vld [vmem:[%s236 + $0xe98] sm:$0xff]
        %v773 = vld [vmem:[%s236 + $0xea0] sm:$0xff]
        %v774 = vld [vmem:[%s236 + $0xea8] sm:$0xff]
        %v775 = vld [vmem:[%s236 + $0xeb0] sm:$0xff]
        %v776 = vld [vmem:[%s236 + $0xeb8] sm:$0xff]
        %v777 = vld [vmem:[%s236 + $0xec0] sm:$0xff]
        %v778 = vld [vmem:[%s236 + $0xec8] sm:$0xff]
        %v779 = vld [vmem:[%s236 + $0xed0] sm:$0xff]
        %v780 = vld [vmem:[%s236 + $0xed8] sm:$0xff]
        %v781 = vld [vmem:[%s236 + $0xee0] sm:$0xff]
        %v782 = vld [vmem:[%s236 + $0xee8] sm:$0xff]
        %v783 = vld [vmem:[%s236 + $0xef0] sm:$0xff]
        %v784 = vld [vmem:[%s236 + $0xef8] sm:$0xff]
        %v785 = vld [vmem:[%s236 + $0xf00] sm:$0xff]
        %v786 = vld [vmem:[%s236 + $0xf08] sm:$0xff]
        %v787 = vld [vmem:[%s236 + $0xf10] sm:$0xff]
        %v788 = vld [vmem:[%s236 + $0xf18] sm:$0xff]
        %v789 = vld [vmem:[%s236 + $0xf20] sm:$0xff]
        %v790 = vld [vmem:[%s236 + $0xf28] sm:$0xff]
        %v791 = vld [vmem:[%s236 + $0xf30] sm:$0xff]
        %v792 = vld [vmem:[%s236 + $0xf38] sm:$0xff]
        %v793 = vld [vmem:[%s236 + $0xf40] sm:$0xff]
        %v794 = vld [vmem:[%s236 + $0xf48] sm:$0xff]
        %v795 = vld [vmem:[%s236 + $0xf50] sm:$0xff]
        %v796 = vld [vmem:[%s236 + $0xf58] sm:$0xff]
        %v797 = vld [vmem:[%s236 + $0xf60] sm:$0xff]
        %v798 = vld [vmem:[%s236 + $0xf68] sm:$0xff]
        %v799 = vld [vmem:[%s236 + $0xf70] sm:$0xff]
        %v800 = vld [vmem:[%s236 + $0xf78] sm:$0xff]
        %v801 = vld [vmem:[%s236 + $0xf80] sm:$0xff]
        %v802 = vld [vmem:[%s236 + $0xf88] sm:$0xff]
        %v803 = vld [vmem:[%s236 + $0xf90] sm:$0xff]
        %v804 = vld [vmem:[%s236 + $0xf98] sm:$0xff]
        %v805 = vld [vmem:[%s236 + $0xfa0] sm:$0xff]
        %v806 = vld [vmem:[%s236 + $0xfa8] sm:$0xff]
        %v807 = vld [vmem:[%s236 + $0xfb0] sm:$0xff]
        %v808 = vld [vmem:[%s236 + $0xfb8] sm:$0xff]
        %v809 = vld [vmem:[%s236 + $0xfc0] sm:$0xff]
        %v810 = vld [vmem:[%s236 + $0xfc8] sm:$0xff]
        %v811 = vld [vmem:[%s236 + $0xfd0] sm:$0xff]
        %v812 = vld [vmem:[%s236 + $0xfd8] sm:$0xff]
        %v813 = vld [vmem:[%s236 + $0xfe0] sm:$0xff]
        %v814 = vld [vmem:[%s236 + $0xfe8] sm:$0xff]
        %v815 = vld [vmem:[%s236 + $0xff0] sm:$0xff]
        %v816 = vld [vmem:[%s236 + $0xff8] sm:$0xff]
        %v817 = vld [vmem:[%s236 + $0x1000] sm:$0xff]
        %v818 = vld [vmem:[%s236 + $0x1008] sm:$0xff]
        %v819 = vld [vmem:[%s236 + $0x1010] sm:$0xff]
        %v820 = vld [vmem:[%s236 + $0x1018] sm:$0xff]
        %v821 = vld [vmem:[%s236 + $0x1020] sm:$0xff]
        %v822 = vld [vmem:[%s236 + $0x1028] sm:$0xff]
        %v823 = vld [vmem:[%s236 + $0x1030] sm:$0xff]
        %v824 = vld [vmem:[%s236 + $0x1038] sm:$0xff]
        %v825 = vld [vmem:[%s236 + $0x1040] sm:$0xff]
        %v826 = vld [vmem:[%s236 + $0x1048] sm:$0xff]
        %v827 = vld [vmem:[%s236 + $0x1050] sm:$0xff]
        %v828 = vld [vmem:[%s236 + $0x1058] sm:$0xff]
        %v829 = vld [vmem:[%s236 + $0x1060] sm:$0xff]
        %v830 = vld [vmem:[%s236 + $0x1068] sm:$0xff]
        %v831 = vld [vmem:[%s236 + $0x1070] sm:$0xff]
        %v832 = vld [vmem:[%s236 + $0x1078] sm:$0xff]
        %v833 = vld [vmem:[%s236 + $0x1080] sm:$0xff]
        %v834 = vld [vmem:[%s236 + $0x1088] sm:$0xff]
        %v835 = vld [vmem:[%s236 + $0x1090] sm:$0xff]
        %v836 = vld [vmem:[%s236 + $0x1098] sm:$0xff]
        %v837 = vld [vmem:[%s236 + $0x10a0] sm:$0xff]
        %v838 = vld [vmem:[%s236 + $0x10a8] sm:$0xff]
        %v839 = vld [vmem:[%s236 + $0x10b0] sm:$0xff]
        %v840 = vld [vmem:[%s236 + $0x10b8] sm:$0xff]
        %v841 = vld [vmem:[%s236 + $0x10c0] sm:$0xff]
        %v842 = vld [vmem:[%s236 + $0x10c8] sm:$0xff]
        %v843 = vld [vmem:[%s236 + $0x10d0] sm:$0xff]
        %v844 = vld [vmem:[%s236 + $0x10d8] sm:$0xff]
        %v845 = vld [vmem:[%s236 + $0x10e0] sm:$0xff]
        %v846 = vld [vmem:[%s236 + $0x10e8] sm:$0xff]
        %v847 = vld [vmem:[%s236 + $0x10f0] sm:$0xff]
        %v848 = vld [vmem:[%s236 + $0x10f8] sm:$0xff]
        %v849 = vld [vmem:[%s236 + $0x1100] sm:$0xff]
        %v850 = vld [vmem:[%s236 + $0x1108] sm:$0xff]
        %v851 = vld [vmem:[%s236 + $0x1110] sm:$0xff]
        %v852 = vld [vmem:[%s236 + $0x1118] sm:$0xff]
        %v853 = vld [vmem:[%s236 + $0x1120] sm:$0xff]
        %v854 = vld [vmem:[%s236 + $0x1128] sm:$0xff]
        %v855 = vld [vmem:[%s236 + $0x1130] sm:$0xff]
        %v856 = vld [vmem:[%s236 + $0x1138] sm:$0xff]
        %v857 = vld [vmem:[%s236 + $0x1140] sm:$0xff]
        %v858 = vld [vmem:[%s236 + $0x1148] sm:$0xff]
        %v859 = vld [vmem:[%s236 + $0x1150] sm:$0xff]
        %v860 = vld [vmem:[%s236 + $0x1158] sm:$0xff]
        %v861 = vld [vmem:[%s236 + $0x1160] sm:$0xff]
        %v862 = vld [vmem:[%s236 + $0x1168] sm:$0xff]
        %v863 = vld [vmem:[%s236 + $0x1170] sm:$0xff]
        %v864 = vld [vmem:[%s236 + $0x1178] sm:$0xff]
        %v865 = vld [vmem:[%s236 + $0x1180] sm:$0xff]
        %v866 = vld [vmem:[%s236 + $0x1188] sm:$0xff]
        %v867 = vld [vmem:[%s236 + $0x1190] sm:$0xff]
        %v868 = vld [vmem:[%s236 + $0x1198] sm:$0xff]
        %v869 = vld [vmem:[%s236 + $0x11a0] sm:$0xff]
        %v870 = vld [vmem:[%s236 + $0x11a8] sm:$0xff]
        %v871 = vld [vmem:[%s236 + $0x11b0] sm:$0xff]
        %v872 = vld [vmem:[%s236 + $0x11b8] sm:$0xff]
        %v873 = vld [vmem:[%s236 + $0x11c0] sm:$0xff]
        %v874 = vld [vmem:[%s236 + $0x11c8] sm:$0xff]
        %v875 = vld [vmem:[%s236 + $0x11d0] sm:$0xff]
        %v876 = vld [vmem:[%s236 + $0x11d8] sm:$0xff]
        %v877 = vld [vmem:[%s236 + $0x11e0] sm:$0xff]
        %v878 = vld [vmem:[%s236 + $0x11e8] sm:$0xff]
        %v879 = vld [vmem:[%s236 + $0x11f0] sm:$0xff]
        %v880 = vld [vmem:[%s236 + $0x11f8] sm:$0xff]
        %v881 = vld [vmem:[%s236 + $0x1200] sm:$0xff]
        %v882 = vld [vmem:[%s236 + $0x1208] sm:$0xff]
        %v883 = vld [vmem:[%s236 + $0x1210] sm:$0xff]
        %v884 = vld [vmem:[%s236 + $0x1218] sm:$0xff]
        %v885 = vld [vmem:[%s236 + $0x1220] sm:$0xff]
        %v886 = vld [vmem:[%s236 + $0x1228] sm:$0xff]
        %v887 = vld [vmem:[%s236 + $0x1230] sm:$0xff]
        %v888 = vld [vmem:[%s236 + $0x1238] sm:$0xff]
        %v889 = vld [vmem:[%s236 + $0x1240] sm:$0xff]
        %v890 = vld [vmem:[%s236 + $0x1248] sm:$0xff]
        %v891 = vld [vmem:[%s236 + $0x1250] sm:$0xff]
        %v892 = vld [vmem:[%s236 + $0x1258] sm:$0xff]
        %v893 = vld [vmem:[%s236 + $0x1260] sm:$0xff]
        %v894 = vld [vmem:[%s236 + $0x1268] sm:$0xff]
        %v895 = vld [vmem:[%s236 + $0x1270] sm:$0xff]
        %v896 = vld [vmem:[%s236 + $0x1278] sm:$0xff]
        %v897 = vld [vmem:[%s236 + $0x1280] sm:$0xff]
        %v898 = vld [vmem:[%s236 + $0x1288] sm:$0xff]
        %v899 = vld [vmem:[%s236 + $0x1290] sm:$0xff]
        %v900 = vld [vmem:[%s236 + $0x1298] sm:$0xff]
        %v901 = vld [vmem:[%s236 + $0x12a0] sm:$0xff]
        %v902 = vld [vmem:[%s236 + $0x12a8] sm:$0xff]
        %v903 = vld [vmem:[%s236 + $0x12b0] sm:$0xff]
        %v904 = vld [vmem:[%s236 + $0x12b8] sm:$0xff]
        %v905 = vld [vmem:[%s236 + $0x12c0] sm:$0xff]
        %v906 = vld [vmem:[%s236 + $0x12c8] sm:$0xff]
        %v907 = vld [vmem:[%s236 + $0x12d0] sm:$0xff]
        %v908 = vld [vmem:[%s236 + $0x12d8] sm:$0xff]
        %v909 = vld [vmem:[%s236 + $0x12e0] sm:$0xff]
        %v910 = vld [vmem:[%s236 + $0x12e8] sm:$0xff]
        %v911 = vld [vmem:[%s236 + $0x12f0] sm:$0xff]
        %v912 = vld [vmem:[%s236 + $0x12f8] sm:$0xff]
        %v913 = vld [vmem:[%s236 + $0x1300] sm:$0xff]
        %v914 = vld [vmem:[%s236 + $0x1308] sm:$0xff]
        %v915 = vld [vmem:[%s236 + $0x1310] sm:$0xff]
        %v916 = vld [vmem:[%s236 + $0x1318] sm:$0xff]
        %v917 = vld [vmem:[%s236 + $0x1320] sm:$0xff]
        %v918 = vld [vmem:[%s236 + $0x1328] sm:$0xff]
        %v919 = vld [vmem:[%s236 + $0x1330] sm:$0xff]
        %v920 = vld [vmem:[%s236 + $0x1338] sm:$0xff]
        %v921 = vld [vmem:[%s236 + $0x1340] sm:$0xff]
        %v922 = vld [vmem:[%s236 + $0x1348] sm:$0xff]
        %v923 = vld [vmem:[%s236 + $0x1350] sm:$0xff]
        %v924 = vld [vmem:[%s236 + $0x1358] sm:$0xff]
        %v925 = vld [vmem:[%s236 + $0x1360] sm:$0xff]
        %v926 = vld [vmem:[%s236 + $0x1368] sm:$0xff]
        %v927 = vld [vmem:[%s236 + $0x1370] sm:$0xff]
        %v928 = vld [vmem:[%s236 + $0x1378] sm:$0xff]
        %v929 = vld [vmem:[%s236 + $0x1380] sm:$0xff]
        %v930 = vld [vmem:[%s236 + $0x1388] sm:$0xff]
        %v931 = vld [vmem:[%s236 + $0x1390] sm:$0xff]
        %v932 = vld [vmem:[%s236 + $0x1398] sm:$0xff]
        %v933 = vld [vmem:[%s236 + $0x13a0] sm:$0xff]
        %v934 = vld [vmem:[%s236 + $0x13a8] sm:$0xff]
        %v935 = vld [vmem:[%s236 + $0x13b0] sm:$0xff]
        %v936 = vld [vmem:[%s236 + $0x13b8] sm:$0xff]
        %v937 = vld [vmem:[%s236 + $0x13c0] sm:$0xff]
        %v938 = vld [vmem:[%s236 + $0x13c8] sm:$0xff]
        %v939 = vld [vmem:[%s236 + $0x13d0] sm:$0xff]
        %v940 = vld [vmem:[%s236 + $0x13d8] sm:$0xff]
        %v941 = vld [vmem:[%s236 + $0x13e0] sm:$0xff]
        %v942 = vld [vmem:[%s236 + $0x13e8] sm:$0xff]
        %v943 = vld [vmem:[%s236 + $0x13f0] sm:$0xff]
        %v944 = vld [vmem:[%s236 + $0x13f8] sm:$0xff]
        %v945 = vld [vmem:[%s236 + $0x1400] sm:$0xff]
        %v946 = vld [vmem:[%s236 + $0x1408] sm:$0xff]
        %v947 = vld [vmem:[%s236 + $0x1410] sm:$0xff]
        %v948 = vld [vmem:[%s236 + $0x1418] sm:$0xff]
        %v949 = vld [vmem:[%s236 + $0x1420] sm:$0xff]
        %v950 = vld [vmem:[%s236 + $0x1428] sm:$0xff]
        %v951 = vld [vmem:[%s236 + $0x1430] sm:$0xff]
        %v952 = vld [vmem:[%s236 + $0x1438] sm:$0xff]
        %v953 = vld [vmem:[%s236 + $0x1440] sm:$0xff]
        %v954 = vld [vmem:[%s236 + $0x1448] sm:$0xff]
        %v955 = vld [vmem:[%s236 + $0x1450] sm:$0xff]
        %v956 = vld [vmem:[%s236 + $0x1458] sm:$0xff]
        %v957 = vld [vmem:[%s236 + $0x1460] sm:$0xff]
        %v958 = vld [vmem:[%s236 + $0x1468] sm:$0xff]
        %v959 = vld [vmem:[%s236 + $0x1470] sm:$0xff]
        %v960 = vld [vmem:[%s236 + $0x1478] sm:$0xff]
        %v961 = vld [vmem:[%s236 + $0x1480] sm:$0xff]
        %v962 = vld [vmem:[%s236 + $0x1488] sm:$0xff]
        %v963 = vld [vmem:[%s236 + $0x1490] sm:$0xff]
        %v964 = vld [vmem:[%s236 + $0x1498] sm:$0xff]
        %v965 = vld [vmem:[%s236 + $0x14a0] sm:$0xff]
        %v966 = vld [vmem:[%s236 + $0x14a8] sm:$0xff]
        %v967 = vld [vmem:[%s236 + $0x14b0] sm:$0xff]
        %v968 = vld [vmem:[%s236 + $0x14b8] sm:$0xff]
        %v969 = vld [vmem:[%s236 + $0x14c0] sm:$0xff]
        %v970 = vld [vmem:[%s236 + $0x14c8] sm:$0xff]
        %v971 = vld [vmem:[%s236 + $0x14d0] sm:$0xff]
        %v972 = vld [vmem:[%s236 + $0x14d8] sm:$0xff]
        %v973 = vld [vmem:[%s236 + $0x14e0] sm:$0xff]
        %v974 = vld [vmem:[%s236 + $0x14e8] sm:$0xff]
        %v975 = vld [vmem:[%s236 + $0x14f0] sm:$0xff]
        %v976 = vld [vmem:[%s236 + $0x14f8] sm:$0xff]
        %v977 = vld [vmem:[%s236 + $0x1500] sm:$0xff]
        %v978 = vld [vmem:[%s236 + $0x1508] sm:$0xff]
        %v979 = vld [vmem:[%s236 + $0x1510] sm:$0xff]
        %v980 = vld [vmem:[%s236 + $0x1518] sm:$0xff]
        %v981 = vld [vmem:[%s236 + $0x1520] sm:$0xff]
        %v982 = vld [vmem:[%s236 + $0x1528] sm:$0xff]
        %v983 = vld [vmem:[%s236 + $0x1530] sm:$0xff]
        %v984 = vld [vmem:[%s236 + $0x1538] sm:$0xff]
        %v985 = vld [vmem:[%s236 + $0x1540] sm:$0xff]
        %v986 = vld [vmem:[%s236 + $0x1548] sm:$0xff]
        %v987 = vld [vmem:[%s236 + $0x1550] sm:$0xff]
        %v988 = vld [vmem:[%s236 + $0x1558] sm:$0xff]
        %v989 = vld [vmem:[%s236 + $0x1560] sm:$0xff]
        %v990 = vld [vmem:[%s236 + $0x1568] sm:$0xff]
        %v991 = vld [vmem:[%s236 + $0x1570] sm:$0xff]
        %v992 = vld [vmem:[%s236 + $0x1578] sm:$0xff]
        %v993 = vld [vmem:[%s236 + $0x1580] sm:$0xff]
        %v994 = vld [vmem:[%s236 + $0x1588] sm:$0xff]
        %v995 = vld [vmem:[%s236 + $0x1590] sm:$0xff]
        %v996 = vld [vmem:[%s236 + $0x1598] sm:$0xff]
        %v997 = vld [vmem:[%s236 + $0x15a0] sm:$0xff]
        %v998 = vld [vmem:[%s236 + $0x15a8] sm:$0xff]
        %v999 = vld [vmem:[%s236 + $0x15b0] sm:$0xff]
        %v1000 = vld [vmem:[%s236 + $0x15b8] sm:$0xff]
        %v1001 = vld [vmem:[%s236 + $0x15c0] sm:$0xff]
        %v1002 = vld [vmem:[%s236 + $0x15c8] sm:$0xff]
        %v1003 = vld [vmem:[%s236 + $0x15d0] sm:$0xff]
        %v1004 = vld [vmem:[%s236 + $0x15d8] sm:$0xff]
        %v1005 = vld [vmem:[%s236 + $0x15e0] sm:$0xff]
        %v1006 = vld [vmem:[%s236 + $0x15e8] sm:$0xff]
        %v1007 = vld [vmem:[%s236 + $0x15f0] sm:$0xff]
        %v1008 = vld [vmem:[%s236 + $0x15f8] sm:$0xff]
        %v1009 = vld [vmem:[%s236 + $0x1600] sm:$0xff]
        %v1010 = vld [vmem:[%s236 + $0x1608] sm:$0xff]
        %v1011 = vld [vmem:[%s236 + $0x1610] sm:$0xff]
        %v1012 = vld [vmem:[%s236 + $0x1618] sm:$0xff]
        %v1013 = vld [vmem:[%s236 + $0x1620] sm:$0xff]
        %v1014 = vld [vmem:[%s236 + $0x1628] sm:$0xff]
        %v1015 = vld [vmem:[%s236 + $0x1630] sm:$0xff]
        %v1016 = vld [vmem:[%s236 + $0x1638] sm:$0xff]
        %v1017 = vld [vmem:[%s236 + $0x1640] sm:$0xff]
        %v1018 = vld [vmem:[%s236 + $0x1648] sm:$0xff]
        %v1019 = vld [vmem:[%s236 + $0x1650] sm:$0xff]
        %v1020 = vld [vmem:[%s236 + $0x1658] sm:$0xff]
        %v1021 = vld [vmem:[%s236 + $0x1660] sm:$0xff]
        %v1022 = vld [vmem:[%s236 + $0x1668] sm:$0xff]
        %v1023 = vld [vmem:[%s236 + $0x1670] sm:$0xff]
        %v1024 = vld [vmem:[%s236 + $0x1678] sm:$0xff]
        %v1025 = vld [vmem:[%s236 + $0x1680] sm:$0xff]
        %v1026 = vld [vmem:[%s236 + $0x1688] sm:$0xff]
        %v1027 = vld [vmem:[%s236 + $0x1690] sm:$0xff]
        %v1028 = vld [vmem:[%s236 + $0x1698] sm:$0xff]
        %v1029 = vld [vmem:[%s236 + $0x16a0] sm:$0xff]
        %v1030 = vld [vmem:[%s236 + $0x16a8] sm:$0xff]
        %v1031 = vld [vmem:[%s236 + $0x16b0] sm:$0xff]
        %v1032 = vld [vmem:[%s236 + $0x16b8] sm:$0xff]
        %v1033 = vld [vmem:[%s236 + $0x16c0] sm:$0xff]
        %v1034 = vld [vmem:[%s236 + $0x16c8] sm:$0xff]
        %v1035 = vld [vmem:[%s236 + $0x16d0] sm:$0xff]
        %v1036 = vld [vmem:[%s236 + $0x16d8] sm:$0xff]
        %v1037 = vld [vmem:[%s236 + $0x16e0] sm:$0xff]
        %v1038 = vld [vmem:[%s236 + $0x16e8] sm:$0xff]
        %v1039 = vld [vmem:[%s236 + $0x16f0] sm:$0xff]
        %v1040 = vld [vmem:[%s236 + $0x16f8] sm:$0xff]
        %v1041 = vld [vmem:[%s236 + $0x1700] sm:$0xff]
        %v1042 = vld [vmem:[%s236 + $0x1708] sm:$0xff]
        %v1043 = vld [vmem:[%s236 + $0x1710] sm:$0xff]
        %v1044 = vld [vmem:[%s236 + $0x1718] sm:$0xff]
        %v1045 = vld [vmem:[%s236 + $0x1720] sm:$0xff]
        %v1046 = vld [vmem:[%s236 + $0x1728] sm:$0xff]
        %v1047 = vld [vmem:[%s236 + $0x1730] sm:$0xff]
        %v1048 = vld [vmem:[%s236 + $0x1738] sm:$0xff]
        %v1049 = vld [vmem:[%s236 + $0x1740] sm:$0xff]
        %v1050 = vld [vmem:[%s236 + $0x1748] sm:$0xff]
        %v1051 = vld [vmem:[%s236 + $0x1750] sm:$0xff]
        %v1052 = vld [vmem:[%s236 + $0x1758] sm:$0xff]
        %v1053 = vld [vmem:[%s236 + $0x1760] sm:$0xff]
        %v1054 = vld [vmem:[%s236 + $0x1768] sm:$0xff]
        %v1055 = vld [vmem:[%s236 + $0x1770] sm:$0xff]
        %v1056 = vld [vmem:[%s236 + $0x1778] sm:$0xff]
        %v1057 = vld [vmem:[%s236 + $0x1780] sm:$0xff]
        %v1058 = vld [vmem:[%s236 + $0x1788] sm:$0xff]
        %v1059 = vld [vmem:[%s236 + $0x1790] sm:$0xff]
        %v1060 = vld [vmem:[%s236 + $0x1798] sm:$0xff]
        %v1061 = vld [vmem:[%s236 + $0x17a0] sm:$0xff]
        %v1062 = vld [vmem:[%s236 + $0x17a8] sm:$0xff]
        %v1063 = vld [vmem:[%s236 + $0x17b0] sm:$0xff]
        %v1064 = vld [vmem:[%s236 + $0x17b8] sm:$0xff]
        %v1065 = vld [vmem:[%s236 + $0x17c0] sm:$0xff]
        %v1066 = vld [vmem:[%s236 + $0x17c8] sm:$0xff]
        %v1067 = vld [vmem:[%s236 + $0x17d0] sm:$0xff]
        %v1068 = vld [vmem:[%s236 + $0x17d8] sm:$0xff]
        %v1069 = vld [vmem:[%s236 + $0x17e0] sm:$0xff]
        %v1070 = vld [vmem:[%s236 + $0x17e8] sm:$0xff]
        %v1071 = vld [vmem:[%s236 + $0x17f0] sm:$0xff]
        %v1072 = vld [vmem:[%s236 + $0x17f8] sm:$0xff]
        %v1073 = vld [vmem:[%s236 + $0x1800] sm:$0xff]
        %v1074 = vld [vmem:[%s236 + $0x1808] sm:$0xff]
        %v1075 = vld [vmem:[%s236 + $0x1810] sm:$0xff]
        %v1076 = vld [vmem:[%s236 + $0x1818] sm:$0xff]
        %v1077 = vld [vmem:[%s236 + $0x1820] sm:$0xff]
        %v1078 = vld [vmem:[%s236 + $0x1828] sm:$0xff]
        %v1079 = vld [vmem:[%s236 + $0x1830] sm:$0xff]
        %v1080 = vld [vmem:[%s236 + $0x1838] sm:$0xff]
        %v1081 = vld [vmem:[%s236 + $0x1840] sm:$0xff]
        %v1082 = vld [vmem:[%s236 + $0x1848] sm:$0xff]
        %v1083 = vld [vmem:[%s236 + $0x1850] sm:$0xff]
        %v1084 = vld [vmem:[%s236 + $0x1858] sm:$0xff]
        %v1085 = vld [vmem:[%s236 + $0x1860] sm:$0xff]
        %v1086 = vld [vmem:[%s236 + $0x1868] sm:$0xff]
        %v1087 = vld [vmem:[%s236 + $0x1870] sm:$0xff]
        %v1088 = vld [vmem:[%s236 + $0x1878] sm:$0xff]
        %v1089 = vld [vmem:[%s236 + $0x1880] sm:$0xff]
        %v1090 = vld [vmem:[%s236 + $0x1888] sm:$0xff]
        %v1091 = vld [vmem:[%s236 + $0x1890] sm:$0xff]
        %v1092 = vld [vmem:[%s236 + $0x1898] sm:$0xff]
        %v1093 = vld [vmem:[%s236 + $0x18a0] sm:$0xff]
        %v1094 = vld [vmem:[%s236 + $0x18a8] sm:$0xff]
        %v1095 = vld [vmem:[%s236 + $0x18b0] sm:$0xff]
        %v1096 = vld [vmem:[%s236 + $0x18b8] sm:$0xff]
        %v1097 = vld [vmem:[%s236 + $0x18c0] sm:$0xff]
        %v1098 = vld [vmem:[%s236 + $0x18c8] sm:$0xff]
        %v1099 = vld [vmem:[%s236 + $0x18d0] sm:$0xff]
        %v1100 = vld [vmem:[%s236 + $0x18d8] sm:$0xff]
        %v1101 = vld [vmem:[%s236 + $0x18e0] sm:$0xff]
        %v1102 = vld [vmem:[%s236 + $0x18e8] sm:$0xff]
        %v1103 = vld [vmem:[%s236 + $0x18f0] sm:$0xff]
        %v1104 = vld [vmem:[%s236 + $0x18f8] sm:$0xff]
        %v1105 = vld [vmem:[%s236 + $0x1900] sm:$0xff]
        %v1106 = vld [vmem:[%s236 + $0x1908] sm:$0xff]
        %v1107 = vld [vmem:[%s236 + $0x1910] sm:$0xff]
        %v1108 = vld [vmem:[%s236 + $0x1918] sm:$0xff]
        %v1109 = vld [vmem:[%s236 + $0x1920] sm:$0xff]
        %v1110 = vld [vmem:[%s236 + $0x1928] sm:$0xff]
        %v1111 = vld [vmem:[%s236 + $0x1930] sm:$0xff]
        %v1112 = vld [vmem:[%s236 + $0x1938] sm:$0xff]
        %v1113 = vld [vmem:[%s236 + $0x1940] sm:$0xff]
        %v1114 = vld [vmem:[%s236 + $0x1948] sm:$0xff]
        %v1115 = vld [vmem:[%s236 + $0x1950] sm:$0xff]
        %v1116 = vld [vmem:[%s236 + $0x1958] sm:$0xff]
        %v1117 = vld [vmem:[%s236 + $0x1960] sm:$0xff]
        %v1118 = vld [vmem:[%s236 + $0x1968] sm:$0xff]
        %v1119 = vld [vmem:[%s236 + $0x1970] sm:$0xff]
        %v1120 = vld [vmem:[%s236 + $0x1978] sm:$0xff]
        %v1121 = vld [vmem:[%s236 + $0x1980] sm:$0xff]
        %v1122 = vld [vmem:[%s236 + $0x1988] sm:$0xff]
        %v1123 = vld [vmem:[%s236 + $0x1990] sm:$0xff]
        %v1124 = vld [vmem:[%s236 + $0x1998] sm:$0xff]
        %v1125 = vld [vmem:[%s236 + $0x19a0] sm:$0xff]
        %v1126 = vld [vmem:[%s236 + $0x19a8] sm:$0xff]
        %v1127 = vld [vmem:[%s236 + $0x19b0] sm:$0xff]
        %v1128 = vld [vmem:[%s236 + $0x19b8] sm:$0xff]
        %v1129 = vld [vmem:[%s236 + $0x19c0] sm:$0xff]
        %v1130 = vld [vmem:[%s236 + $0x19c8] sm:$0xff]
        %v1131 = vld [vmem:[%s236 + $0x19d0] sm:$0xff]
        %v1132 = vld [vmem:[%s236 + $0x19d8] sm:$0xff]
        %v1133 = vld [vmem:[%s236 + $0x19e0] sm:$0xff]
        %v1134 = vld [vmem:[%s236 + $0x19e8] sm:$0xff]
        %v1135 = vld [vmem:[%s236 + $0x19f0] sm:$0xff]
        %v1136 = vld [vmem:[%s236 + $0x19f8] sm:$0xff]
        %v1137 = vld [vmem:[%s236 + $0x1a00] sm:$0xff]
        %v1138 = vld [vmem:[%s236 + $0x1a08] sm:$0xff]
        %v1139 = vld [vmem:[%s236 + $0x1a10] sm:$0xff]
        %v1140 = vld [vmem:[%s236 + $0x1a18] sm:$0xff]
        %v1141 = vld [vmem:[%s236 + $0x1a20] sm:$0xff]
        %v1142 = vld [vmem:[%s236 + $0x1a28] sm:$0xff]
        %v1143 = vld [vmem:[%s236 + $0x1a30] sm:$0xff]
        %v1144 = vld [vmem:[%s236 + $0x1a38] sm:$0xff]
        %v1145 = vld [vmem:[%s236 + $0x1a40] sm:$0xff]
        %v1146 = vld [vmem:[%s236 + $0x1a48] sm:$0xff]
        %v1147 = vld [vmem:[%s236 + $0x1a50] sm:$0xff]
        %v1148 = vld [vmem:[%s236 + $0x1a58] sm:$0xff]
        %v1149 = vld [vmem:[%s236 + $0x1a60] sm:$0xff]
        %v1150 = vld [vmem:[%s236 + $0x1a68] sm:$0xff]
        %v1151 = vld [vmem:[%s236 + $0x1a70] sm:$0xff]
        %v1152 = vld [vmem:[%s236 + $0x1a78] sm:$0xff]
        %v1153 = vld [vmem:[%s236 + $0x1a80] sm:$0xff]
        %v1154 = vld [vmem:[%s236 + $0x1a88] sm:$0xff]
        %v1155 = vld [vmem:[%s236 + $0x1a90] sm:$0xff]
        %v1156 = vld [vmem:[%s236 + $0x1a98] sm:$0xff]
        %v1157 = vld [vmem:[%s236 + $0x1aa0] sm:$0xff]
        %v1158 = vld [vmem:[%s236 + $0x1aa8] sm:$0xff]
        %v1159 = vld [vmem:[%s236 + $0x1ab0] sm:$0xff]
        %v1160 = vld [vmem:[%s236 + $0x1ab8] sm:$0xff]
        %v1161 = vld [vmem:[%s236 + $0x1ac0] sm:$0xff]
        %v1162 = vld [vmem:[%s236 + $0x1ac8] sm:$0xff]
        %v1163 = vld [vmem:[%s236 + $0x1ad0] sm:$0xff]
        %v1164 = vld [vmem:[%s236 + $0x1ad8] sm:$0xff]
        %v1165 = vld [vmem:[%s236 + $0x1ae0] sm:$0xff]
        %v1166 = vld [vmem:[%s236 + $0x1ae8] sm:$0xff]
        %v1167 = vld [vmem:[%s236 + $0x1af0] sm:$0xff]
        %v1168 = vld [vmem:[%s236 + $0x1af8] sm:$0xff]
        %v1169 = vld [vmem:[%s236 + $0x1b00] sm:$0xff]
        %v1170 = vld [vmem:[%s236 + $0x1b08] sm:$0xff]
        %v1171 = vld [vmem:[%s236 + $0x1b10] sm:$0xff]
        %v1172 = vld [vmem:[%s236 + $0x1b18] sm:$0xff]
        %v1173 = vld [vmem:[%s236 + $0x1b20] sm:$0xff]
        %v1174 = vld [vmem:[%s236 + $0x1b28] sm:$0xff]
        %v1175 = vld [vmem:[%s236 + $0x1b30] sm:$0xff]
        %v1176 = vld [vmem:[%s236 + $0x1b38] sm:$0xff]
        %v1177 = vld [vmem:[%s236 + $0x1b40] sm:$0xff]
        %v1178 = vld [vmem:[%s236 + $0x1b48] sm:$0xff]
        %v1179 = vld [vmem:[%s236 + $0x1b50] sm:$0xff]
        %v1180 = vld [vmem:[%s236 + $0x1b58] sm:$0xff]
        %v1181 = vld [vmem:[%s236 + $0x1b60] sm:$0xff]
        %v1182 = vld [vmem:[%s236 + $0x1b68] sm:$0xff]
        %v1183 = vld [vmem:[%s236 + $0x1b70] sm:$0xff]
        %v1184 = vld [vmem:[%s236 + $0x1b78] sm:$0xff]
        %v1185 = vld [vmem:[%s236 + $0x1b80] sm:$0xff]
        %v1186 = vld [vmem:[%s236 + $0x1b88] sm:$0xff]
        %v1187 = vld [vmem:[%s236 + $0x1b90] sm:$0xff]
        %v1188 = vld [vmem:[%s236 + $0x1b98] sm:$0xff]
        %v1189 = vld [vmem:[%s236 + $0x1ba0] sm:$0xff]
        %v1190 = vld [vmem:[%s236 + $0x1ba8] sm:$0xff]
        %v1191 = vld [vmem:[%s236 + $0x1bb0] sm:$0xff]
        %v1192 = vld [vmem:[%s236 + $0x1bb8] sm:$0xff]
        %v1193 = vld [vmem:[%s236 + $0x1bc0] sm:$0xff]
        %v1194 = vld [vmem:[%s236 + $0x1bc8] sm:$0xff]
        %v1195 = vld [vmem:[%s236 + $0x1bd0] sm:$0xff]
        %v1196 = vld [vmem:[%s236 + $0x1bd8] sm:$0xff]
        %v1197 = vld [vmem:[%s236 + $0x1be0] sm:$0xff]
        %v1198 = vld [vmem:[%s236 + $0x1be8] sm:$0xff]
        %v1199 = vld [vmem:[%s236 + $0x1bf0] sm:$0xff]
        %v1200 = vld [vmem:[%s236 + $0x1bf8] sm:$0xff]
        %v1205 = vcombine.high %v301, %v301
        %v1207 = vunpack.c.l.s4 1966171168
        %v1208 = vunpack.c.0.s8 %v1207
        %v1209 = vlaneseq
        %v1210 = vshrl.u32 %v1209, 7
        %v1211 = vsub.s32 %v1208, %v1210
        %v1212 = vrot.slane %v301, %v1211
        %v1214 = vunpack.c.l.s4 1966171168
        %v1215 = vunpack.c.0.s8 %v1214
        %v1216 = vlaneseq
        %v1217 = vshrl.u32 %v1216, 7
        %v1218 = vsub.s32 %v1215, %v1217
        %v1219 = vrot.slane %v1205, %v1218
        %v1220 = vcombine.high %v1212, %v1212
        %v1221 = vcombine.high %v1219, %v1219
        %v1223 = vunpack.c.l.s4 1966171168
        %v1224 = vunpack.c.0.s8 %v1223
        %v1225 = vlaneseq
        %v1226 = vshrl.u32 %v1225, 7
        %v1227 = vsub.s32 %v1224, %v1226
        %v1228 = vrot.slane %v1212, %v1227
        %v1230 = vunpack.c.l.s4 1966171168
        %v1231 = vunpack.c.0.s8 %v1230
        %v1232 = vlaneseq
        %v1233 = vshrl.u32 %v1232, 7
        %v1234 = vsub.s32 %v1231, %v1233
        %v1235 = vrot.slane %v1219, %v1234
        %v1237 = vunpack.c.l.s4 1966171168
        %v1238 = vunpack.c.0.s8 %v1237
        %v1239 = vlaneseq
        %v1240 = vshrl.u32 %v1239, 7
        %v1241 = vsub.s32 %v1238, %v1240
        %v1242 = vrot.slane %v1220, %v1241
        %v1244 = vunpack.c.l.s4 1966171168
        %v1245 = vunpack.c.0.s8 %v1244
        %v1246 = vlaneseq
        %v1247 = vshrl.u32 %v1246, 7
        %v1248 = vsub.s32 %v1245, %v1247
        %v1249 = vrot.slane %v1221, %v1248
        %v1250 = vcombine.high %v1228, %v1228
        %v1251 = vcombine.high %v1235, %v1235
        %v1252 = vcombine.high %v1242, %v1242
        %v1253 = vcombine.high %v1249, %v1249
        %v1254 = vcombine.high %v302, %v302
        %v1256 = vunpack.c.l.s4 1966171168
        %v1257 = vunpack.c.0.s8 %v1256
        %v1258 = vlaneseq
        %v1259 = vshrl.u32 %v1258, 7
        %v1260 = vsub.s32 %v1257, %v1259
        %v1261 = vrot.slane %v302, %v1260
        %v1263 = vunpack.c.l.s4 1966171168
        %v1264 = vunpack.c.0.s8 %v1263
        %v1265 = vlaneseq
        %v1266 = vshrl.u32 %v1265, 7
        %v1267 = vsub.s32 %v1264, %v1266
        %v1268 = vrot.slane %v1254, %v1267
        %v1269 = vcombine.high %v1261, %v1261
        %v1270 = vcombine.high %v1268, %v1268
        %v1272 = vunpack.c.l.s4 1966171168
        %v1273 = vunpack.c.0.s8 %v1272
        %v1274 = vlaneseq
        %v1275 = vshrl.u32 %v1274, 7
        %v1276 = vsub.s32 %v1273, %v1275
        %v1277 = vrot.slane %v1261, %v1276
        %v1279 = vunpack.c.l.s4 1966171168
        %v1280 = vunpack.c.0.s8 %v1279
        %v1281 = vlaneseq
        %v1282 = vshrl.u32 %v1281, 7
        %v1283 = vsub.s32 %v1280, %v1282
        %v1284 = vrot.slane %v1268, %v1283
        %v1286 = vunpack.c.l.s4 1966171168
        %v1287 = vunpack.c.0.s8 %v1286
        %v1288 = vlaneseq
        %v1289 = vshrl.u32 %v1288, 7
        %v1290 = vsub.s32 %v1287, %v1289
        %v1291 = vrot.slane %v1269, %v1290
        %v1293 = vunpack.c.l.s4 1966171168
        %v1294 = vunpack.c.0.s8 %v1293
        %v1295 = vlaneseq
        %v1296 = vshrl.u32 %v1295, 7
        %v1297 = vsub.s32 %v1294, %v1296
        %v1298 = vrot.slane %v1270, %v1297
        %v1299 = vcombine.high %v1277, %v1277
        %v1300 = vcombine.high %v1284, %v1284
        %v1301 = vcombine.high %v1291, %v1291
        %v1302 = vcombine.high %v1298, %v1298
        %v1303 = vcombine.high %v303, %v303
        %v1305 = vunpack.c.l.s4 1966171168
        %v1306 = vunpack.c.0.s8 %v1305
        %v1307 = vlaneseq
        %v1308 = vshrl.u32 %v1307, 7
        %v1309 = vsub.s32 %v1306, %v1308
        %v1310 = vrot.slane %v303, %v1309
        %v1312 = vunpack.c.l.s4 1966171168
        %v1313 = vunpack.c.0.s8 %v1312
        %v1314 = vlaneseq
        %v1315 = vshrl.u32 %v1314, 7
        %v1316 = vsub.s32 %v1313, %v1315
        %v1317 = vrot.slane %v1303, %v1316
        %v1318 = vcombine.high %v1310, %v1310
        %v1319 = vcombine.high %v1317, %v1317
        %v1321 = vunpack.c.l.s4 1966171168
        %v1322 = vunpack.c.0.s8 %v1321
        %v1323 = vlaneseq
        %v1324 = vshrl.u32 %v1323, 7
        %v1325 = vsub.s32 %v1322, %v1324
        %v1326 = vrot.slane %v1310, %v1325
        %v1328 = vunpack.c.l.s4 1966171168
        %v1329 = vunpack.c.0.s8 %v1328
        %v1330 = vlaneseq
        %v1331 = vshrl.u32 %v1330, 7
        %v1332 = vsub.s32 %v1329, %v1331
        %v1333 = vrot.slane %v1317, %v1332
        %v1335 = vunpack.c.l.s4 1966171168
        %v1336 = vunpack.c.0.s8 %v1335
        %v1337 = vlaneseq
        %v1338 = vshrl.u32 %v1337, 7
        %v1339 = vsub.s32 %v1336, %v1338
        %v1340 = vrot.slane %v1318, %v1339
        %v1342 = vunpack.c.l.s4 1966171168
        %v1343 = vunpack.c.0.s8 %v1342
        %v1344 = vlaneseq
        %v1345 = vshrl.u32 %v1344, 7
        %v1346 = vsub.s32 %v1343, %v1345
        %v1347 = vrot.slane %v1319, %v1346
        %v1348 = vcombine.high %v1326, %v1326
        %v1349 = vcombine.high %v1333, %v1333
        %v1350 = vcombine.high %v1340, %v1340
        %v1351 = vcombine.high %v1347, %v1347
        %v1353 = vunpack.c.l.s4 1966171168
        %v1354 = vunpack.c.0.s8 %v1353
        %v1355 = vlaneseq
        %v1356 = vshrl.u32 %v1355, 7
        %v1357 = vsub.s32 %v1354, %v1356
        %v1358 = vrot.slane %v304, %v1357
        %v1359 = vcombine.high %v1358, %v1358
        %v1361 = vunpack.c.l.s4 1966171168
        %v1362 = vunpack.c.0.s8 %v1361
        %v1363 = vlaneseq
        %v1364 = vshrl.u32 %v1363, 7
        %v1365 = vsub.s32 %v1362, %v1364
        %v1366 = vrot.slane %v1358, %v1365
        %v1368 = vunpack.c.l.s4 1966171168
        %v1369 = vunpack.c.0.s8 %v1368
        %v1370 = vlaneseq
        %v1371 = vshrl.u32 %v1370, 7
        %v1372 = vsub.s32 %v1369, %v1371
        %v1373 = vrot.slane %v1359, %v1372
        %v1374 = vcombine.high %v1366, %v1366
        %v1375 = vcombine.high %v1373, %v1373
        %v2300 = vunpack.c.l.b16 %v305
        %v2301 = vunpack.c.h.b16 %v305
        %v2302 = vunpack.c.l.b16 %v306
        %v2303 = vunpack.c.h.b16 %v306
        %v2304 = vunpack.c.l.b16 %v307
        %v2305 = vunpack.c.h.b16 %v307
        %v2306 = vunpack.c.l.b16 %v308
        %v2307 = vunpack.c.h.b16 %v308
        %v2308 = vunpack.c.l.b16 %v309
        %v2309 = vunpack.c.h.b16 %v309
        %v2310 = vunpack.c.l.b16 %v310
        %v2311 = vunpack.c.h.b16 %v310
        %v2312 = vunpack.c.l.b16 %v311
        %v2313 = vunpack.c.h.b16 %v311
        %v2314 = vunpack.c.l.b16 %v312
        %v2315 = vunpack.c.h.b16 %v312
        %v2316 = vunpack.c.l.b16 %v313
        %v2317 = vunpack.c.h.b16 %v313
        %v2318 = vunpack.c.l.b16 %v314
        %v2319 = vunpack.c.h.b16 %v314
        %v2320 = vunpack.c.l.b16 %v315
        %v2321 = vunpack.c.h.b16 %v315
        %v2322 = vunpack.c.l.b16 %v316
        %v2323 = vunpack.c.h.b16 %v316
        %v2324 = vunpack.c.l.b16 %v317
        %v2325 = vunpack.c.h.b16 %v317
        %v2326 = vunpack.c.l.b16 %v318
        %v2327 = vunpack.c.h.b16 %v318
        %v2328 = vunpack.c.l.b16 %v319
        %v2329 = vunpack.c.h.b16 %v319
        %v2330 = vunpack.c.l.b16 %v320
        %v2331 = vunpack.c.h.b16 %v320
        %v2332 = vunpack.c.l.b16 %v321
        %v2333 = vunpack.c.h.b16 %v321
        %v2334 = vunpack.c.l.b16 %v322
        %v2335 = vunpack.c.h.b16 %v322
        %v2336 = vunpack.c.l.b16 %v323
        %v2337 = vunpack.c.h.b16 %v323
        %v2338 = vunpack.c.l.b16 %v324
        %v2339 = vunpack.c.h.b16 %v324
        %v2340 = vunpack.c.l.b16 %v325
        %v2341 = vunpack.c.h.b16 %v325
        %v2342 = vunpack.c.l.b16 %v326
        %v2343 = vunpack.c.h.b16 %v326
        %v2344 = vunpack.c.l.b16 %v327
        %v2345 = vunpack.c.h.b16 %v327
        %v2346 = vunpack.c.l.b16 %v328
        %v2347 = vunpack.c.h.b16 %v328
        %v2348 = vunpack.c.l.b16 %v329
        %v2349 = vunpack.c.h.b16 %v329
        %v2350 = vunpack.c.l.b16 %v330
        %v2351 = vunpack.c.h.b16 %v330
        %v2352 = vunpack.c.l.b16 %v331
        %v2353 = vunpack.c.h.b16 %v331
        %v2354 = vunpack.c.l.b16 %v332
        %v2355 = vunpack.c.h.b16 %v332
        %v2356 = vunpack.c.l.b16 %v333
        %v2357 = vunpack.c.h.b16 %v333
        %v2358 = vunpack.c.l.b16 %v334
        %v2359 = vunpack.c.h.b16 %v334
        %v2360 = vunpack.c.l.b16 %v335
        %v2361 = vunpack.c.h.b16 %v335
        %v2362 = vunpack.c.l.b16 %v336
        %v2363 = vunpack.c.h.b16 %v336
        %v2364 = vunpack.c.l.b16 %v337
        %v2365 = vunpack.c.h.b16 %v337
        %v2366 = vunpack.c.l.b16 %v338
        %v2367 = vunpack.c.h.b16 %v338
        %v2368 = vunpack.c.l.b16 %v339
        %v2369 = vunpack.c.h.b16 %v339
        %v2370 = vunpack.c.l.b16 %v340
        %v2371 = vunpack.c.h.b16 %v340
        %v2372 = vunpack.c.l.b16 %v341
        %v2373 = vunpack.c.h.b16 %v341
        %v2374 = vunpack.c.l.b16 %v342
        %v2375 = vunpack.c.h.b16 %v342
        %v2376 = vunpack.c.l.b16 %v343
        %v2377 = vunpack.c.h.b16 %v343
        %v2378 = vunpack.c.l.b16 %v344
        %v2379 = vunpack.c.h.b16 %v344
        %v2380 = vunpack.c.l.b16 %v345
        %v2381 = vunpack.c.h.b16 %v345
        %v2382 = vunpack.c.l.b16 %v346
        %v2383 = vunpack.c.h.b16 %v346
        %v2384 = vunpack.c.l.b16 %v347
        %v2385 = vunpack.c.h.b16 %v347
        %v2386 = vunpack.c.l.b16 %v348
        %v2387 = vunpack.c.h.b16 %v348
        %v2388 = vunpack.c.l.b16 %v349
        %v2389 = vunpack.c.h.b16 %v349
        %v2390 = vunpack.c.l.b16 %v350
        %v2391 = vunpack.c.h.b16 %v350
        %v2392 = vunpack.c.l.b16 %v351
        %v2393 = vunpack.c.h.b16 %v351
        %v2394 = vunpack.c.l.b16 %v352
        %v2395 = vunpack.c.h.b16 %v352
        %v2396 = vunpack.c.l.b16 %v353
        %v2397 = vunpack.c.h.b16 %v353
        %v2398 = vunpack.c.l.b16 %v354
        %v2399 = vunpack.c.h.b16 %v354
        %v2400 = vunpack.c.l.b16 %v355
        %v2401 = vunpack.c.h.b16 %v355
        %v2402 = vunpack.c.l.b16 %v356
        %v2403 = vunpack.c.h.b16 %v356
        %v2404 = vunpack.c.l.b16 %v357
        %v2405 = vunpack.c.h.b16 %v357
        %v2406 = vunpack.c.l.b16 %v358
        %v2407 = vunpack.c.h.b16 %v358
        %v2408 = vunpack.c.l.b16 %v359
        %v2409 = vunpack.c.h.b16 %v359
        %v2410 = vunpack.c.l.b16 %v360
        %v2411 = vunpack.c.h.b16 %v360
        %v2412 = vunpack.c.l.b16 %v361
        %v2413 = vunpack.c.h.b16 %v361
        %v2414 = vunpack.c.l.b16 %v362
        %v2415 = vunpack.c.h.b16 %v362
        %v2416 = vunpack.c.l.b16 %v363
        %v2417 = vunpack.c.h.b16 %v363
        %v2418 = vunpack.c.l.b16 %v364
        %v2419 = vunpack.c.h.b16 %v364
        %v2420 = vunpack.c.l.b16 %v365
        %v2421 = vunpack.c.h.b16 %v365
        %v2422 = vunpack.c.l.b16 %v366
        %v2423 = vunpack.c.h.b16 %v366
        %v2424 = vunpack.c.l.b16 %v367
        %v2425 = vunpack.c.h.b16 %v367
        %v2426 = vunpack.c.l.b16 %v368
        %v2427 = vunpack.c.h.b16 %v368
        %v2428 = vunpack.c.l.b16 %v369
        %v2429 = vunpack.c.h.b16 %v369
        %v2430 = vunpack.c.l.b16 %v370
        %v2431 = vunpack.c.h.b16 %v370
        %v2432 = vunpack.c.l.b16 %v371
        %v2433 = vunpack.c.h.b16 %v371
        %v2434 = vunpack.c.l.b16 %v372
        %v2435 = vunpack.c.h.b16 %v372
        %v2436 = vunpack.c.l.b16 %v373
        %v2437 = vunpack.c.h.b16 %v373
        %v2438 = vunpack.c.l.b16 %v374
        %v2439 = vunpack.c.h.b16 %v374
        %v2440 = vunpack.c.l.b16 %v375
        %v2441 = vunpack.c.h.b16 %v375
        %v2442 = vunpack.c.l.b16 %v376
        %v2443 = vunpack.c.h.b16 %v376
        %v2444 = vunpack.c.l.b16 %v377
        %v2445 = vunpack.c.h.b16 %v377
        %v2446 = vunpack.c.l.b16 %v378
        %v2447 = vunpack.c.h.b16 %v378
        %v2448 = vunpack.c.l.b16 %v379
        %v2449 = vunpack.c.h.b16 %v379
        %v2450 = vunpack.c.l.b16 %v380
        %v2451 = vunpack.c.h.b16 %v380
        %v2452 = vunpack.c.l.b16 %v381
        %v2453 = vunpack.c.h.b16 %v381
        %v2454 = vunpack.c.l.b16 %v382
        %v2455 = vunpack.c.h.b16 %v382
        %v2456 = vunpack.c.l.b16 %v383
        %v2457 = vunpack.c.h.b16 %v383
        %v2458 = vunpack.c.l.b16 %v384
        %v2459 = vunpack.c.h.b16 %v384
        %v2460 = vunpack.c.l.b16 %v385
        %v2461 = vunpack.c.h.b16 %v385
        %v2462 = vunpack.c.l.b16 %v386
        %v2463 = vunpack.c.h.b16 %v386
        %v2464 = vunpack.c.l.b16 %v387
        %v2465 = vunpack.c.h.b16 %v387
        %v2466 = vunpack.c.l.b16 %v388
        %v2467 = vunpack.c.h.b16 %v388
        %v2468 = vunpack.c.l.b16 %v389
        %v2469 = vunpack.c.h.b16 %v389
        %v2470 = vunpack.c.l.b16 %v390
        %v2471 = vunpack.c.h.b16 %v390
        %v2472 = vunpack.c.l.b16 %v391
        %v2473 = vunpack.c.h.b16 %v391
        %v2474 = vunpack.c.l.b16 %v392
        %v2475 = vunpack.c.h.b16 %v392
        %v2476 = vunpack.c.l.b16 %v393
        %v2477 = vunpack.c.h.b16 %v393
        %v2478 = vunpack.c.l.b16 %v394
        %v2479 = vunpack.c.h.b16 %v394
        %v2480 = vunpack.c.l.b16 %v395
        %v2481 = vunpack.c.h.b16 %v395
        %v2482 = vunpack.c.l.b16 %v396
        %v2483 = vunpack.c.h.b16 %v396
        %v2484 = vunpack.c.l.b16 %v397
        %v2485 = vunpack.c.h.b16 %v397
        %v2486 = vunpack.c.l.b16 %v398
        %v2487 = vunpack.c.h.b16 %v398
        %v2488 = vunpack.c.l.b16 %v399
        %v2489 = vunpack.c.h.b16 %v399
        %v2490 = vunpack.c.l.b16 %v400
        %v2491 = vunpack.c.h.b16 %v400
        %v2492 = vunpack.c.l.b16 %v401
        %v2493 = vunpack.c.h.b16 %v401
        %v2494 = vunpack.c.l.b16 %v402
        %v2495 = vunpack.c.h.b16 %v402
        %v2496 = vunpack.c.l.b16 %v403
        %v2497 = vunpack.c.h.b16 %v403
        %v2498 = vunpack.c.l.b16 %v404
        %v2499 = vunpack.c.h.b16 %v404
        %v2500 = vunpack.c.l.b16 %v405
        %v2501 = vunpack.c.h.b16 %v405
        %v2502 = vunpack.c.l.b16 %v406
        %v2503 = vunpack.c.h.b16 %v406
        %v2504 = vunpack.c.l.b16 %v407
        %v2505 = vunpack.c.h.b16 %v407
        %v2506 = vunpack.c.l.b16 %v408
        %v2507 = vunpack.c.h.b16 %v408
        %v2508 = vunpack.c.l.b16 %v409
        %v2509 = vunpack.c.h.b16 %v409
        %v2510 = vunpack.c.l.b16 %v410
        %v2511 = vunpack.c.h.b16 %v410
        %v2512 = vunpack.c.l.b16 %v411
        %v2513 = vunpack.c.h.b16 %v411
        %v2514 = vunpack.c.l.b16 %v412
        %v2515 = vunpack.c.h.b16 %v412
        %v2516 = vunpack.c.l.b16 %v413
        %v2517 = vunpack.c.h.b16 %v413
        %v2518 = vunpack.c.l.b16 %v414
        %v2519 = vunpack.c.h.b16 %v414
        %v2520 = vunpack.c.l.b16 %v415
        %v2521 = vunpack.c.h.b16 %v415
        %v2522 = vunpack.c.l.b16 %v416
        %v2523 = vunpack.c.h.b16 %v416
        %v2524 = vunpack.c.l.b16 %v417
        %v2525 = vunpack.c.h.b16 %v417
        %v2526 = vunpack.c.l.b16 %v418
        %v2527 = vunpack.c.h.b16 %v418
        %v2528 = vunpack.c.l.b16 %v419
        %v2529 = vunpack.c.h.b16 %v419
        %v2530 = vunpack.c.l.b16 %v420
        %v2531 = vunpack.c.h.b16 %v420
        %v2532 = vunpack.c.l.b16 %v421
        %v2533 = vunpack.c.h.b16 %v421
        %v2534 = vunpack.c.l.b16 %v422
        %v2535 = vunpack.c.h.b16 %v422
        %v2536 = vunpack.c.l.b16 %v423
        %v2537 = vunpack.c.h.b16 %v423
        %v2538 = vunpack.c.l.b16 %v424
        %v2539 = vunpack.c.h.b16 %v424
        %v2540 = vunpack.c.l.b16 %v425
        %v2541 = vunpack.c.h.b16 %v425
        %v2542 = vunpack.c.l.b16 %v426
        %v2543 = vunpack.c.h.b16 %v426
        %v2544 = vunpack.c.l.b16 %v427
        %v2545 = vunpack.c.h.b16 %v427
        %v2546 = vunpack.c.l.b16 %v428
        %v2547 = vunpack.c.h.b16 %v428
        %v2548 = vunpack.c.l.b16 %v429
        %v2549 = vunpack.c.h.b16 %v429
        %v2550 = vunpack.c.l.b16 %v430
        %v2551 = vunpack.c.h.b16 %v430
        %v2552 = vunpack.c.l.b16 %v431
        %v2553 = vunpack.c.h.b16 %v431
        %v2554 = vunpack.c.l.b16 %v432
        %v2555 = vunpack.c.h.b16 %v432
        %v2556 = vunpack.c.l.b16 %v433
        %v2557 = vunpack.c.h.b16 %v433
        %v2558 = vunpack.c.l.b16 %v434
        %v2559 = vunpack.c.h.b16 %v434
        %v2560 = vunpack.c.l.b16 %v435
        %v2561 = vunpack.c.h.b16 %v435
        %v2562 = vunpack.c.l.b16 %v436
        %v2563 = vunpack.c.h.b16 %v436
        %v2564 = vunpack.c.l.b16 %v437
        %v2565 = vunpack.c.h.b16 %v437
        %v2566 = vunpack.c.l.b16 %v438
        %v2567 = vunpack.c.h.b16 %v438
        %v2568 = vunpack.c.l.b16 %v439
        %v2569 = vunpack.c.h.b16 %v439
        %v2570 = vunpack.c.l.b16 %v440
        %v2571 = vunpack.c.h.b16 %v440
        %v2572 = vunpack.c.l.b16 %v441
        %v2573 = vunpack.c.h.b16 %v441
        %v2574 = vunpack.c.l.b16 %v442
        %v2575 = vunpack.c.h.b16 %v442
        %v2576 = vunpack.c.l.b16 %v443
        %v2577 = vunpack.c.h.b16 %v443
        %v2578 = vunpack.c.l.b16 %v444
        %v2579 = vunpack.c.h.b16 %v444
        %v2580 = vunpack.c.l.b16 %v445
        %v2581 = vunpack.c.h.b16 %v445
        %v2582 = vunpack.c.l.b16 %v446
        %v2583 = vunpack.c.h.b16 %v446
        %v2584 = vunpack.c.l.b16 %v447
        %v2585 = vunpack.c.h.b16 %v447
        %v2586 = vunpack.c.l.b16 %v448
        %v2587 = vunpack.c.h.b16 %v448
        %v2588 = vunpack.c.l.b16 %v449
        %v2589 = vunpack.c.h.b16 %v449
        %v2590 = vunpack.c.l.b16 %v450
        %v2591 = vunpack.c.h.b16 %v450
        %v2592 = vunpack.c.l.b16 %v451
        %v2593 = vunpack.c.h.b16 %v451
        %v2594 = vunpack.c.l.b16 %v452
        %v2595 = vunpack.c.h.b16 %v452
        %v2596 = vunpack.c.l.b16 %v453
        %v2597 = vunpack.c.h.b16 %v453
        %v2598 = vunpack.c.l.b16 %v454
        %v2599 = vunpack.c.h.b16 %v454
        %v2600 = vunpack.c.l.b16 %v455
        %v2601 = vunpack.c.h.b16 %v455
        %v2602 = vunpack.c.l.b16 %v456
        %v2603 = vunpack.c.h.b16 %v456
        %v2604 = vunpack.c.l.b16 %v457
        %v2605 = vunpack.c.h.b16 %v457
        %v2606 = vunpack.c.l.b16 %v458
        %v2607 = vunpack.c.h.b16 %v458
        %v2608 = vunpack.c.l.b16 %v459
        %v2609 = vunpack.c.h.b16 %v459
        %v2610 = vunpack.c.l.b16 %v460
        %v2611 = vunpack.c.h.b16 %v460
        %v2612 = vunpack.c.l.b16 %v461
        %v2613 = vunpack.c.h.b16 %v461
        %v2614 = vunpack.c.l.b16 %v462
        %v2615 = vunpack.c.h.b16 %v462
        %v2616 = vunpack.c.l.b16 %v463
        %v2617 = vunpack.c.h.b16 %v463
        %v2618 = vunpack.c.l.b16 %v464
        %v2619 = vunpack.c.h.b16 %v464
        %v2620 = vunpack.c.l.b16 %v465
        %v2621 = vunpack.c.h.b16 %v465
        %v2622 = vunpack.c.l.b16 %v466
        %v2623 = vunpack.c.h.b16 %v466
        %v2624 = vunpack.c.l.b16 %v467
        %v2625 = vunpack.c.h.b16 %v467
        %v2626 = vunpack.c.l.b16 %v468
        %v2627 = vunpack.c.h.b16 %v468
        %v2628 = vunpack.c.l.b16 %v469
        %v2629 = vunpack.c.h.b16 %v469
        %v2630 = vunpack.c.l.b16 %v470
        %v2631 = vunpack.c.h.b16 %v470
        %v2632 = vunpack.c.l.b16 %v471
        %v2633 = vunpack.c.h.b16 %v471
        %v2634 = vunpack.c.l.b16 %v472
        %v2635 = vunpack.c.h.b16 %v472
        %v2636 = vunpack.c.l.b16 %v473
        %v2637 = vunpack.c.h.b16 %v473
        %v2638 = vunpack.c.l.b16 %v474
        %v2639 = vunpack.c.h.b16 %v474
        %v2640 = vunpack.c.l.b16 %v475
        %v2641 = vunpack.c.h.b16 %v475
        %v2642 = vunpack.c.l.b16 %v476
        %v2643 = vunpack.c.h.b16 %v476
        %v2644 = vunpack.c.l.b16 %v477
        %v2645 = vunpack.c.h.b16 %v477
        %v2646 = vunpack.c.l.b16 %v478
        %v2647 = vunpack.c.h.b16 %v478
        %v2648 = vunpack.c.l.b16 %v479
        %v2649 = vunpack.c.h.b16 %v479
        %v2650 = vunpack.c.l.b16 %v480
        %v2651 = vunpack.c.h.b16 %v480
        %v2652 = vunpack.c.l.b16 %v481
        %v2653 = vunpack.c.h.b16 %v481
        %v2654 = vunpack.c.l.b16 %v482
        %v2655 = vunpack.c.h.b16 %v482
        %v2656 = vunpack.c.l.b16 %v483
        %v2657 = vunpack.c.h.b16 %v483
        %v2658 = vunpack.c.l.b16 %v484
        %v2659 = vunpack.c.h.b16 %v484
        %v2660 = vunpack.c.l.b16 %v485
        %v2661 = vunpack.c.h.b16 %v485
        %v2662 = vunpack.c.l.b16 %v486
        %v2663 = vunpack.c.h.b16 %v486
        %v2664 = vunpack.c.l.b16 %v487
        %v2665 = vunpack.c.h.b16 %v487
        %v2666 = vunpack.c.l.b16 %v488
        %v2667 = vunpack.c.h.b16 %v488
        %v2668 = vunpack.c.l.b16 %v489
        %v2669 = vunpack.c.h.b16 %v489
        %v2670 = vunpack.c.l.b16 %v490
        %v2671 = vunpack.c.h.b16 %v490
        %v2672 = vunpack.c.l.b16 %v491
        %v2673 = vunpack.c.h.b16 %v491
        %v2674 = vunpack.c.l.b16 %v492
        %v2675 = vunpack.c.h.b16 %v492
        %v2676 = vunpack.c.l.b16 %v493
        %v2677 = vunpack.c.h.b16 %v493
        %v2678 = vunpack.c.l.b16 %v494
        %v2679 = vunpack.c.h.b16 %v494
        %v2680 = vunpack.c.l.b16 %v495
        %v2681 = vunpack.c.h.b16 %v495
        %v2682 = vunpack.c.l.b16 %v496
        %v2683 = vunpack.c.h.b16 %v496
        %v2684 = vunpack.c.l.b16 %v497
        %v2685 = vunpack.c.h.b16 %v497
        %v2686 = vunpack.c.l.b16 %v498
        %v2687 = vunpack.c.h.b16 %v498
        %v2688 = vunpack.c.l.b16 %v499
        %v2689 = vunpack.c.h.b16 %v499
        %v2690 = vunpack.c.l.b16 %v500
        %v2691 = vunpack.c.h.b16 %v500
        %v2692 = vunpack.c.l.b16 %v501
        %v2693 = vunpack.c.h.b16 %v501
        %v2694 = vunpack.c.l.b16 %v502
        %v2695 = vunpack.c.h.b16 %v502
        %v2696 = vunpack.c.l.b16 %v503
        %v2697 = vunpack.c.h.b16 %v503
        %v2698 = vunpack.c.l.b16 %v504
        %v2699 = vunpack.c.h.b16 %v504
        %v2700 = vunpack.c.l.b16 %v505
        %v2701 = vunpack.c.h.b16 %v505
        %v2702 = vunpack.c.l.b16 %v506
        %v2703 = vunpack.c.h.b16 %v506
        %v2704 = vunpack.c.l.b16 %v507
        %v2705 = vunpack.c.h.b16 %v507
        %v2706 = vunpack.c.l.b16 %v508
        %v2707 = vunpack.c.h.b16 %v508
        %v2708 = vunpack.c.l.b16 %v509
        %v2709 = vunpack.c.h.b16 %v509
        %v2710 = vunpack.c.l.b16 %v510
        %v2711 = vunpack.c.h.b16 %v510
        %v2712 = vunpack.c.l.b16 %v511
        %v2713 = vunpack.c.h.b16 %v511
        %v2714 = vunpack.c.l.b16 %v512
        %v2715 = vunpack.c.h.b16 %v512
        %v2716 = vunpack.c.l.b16 %v513
        %v2717 = vunpack.c.h.b16 %v513
        %v2718 = vunpack.c.l.b16 %v514
        %v2719 = vunpack.c.h.b16 %v514
        %v2720 = vunpack.c.l.b16 %v515
        %v2721 = vunpack.c.h.b16 %v515
        %v2722 = vunpack.c.l.b16 %v516
        %v2723 = vunpack.c.h.b16 %v516
        %v2724 = vunpack.c.l.b16 %v517
        %v2725 = vunpack.c.h.b16 %v517
        %v2726 = vunpack.c.l.b16 %v518
        %v2727 = vunpack.c.h.b16 %v518
        %v2728 = vunpack.c.l.b16 %v519
        %v2729 = vunpack.c.h.b16 %v519
        %v2730 = vunpack.c.l.b16 %v520
        %v2731 = vunpack.c.h.b16 %v520
        %v2732 = vunpack.c.l.b16 %v521
        %v2733 = vunpack.c.h.b16 %v521
        %v2734 = vunpack.c.l.b16 %v522
        %v2735 = vunpack.c.h.b16 %v522
        %v2736 = vunpack.c.l.b16 %v523
        %v2737 = vunpack.c.h.b16 %v523
        %v2738 = vunpack.c.l.b16 %v524
        %v2739 = vunpack.c.h.b16 %v524
        %v2740 = vunpack.c.l.b16 %v525
        %v2741 = vunpack.c.h.b16 %v525
        %v2742 = vunpack.c.l.b16 %v526
        %v2743 = vunpack.c.h.b16 %v526
        %v2744 = vunpack.c.l.b16 %v527
        %v2745 = vunpack.c.h.b16 %v527
        %v2746 = vunpack.c.l.b16 %v528
        %v2747 = vunpack.c.h.b16 %v528
        %v2748 = vunpack.c.l.b16 %v529
        %v2749 = vunpack.c.h.b16 %v529
        %v2750 = vunpack.c.l.b16 %v530
        %v2751 = vunpack.c.h.b16 %v530
        %v2752 = vunpack.c.l.b16 %v531
        %v2753 = vunpack.c.h.b16 %v531
        %v2754 = vunpack.c.l.b16 %v532
        %v2755 = vunpack.c.h.b16 %v532
        %v2756 = vunpack.c.l.b16 %v533
        %v2757 = vunpack.c.h.b16 %v533
        %v2758 = vunpack.c.l.b16 %v534
        %v2759 = vunpack.c.h.b16 %v534
        %v2760 = vunpack.c.l.b16 %v535
        %v2761 = vunpack.c.h.b16 %v535
        %v2762 = vunpack.c.l.b16 %v536
        %v2763 = vunpack.c.h.b16 %v536
        %v2764 = vunpack.c.l.b16 %v537
        %v2765 = vunpack.c.h.b16 %v537
        %v2766 = vunpack.c.l.b16 %v538
        %v2767 = vunpack.c.h.b16 %v538
        %v2768 = vunpack.c.l.b16 %v539
        %v2769 = vunpack.c.h.b16 %v539
        %v2770 = vunpack.c.l.b16 %v540
        %v2771 = vunpack.c.h.b16 %v540
        %v2772 = vunpack.c.l.b16 %v541
        %v2773 = vunpack.c.h.b16 %v541
        %v2774 = vunpack.c.l.b16 %v542
        %v2775 = vunpack.c.h.b16 %v542
        %v2776 = vunpack.c.l.b16 %v543
        %v2777 = vunpack.c.h.b16 %v543
        %v2778 = vunpack.c.l.b16 %v544
        %v2779 = vunpack.c.h.b16 %v544
        %v2780 = vunpack.c.l.b16 %v545
        %v2781 = vunpack.c.h.b16 %v545
        %v2782 = vunpack.c.l.b16 %v546
        %v2783 = vunpack.c.h.b16 %v546
        %v2784 = vunpack.c.l.b16 %v547
        %v2785 = vunpack.c.h.b16 %v547
        %v2786 = vunpack.c.l.b16 %v548
        %v2787 = vunpack.c.h.b16 %v548
        %v2788 = vunpack.c.l.b16 %v549
        %v2789 = vunpack.c.h.b16 %v549
        %v2790 = vunpack.c.l.b16 %v550
        %v2791 = vunpack.c.h.b16 %v550
        %v2792 = vunpack.c.l.b16 %v551
        %v2793 = vunpack.c.h.b16 %v551
        %v2794 = vunpack.c.l.b16 %v552
        %v2795 = vunpack.c.h.b16 %v552
        %v2796 = vunpack.c.l.b16 %v553
        %v2797 = vunpack.c.h.b16 %v553
        %v2798 = vunpack.c.l.b16 %v554
        %v2799 = vunpack.c.h.b16 %v554
        %v2800 = vunpack.c.l.b16 %v555
        %v2801 = vunpack.c.h.b16 %v555
        %v2802 = vunpack.c.l.b16 %v556
        %v2803 = vunpack.c.h.b16 %v556
        %v2804 = vunpack.c.l.b16 %v557
        %v2805 = vunpack.c.h.b16 %v557
        %v2806 = vunpack.c.l.b16 %v558
        %v2807 = vunpack.c.h.b16 %v558
        %v2808 = vunpack.c.l.b16 %v559
        %v2809 = vunpack.c.h.b16 %v559
        %v2810 = vunpack.c.l.b16 %v560
        %v2811 = vunpack.c.h.b16 %v560
        %v2812 = vunpack.c.l.b16 %v561
        %v2813 = vunpack.c.h.b16 %v561
        %v2814 = vunpack.c.l.b16 %v562
        %v2815 = vunpack.c.h.b16 %v562
        %v2816 = vunpack.c.l.b16 %v563
        %v2817 = vunpack.c.h.b16 %v563
        %v2818 = vunpack.c.l.b16 %v564
        %v2819 = vunpack.c.h.b16 %v564
        %v2820 = vunpack.c.l.b16 %v565
        %v2821 = vunpack.c.h.b16 %v565
        %v2822 = vunpack.c.l.b16 %v566
        %v2823 = vunpack.c.h.b16 %v566
        %v2824 = vunpack.c.l.b16 %v567
        %v2825 = vunpack.c.h.b16 %v567
        %v2826 = vunpack.c.l.b16 %v568
        %v2827 = vunpack.c.h.b16 %v568
        %v2828 = vunpack.c.l.b16 %v569
        %v2829 = vunpack.c.h.b16 %v569
        %v2830 = vunpack.c.l.b16 %v570
        %v2831 = vunpack.c.h.b16 %v570
        %v2832 = vunpack.c.l.b16 %v571
        %v2833 = vunpack.c.h.b16 %v571
        %v2834 = vunpack.c.l.b16 %v572
        %v2835 = vunpack.c.h.b16 %v572
        %v2836 = vunpack.c.l.b16 %v573
        %v2837 = vunpack.c.h.b16 %v573
        %v2838 = vunpack.c.l.b16 %v574
        %v2839 = vunpack.c.h.b16 %v574
        %v2840 = vunpack.c.l.b16 %v575
        %v2841 = vunpack.c.h.b16 %v575
        %v2842 = vunpack.c.l.b16 %v576
        %v2843 = vunpack.c.h.b16 %v576
        %v2844 = vunpack.c.l.b16 %v577
        %v2845 = vunpack.c.h.b16 %v577
        %v2846 = vunpack.c.l.b16 %v578
        %v2847 = vunpack.c.h.b16 %v578
        %v2848 = vunpack.c.l.b16 %v579
        %v2849 = vunpack.c.h.b16 %v579
        %v2850 = vunpack.c.l.b16 %v580
        %v2851 = vunpack.c.h.b16 %v580
        %v2852 = vunpack.c.l.b16 %v581
        %v2853 = vunpack.c.h.b16 %v581
        %v2854 = vunpack.c.l.b16 %v582
        %v2855 = vunpack.c.h.b16 %v582
        %v2856 = vunpack.c.l.b16 %v583
        %v2857 = vunpack.c.h.b16 %v583
        %v2858 = vunpack.c.l.b16 %v584
        %v2859 = vunpack.c.h.b16 %v584
        %v2860 = vunpack.c.l.b16 %v585
        %v2861 = vunpack.c.h.b16 %v585
        %v2862 = vunpack.c.l.b16 %v586
        %v2863 = vunpack.c.h.b16 %v586
        %v2864 = vunpack.c.l.b16 %v587
        %v2865 = vunpack.c.h.b16 %v587
        %v2866 = vunpack.c.l.b16 %v588
        %v2867 = vunpack.c.h.b16 %v588
        %v2868 = vunpack.c.l.b16 %v589
        %v2869 = vunpack.c.h.b16 %v589
        %v2870 = vunpack.c.l.b16 %v590
        %v2871 = vunpack.c.h.b16 %v590
        %v2872 = vunpack.c.l.b16 %v591
        %v2873 = vunpack.c.h.b16 %v591
        %v2874 = vunpack.c.l.b16 %v592
        %v2875 = vunpack.c.h.b16 %v592
        %v2876 = vunpack.c.l.b16 %v593
        %v2877 = vunpack.c.h.b16 %v593
        %v2878 = vunpack.c.l.b16 %v594
        %v2879 = vunpack.c.h.b16 %v594
        %v2880 = vunpack.c.l.b16 %v595
        %v2881 = vunpack.c.h.b16 %v595
        %v2882 = vunpack.c.l.b16 %v596
        %v2883 = vunpack.c.h.b16 %v596
        %v2884 = vunpack.c.l.b16 %v597
        %v2885 = vunpack.c.h.b16 %v597
        %v2886 = vunpack.c.l.b16 %v598
        %v2887 = vunpack.c.h.b16 %v598
        %v2888 = vunpack.c.l.b16 %v599
        %v2889 = vunpack.c.h.b16 %v599
        %v2890 = vunpack.c.l.b16 %v600
        %v2891 = vunpack.c.h.b16 %v600
        %v2892 = vunpack.c.l.b16 %v601
        %v2893 = vunpack.c.h.b16 %v601
        %v2894 = vunpack.c.l.b16 %v602
        %v2895 = vunpack.c.h.b16 %v602
        %v2896 = vunpack.c.l.b16 %v603
        %v2897 = vunpack.c.h.b16 %v603
        %v2898 = vunpack.c.l.b16 %v604
        %v2899 = vunpack.c.h.b16 %v604
        %v2900 = vunpack.c.l.b16 %v605
        %v2901 = vunpack.c.h.b16 %v605
        %v2902 = vunpack.c.l.b16 %v606
        %v2903 = vunpack.c.h.b16 %v606
        %v2904 = vunpack.c.l.b16 %v607
        %v2905 = vunpack.c.h.b16 %v607
        %v2906 = vunpack.c.l.b16 %v608
        %v2907 = vunpack.c.h.b16 %v608
        %v2908 = vunpack.c.l.b16 %v609
        %v2909 = vunpack.c.h.b16 %v609
        %v2910 = vunpack.c.l.b16 %v610
        %v2911 = vunpack.c.h.b16 %v610
        %v2912 = vunpack.c.l.b16 %v611
        %v2913 = vunpack.c.h.b16 %v611
        %v2914 = vunpack.c.l.b16 %v612
        %v2915 = vunpack.c.h.b16 %v612
        %v2916 = vunpack.c.l.b16 %v613
        %v2917 = vunpack.c.h.b16 %v613
        %v2918 = vunpack.c.l.b16 %v614
        %v2919 = vunpack.c.h.b16 %v614
        %v2920 = vunpack.c.l.b16 %v615
        %v2921 = vunpack.c.h.b16 %v615
        %v2922 = vunpack.c.l.b16 %v616
        %v2923 = vunpack.c.h.b16 %v616
        %v2924 = vunpack.c.l.b16 %v617
        %v2925 = vunpack.c.h.b16 %v617
        %v2926 = vunpack.c.l.b16 %v618
        %v2927 = vunpack.c.h.b16 %v618
        %v2928 = vunpack.c.l.b16 %v619
        %v2929 = vunpack.c.h.b16 %v619
        %v2930 = vunpack.c.l.b16 %v620
        %v2931 = vunpack.c.h.b16 %v620
        %v2932 = vunpack.c.l.b16 %v621
        %v2933 = vunpack.c.h.b16 %v621
        %v2934 = vunpack.c.l.b16 %v622
        %v2935 = vunpack.c.h.b16 %v622
        %v2936 = vunpack.c.l.b16 %v623
        %v2937 = vunpack.c.h.b16 %v623
        %v2938 = vunpack.c.l.b16 %v624
        %v2939 = vunpack.c.h.b16 %v624
        %v2940 = vunpack.c.l.b16 %v625
        %v2941 = vunpack.c.h.b16 %v625
        %v2942 = vunpack.c.l.b16 %v626
        %v2943 = vunpack.c.h.b16 %v626
        %v2944 = vunpack.c.l.b16 %v627
        %v2945 = vunpack.c.h.b16 %v627
        %v2946 = vunpack.c.l.b16 %v628
        %v2947 = vunpack.c.h.b16 %v628
        %v2948 = vunpack.c.l.b16 %v629
        %v2949 = vunpack.c.h.b16 %v629
        %v2950 = vunpack.c.l.b16 %v630
        %v2951 = vunpack.c.h.b16 %v630
        %v2952 = vunpack.c.l.b16 %v631
        %v2953 = vunpack.c.h.b16 %v631
        %v2954 = vunpack.c.l.b16 %v632
        %v2955 = vunpack.c.h.b16 %v632
        %v2956 = vunpack.c.l.b16 %v633
        %v2957 = vunpack.c.h.b16 %v633
        %v2958 = vunpack.c.l.b16 %v634
        %v2959 = vunpack.c.h.b16 %v634
        %v2960 = vunpack.c.l.b16 %v635
        %v2961 = vunpack.c.h.b16 %v635
        %v2962 = vunpack.c.l.b16 %v636
        %v2963 = vunpack.c.h.b16 %v636
        %v2964 = vunpack.c.l.b16 %v637
        %v2965 = vunpack.c.h.b16 %v637
        %v2966 = vunpack.c.l.b16 %v638
        %v2967 = vunpack.c.h.b16 %v638
        %v2968 = vunpack.c.l.b16 %v639
        %v2969 = vunpack.c.h.b16 %v639
        %v2970 = vunpack.c.l.b16 %v640
        %v2971 = vunpack.c.h.b16 %v640
        %v2972 = vunpack.c.l.b16 %v641
        %v2973 = vunpack.c.h.b16 %v641
        %v2974 = vunpack.c.l.b16 %v642
        %v2975 = vunpack.c.h.b16 %v642
        %v2976 = vunpack.c.l.b16 %v643
        %v2977 = vunpack.c.h.b16 %v643
        %v2978 = vunpack.c.l.b16 %v644
        %v2979 = vunpack.c.h.b16 %v644
        %v2980 = vunpack.c.l.b16 %v645
        %v2981 = vunpack.c.h.b16 %v645
        %v2982 = vunpack.c.l.b16 %v646
        %v2983 = vunpack.c.h.b16 %v646
        %v2984 = vunpack.c.l.b16 %v647
        %v2985 = vunpack.c.h.b16 %v647
        %v2986 = vunpack.c.l.b16 %v648
        %v2987 = vunpack.c.h.b16 %v648
        %v2988 = vunpack.c.l.b16 %v649
        %v2989 = vunpack.c.h.b16 %v649
        %v2990 = vunpack.c.l.b16 %v650
        %v2991 = vunpack.c.h.b16 %v650
        %v2992 = vunpack.c.l.b16 %v651
        %v2993 = vunpack.c.h.b16 %v651
        %v2994 = vunpack.c.l.b16 %v652
        %v2995 = vunpack.c.h.b16 %v652
        %v2996 = vunpack.c.l.b16 %v653
        %v2997 = vunpack.c.h.b16 %v653
        %v2998 = vunpack.c.l.b16 %v654
        %v2999 = vunpack.c.h.b16 %v654
        %v3000 = vunpack.c.l.b16 %v655
        %v3001 = vunpack.c.h.b16 %v655
        %v3002 = vunpack.c.l.b16 %v656
        %v3003 = vunpack.c.h.b16 %v656
        %v3004 = vunpack.c.l.b16 %v657
        %v3005 = vunpack.c.h.b16 %v657
        %v3006 = vunpack.c.l.b16 %v658
        %v3007 = vunpack.c.h.b16 %v658
        %v3008 = vunpack.c.l.b16 %v659
        %v3009 = vunpack.c.h.b16 %v659
        %v3010 = vunpack.c.l.b16 %v660
        %v3011 = vunpack.c.h.b16 %v660
        %v3012 = vunpack.c.l.b16 %v661
        %v3013 = vunpack.c.h.b16 %v661
        %v3014 = vunpack.c.l.b16 %v662
        %v3015 = vunpack.c.h.b16 %v662
        %v3016 = vunpack.c.l.b16 %v663
        %v3017 = vunpack.c.h.b16 %v663
        %v3018 = vunpack.c.l.b16 %v664
        %v3019 = vunpack.c.h.b16 %v664
        %v3020 = vunpack.c.l.b16 %v665
        %v3021 = vunpack.c.h.b16 %v665
        %v3022 = vunpack.c.l.b16 %v666
        %v3023 = vunpack.c.h.b16 %v666
        %v3024 = vunpack.c.l.b16 %v667
        %v3025 = vunpack.c.h.b16 %v667
        %v3026 = vunpack.c.l.b16 %v668
        %v3027 = vunpack.c.h.b16 %v668
        %v3028 = vunpack.c.l.b16 %v669
        %v3029 = vunpack.c.h.b16 %v669
        %v3030 = vunpack.c.l.b16 %v670
        %v3031 = vunpack.c.h.b16 %v670
        %v3032 = vunpack.c.l.b16 %v671
        %v3033 = vunpack.c.h.b16 %v671
        %v3034 = vunpack.c.l.b16 %v672
        %v3035 = vunpack.c.h.b16 %v672
        %v3036 = vunpack.c.l.b16 %v673
        %v3037 = vunpack.c.h.b16 %v673
        %v3038 = vunpack.c.l.b16 %v674
        %v3039 = vunpack.c.h.b16 %v674
        %v3040 = vunpack.c.l.b16 %v675
        %v3041 = vunpack.c.h.b16 %v675
        %v3042 = vunpack.c.l.b16 %v676
        %v3043 = vunpack.c.h.b16 %v676
        %v3044 = vunpack.c.l.b16 %v677
        %v3045 = vunpack.c.h.b16 %v677
        %v3046 = vunpack.c.l.b16 %v678
        %v3047 = vunpack.c.h.b16 %v678
        %v3048 = vunpack.c.l.b16 %v679
        %v3049 = vunpack.c.h.b16 %v679
        %v3050 = vunpack.c.l.b16 %v680
        %v3051 = vunpack.c.h.b16 %v680
        %v3052 = vunpack.c.l.b16 %v681
        %v3053 = vunpack.c.h.b16 %v681
        %v3054 = vunpack.c.l.b16 %v682
        %v3055 = vunpack.c.h.b16 %v682
        %v3056 = vunpack.c.l.b16 %v683
        %v3057 = vunpack.c.h.b16 %v683
        %v3058 = vunpack.c.l.b16 %v684
        %v3059 = vunpack.c.h.b16 %v684
        %v3060 = vunpack.c.l.b16 %v685
        %v3061 = vunpack.c.h.b16 %v685
        %v3062 = vunpack.c.l.b16 %v686
        %v3063 = vunpack.c.h.b16 %v686
        %v3064 = vunpack.c.l.b16 %v687
        %v3065 = vunpack.c.h.b16 %v687
        %v3066 = vunpack.c.l.b16 %v688
        %v3067 = vunpack.c.h.b16 %v688
        %v3068 = vunpack.c.l.b16 %v689
        %v3069 = vunpack.c.h.b16 %v689
        %v3070 = vunpack.c.l.b16 %v690
        %v3071 = vunpack.c.h.b16 %v690
        %v3072 = vunpack.c.l.b16 %v691
        %v3073 = vunpack.c.h.b16 %v691
        %v3074 = vunpack.c.l.b16 %v692
        %v3075 = vunpack.c.h.b16 %v692
        %v3076 = vunpack.c.l.b16 %v693
        %v3077 = vunpack.c.h.b16 %v693
        %v3078 = vunpack.c.l.b16 %v694
        %v3079 = vunpack.c.h.b16 %v694
        %v3080 = vunpack.c.l.b16 %v695
        %v3081 = vunpack.c.h.b16 %v695
        %v3082 = vunpack.c.l.b16 %v696
        %v3083 = vunpack.c.h.b16 %v696
        %v3084 = vunpack.c.l.b16 %v697
        %v3085 = vunpack.c.h.b16 %v697
        %v3086 = vunpack.c.l.b16 %v698
        %v3087 = vunpack.c.h.b16 %v698
        %v3088 = vunpack.c.l.b16 %v699
        %v3089 = vunpack.c.h.b16 %v699
        %v3090 = vunpack.c.l.b16 %v700
        %v3091 = vunpack.c.h.b16 %v700
        %v3092 = vunpack.c.l.b16 %v701
        %v3093 = vunpack.c.h.b16 %v701
        %v3094 = vunpack.c.l.b16 %v702
        %v3095 = vunpack.c.h.b16 %v702
        %v3096 = vunpack.c.l.b16 %v703
        %v3097 = vunpack.c.h.b16 %v703
        %v3098 = vunpack.c.l.b16 %v704
        %v3099 = vunpack.c.h.b16 %v704
        %v3100 = vunpack.c.l.b16 %v705
        %v3101 = vunpack.c.h.b16 %v705
        %v3102 = vunpack.c.l.b16 %v706
        %v3103 = vunpack.c.h.b16 %v706
        %v3104 = vunpack.c.l.b16 %v707
        %v3105 = vunpack.c.h.b16 %v707
        %v3106 = vunpack.c.l.b16 %v708
        %v3107 = vunpack.c.h.b16 %v708
        %v3108 = vunpack.c.l.b16 %v709
        %v3109 = vunpack.c.h.b16 %v709
        %v3110 = vunpack.c.l.b16 %v710
        %v3111 = vunpack.c.h.b16 %v710
        %v3112 = vunpack.c.l.b16 %v711
        %v3113 = vunpack.c.h.b16 %v711
        %v3114 = vunpack.c.l.b16 %v712
        %v3115 = vunpack.c.h.b16 %v712
        %v3116 = vunpack.c.l.b16 %v713
        %v3117 = vunpack.c.h.b16 %v713
        %v3118 = vunpack.c.l.b16 %v714
        %v3119 = vunpack.c.h.b16 %v714
        %v3120 = vunpack.c.l.b16 %v715
        %v3121 = vunpack.c.h.b16 %v715
        %v3122 = vunpack.c.l.b16 %v716
        %v3123 = vunpack.c.h.b16 %v716
        %v3124 = vunpack.c.l.b16 %v717
        %v3125 = vunpack.c.h.b16 %v717
        %v3126 = vunpack.c.l.b16 %v718
        %v3127 = vunpack.c.h.b16 %v718
        %v3128 = vunpack.c.l.b16 %v719
        %v3129 = vunpack.c.h.b16 %v719
        %v3130 = vunpack.c.l.b16 %v720
        %v3131 = vunpack.c.h.b16 %v720
        %v3132 = vunpack.c.l.b16 %v721
        %v3133 = vunpack.c.h.b16 %v721
        %v3134 = vunpack.c.l.b16 %v722
        %v3135 = vunpack.c.h.b16 %v722
        %v3136 = vunpack.c.l.b16 %v723
        %v3137 = vunpack.c.h.b16 %v723
        %v3138 = vunpack.c.l.b16 %v724
        %v3139 = vunpack.c.h.b16 %v724
        %v3140 = vunpack.c.l.b16 %v725
        %v3141 = vunpack.c.h.b16 %v725
        %v3142 = vunpack.c.l.b16 %v726
        %v3143 = vunpack.c.h.b16 %v726
        %v3144 = vunpack.c.l.b16 %v727
        %v3145 = vunpack.c.h.b16 %v727
        %v3146 = vunpack.c.l.b16 %v728
        %v3147 = vunpack.c.h.b16 %v728
        %v3148 = vunpack.c.l.b16 %v729
        %v3149 = vunpack.c.h.b16 %v729
        %v3150 = vunpack.c.l.b16 %v730
        %v3151 = vunpack.c.h.b16 %v730
        %v3152 = vunpack.c.l.b16 %v731
        %v3153 = vunpack.c.h.b16 %v731
        %v3154 = vunpack.c.l.b16 %v732
        %v3155 = vunpack.c.h.b16 %v732
        %v3156 = vunpack.c.l.b16 %v733
        %v3157 = vunpack.c.h.b16 %v733
        %v3158 = vunpack.c.l.b16 %v734
        %v3159 = vunpack.c.h.b16 %v734
        %v3160 = vunpack.c.l.b16 %v735
        %v3161 = vunpack.c.h.b16 %v735
        %v3162 = vunpack.c.l.b16 %v736
        %v3163 = vunpack.c.h.b16 %v736
        %v3164 = vunpack.c.l.b16 %v737
        %v3165 = vunpack.c.h.b16 %v737
        %v3166 = vunpack.c.l.b16 %v738
        %v3167 = vunpack.c.h.b16 %v738
        %v3168 = vunpack.c.l.b16 %v739
        %v3169 = vunpack.c.h.b16 %v739
        %v3170 = vunpack.c.l.b16 %v740
        %v3171 = vunpack.c.h.b16 %v740
        %v3172 = vunpack.c.l.b16 %v741
        %v3173 = vunpack.c.h.b16 %v741
        %v3174 = vunpack.c.l.b16 %v742
        %v3175 = vunpack.c.h.b16 %v742
        %v3176 = vunpack.c.l.b16 %v743
        %v3177 = vunpack.c.h.b16 %v743
        %v3178 = vunpack.c.l.b16 %v744
        %v3179 = vunpack.c.h.b16 %v744
        %v3180 = vunpack.c.l.b16 %v745
        %v3181 = vunpack.c.h.b16 %v745
        %v3182 = vunpack.c.l.b16 %v746
        %v3183 = vunpack.c.h.b16 %v746
        %v3184 = vunpack.c.l.b16 %v747
        %v3185 = vunpack.c.h.b16 %v747
        %v3186 = vunpack.c.l.b16 %v748
        %v3187 = vunpack.c.h.b16 %v748
        %v3188 = vunpack.c.l.b16 %v749
        %v3189 = vunpack.c.h.b16 %v749
        %v3190 = vunpack.c.l.b16 %v750
        %v3191 = vunpack.c.h.b16 %v750
        %v3192 = vunpack.c.l.b16 %v751
        %v3193 = vunpack.c.h.b16 %v751
        %v3194 = vunpack.c.l.b16 %v752
        %v3195 = vunpack.c.h.b16 %v752
        %v3196 = vunpack.c.l.b16 %v753
        %v3197 = vunpack.c.h.b16 %v753
        %v3198 = vunpack.c.l.b16 %v754
        %v3199 = vunpack.c.h.b16 %v754
        %v3200 = vunpack.c.l.b16 %v755
        %v3201 = vunpack.c.h.b16 %v755
        %v3202 = vunpack.c.l.b16 %v756
        %v3203 = vunpack.c.h.b16 %v756
        %v3204 = vunpack.c.l.b16 %v757
        %v3205 = vunpack.c.h.b16 %v757
        %v3206 = vunpack.c.l.b16 %v758
        %v3207 = vunpack.c.h.b16 %v758
        %v3208 = vunpack.c.l.b16 %v759
        %v3209 = vunpack.c.h.b16 %v759
        %v3210 = vunpack.c.l.b16 %v760
        %v3211 = vunpack.c.h.b16 %v760
        %v3212 = vunpack.c.l.b16 %v761
        %v3213 = vunpack.c.h.b16 %v761
        %v3214 = vunpack.c.l.b16 %v762
        %v3215 = vunpack.c.h.b16 %v762
        %v3216 = vunpack.c.l.b16 %v763
        %v3217 = vunpack.c.h.b16 %v763
        %v3218 = vunpack.c.l.b16 %v764
        %v3219 = vunpack.c.h.b16 %v764
        %v3220 = vunpack.c.l.b16 %v765
        %v3221 = vunpack.c.h.b16 %v765
        %v3222 = vunpack.c.l.b16 %v766
        %v3223 = vunpack.c.h.b16 %v766
        %v3224 = vunpack.c.l.b16 %v767
        %v3225 = vunpack.c.h.b16 %v767
        %v3226 = vunpack.c.l.b16 %v768
        %v3227 = vunpack.c.h.b16 %v768
        %v3228 = vunpack.c.l.b16 %v769
        %v3229 = vunpack.c.h.b16 %v769
        %v3230 = vunpack.c.l.b16 %v770
        %v3231 = vunpack.c.h.b16 %v770
        %v3232 = vunpack.c.l.b16 %v771
        %v3233 = vunpack.c.h.b16 %v771
        %v3234 = vunpack.c.l.b16 %v772
        %v3235 = vunpack.c.h.b16 %v772
        %v3236 = vunpack.c.l.b16 %v773
        %v3237 = vunpack.c.h.b16 %v773
        %v3238 = vunpack.c.l.b16 %v774
        %v3239 = vunpack.c.h.b16 %v774
        %v3240 = vunpack.c.l.b16 %v775
        %v3241 = vunpack.c.h.b16 %v775
        %v3242 = vunpack.c.l.b16 %v776
        %v3243 = vunpack.c.h.b16 %v776
        %v3244 = vunpack.c.l.b16 %v777
        %v3245 = vunpack.c.h.b16 %v777
        %v3246 = vunpack.c.l.b16 %v778
        %v3247 = vunpack.c.h.b16 %v778
        %v3248 = vunpack.c.l.b16 %v779
        %v3249 = vunpack.c.h.b16 %v779
        %v3250 = vunpack.c.l.b16 %v780
        %v3251 = vunpack.c.h.b16 %v780
        %v3252 = vunpack.c.l.b16 %v781
        %v3253 = vunpack.c.h.b16 %v781
        %v3254 = vunpack.c.l.b16 %v782
        %v3255 = vunpack.c.h.b16 %v782
        %v3256 = vunpack.c.l.b16 %v783
        %v3257 = vunpack.c.h.b16 %v783
        %v3258 = vunpack.c.l.b16 %v784
        %v3259 = vunpack.c.h.b16 %v784
        %v3260 = vunpack.c.l.b16 %v785
        %v3261 = vunpack.c.h.b16 %v785
        %v3262 = vunpack.c.l.b16 %v786
        %v3263 = vunpack.c.h.b16 %v786
        %v3264 = vunpack.c.l.b16 %v787
        %v3265 = vunpack.c.h.b16 %v787
        %v3266 = vunpack.c.l.b16 %v788
        %v3267 = vunpack.c.h.b16 %v788
        %v3268 = vunpack.c.l.b16 %v789
        %v3269 = vunpack.c.h.b16 %v789
        %v3270 = vunpack.c.l.b16 %v790
        %v3271 = vunpack.c.h.b16 %v790
        %v3272 = vunpack.c.l.b16 %v791
        %v3273 = vunpack.c.h.b16 %v791
        %v3274 = vunpack.c.l.b16 %v792
        %v3275 = vunpack.c.h.b16 %v792
        %v3276 = vunpack.c.l.b16 %v793
        %v3277 = vunpack.c.h.b16 %v793
        %v3278 = vunpack.c.l.b16 %v794
        %v3279 = vunpack.c.h.b16 %v794
        %v3280 = vunpack.c.l.b16 %v795
        %v3281 = vunpack.c.h.b16 %v795
        %v3282 = vunpack.c.l.b16 %v796
        %v3283 = vunpack.c.h.b16 %v796
        %v3284 = vunpack.c.l.b16 %v797
        %v3285 = vunpack.c.h.b16 %v797
        %v3286 = vunpack.c.l.b16 %v798
        %v3287 = vunpack.c.h.b16 %v798
        %v3288 = vunpack.c.l.b16 %v799
        %v3289 = vunpack.c.h.b16 %v799
        %v3290 = vunpack.c.l.b16 %v800
        %v3291 = vunpack.c.h.b16 %v800
        %v3292 = vunpack.c.l.b16 %v801
        %v3293 = vunpack.c.h.b16 %v801
        %v3294 = vunpack.c.l.b16 %v802
        %v3295 = vunpack.c.h.b16 %v802
        %v3296 = vunpack.c.l.b16 %v803
        %v3297 = vunpack.c.h.b16 %v803
        %v3298 = vunpack.c.l.b16 %v804
        %v3299 = vunpack.c.h.b16 %v804
        %v3300 = vunpack.c.l.b16 %v805
        %v3301 = vunpack.c.h.b16 %v805
        %v3302 = vunpack.c.l.b16 %v806
        %v3303 = vunpack.c.h.b16 %v806
        %v3304 = vunpack.c.l.b16 %v807
        %v3305 = vunpack.c.h.b16 %v807
        %v3306 = vunpack.c.l.b16 %v808
        %v3307 = vunpack.c.h.b16 %v808
        %v3308 = vunpack.c.l.b16 %v809
        %v3309 = vunpack.c.h.b16 %v809
        %v3310 = vunpack.c.l.b16 %v810
        %v3311 = vunpack.c.h.b16 %v810
        %v3312 = vunpack.c.l.b16 %v811
        %v3313 = vunpack.c.h.b16 %v811
        %v3314 = vunpack.c.l.b16 %v812
        %v3315 = vunpack.c.h.b16 %v812
        %v3316 = vunpack.c.l.b16 %v813
        %v3317 = vunpack.c.h.b16 %v813
        %v3318 = vunpack.c.l.b16 %v814
        %v3319 = vunpack.c.h.b16 %v814
        %v3320 = vunpack.c.l.b16 %v815
        %v3321 = vunpack.c.h.b16 %v815
        %v3322 = vunpack.c.l.b16 %v816
        %v3323 = vunpack.c.h.b16 %v816
        %v3324 = vunpack.c.l.b16 %v817
        %v3325 = vunpack.c.h.b16 %v817
        %v3326 = vunpack.c.l.b16 %v818
        %v3327 = vunpack.c.h.b16 %v818
        %v3328 = vunpack.c.l.b16 %v819
        %v3329 = vunpack.c.h.b16 %v819
        %v3330 = vunpack.c.l.b16 %v820
        %v3331 = vunpack.c.h.b16 %v820
        %v3332 = vunpack.c.l.b16 %v821
        %v3333 = vunpack.c.h.b16 %v821
        %v3334 = vunpack.c.l.b16 %v822
        %v3335 = vunpack.c.h.b16 %v822
        %v3336 = vunpack.c.l.b16 %v823
        %v3337 = vunpack.c.h.b16 %v823
        %v3338 = vunpack.c.l.b16 %v824
        %v3339 = vunpack.c.h.b16 %v824
        %v3340 = vunpack.c.l.b16 %v825
        %v3341 = vunpack.c.h.b16 %v825
        %v3342 = vunpack.c.l.b16 %v826
        %v3343 = vunpack.c.h.b16 %v826
        %v3344 = vunpack.c.l.b16 %v827
        %v3345 = vunpack.c.h.b16 %v827
        %v3346 = vunpack.c.l.b16 %v828
        %v3347 = vunpack.c.h.b16 %v828
        %v3348 = vunpack.c.l.b16 %v829
        %v3349 = vunpack.c.h.b16 %v829
        %v3350 = vunpack.c.l.b16 %v830
        %v3351 = vunpack.c.h.b16 %v830
        %v3352 = vunpack.c.l.b16 %v831
        %v3353 = vunpack.c.h.b16 %v831
        %v3354 = vunpack.c.l.b16 %v832
        %v3355 = vunpack.c.h.b16 %v832
        %v3356 = vunpack.c.l.b16 %v833
        %v3357 = vunpack.c.h.b16 %v833
        %v3358 = vunpack.c.l.b16 %v834
        %v3359 = vunpack.c.h.b16 %v834
        %v3360 = vunpack.c.l.b16 %v835
        %v3361 = vunpack.c.h.b16 %v835
        %v3362 = vunpack.c.l.b16 %v836
        %v3363 = vunpack.c.h.b16 %v836
        %v3364 = vunpack.c.l.b16 %v837
        %v3365 = vunpack.c.h.b16 %v837
        %v3366 = vunpack.c.l.b16 %v838
        %v3367 = vunpack.c.h.b16 %v838
        %v3368 = vunpack.c.l.b16 %v839
        %v3369 = vunpack.c.h.b16 %v839
        %v3370 = vunpack.c.l.b16 %v840
        %v3371 = vunpack.c.h.b16 %v840
        %v3372 = vunpack.c.l.b16 %v841
        %v3373 = vunpack.c.h.b16 %v841
        %v3374 = vunpack.c.l.b16 %v842
        %v3375 = vunpack.c.h.b16 %v842
        %v3376 = vunpack.c.l.b16 %v843
        %v3377 = vunpack.c.h.b16 %v843
        %v3378 = vunpack.c.l.b16 %v844
        %v3379 = vunpack.c.h.b16 %v844
        %v3380 = vunpack.c.l.b16 %v845
        %v3381 = vunpack.c.h.b16 %v845
        %v3382 = vunpack.c.l.b16 %v846
        %v3383 = vunpack.c.h.b16 %v846
        %v3384 = vunpack.c.l.b16 %v847
        %v3385 = vunpack.c.h.b16 %v847
        %v3386 = vunpack.c.l.b16 %v848
        %v3387 = vunpack.c.h.b16 %v848
        %v3388 = vunpack.c.l.b16 %v849
        %v3389 = vunpack.c.h.b16 %v849
        %v3390 = vunpack.c.l.b16 %v850
        %v3391 = vunpack.c.h.b16 %v850
        %v3392 = vunpack.c.l.b16 %v851
        %v3393 = vunpack.c.h.b16 %v851
        %v3394 = vunpack.c.l.b16 %v852
        %v3395 = vunpack.c.h.b16 %v852
        %v3396 = vunpack.c.l.b16 %v853
        %v3397 = vunpack.c.h.b16 %v853
        %v3398 = vunpack.c.l.b16 %v854
        %v3399 = vunpack.c.h.b16 %v854
        %v3400 = vunpack.c.l.b16 %v855
        %v3401 = vunpack.c.h.b16 %v855
        %v3402 = vunpack.c.l.b16 %v856
        %v3403 = vunpack.c.h.b16 %v856
        %v3404 = vunpack.c.l.b16 %v857
        %v3405 = vunpack.c.h.b16 %v857
        %v3406 = vunpack.c.l.b16 %v858
        %v3407 = vunpack.c.h.b16 %v858
        %v3408 = vunpack.c.l.b16 %v859
        %v3409 = vunpack.c.h.b16 %v859
        %v3410 = vunpack.c.l.b16 %v860
        %v3411 = vunpack.c.h.b16 %v860
        %v3412 = vunpack.c.l.b16 %v861
        %v3413 = vunpack.c.h.b16 %v861
        %v3414 = vunpack.c.l.b16 %v862
        %v3415 = vunpack.c.h.b16 %v862
        %v3416 = vunpack.c.l.b16 %v863
        %v3417 = vunpack.c.h.b16 %v863
        %v3418 = vunpack.c.l.b16 %v864
        %v3419 = vunpack.c.h.b16 %v864
        %v3420 = vunpack.c.l.b16 %v865
        %v3421 = vunpack.c.h.b16 %v865
        %v3422 = vunpack.c.l.b16 %v866
        %v3423 = vunpack.c.h.b16 %v866
        %v3424 = vunpack.c.l.b16 %v867
        %v3425 = vunpack.c.h.b16 %v867
        %v3426 = vunpack.c.l.b16 %v868
        %v3427 = vunpack.c.h.b16 %v868
        %v3428 = vunpack.c.l.b16 %v869
        %v3429 = vunpack.c.h.b16 %v869
        %v3430 = vunpack.c.l.b16 %v870
        %v3431 = vunpack.c.h.b16 %v870
        %v3432 = vunpack.c.l.b16 %v871
        %v3433 = vunpack.c.h.b16 %v871
        %v3434 = vunpack.c.l.b16 %v872
        %v3435 = vunpack.c.h.b16 %v872
        %v3436 = vunpack.c.l.b16 %v873
        %v3437 = vunpack.c.h.b16 %v873
        %v3438 = vunpack.c.l.b16 %v874
        %v3439 = vunpack.c.h.b16 %v874
        %v3440 = vunpack.c.l.b16 %v875
        %v3441 = vunpack.c.h.b16 %v875
        %v3442 = vunpack.c.l.b16 %v876
        %v3443 = vunpack.c.h.b16 %v876
        %v3444 = vunpack.c.l.b16 %v877
        %v3445 = vunpack.c.h.b16 %v877
        %v3446 = vunpack.c.l.b16 %v878
        %v3447 = vunpack.c.h.b16 %v878
        %v3448 = vunpack.c.l.b16 %v879
        %v3449 = vunpack.c.h.b16 %v879
        %v3450 = vunpack.c.l.b16 %v880
        %v3451 = vunpack.c.h.b16 %v880
        %v3452 = vunpack.c.l.b16 %v881
        %v3453 = vunpack.c.h.b16 %v881
        %v3454 = vunpack.c.l.b16 %v882
        %v3455 = vunpack.c.h.b16 %v882
        %v3456 = vunpack.c.l.b16 %v883
        %v3457 = vunpack.c.h.b16 %v883
        %v3458 = vunpack.c.l.b16 %v884
        %v3459 = vunpack.c.h.b16 %v884
        %v3460 = vunpack.c.l.b16 %v885
        %v3461 = vunpack.c.h.b16 %v885
        %v3462 = vunpack.c.l.b16 %v886
        %v3463 = vunpack.c.h.b16 %v886
        %v3464 = vunpack.c.l.b16 %v887
        %v3465 = vunpack.c.h.b16 %v887
        %v3466 = vunpack.c.l.b16 %v888
        %v3467 = vunpack.c.h.b16 %v888
        %v3468 = vunpack.c.l.b16 %v889
        %v3469 = vunpack.c.h.b16 %v889
        %v3470 = vunpack.c.l.b16 %v890
        %v3471 = vunpack.c.h.b16 %v890
        %v3472 = vunpack.c.l.b16 %v891
        %v3473 = vunpack.c.h.b16 %v891
        %v3474 = vunpack.c.l.b16 %v892
        %v3475 = vunpack.c.h.b16 %v892
        %v3476 = vunpack.c.l.b16 %v893
        %v3477 = vunpack.c.h.b16 %v893
        %v3478 = vunpack.c.l.b16 %v894
        %v3479 = vunpack.c.h.b16 %v894
        %v3480 = vunpack.c.l.b16 %v895
        %v3481 = vunpack.c.h.b16 %v895
        %v3482 = vunpack.c.l.b16 %v896
        %v3483 = vunpack.c.h.b16 %v896
        %v3484 = vunpack.c.l.b16 %v897
        %v3485 = vunpack.c.h.b16 %v897
        %v3486 = vunpack.c.l.b16 %v898
        %v3487 = vunpack.c.h.b16 %v898
        %v3488 = vunpack.c.l.b16 %v899
        %v3489 = vunpack.c.h.b16 %v899
        %v3490 = vunpack.c.l.b16 %v900
        %v3491 = vunpack.c.h.b16 %v900
        %v3492 = vunpack.c.l.b16 %v901
        %v3493 = vunpack.c.h.b16 %v901
        %v3494 = vunpack.c.l.b16 %v902
        %v3495 = vunpack.c.h.b16 %v902
        %v3496 = vunpack.c.l.b16 %v903
        %v3497 = vunpack.c.h.b16 %v903
        %v3498 = vunpack.c.l.b16 %v904
        %v3499 = vunpack.c.h.b16 %v904
        %v3500 = vunpack.c.l.b16 %v905
        %v3501 = vunpack.c.h.b16 %v905
        %v3502 = vunpack.c.l.b16 %v906
        %v3503 = vunpack.c.h.b16 %v906
        %v3504 = vunpack.c.l.b16 %v907
        %v3505 = vunpack.c.h.b16 %v907
        %v3506 = vunpack.c.l.b16 %v908
        %v3507 = vunpack.c.h.b16 %v908
        %v3508 = vunpack.c.l.b16 %v909
        %v3509 = vunpack.c.h.b16 %v909
        %v3510 = vunpack.c.l.b16 %v910
        %v3511 = vunpack.c.h.b16 %v910
        %v3512 = vunpack.c.l.b16 %v911
        %v3513 = vunpack.c.h.b16 %v911
        %v3514 = vunpack.c.l.b16 %v912
        %v3515 = vunpack.c.h.b16 %v912
        %v3516 = vunpack.c.l.b16 %v913
        %v3517 = vunpack.c.h.b16 %v913
        %v3518 = vunpack.c.l.b16 %v914
        %v3519 = vunpack.c.h.b16 %v914
        %v3520 = vunpack.c.l.b16 %v915
        %v3521 = vunpack.c.h.b16 %v915
        %v3522 = vunpack.c.l.b16 %v916
        %v3523 = vunpack.c.h.b16 %v916
        %v3524 = vunpack.c.l.b16 %v917
        %v3525 = vunpack.c.h.b16 %v917
        %v3526 = vunpack.c.l.b16 %v918
        %v3527 = vunpack.c.h.b16 %v918
        %v3528 = vunpack.c.l.b16 %v919
        %v3529 = vunpack.c.h.b16 %v919
        %v3530 = vunpack.c.l.b16 %v920
        %v3531 = vunpack.c.h.b16 %v920
        %v3532 = vunpack.c.l.b16 %v921
        %v3533 = vunpack.c.h.b16 %v921
        %v3534 = vunpack.c.l.b16 %v922
        %v3535 = vunpack.c.h.b16 %v922
        %v3536 = vunpack.c.l.b16 %v923
        %v3537 = vunpack.c.h.b16 %v923
        %v3538 = vunpack.c.l.b16 %v924
        %v3539 = vunpack.c.h.b16 %v924
        %v3540 = vunpack.c.l.b16 %v925
        %v3541 = vunpack.c.h.b16 %v925
        %v3542 = vunpack.c.l.b16 %v926
        %v3543 = vunpack.c.h.b16 %v926
        %v3544 = vunpack.c.l.b16 %v927
        %v3545 = vunpack.c.h.b16 %v927
        %v3546 = vunpack.c.l.b16 %v928
        %v3547 = vunpack.c.h.b16 %v928
        %v3548 = vunpack.c.l.b16 %v929
        %v3549 = vunpack.c.h.b16 %v929
        %v3550 = vunpack.c.l.b16 %v930
        %v3551 = vunpack.c.h.b16 %v930
        %v3552 = vunpack.c.l.b16 %v931
        %v3553 = vunpack.c.h.b16 %v931
        %v3554 = vunpack.c.l.b16 %v932
        %v3555 = vunpack.c.h.b16 %v932
        %v3556 = vunpack.c.l.b16 %v933
        %v3557 = vunpack.c.h.b16 %v933
        %v3558 = vunpack.c.l.b16 %v934
        %v3559 = vunpack.c.h.b16 %v934
        %v3560 = vunpack.c.l.b16 %v935
        %v3561 = vunpack.c.h.b16 %v935
        %v3562 = vunpack.c.l.b16 %v936
        %v3563 = vunpack.c.h.b16 %v936
        %v3564 = vunpack.c.l.b16 %v937
        %v3565 = vunpack.c.h.b16 %v937
        %v3566 = vunpack.c.l.b16 %v938
        %v3567 = vunpack.c.h.b16 %v938
        %v3568 = vunpack.c.l.b16 %v939
        %v3569 = vunpack.c.h.b16 %v939
        %v3570 = vunpack.c.l.b16 %v940
        %v3571 = vunpack.c.h.b16 %v940
        %v3572 = vunpack.c.l.b16 %v941
        %v3573 = vunpack.c.h.b16 %v941
        %v3574 = vunpack.c.l.b16 %v942
        %v3575 = vunpack.c.h.b16 %v942
        %v3576 = vunpack.c.l.b16 %v943
        %v3577 = vunpack.c.h.b16 %v943
        %v3578 = vunpack.c.l.b16 %v944
        %v3579 = vunpack.c.h.b16 %v944
        %v3580 = vunpack.c.l.b16 %v945
        %v3581 = vunpack.c.h.b16 %v945
        %v3582 = vunpack.c.l.b16 %v946
        %v3583 = vunpack.c.h.b16 %v946
        %v3584 = vunpack.c.l.b16 %v947
        %v3585 = vunpack.c.h.b16 %v947
        %v3586 = vunpack.c.l.b16 %v948
        %v3587 = vunpack.c.h.b16 %v948
        %v3588 = vunpack.c.l.b16 %v949
        %v3589 = vunpack.c.h.b16 %v949
        %v3590 = vunpack.c.l.b16 %v950
        %v3591 = vunpack.c.h.b16 %v950
        %v3592 = vunpack.c.l.b16 %v951
        %v3593 = vunpack.c.h.b16 %v951
        %v3594 = vunpack.c.l.b16 %v952
        %v3595 = vunpack.c.h.b16 %v952
        %v3596 = vunpack.c.l.b16 %v953
        %v3597 = vunpack.c.h.b16 %v953
        %v3598 = vunpack.c.l.b16 %v954
        %v3599 = vunpack.c.h.b16 %v954
        %v3600 = vunpack.c.l.b16 %v955
        %v3601 = vunpack.c.h.b16 %v955
        %v3602 = vunpack.c.l.b16 %v956
        %v3603 = vunpack.c.h.b16 %v956
        %v3604 = vunpack.c.l.b16 %v957
        %v3605 = vunpack.c.h.b16 %v957
        %v3606 = vunpack.c.l.b16 %v958
        %v3607 = vunpack.c.h.b16 %v958
        %v3608 = vunpack.c.l.b16 %v959
        %v3609 = vunpack.c.h.b16 %v959
        %v3610 = vunpack.c.l.b16 %v960
        %v3611 = vunpack.c.h.b16 %v960
        %v3612 = vunpack.c.l.b16 %v961
        %v3613 = vunpack.c.h.b16 %v961
        %v3614 = vunpack.c.l.b16 %v962
        %v3615 = vunpack.c.h.b16 %v962
        %v3616 = vunpack.c.l.b16 %v963
        %v3617 = vunpack.c.h.b16 %v963
        %v3618 = vunpack.c.l.b16 %v964
        %v3619 = vunpack.c.h.b16 %v964
        %v3620 = vunpack.c.l.b16 %v965
        %v3621 = vunpack.c.h.b16 %v965
        %v3622 = vunpack.c.l.b16 %v966
        %v3623 = vunpack.c.h.b16 %v966
        %v3624 = vunpack.c.l.b16 %v967
        %v3625 = vunpack.c.h.b16 %v967
        %v3626 = vunpack.c.l.b16 %v968
        %v3627 = vunpack.c.h.b16 %v968
        %v3628 = vunpack.c.l.b16 %v969
        %v3629 = vunpack.c.h.b16 %v969
        %v3630 = vunpack.c.l.b16 %v970
        %v3631 = vunpack.c.h.b16 %v970
        %v3632 = vunpack.c.l.b16 %v971
        %v3633 = vunpack.c.h.b16 %v971
        %v3634 = vunpack.c.l.b16 %v972
        %v3635 = vunpack.c.h.b16 %v972
        %v3636 = vunpack.c.l.b16 %v973
        %v3637 = vunpack.c.h.b16 %v973
        %v3638 = vunpack.c.l.b16 %v974
        %v3639 = vunpack.c.h.b16 %v974
        %v3640 = vunpack.c.l.b16 %v975
        %v3641 = vunpack.c.h.b16 %v975
        %v3642 = vunpack.c.l.b16 %v976
        %v3643 = vunpack.c.h.b16 %v976
        %v3644 = vunpack.c.l.b16 %v977
        %v3645 = vunpack.c.h.b16 %v977
        %v3646 = vunpack.c.l.b16 %v978
        %v3647 = vunpack.c.h.b16 %v978
        %v3648 = vunpack.c.l.b16 %v979
        %v3649 = vunpack.c.h.b16 %v979
        %v3650 = vunpack.c.l.b16 %v980
        %v3651 = vunpack.c.h.b16 %v980
        %v3652 = vunpack.c.l.b16 %v981
        %v3653 = vunpack.c.h.b16 %v981
        %v3654 = vunpack.c.l.b16 %v982
        %v3655 = vunpack.c.h.b16 %v982
        %v3656 = vunpack.c.l.b16 %v983
        %v3657 = vunpack.c.h.b16 %v983
        %v3658 = vunpack.c.l.b16 %v984
        %v3659 = vunpack.c.h.b16 %v984
        %v3660 = vunpack.c.l.b16 %v985
        %v3661 = vunpack.c.h.b16 %v985
        %v3662 = vunpack.c.l.b16 %v986
        %v3663 = vunpack.c.h.b16 %v986
        %v3664 = vunpack.c.l.b16 %v987
        %v3665 = vunpack.c.h.b16 %v987
        %v3666 = vunpack.c.l.b16 %v988
        %v3667 = vunpack.c.h.b16 %v988
        %v3668 = vunpack.c.l.b16 %v989
        %v3669 = vunpack.c.h.b16 %v989
        %v3670 = vunpack.c.l.b16 %v990
        %v3671 = vunpack.c.h.b16 %v990
        %v3672 = vunpack.c.l.b16 %v991
        %v3673 = vunpack.c.h.b16 %v991
        %v3674 = vunpack.c.l.b16 %v992
        %v3675 = vunpack.c.h.b16 %v992
        %v3676 = vunpack.c.l.b16 %v993
        %v3677 = vunpack.c.h.b16 %v993
        %v3678 = vunpack.c.l.b16 %v994
        %v3679 = vunpack.c.h.b16 %v994
        %v3680 = vunpack.c.l.b16 %v995
        %v3681 = vunpack.c.h.b16 %v995
        %v3682 = vunpack.c.l.b16 %v996
        %v3683 = vunpack.c.h.b16 %v996
        %v3684 = vunpack.c.l.b16 %v997
        %v3685 = vunpack.c.h.b16 %v997
        %v3686 = vunpack.c.l.b16 %v998
        %v3687 = vunpack.c.h.b16 %v998
        %v3688 = vunpack.c.l.b16 %v999
        %v3689 = vunpack.c.h.b16 %v999
        %v3690 = vunpack.c.l.b16 %v1000
        %v3691 = vunpack.c.h.b16 %v1000
        %v3692 = vunpack.c.l.b16 %v1001
        %v3693 = vunpack.c.h.b16 %v1001
        %v3694 = vunpack.c.l.b16 %v1002
        %v3695 = vunpack.c.h.b16 %v1002
        %v3696 = vunpack.c.l.b16 %v1003
        %v3697 = vunpack.c.h.b16 %v1003
        %v3698 = vunpack.c.l.b16 %v1004
        %v3699 = vunpack.c.h.b16 %v1004
        %v3700 = vunpack.c.l.b16 %v1005
        %v3701 = vunpack.c.h.b16 %v1005
        %v3702 = vunpack.c.l.b16 %v1006
        %v3703 = vunpack.c.h.b16 %v1006
        %v3704 = vunpack.c.l.b16 %v1007
        %v3705 = vunpack.c.h.b16 %v1007
        %v3706 = vunpack.c.l.b16 %v1008
        %v3707 = vunpack.c.h.b16 %v1008
        %v3708 = vunpack.c.l.b16 %v1009
        %v3709 = vunpack.c.h.b16 %v1009
        %v3710 = vunpack.c.l.b16 %v1010
        %v3711 = vunpack.c.h.b16 %v1010
        %v3712 = vunpack.c.l.b16 %v1011
        %v3713 = vunpack.c.h.b16 %v1011
        %v3714 = vunpack.c.l.b16 %v1012
        %v3715 = vunpack.c.h.b16 %v1012
        %v3716 = vunpack.c.l.b16 %v1013
        %v3717 = vunpack.c.h.b16 %v1013
        %v3718 = vunpack.c.l.b16 %v1014
        %v3719 = vunpack.c.h.b16 %v1014
        %v3720 = vunpack.c.l.b16 %v1015
        %v3721 = vunpack.c.h.b16 %v1015
        %v3722 = vunpack.c.l.b16 %v1016
        %v3723 = vunpack.c.h.b16 %v1016
        %v3724 = vunpack.c.l.b16 %v1017
        %v3725 = vunpack.c.h.b16 %v1017
        %v3726 = vunpack.c.l.b16 %v1018
        %v3727 = vunpack.c.h.b16 %v1018
        %v3728 = vunpack.c.l.b16 %v1019
        %v3729 = vunpack.c.h.b16 %v1019
        %v3730 = vunpack.c.l.b16 %v1020
        %v3731 = vunpack.c.h.b16 %v1020
        %v3732 = vunpack.c.l.b16 %v1021
        %v3733 = vunpack.c.h.b16 %v1021
        %v3734 = vunpack.c.l.b16 %v1022
        %v3735 = vunpack.c.h.b16 %v1022
        %v3736 = vunpack.c.l.b16 %v1023
        %v3737 = vunpack.c.h.b16 %v1023
        %v3738 = vunpack.c.l.b16 %v1024
        %v3739 = vunpack.c.h.b16 %v1024
        %v3740 = vunpack.c.l.b16 %v1025
        %v3741 = vunpack.c.h.b16 %v1025
        %v3742 = vunpack.c.l.b16 %v1026
        %v3743 = vunpack.c.h.b16 %v1026
        %v3744 = vunpack.c.l.b16 %v1027
        %v3745 = vunpack.c.h.b16 %v1027
        %v3746 = vunpack.c.l.b16 %v1028
        %v3747 = vunpack.c.h.b16 %v1028
        %v3748 = vunpack.c.l.b16 %v1029
        %v3749 = vunpack.c.h.b16 %v1029
        %v3750 = vunpack.c.l.b16 %v1030
        %v3751 = vunpack.c.h.b16 %v1030
        %v3752 = vunpack.c.l.b16 %v1031
        %v3753 = vunpack.c.h.b16 %v1031
        %v3754 = vunpack.c.l.b16 %v1032
        %v3755 = vunpack.c.h.b16 %v1032
        %v3756 = vunpack.c.l.b16 %v1033
        %v3757 = vunpack.c.h.b16 %v1033
        %v3758 = vunpack.c.l.b16 %v1034
        %v3759 = vunpack.c.h.b16 %v1034
        %v3760 = vunpack.c.l.b16 %v1035
        %v3761 = vunpack.c.h.b16 %v1035
        %v3762 = vunpack.c.l.b16 %v1036
        %v3763 = vunpack.c.h.b16 %v1036
        %v3764 = vunpack.c.l.b16 %v1037
        %v3765 = vunpack.c.h.b16 %v1037
        %v3766 = vunpack.c.l.b16 %v1038
        %v3767 = vunpack.c.h.b16 %v1038
        %v3768 = vunpack.c.l.b16 %v1039
        %v3769 = vunpack.c.h.b16 %v1039
        %v3770 = vunpack.c.l.b16 %v1040
        %v3771 = vunpack.c.h.b16 %v1040
        %v3772 = vunpack.c.l.b16 %v1041
        %v3773 = vunpack.c.h.b16 %v1041
        %v3774 = vunpack.c.l.b16 %v1042
        %v3775 = vunpack.c.h.b16 %v1042
        %v3776 = vunpack.c.l.b16 %v1043
        %v3777 = vunpack.c.h.b16 %v1043
        %v3778 = vunpack.c.l.b16 %v1044
        %v3779 = vunpack.c.h.b16 %v1044
        %v3780 = vunpack.c.l.b16 %v1045
        %v3781 = vunpack.c.h.b16 %v1045
        %v3782 = vunpack.c.l.b16 %v1046
        %v3783 = vunpack.c.h.b16 %v1046
        %v3784 = vunpack.c.l.b16 %v1047
        %v3785 = vunpack.c.h.b16 %v1047
        %v3786 = vunpack.c.l.b16 %v1048
        %v3787 = vunpack.c.h.b16 %v1048
        %v3788 = vunpack.c.l.b16 %v1049
        %v3789 = vunpack.c.h.b16 %v1049
        %v3790 = vunpack.c.l.b16 %v1050
        %v3791 = vunpack.c.h.b16 %v1050
        %v3792 = vunpack.c.l.b16 %v1051
        %v3793 = vunpack.c.h.b16 %v1051
        %v3794 = vunpack.c.l.b16 %v1052
        %v3795 = vunpack.c.h.b16 %v1052
        %v3796 = vunpack.c.l.b16 %v1053
        %v3797 = vunpack.c.h.b16 %v1053
        %v3798 = vunpack.c.l.b16 %v1054
        %v3799 = vunpack.c.h.b16 %v1054
        %v3800 = vunpack.c.l.b16 %v1055
        %v3801 = vunpack.c.h.b16 %v1055
        %v3802 = vunpack.c.l.b16 %v1056
        %v3803 = vunpack.c.h.b16 %v1056
        %v3804 = vunpack.c.l.b16 %v1057
        %v3805 = vunpack.c.h.b16 %v1057
        %v3806 = vunpack.c.l.b16 %v1058
        %v3807 = vunpack.c.h.b16 %v1058
        %v3808 = vunpack.c.l.b16 %v1059
        %v3809 = vunpack.c.h.b16 %v1059
        %v3810 = vunpack.c.l.b16 %v1060
        %v3811 = vunpack.c.h.b16 %v1060
        %v3812 = vunpack.c.l.b16 %v1061
        %v3813 = vunpack.c.h.b16 %v1061
        %v3814 = vunpack.c.l.b16 %v1062
        %v3815 = vunpack.c.h.b16 %v1062
        %v3816 = vunpack.c.l.b16 %v1063
        %v3817 = vunpack.c.h.b16 %v1063
        %v3818 = vunpack.c.l.b16 %v1064
        %v3819 = vunpack.c.h.b16 %v1064
        %v3820 = vunpack.c.l.b16 %v1065
        %v3821 = vunpack.c.h.b16 %v1065
        %v3822 = vunpack.c.l.b16 %v1066
        %v3823 = vunpack.c.h.b16 %v1066
        %v3824 = vunpack.c.l.b16 %v1067
        %v3825 = vunpack.c.h.b16 %v1067
        %v3826 = vunpack.c.l.b16 %v1068
        %v3827 = vunpack.c.h.b16 %v1068
        %v3828 = vunpack.c.l.b16 %v1069
        %v3829 = vunpack.c.h.b16 %v1069
        %v3830 = vunpack.c.l.b16 %v1070
        %v3831 = vunpack.c.h.b16 %v1070
        %v3832 = vunpack.c.l.b16 %v1071
        %v3833 = vunpack.c.h.b16 %v1071
        %v3834 = vunpack.c.l.b16 %v1072
        %v3835 = vunpack.c.h.b16 %v1072
        %v3836 = vunpack.c.l.b16 %v1073
        %v3837 = vunpack.c.h.b16 %v1073
        %v3838 = vunpack.c.l.b16 %v1074
        %v3839 = vunpack.c.h.b16 %v1074
        %v3840 = vunpack.c.l.b16 %v1075
        %v3841 = vunpack.c.h.b16 %v1075
        %v3842 = vunpack.c.l.b16 %v1076
        %v3843 = vunpack.c.h.b16 %v1076
        %v3844 = vunpack.c.l.b16 %v1077
        %v3845 = vunpack.c.h.b16 %v1077
        %v3846 = vunpack.c.l.b16 %v1078
        %v3847 = vunpack.c.h.b16 %v1078
        %v3848 = vunpack.c.l.b16 %v1079
        %v3849 = vunpack.c.h.b16 %v1079
        %v3850 = vunpack.c.l.b16 %v1080
        %v3851 = vunpack.c.h.b16 %v1080
        %v3852 = vunpack.c.l.b16 %v1081
        %v3853 = vunpack.c.h.b16 %v1081
        %v3854 = vunpack.c.l.b16 %v1082
        %v3855 = vunpack.c.h.b16 %v1082
        %v3856 = vunpack.c.l.b16 %v1083
        %v3857 = vunpack.c.h.b16 %v1083
        %v3858 = vunpack.c.l.b16 %v1084
        %v3859 = vunpack.c.h.b16 %v1084
        %v3860 = vunpack.c.l.b16 %v1085
        %v3861 = vunpack.c.h.b16 %v1085
        %v3862 = vunpack.c.l.b16 %v1086
        %v3863 = vunpack.c.h.b16 %v1086
        %v3864 = vunpack.c.l.b16 %v1087
        %v3865 = vunpack.c.h.b16 %v1087
        %v3866 = vunpack.c.l.b16 %v1088
        %v3867 = vunpack.c.h.b16 %v1088
        %v3868 = vunpack.c.l.b16 %v1089
        %v3869 = vunpack.c.h.b16 %v1089
        %v3870 = vunpack.c.l.b16 %v1090
        %v3871 = vunpack.c.h.b16 %v1090
        %v3872 = vunpack.c.l.b16 %v1091
        %v3873 = vunpack.c.h.b16 %v1091
        %v3874 = vunpack.c.l.b16 %v1092
        %v3875 = vunpack.c.h.b16 %v1092
        %v3876 = vunpack.c.l.b16 %v1093
        %v3877 = vunpack.c.h.b16 %v1093
        %v3878 = vunpack.c.l.b16 %v1094
        %v3879 = vunpack.c.h.b16 %v1094
        %v3880 = vunpack.c.l.b16 %v1095
        %v3881 = vunpack.c.h.b16 %v1095
        %v3882 = vunpack.c.l.b16 %v1096
        %v3883 = vunpack.c.h.b16 %v1096
        %v3884 = vunpack.c.l.b16 %v1097
        %v3885 = vunpack.c.h.b16 %v1097
        %v3886 = vunpack.c.l.b16 %v1098
        %v3887 = vunpack.c.h.b16 %v1098
        %v3888 = vunpack.c.l.b16 %v1099
        %v3889 = vunpack.c.h.b16 %v1099
        %v3890 = vunpack.c.l.b16 %v1100
        %v3891 = vunpack.c.h.b16 %v1100
        %v3892 = vunpack.c.l.b16 %v1101
        %v3893 = vunpack.c.h.b16 %v1101
        %v3894 = vunpack.c.l.b16 %v1102
        %v3895 = vunpack.c.h.b16 %v1102
        %v3896 = vunpack.c.l.b16 %v1103
        %v3897 = vunpack.c.h.b16 %v1103
        %v3898 = vunpack.c.l.b16 %v1104
        %v3899 = vunpack.c.h.b16 %v1104
        %v3900 = vunpack.c.l.b16 %v1105
        %v3901 = vunpack.c.h.b16 %v1105
        %v3902 = vunpack.c.l.b16 %v1106
        %v3903 = vunpack.c.h.b16 %v1106
        %v3904 = vunpack.c.l.b16 %v1107
        %v3905 = vunpack.c.h.b16 %v1107
        %v3906 = vunpack.c.l.b16 %v1108
        %v3907 = vunpack.c.h.b16 %v1108
        %v3908 = vunpack.c.l.b16 %v1109
        %v3909 = vunpack.c.h.b16 %v1109
        %v3910 = vunpack.c.l.b16 %v1110
        %v3911 = vunpack.c.h.b16 %v1110
        %v3912 = vunpack.c.l.b16 %v1111
        %v3913 = vunpack.c.h.b16 %v1111
        %v3914 = vunpack.c.l.b16 %v1112
        %v3915 = vunpack.c.h.b16 %v1112
        %v3916 = vunpack.c.l.b16 %v1113
        %v3917 = vunpack.c.h.b16 %v1113
        %v3918 = vunpack.c.l.b16 %v1114
        %v3919 = vunpack.c.h.b16 %v1114
        %v3920 = vunpack.c.l.b16 %v1115
        %v3921 = vunpack.c.h.b16 %v1115
        %v3922 = vunpack.c.l.b16 %v1116
        %v3923 = vunpack.c.h.b16 %v1116
        %v3924 = vunpack.c.l.b16 %v1117
        %v3925 = vunpack.c.h.b16 %v1117
        %v3926 = vunpack.c.l.b16 %v1118
        %v3927 = vunpack.c.h.b16 %v1118
        %v3928 = vunpack.c.l.b16 %v1119
        %v3929 = vunpack.c.h.b16 %v1119
        %v3930 = vunpack.c.l.b16 %v1120
        %v3931 = vunpack.c.h.b16 %v1120
        %v3932 = vunpack.c.l.b16 %v1121
        %v3933 = vunpack.c.h.b16 %v1121
        %v3934 = vunpack.c.l.b16 %v1122
        %v3935 = vunpack.c.h.b16 %v1122
        %v3936 = vunpack.c.l.b16 %v1123
        %v3937 = vunpack.c.h.b16 %v1123
        %v3938 = vunpack.c.l.b16 %v1124
        %v3939 = vunpack.c.h.b16 %v1124
        %v3940 = vunpack.c.l.b16 %v1125
        %v3941 = vunpack.c.h.b16 %v1125
        %v3942 = vunpack.c.l.b16 %v1126
        %v3943 = vunpack.c.h.b16 %v1126
        %v3944 = vunpack.c.l.b16 %v1127
        %v3945 = vunpack.c.h.b16 %v1127
        %v3946 = vunpack.c.l.b16 %v1128
        %v3947 = vunpack.c.h.b16 %v1128
        %v3948 = vunpack.c.l.b16 %v1129
        %v3949 = vunpack.c.h.b16 %v1129
        %v3950 = vunpack.c.l.b16 %v1130
        %v3951 = vunpack.c.h.b16 %v1130
        %v3952 = vunpack.c.l.b16 %v1131
        %v3953 = vunpack.c.h.b16 %v1131
        %v3954 = vunpack.c.l.b16 %v1132
        %v3955 = vunpack.c.h.b16 %v1132
        %v3956 = vunpack.c.l.b16 %v1133
        %v3957 = vunpack.c.h.b16 %v1133
        %v3958 = vunpack.c.l.b16 %v1134
        %v3959 = vunpack.c.h.b16 %v1134
        %v3960 = vunpack.c.l.b16 %v1135
        %v3961 = vunpack.c.h.b16 %v1135
        %v3962 = vunpack.c.l.b16 %v1136
        %v3963 = vunpack.c.h.b16 %v1136
        %v3964 = vunpack.c.l.b16 %v1137
        %v3965 = vunpack.c.h.b16 %v1137
        %v3966 = vunpack.c.l.b16 %v1138
        %v3967 = vunpack.c.h.b16 %v1138
        %v3968 = vunpack.c.l.b16 %v1139
        %v3969 = vunpack.c.h.b16 %v1139
        %v3970 = vunpack.c.l.b16 %v1140
        %v3971 = vunpack.c.h.b16 %v1140
        %v3972 = vunpack.c.l.b16 %v1141
        %v3973 = vunpack.c.h.b16 %v1141
        %v3974 = vunpack.c.l.b16 %v1142
        %v3975 = vunpack.c.h.b16 %v1142
        %v3976 = vunpack.c.l.b16 %v1143
        %v3977 = vunpack.c.h.b16 %v1143
        %v3978 = vunpack.c.l.b16 %v1144
        %v3979 = vunpack.c.h.b16 %v1144
        %v3980 = vunpack.c.l.b16 %v1145
        %v3981 = vunpack.c.h.b16 %v1145
        %v3982 = vunpack.c.l.b16 %v1146
        %v3983 = vunpack.c.h.b16 %v1146
        %v3984 = vunpack.c.l.b16 %v1147
        %v3985 = vunpack.c.h.b16 %v1147
        %v3986 = vunpack.c.l.b16 %v1148
        %v3987 = vunpack.c.h.b16 %v1148
        %v3988 = vunpack.c.l.b16 %v1149
        %v3989 = vunpack.c.h.b16 %v1149
        %v3990 = vunpack.c.l.b16 %v1150
        %v3991 = vunpack.c.h.b16 %v1150
        %v3992 = vunpack.c.l.b16 %v1151
        %v3993 = vunpack.c.h.b16 %v1151
        %v3994 = vunpack.c.l.b16 %v1152
        %v3995 = vunpack.c.h.b16 %v1152
        %v3996 = vunpack.c.l.b16 %v1153
        %v3997 = vunpack.c.h.b16 %v1153
        %v3998 = vunpack.c.l.b16 %v1154
        %v3999 = vunpack.c.h.b16 %v1154
        %v4000 = vunpack.c.l.b16 %v1155
        %v4001 = vunpack.c.h.b16 %v1155
        %v4002 = vunpack.c.l.b16 %v1156
        %v4003 = vunpack.c.h.b16 %v1156
        %v4004 = vunpack.c.l.b16 %v1157
        %v4005 = vunpack.c.h.b16 %v1157
        %v4006 = vunpack.c.l.b16 %v1158
        %v4007 = vunpack.c.h.b16 %v1158
        %v4008 = vunpack.c.l.b16 %v1159
        %v4009 = vunpack.c.h.b16 %v1159
        %v4010 = vunpack.c.l.b16 %v1160
        %v4011 = vunpack.c.h.b16 %v1160
        %v4012 = vunpack.c.l.b16 %v1161
        %v4013 = vunpack.c.h.b16 %v1161
        %v4014 = vunpack.c.l.b16 %v1162
        %v4015 = vunpack.c.h.b16 %v1162
        %v4016 = vunpack.c.l.b16 %v1163
        %v4017 = vunpack.c.h.b16 %v1163
        %v4018 = vunpack.c.l.b16 %v1164
        %v4019 = vunpack.c.h.b16 %v1164
        %v4020 = vunpack.c.l.b16 %v1165
        %v4021 = vunpack.c.h.b16 %v1165
        %v4022 = vunpack.c.l.b16 %v1166
        %v4023 = vunpack.c.h.b16 %v1166
        %v4024 = vunpack.c.l.b16 %v1167
        %v4025 = vunpack.c.h.b16 %v1167
        %v4026 = vunpack.c.l.b16 %v1168
        %v4027 = vunpack.c.h.b16 %v1168
        %v4028 = vunpack.c.l.b16 %v1169
        %v4029 = vunpack.c.h.b16 %v1169
        %v4030 = vunpack.c.l.b16 %v1170
        %v4031 = vunpack.c.h.b16 %v1170
        %v4032 = vunpack.c.l.b16 %v1171
        %v4033 = vunpack.c.h.b16 %v1171
        %v4034 = vunpack.c.l.b16 %v1172
        %v4035 = vunpack.c.h.b16 %v1172
        %v4036 = vunpack.c.l.b16 %v1173
        %v4037 = vunpack.c.h.b16 %v1173
        %v4038 = vunpack.c.l.b16 %v1174
        %v4039 = vunpack.c.h.b16 %v1174
        %v4040 = vunpack.c.l.b16 %v1175
        %v4041 = vunpack.c.h.b16 %v1175
        %v4042 = vunpack.c.l.b16 %v1176
        %v4043 = vunpack.c.h.b16 %v1176
        %v4044 = vunpack.c.l.b16 %v1177
        %v4045 = vunpack.c.h.b16 %v1177
        %v4046 = vunpack.c.l.b16 %v1178
        %v4047 = vunpack.c.h.b16 %v1178
        %v4048 = vunpack.c.l.b16 %v1179
        %v4049 = vunpack.c.h.b16 %v1179
        %v4050 = vunpack.c.l.b16 %v1180
        %v4051 = vunpack.c.h.b16 %v1180
        %v4052 = vunpack.c.l.b16 %v1181
        %v4053 = vunpack.c.h.b16 %v1181
        %v4054 = vunpack.c.l.b16 %v1182
        %v4055 = vunpack.c.h.b16 %v1182
        %v4056 = vunpack.c.l.b16 %v1183
        %v4057 = vunpack.c.h.b16 %v1183
        %v4058 = vunpack.c.l.b16 %v1184
        %v4059 = vunpack.c.h.b16 %v1184
        %v4060 = vunpack.c.l.b16 %v1185
        %v4061 = vunpack.c.h.b16 %v1185
        %v4062 = vunpack.c.l.b16 %v1186
        %v4063 = vunpack.c.h.b16 %v1186
        %v4064 = vunpack.c.l.b16 %v1187
        %v4065 = vunpack.c.h.b16 %v1187
        %v4066 = vunpack.c.l.b16 %v1188
        %v4067 = vunpack.c.h.b16 %v1188
        %v4068 = vunpack.c.l.b16 %v1189
        %v4069 = vunpack.c.h.b16 %v1189
        %v4070 = vunpack.c.l.b16 %v1190
        %v4071 = vunpack.c.h.b16 %v1190
        %v4072 = vunpack.c.l.b16 %v1191
        %v4073 = vunpack.c.h.b16 %v1191
        %v4074 = vunpack.c.l.b16 %v1192
        %v4075 = vunpack.c.h.b16 %v1192
        %v4076 = vunpack.c.l.b16 %v1193
        %v4077 = vunpack.c.h.b16 %v1193
        %v4078 = vunpack.c.l.b16 %v1194
        %v4079 = vunpack.c.h.b16 %v1194
        %v4080 = vunpack.c.l.b16 %v1195
        %v4081 = vunpack.c.h.b16 %v1195
        %v4082 = vunpack.c.l.b16 %v1196
        %v4083 = vunpack.c.h.b16 %v1196
        %v4084 = vunpack.c.l.b16 %v1197
        %v4085 = vunpack.c.h.b16 %v1197
        %v4086 = vunpack.c.l.b16 %v1198
        %v4087 = vunpack.c.h.b16 %v1198
        %v4088 = vunpack.c.l.b16 %v1199
        %v4089 = vunpack.c.h.b16 %v1199
        %v4090 = vunpack.c.l.b16 %v1200
        %v4091 = vunpack.c.h.b16 %v1200
        %v4092 = vpack.c.b16 %v2304, %v2300
        %v4093 = vpack.c.b16 %v2305, %v2301
        %v4094 = vpack.c.b16 %v2306, %v2302
        %v4095 = vpack.c.b16 %v2307, %v2303
        %v4096 = vpack.c.b16 %v2312, %v2308
        %v4097 = vpack.c.b16 %v2313, %v2309
        %v4098 = vpack.c.b16 %v2314, %v2310
        %v4099 = vpack.c.b16 %v2315, %v2311
        %v4100 = vpack.c.b16 %v2320, %v2316
        %v4101 = vpack.c.b16 %v2321, %v2317
        %v4102 = vpack.c.b16 %v2322, %v2318
        %v4103 = vpack.c.b16 %v2323, %v2319
        %v4104 = vpack.c.b16 %v2328, %v2324
        %v4105 = vpack.c.b16 %v2329, %v2325
        %v4106 = vpack.c.b16 %v2330, %v2326
        %v4107 = vpack.c.b16 %v2331, %v2327
        %v4108 = vpack.c.b16 %v2336, %v2332
        %v4109 = vpack.c.b16 %v2337, %v2333
        %v4110 = vpack.c.b16 %v2338, %v2334
        %v4111 = vpack.c.b16 %v2339, %v2335
        %v4112 = vpack.c.b16 %v2344, %v2340
        %v4113 = vpack.c.b16 %v2345, %v2341
        %v4114 = vpack.c.b16 %v2346, %v2342
        %v4115 = vpack.c.b16 %v2347, %v2343
        %v4116 = vpack.c.b16 %v2352, %v2348
        %v4117 = vpack.c.b16 %v2353, %v2349
        %v4118 = vpack.c.b16 %v2354, %v2350
        %v4119 = vpack.c.b16 %v2355, %v2351
        %v4120 = vpack.c.b16 %v2360, %v2356
        %v4121 = vpack.c.b16 %v2361, %v2357
        %v4122 = vpack.c.b16 %v2362, %v2358
        %v4123 = vpack.c.b16 %v2363, %v2359
        %v4124 = vpack.c.b16 %v2368, %v2364
        %v4125 = vpack.c.b16 %v2369, %v2365
        %v4126 = vpack.c.b16 %v2370, %v2366
        %v4127 = vpack.c.b16 %v2371, %v2367
        %v4128 = vpack.c.b16 %v2376, %v2372
        %v4129 = vpack.c.b16 %v2377, %v2373
        %v4130 = vpack.c.b16 %v2378, %v2374
        %v4131 = vpack.c.b16 %v2379, %v2375
        %v4132 = vpack.c.b16 %v2384, %v2380
        %v4133 = vpack.c.b16 %v2385, %v2381
        %v4134 = vpack.c.b16 %v2386, %v2382
        %v4135 = vpack.c.b16 %v2387, %v2383
        %v4136 = vpack.c.b16 %v2392, %v2388
        %v4137 = vpack.c.b16 %v2393, %v2389
        %v4138 = vpack.c.b16 %v2394, %v2390
        %v4139 = vpack.c.b16 %v2395, %v2391
        %v4140 = vpack.c.b16 %v2400, %v2396
        %v4141 = vpack.c.b16 %v2401, %v2397
        %v4142 = vpack.c.b16 %v2402, %v2398
        %v4143 = vpack.c.b16 %v2403, %v2399
        %v4144 = vpack.c.b16 %v2408, %v2404
        %v4145 = vpack.c.b16 %v2409, %v2405
        %v4146 = vpack.c.b16 %v2410, %v2406
        %v4147 = vpack.c.b16 %v2411, %v2407
        %v4148 = vpack.c.b16 %v2416, %v2412
        %v4149 = vpack.c.b16 %v2417, %v2413
        %v4150 = vpack.c.b16 %v2418, %v2414
        %v4151 = vpack.c.b16 %v2419, %v2415
        %v4152 = vpack.c.b16 %v2424, %v2420
        %v4153 = vpack.c.b16 %v2425, %v2421
        %v4154 = vpack.c.b16 %v2426, %v2422
        %v4155 = vpack.c.b16 %v2427, %v2423
        %v4156 = vpack.c.b16 %v2432, %v2428
        %v4157 = vpack.c.b16 %v2433, %v2429
        %v4158 = vpack.c.b16 %v2434, %v2430
        %v4159 = vpack.c.b16 %v2435, %v2431
        %v4160 = vpack.c.b16 %v2440, %v2436
        %v4161 = vpack.c.b16 %v2441, %v2437
        %v4162 = vpack.c.b16 %v2442, %v2438
        %v4163 = vpack.c.b16 %v2443, %v2439
        %v4164 = vpack.c.b16 %v2448, %v2444
        %v4165 = vpack.c.b16 %v2449, %v2445
        %v4166 = vpack.c.b16 %v2450, %v2446
        %v4167 = vpack.c.b16 %v2451, %v2447
        %v4168 = vpack.c.b16 %v2456, %v2452
        %v4169 = vpack.c.b16 %v2457, %v2453
        %v4170 = vpack.c.b16 %v2458, %v2454
        %v4171 = vpack.c.b16 %v2459, %v2455
        %v4172 = vpack.c.b16 %v2464, %v2460
        %v4173 = vpack.c.b16 %v2465, %v2461
        %v4174 = vpack.c.b16 %v2466, %v2462
        %v4175 = vpack.c.b16 %v2467, %v2463
        %v4176 = vpack.c.b16 %v2472, %v2468
        %v4177 = vpack.c.b16 %v2473, %v2469
        %v4178 = vpack.c.b16 %v2474, %v2470
        %v4179 = vpack.c.b16 %v2475, %v2471
        %v4180 = vpack.c.b16 %v2480, %v2476
        %v4181 = vpack.c.b16 %v2481, %v2477
        %v4182 = vpack.c.b16 %v2482, %v2478
        %v4183 = vpack.c.b16 %v2483, %v2479
        %v4184 = vpack.c.b16 %v2488, %v2484
        %v4185 = vpack.c.b16 %v2489, %v2485
        %v4186 = vpack.c.b16 %v2490, %v2486
        %v4187 = vpack.c.b16 %v2491, %v2487
        %v4188 = vpack.c.b16 %v2496, %v2492
        %v4189 = vpack.c.b16 %v2497, %v2493
        %v4190 = vpack.c.b16 %v2498, %v2494
        %v4191 = vpack.c.b16 %v2499, %v2495
        %v4192 = vpack.c.b16 %v2504, %v2500
        %v4193 = vpack.c.b16 %v2505, %v2501
        %v4194 = vpack.c.b16 %v2506, %v2502
        %v4195 = vpack.c.b16 %v2507, %v2503
        %v4196 = vpack.c.b16 %v2512, %v2508
        %v4197 = vpack.c.b16 %v2513, %v2509
        %v4198 = vpack.c.b16 %v2514, %v2510
        %v4199 = vpack.c.b16 %v2515, %v2511
        %v4200 = vpack.c.b16 %v2520, %v2516
        %v4201 = vpack.c.b16 %v2521, %v2517
        %v4202 = vpack.c.b16 %v2522, %v2518
        %v4203 = vpack.c.b16 %v2523, %v2519
        %v4204 = vpack.c.b16 %v2528, %v2524
        %v4205 = vpack.c.b16 %v2529, %v2525
        %v4206 = vpack.c.b16 %v2530, %v2526
        %v4207 = vpack.c.b16 %v2531, %v2527
        %v4208 = vpack.c.b16 %v2536, %v2532
        %v4209 = vpack.c.b16 %v2537, %v2533
        %v4210 = vpack.c.b16 %v2538, %v2534
        %v4211 = vpack.c.b16 %v2539, %v2535
        %v4212 = vpack.c.b16 %v2544, %v2540
        %v4213 = vpack.c.b16 %v2545, %v2541
        %v4214 = vpack.c.b16 %v2546, %v2542
        %v4215 = vpack.c.b16 %v2547, %v2543
        %v4216 = vpack.c.b16 %v2552, %v2548
        %v4217 = vpack.c.b16 %v2553, %v2549
        %v4218 = vpack.c.b16 %v2554, %v2550
        %v4219 = vpack.c.b16 %v2555, %v2551
        %v4220 = vpack.c.b16 %v2560, %v2556
        %v4221 = vpack.c.b16 %v2561, %v2557
        %v4222 = vpack.c.b16 %v2562, %v2558
        %v4223 = vpack.c.b16 %v2563, %v2559
        %v4224 = vpack.c.b16 %v2568, %v2564
        %v4225 = vpack.c.b16 %v2569, %v2565
        %v4226 = vpack.c.b16 %v2570, %v2566
        %v4227 = vpack.c.b16 %v2571, %v2567
        %v4228 = vpack.c.b16 %v2576, %v2572
        %v4229 = vpack.c.b16 %v2577, %v2573
        %v4230 = vpack.c.b16 %v2578, %v2574
        %v4231 = vpack.c.b16 %v2579, %v2575
        %v4232 = vpack.c.b16 %v2584, %v2580
        %v4233 = vpack.c.b16 %v2585, %v2581
        %v4234 = vpack.c.b16 %v2586, %v2582
        %v4235 = vpack.c.b16 %v2587, %v2583
        %v4236 = vpack.c.b16 %v2592, %v2588
        %v4237 = vpack.c.b16 %v2593, %v2589
        %v4238 = vpack.c.b16 %v2594, %v2590
        %v4239 = vpack.c.b16 %v2595, %v2591
        %v4240 = vpack.c.b16 %v2600, %v2596
        %v4241 = vpack.c.b16 %v2601, %v2597
        %v4242 = vpack.c.b16 %v2602, %v2598
        %v4243 = vpack.c.b16 %v2603, %v2599
        %v4244 = vpack.c.b16 %v2608, %v2604
        %v4245 = vpack.c.b16 %v2609, %v2605
        %v4246 = vpack.c.b16 %v2610, %v2606
        %v4247 = vpack.c.b16 %v2611, %v2607
        %v4248 = vpack.c.b16 %v2616, %v2612
        %v4249 = vpack.c.b16 %v2617, %v2613
        %v4250 = vpack.c.b16 %v2618, %v2614
        %v4251 = vpack.c.b16 %v2619, %v2615
        %v4252 = vpack.c.b16 %v2624, %v2620
        %v4253 = vpack.c.b16 %v2625, %v2621
        %v4254 = vpack.c.b16 %v2626, %v2622
        %v4255 = vpack.c.b16 %v2627, %v2623
        %v4256 = vpack.c.b16 %v2632, %v2628
        %v4257 = vpack.c.b16 %v2633, %v2629
        %v4258 = vpack.c.b16 %v2634, %v2630
        %v4259 = vpack.c.b16 %v2635, %v2631
        %v4260 = vpack.c.b16 %v2640, %v2636
        %v4261 = vpack.c.b16 %v2641, %v2637
        %v4262 = vpack.c.b16 %v2642, %v2638
        %v4263 = vpack.c.b16 %v2643, %v2639
        %v4264 = vpack.c.b16 %v2648, %v2644
        %v4265 = vpack.c.b16 %v2649, %v2645
        %v4266 = vpack.c.b16 %v2650, %v2646
        %v4267 = vpack.c.b16 %v2651, %v2647
        %v4268 = vpack.c.b16 %v2656, %v2652
        %v4269 = vpack.c.b16 %v2657, %v2653
        %v4270 = vpack.c.b16 %v2658, %v2654
        %v4271 = vpack.c.b16 %v2659, %v2655
        %v4272 = vpack.c.b16 %v2664, %v2660
        %v4273 = vpack.c.b16 %v2665, %v2661
        %v4274 = vpack.c.b16 %v2666, %v2662
        %v4275 = vpack.c.b16 %v2667, %v2663
        %v4276 = vpack.c.b16 %v2672, %v2668
        %v4277 = vpack.c.b16 %v2673, %v2669
        %v4278 = vpack.c.b16 %v2674, %v2670
        %v4279 = vpack.c.b16 %v2675, %v2671
        %v4280 = vpack.c.b16 %v2680, %v2676
        %v4281 = vpack.c.b16 %v2681, %v2677
        %v4282 = vpack.c.b16 %v2682, %v2678
        %v4283 = vpack.c.b16 %v2683, %v2679
        %v4284 = vpack.c.b16 %v2688, %v2684
        %v4285 = vpack.c.b16 %v2689, %v2685
        %v4286 = vpack.c.b16 %v2690, %v2686
        %v4287 = vpack.c.b16 %v2691, %v2687
        %v4288 = vpack.c.b16 %v2696, %v2692
        %v4289 = vpack.c.b16 %v2697, %v2693
        %v4290 = vpack.c.b16 %v2698, %v2694
        %v4291 = vpack.c.b16 %v2699, %v2695
        %v4292 = vpack.c.b16 %v2704, %v2700
        %v4293 = vpack.c.b16 %v2705, %v2701
        %v4294 = vpack.c.b16 %v2706, %v2702
        %v4295 = vpack.c.b16 %v2707, %v2703
        %v4296 = vpack.c.b16 %v2712, %v2708
        %v4297 = vpack.c.b16 %v2713, %v2709
        %v4298 = vpack.c.b16 %v2714, %v2710
        %v4299 = vpack.c.b16 %v2715, %v2711
        %v4300 = vpack.c.b16 %v2720, %v2716
        %v4301 = vpack.c.b16 %v2721, %v2717
        %v4302 = vpack.c.b16 %v2722, %v2718
        %v4303 = vpack.c.b16 %v2723, %v2719
        %v4304 = vpack.c.b16 %v2728, %v2724
        %v4305 = vpack.c.b16 %v2729, %v2725
        %v4306 = vpack.c.b16 %v2730, %v2726
        %v4307 = vpack.c.b16 %v2731, %v2727
        %v4308 = vpack.c.b16 %v2736, %v2732
        %v4309 = vpack.c.b16 %v2737, %v2733
        %v4310 = vpack.c.b16 %v2738, %v2734
        %v4311 = vpack.c.b16 %v2739, %v2735
        %v4312 = vpack.c.b16 %v2744, %v2740
        %v4313 = vpack.c.b16 %v2745, %v2741
        %v4314 = vpack.c.b16 %v2746, %v2742
        %v4315 = vpack.c.b16 %v2747, %v2743
        %v4316 = vpack.c.b16 %v2752, %v2748
        %v4317 = vpack.c.b16 %v2753, %v2749
        %v4318 = vpack.c.b16 %v2754, %v2750
        %v4319 = vpack.c.b16 %v2755, %v2751
        %v4320 = vpack.c.b16 %v2760, %v2756
        %v4321 = vpack.c.b16 %v2761, %v2757
        %v4322 = vpack.c.b16 %v2762, %v2758
        %v4323 = vpack.c.b16 %v2763, %v2759
        %v4324 = vpack.c.b16 %v2768, %v2764
        %v4325 = vpack.c.b16 %v2769, %v2765
        %v4326 = vpack.c.b16 %v2770, %v2766
        %v4327 = vpack.c.b16 %v2771, %v2767
        %v4328 = vpack.c.b16 %v2776, %v2772
        %v4329 = vpack.c.b16 %v2777, %v2773
        %v4330 = vpack.c.b16 %v2778, %v2774
        %v4331 = vpack.c.b16 %v2779, %v2775
        %v4332 = vpack.c.b16 %v2784, %v2780
        %v4333 = vpack.c.b16 %v2785, %v2781
        %v4334 = vpack.c.b16 %v2786, %v2782
        %v4335 = vpack.c.b16 %v2787, %v2783
        %v4336 = vpack.c.b16 %v2792, %v2788
        %v4337 = vpack.c.b16 %v2793, %v2789
        %v4338 = vpack.c.b16 %v2794, %v2790
        %v4339 = vpack.c.b16 %v2795, %v2791
        %v4340 = vpack.c.b16 %v2800, %v2796
        %v4341 = vpack.c.b16 %v2801, %v2797
        %v4342 = vpack.c.b16 %v2802, %v2798
        %v4343 = vpack.c.b16 %v2803, %v2799
        %v4344 = vpack.c.b16 %v2808, %v2804
        %v4345 = vpack.c.b16 %v2809, %v2805
        %v4346 = vpack.c.b16 %v2810, %v2806
        %v4347 = vpack.c.b16 %v2811, %v2807
        %v4348 = vpack.c.b16 %v2816, %v2812
        %v4349 = vpack.c.b16 %v2817, %v2813
        %v4350 = vpack.c.b16 %v2818, %v2814
        %v4351 = vpack.c.b16 %v2819, %v2815
        %v4352 = vpack.c.b16 %v2824, %v2820
        %v4353 = vpack.c.b16 %v2825, %v2821
        %v4354 = vpack.c.b16 %v2826, %v2822
        %v4355 = vpack.c.b16 %v2827, %v2823
        %v4356 = vpack.c.b16 %v2832, %v2828
        %v4357 = vpack.c.b16 %v2833, %v2829
        %v4358 = vpack.c.b16 %v2834, %v2830
        %v4359 = vpack.c.b16 %v2835, %v2831
        %v4360 = vpack.c.b16 %v2840, %v2836
        %v4361 = vpack.c.b16 %v2841, %v2837
        %v4362 = vpack.c.b16 %v2842, %v2838
        %v4363 = vpack.c.b16 %v2843, %v2839
        %v4364 = vpack.c.b16 %v2848, %v2844
        %v4365 = vpack.c.b16 %v2849, %v2845
        %v4366 = vpack.c.b16 %v2850, %v2846
        %v4367 = vpack.c.b16 %v2851, %v2847
        %v4368 = vpack.c.b16 %v2856, %v2852
        %v4369 = vpack.c.b16 %v2857, %v2853
        %v4370 = vpack.c.b16 %v2858, %v2854
        %v4371 = vpack.c.b16 %v2859, %v2855
        %v4372 = vpack.c.b16 %v2864, %v2860
        %v4373 = vpack.c.b16 %v2865, %v2861
        %v4374 = vpack.c.b16 %v2866, %v2862
        %v4375 = vpack.c.b16 %v2867, %v2863
        %v4376 = vpack.c.b16 %v2872, %v2868
        %v4377 = vpack.c.b16 %v2873, %v2869
        %v4378 = vpack.c.b16 %v2874, %v2870
        %v4379 = vpack.c.b16 %v2875, %v2871
        %v4380 = vpack.c.b16 %v2880, %v2876
        %v4381 = vpack.c.b16 %v2881, %v2877
        %v4382 = vpack.c.b16 %v2882, %v2878
        %v4383 = vpack.c.b16 %v2883, %v2879
        %v4384 = vpack.c.b16 %v2888, %v2884
        %v4385 = vpack.c.b16 %v2889, %v2885
        %v4386 = vpack.c.b16 %v2890, %v2886
        %v4387 = vpack.c.b16 %v2891, %v2887
        %v4388 = vpack.c.b16 %v2896, %v2892
        %v4389 = vpack.c.b16 %v2897, %v2893
        %v4390 = vpack.c.b16 %v2898, %v2894
        %v4391 = vpack.c.b16 %v2899, %v2895
        %v4392 = vpack.c.b16 %v2904, %v2900
        %v4393 = vpack.c.b16 %v2905, %v2901
        %v4394 = vpack.c.b16 %v2906, %v2902
        %v4395 = vpack.c.b16 %v2907, %v2903
        %v4396 = vpack.c.b16 %v2912, %v2908
        %v4397 = vpack.c.b16 %v2913, %v2909
        %v4398 = vpack.c.b16 %v2914, %v2910
        %v4399 = vpack.c.b16 %v2915, %v2911
        %v4400 = vpack.c.b16 %v2920, %v2916
        %v4401 = vpack.c.b16 %v2921, %v2917
        %v4402 = vpack.c.b16 %v2922, %v2918
        %v4403 = vpack.c.b16 %v2923, %v2919
        %v4404 = vpack.c.b16 %v2928, %v2924
        %v4405 = vpack.c.b16 %v2929, %v2925
        %v4406 = vpack.c.b16 %v2930, %v2926
        %v4407 = vpack.c.b16 %v2931, %v2927
        %v4408 = vpack.c.b16 %v2936, %v2932
        %v4409 = vpack.c.b16 %v2937, %v2933
        %v4410 = vpack.c.b16 %v2938, %v2934
        %v4411 = vpack.c.b16 %v2939, %v2935
        %v4412 = vpack.c.b16 %v2944, %v2940
        %v4413 = vpack.c.b16 %v2945, %v2941
        %v4414 = vpack.c.b16 %v2946, %v2942
        %v4415 = vpack.c.b16 %v2947, %v2943
        %v4416 = vpack.c.b16 %v2952, %v2948
        %v4417 = vpack.c.b16 %v2953, %v2949
        %v4418 = vpack.c.b16 %v2954, %v2950
        %v4419 = vpack.c.b16 %v2955, %v2951
        %v4420 = vpack.c.b16 %v2960, %v2956
        %v4421 = vpack.c.b16 %v2961, %v2957
        %v4422 = vpack.c.b16 %v2962, %v2958
        %v4423 = vpack.c.b16 %v2963, %v2959
        %v4424 = vpack.c.b16 %v2968, %v2964
        %v4425 = vpack.c.b16 %v2969, %v2965
        %v4426 = vpack.c.b16 %v2970, %v2966
        %v4427 = vpack.c.b16 %v2971, %v2967
        %v4428 = vpack.c.b16 %v2976, %v2972
        %v4429 = vpack.c.b16 %v2977, %v2973
        %v4430 = vpack.c.b16 %v2978, %v2974
        %v4431 = vpack.c.b16 %v2979, %v2975
        %v4432 = vpack.c.b16 %v2984, %v2980
        %v4433 = vpack.c.b16 %v2985, %v2981
        %v4434 = vpack.c.b16 %v2986, %v2982
        %v4435 = vpack.c.b16 %v2987, %v2983
        %v4436 = vpack.c.b16 %v2992, %v2988
        %v4437 = vpack.c.b16 %v2993, %v2989
        %v4438 = vpack.c.b16 %v2994, %v2990
        %v4439 = vpack.c.b16 %v2995, %v2991
        %v4440 = vpack.c.b16 %v3000, %v2996
        %v4441 = vpack.c.b16 %v3001, %v2997
        %v4442 = vpack.c.b16 %v3002, %v2998
        %v4443 = vpack.c.b16 %v3003, %v2999
        %v4444 = vpack.c.b16 %v3008, %v3004
        %v4445 = vpack.c.b16 %v3009, %v3005
        %v4446 = vpack.c.b16 %v3010, %v3006
        %v4447 = vpack.c.b16 %v3011, %v3007
        %v4448 = vpack.c.b16 %v3016, %v3012
        %v4449 = vpack.c.b16 %v3017, %v3013
        %v4450 = vpack.c.b16 %v3018, %v3014
        %v4451 = vpack.c.b16 %v3019, %v3015
        %v4452 = vpack.c.b16 %v3024, %v3020
        %v4453 = vpack.c.b16 %v3025, %v3021
        %v4454 = vpack.c.b16 %v3026, %v3022
        %v4455 = vpack.c.b16 %v3027, %v3023
        %v4456 = vpack.c.b16 %v3032, %v3028
        %v4457 = vpack.c.b16 %v3033, %v3029
        %v4458 = vpack.c.b16 %v3034, %v3030
        %v4459 = vpack.c.b16 %v3035, %v3031
        %v4460 = vpack.c.b16 %v3040, %v3036
        %v4461 = vpack.c.b16 %v3041, %v3037
        %v4462 = vpack.c.b16 %v3042, %v3038
        %v4463 = vpack.c.b16 %v3043, %v3039
        %v4464 = vpack.c.b16 %v3048, %v3044
        %v4465 = vpack.c.b16 %v3049, %v3045
        %v4466 = vpack.c.b16 %v3050, %v3046
        %v4467 = vpack.c.b16 %v3051, %v3047
        %v4468 = vpack.c.b16 %v3056, %v3052
        %v4469 = vpack.c.b16 %v3057, %v3053
        %v4470 = vpack.c.b16 %v3058, %v3054
        %v4471 = vpack.c.b16 %v3059, %v3055
        %v4472 = vpack.c.b16 %v3064, %v3060
        %v4473 = vpack.c.b16 %v3065, %v3061
        %v4474 = vpack.c.b16 %v3066, %v3062
        %v4475 = vpack.c.b16 %v3067, %v3063
        %v4476 = vpack.c.b16 %v3072, %v3068
        %v4477 = vpack.c.b16 %v3073, %v3069
        %v4478 = vpack.c.b16 %v3074, %v3070
        %v4479 = vpack.c.b16 %v3075, %v3071
        %v4480 = vpack.c.b16 %v3080, %v3076
        %v4481 = vpack.c.b16 %v3081, %v3077
        %v4482 = vpack.c.b16 %v3082, %v3078
        %v4483 = vpack.c.b16 %v3083, %v3079
        %v4484 = vpack.c.b16 %v3088, %v3084
        %v4485 = vpack.c.b16 %v3089, %v3085
        %v4486 = vpack.c.b16 %v3090, %v3086
        %v4487 = vpack.c.b16 %v3091, %v3087
        %v4488 = vpack.c.b16 %v3096, %v3092
        %v4489 = vpack.c.b16 %v3097, %v3093
        %v4490 = vpack.c.b16 %v3098, %v3094
        %v4491 = vpack.c.b16 %v3099, %v3095
        %v4492 = vpack.c.b16 %v3104, %v3100
        %v4493 = vpack.c.b16 %v3105, %v3101
        %v4494 = vpack.c.b16 %v3106, %v3102
        %v4495 = vpack.c.b16 %v3107, %v3103
        %v4496 = vpack.c.b16 %v3112, %v3108
        %v4497 = vpack.c.b16 %v3113, %v3109
        %v4498 = vpack.c.b16 %v3114, %v3110
        %v4499 = vpack.c.b16 %v3115, %v3111
        %v4500 = vpack.c.b16 %v3120, %v3116
        %v4501 = vpack.c.b16 %v3121, %v3117
        %v4502 = vpack.c.b16 %v3122, %v3118
        %v4503 = vpack.c.b16 %v3123, %v3119
        %v4504 = vpack.c.b16 %v3128, %v3124
        %v4505 = vpack.c.b16 %v3129, %v3125
        %v4506 = vpack.c.b16 %v3130, %v3126
        %v4507 = vpack.c.b16 %v3131, %v3127
        %v4508 = vpack.c.b16 %v3136, %v3132
        %v4509 = vpack.c.b16 %v3137, %v3133
        %v4510 = vpack.c.b16 %v3138, %v3134
        %v4511 = vpack.c.b16 %v3139, %v3135
        %v4512 = vpack.c.b16 %v3144, %v3140
        %v4513 = vpack.c.b16 %v3145, %v3141
        %v4514 = vpack.c.b16 %v3146, %v3142
        %v4515 = vpack.c.b16 %v3147, %v3143
        %v4516 = vpack.c.b16 %v3152, %v3148
        %v4517 = vpack.c.b16 %v3153, %v3149
        %v4518 = vpack.c.b16 %v3154, %v3150
        %v4519 = vpack.c.b16 %v3155, %v3151
        %v4520 = vpack.c.b16 %v3160, %v3156
        %v4521 = vpack.c.b16 %v3161, %v3157
        %v4522 = vpack.c.b16 %v3162, %v3158
        %v4523 = vpack.c.b16 %v3163, %v3159
        %v4524 = vpack.c.b16 %v3168, %v3164
        %v4525 = vpack.c.b16 %v3169, %v3165
        %v4526 = vpack.c.b16 %v3170, %v3166
        %v4527 = vpack.c.b16 %v3171, %v3167
        %v4528 = vpack.c.b16 %v3176, %v3172
        %v4529 = vpack.c.b16 %v3177, %v3173
        %v4530 = vpack.c.b16 %v3178, %v3174
        %v4531 = vpack.c.b16 %v3179, %v3175
        %v4532 = vpack.c.b16 %v3184, %v3180
        %v4533 = vpack.c.b16 %v3185, %v3181
        %v4534 = vpack.c.b16 %v3186, %v3182
        %v4535 = vpack.c.b16 %v3187, %v3183
        %v4536 = vpack.c.b16 %v3192, %v3188
        %v4537 = vpack.c.b16 %v3193, %v3189
        %v4538 = vpack.c.b16 %v3194, %v3190
        %v4539 = vpack.c.b16 %v3195, %v3191
        %v4540 = vpack.c.b16 %v3200, %v3196
        %v4541 = vpack.c.b16 %v3201, %v3197
        %v4542 = vpack.c.b16 %v3202, %v3198
        %v4543 = vpack.c.b16 %v3203, %v3199
        %v4544 = vpack.c.b16 %v3208, %v3204
        %v4545 = vpack.c.b16 %v3209, %v3205
        %v4546 = vpack.c.b16 %v3210, %v3206
        %v4547 = vpack.c.b16 %v3211, %v3207
        %v4548 = vpack.c.b16 %v3216, %v3212
        %v4549 = vpack.c.b16 %v3217, %v3213
        %v4550 = vpack.c.b16 %v3218, %v3214
        %v4551 = vpack.c.b16 %v3219, %v3215
        %v4552 = vpack.c.b16 %v3224, %v3220
        %v4553 = vpack.c.b16 %v3225, %v3221
        %v4554 = vpack.c.b16 %v3226, %v3222
        %v4555 = vpack.c.b16 %v3227, %v3223
        %v4556 = vpack.c.b16 %v3232, %v3228
        %v4557 = vpack.c.b16 %v3233, %v3229
        %v4558 = vpack.c.b16 %v3234, %v3230
        %v4559 = vpack.c.b16 %v3235, %v3231
        %v4560 = vpack.c.b16 %v3240, %v3236
        %v4561 = vpack.c.b16 %v3241, %v3237
        %v4562 = vpack.c.b16 %v3242, %v3238
        %v4563 = vpack.c.b16 %v3243, %v3239
        %v4564 = vpack.c.b16 %v3248, %v3244
        %v4565 = vpack.c.b16 %v3249, %v3245
        %v4566 = vpack.c.b16 %v3250, %v3246
        %v4567 = vpack.c.b16 %v3251, %v3247
        %v4568 = vpack.c.b16 %v3256, %v3252
        %v4569 = vpack.c.b16 %v3257, %v3253
        %v4570 = vpack.c.b16 %v3258, %v3254
        %v4571 = vpack.c.b16 %v3259, %v3255
        %v4572 = vpack.c.b16 %v3264, %v3260
        %v4573 = vpack.c.b16 %v3265, %v3261
        %v4574 = vpack.c.b16 %v3266, %v3262
        %v4575 = vpack.c.b16 %v3267, %v3263
        %v4576 = vpack.c.b16 %v3272, %v3268
        %v4577 = vpack.c.b16 %v3273, %v3269
        %v4578 = vpack.c.b16 %v3274, %v3270
        %v4579 = vpack.c.b16 %v3275, %v3271
        %v4580 = vpack.c.b16 %v3280, %v3276
        %v4581 = vpack.c.b16 %v3281, %v3277
        %v4582 = vpack.c.b16 %v3282, %v3278
        %v4583 = vpack.c.b16 %v3283, %v3279
        %v4584 = vpack.c.b16 %v3288, %v3284
        %v4585 = vpack.c.b16 %v3289, %v3285
        %v4586 = vpack.c.b16 %v3290, %v3286
        %v4587 = vpack.c.b16 %v3291, %v3287
        %v4588 = vpack.c.b16 %v3296, %v3292
        %v4589 = vpack.c.b16 %v3297, %v3293
        %v4590 = vpack.c.b16 %v3298, %v3294
        %v4591 = vpack.c.b16 %v3299, %v3295
        %v4592 = vpack.c.b16 %v3304, %v3300
        %v4593 = vpack.c.b16 %v3305, %v3301
        %v4594 = vpack.c.b16 %v3306, %v3302
        %v4595 = vpack.c.b16 %v3307, %v3303
        %v4596 = vpack.c.b16 %v3312, %v3308
        %v4597 = vpack.c.b16 %v3313, %v3309
        %v4598 = vpack.c.b16 %v3314, %v3310
        %v4599 = vpack.c.b16 %v3315, %v3311
        %v4600 = vpack.c.b16 %v3320, %v3316
        %v4601 = vpack.c.b16 %v3321, %v3317
        %v4602 = vpack.c.b16 %v3322, %v3318
        %v4603 = vpack.c.b16 %v3323, %v3319
        %v4604 = vpack.c.b16 %v3328, %v3324
        %v4605 = vpack.c.b16 %v3329, %v3325
        %v4606 = vpack.c.b16 %v3330, %v3326
        %v4607 = vpack.c.b16 %v3331, %v3327
        %v4608 = vpack.c.b16 %v3336, %v3332
        %v4609 = vpack.c.b16 %v3337, %v3333
        %v4610 = vpack.c.b16 %v3338, %v3334
        %v4611 = vpack.c.b16 %v3339, %v3335
        %v4612 = vpack.c.b16 %v3344, %v3340
        %v4613 = vpack.c.b16 %v3345, %v3341
        %v4614 = vpack.c.b16 %v3346, %v3342
        %v4615 = vpack.c.b16 %v3347, %v3343
        %v4616 = vpack.c.b16 %v3352, %v3348
        %v4617 = vpack.c.b16 %v3353, %v3349
        %v4618 = vpack.c.b16 %v3354, %v3350
        %v4619 = vpack.c.b16 %v3355, %v3351
        %v4620 = vpack.c.b16 %v3360, %v3356
        %v4621 = vpack.c.b16 %v3361, %v3357
        %v4622 = vpack.c.b16 %v3362, %v3358
        %v4623 = vpack.c.b16 %v3363, %v3359
        %v4624 = vpack.c.b16 %v3368, %v3364
        %v4625 = vpack.c.b16 %v3369, %v3365
        %v4626 = vpack.c.b16 %v3370, %v3366
        %v4627 = vpack.c.b16 %v3371, %v3367
        %v4628 = vpack.c.b16 %v3376, %v3372
        %v4629 = vpack.c.b16 %v3377, %v3373
        %v4630 = vpack.c.b16 %v3378, %v3374
        %v4631 = vpack.c.b16 %v3379, %v3375
        %v4632 = vpack.c.b16 %v3384, %v3380
        %v4633 = vpack.c.b16 %v3385, %v3381
        %v4634 = vpack.c.b16 %v3386, %v3382
        %v4635 = vpack.c.b16 %v3387, %v3383
        %v4636 = vpack.c.b16 %v3392, %v3388
        %v4637 = vpack.c.b16 %v3393, %v3389
        %v4638 = vpack.c.b16 %v3394, %v3390
        %v4639 = vpack.c.b16 %v3395, %v3391
        %v4640 = vpack.c.b16 %v3400, %v3396
        %v4641 = vpack.c.b16 %v3401, %v3397
        %v4642 = vpack.c.b16 %v3402, %v3398
        %v4643 = vpack.c.b16 %v3403, %v3399
        %v4644 = vpack.c.b16 %v3408, %v3404
        %v4645 = vpack.c.b16 %v3409, %v3405
        %v4646 = vpack.c.b16 %v3410, %v3406
        %v4647 = vpack.c.b16 %v3411, %v3407
        %v4648 = vpack.c.b16 %v3416, %v3412
        %v4649 = vpack.c.b16 %v3417, %v3413
        %v4650 = vpack.c.b16 %v3418, %v3414
        %v4651 = vpack.c.b16 %v3419, %v3415
        %v4652 = vpack.c.b16 %v3424, %v3420
        %v4653 = vpack.c.b16 %v3425, %v3421
        %v4654 = vpack.c.b16 %v3426, %v3422
        %v4655 = vpack.c.b16 %v3427, %v3423
        %v4656 = vpack.c.b16 %v3432, %v3428
        %v4657 = vpack.c.b16 %v3433, %v3429
        %v4658 = vpack.c.b16 %v3434, %v3430
        %v4659 = vpack.c.b16 %v3435, %v3431
        %v4660 = vpack.c.b16 %v3440, %v3436
        %v4661 = vpack.c.b16 %v3441, %v3437
        %v4662 = vpack.c.b16 %v3442, %v3438
        %v4663 = vpack.c.b16 %v3443, %v3439
        %v4664 = vpack.c.b16 %v3448, %v3444
        %v4665 = vpack.c.b16 %v3449, %v3445
        %v4666 = vpack.c.b16 %v3450, %v3446
        %v4667 = vpack.c.b16 %v3451, %v3447
        %v4668 = vpack.c.b16 %v3456, %v3452
        %v4669 = vpack.c.b16 %v3457, %v3453
        %v4670 = vpack.c.b16 %v3458, %v3454
        %v4671 = vpack.c.b16 %v3459, %v3455
        %v4672 = vpack.c.b16 %v3464, %v3460
        %v4673 = vpack.c.b16 %v3465, %v3461
        %v4674 = vpack.c.b16 %v3466, %v3462
        %v4675 = vpack.c.b16 %v3467, %v3463
        %v4676 = vpack.c.b16 %v3472, %v3468
        %v4677 = vpack.c.b16 %v3473, %v3469
        %v4678 = vpack.c.b16 %v3474, %v3470
        %v4679 = vpack.c.b16 %v3475, %v3471
        %v4680 = vpack.c.b16 %v3480, %v3476
        %v4681 = vpack.c.b16 %v3481, %v3477
        %v4682 = vpack.c.b16 %v3482, %v3478
        %v4683 = vpack.c.b16 %v3483, %v3479
        %v4684 = vpack.c.b16 %v3488, %v3484
        %v4685 = vpack.c.b16 %v3489, %v3485
        %v4686 = vpack.c.b16 %v3490, %v3486
        %v4687 = vpack.c.b16 %v3491, %v3487
        %v4688 = vpack.c.b16 %v3496, %v3492
        %v4689 = vpack.c.b16 %v3497, %v3493
        %v4690 = vpack.c.b16 %v3498, %v3494
        %v4691 = vpack.c.b16 %v3499, %v3495
        %v4692 = vpack.c.b16 %v3504, %v3500
        %v4693 = vpack.c.b16 %v3505, %v3501
        %v4694 = vpack.c.b16 %v3506, %v3502
        %v4695 = vpack.c.b16 %v3507, %v3503
        %v4696 = vpack.c.b16 %v3512, %v3508
        %v4697 = vpack.c.b16 %v3513, %v3509
        %v4698 = vpack.c.b16 %v3514, %v3510
        %v4699 = vpack.c.b16 %v3515, %v3511
        %v4700 = vpack.c.b16 %v3520, %v3516
        %v4701 = vpack.c.b16 %v3521, %v3517
        %v4702 = vpack.c.b16 %v3522, %v3518
        %v4703 = vpack.c.b16 %v3523, %v3519
        %v4704 = vpack.c.b16 %v3528, %v3524
        %v4705 = vpack.c.b16 %v3529, %v3525
        %v4706 = vpack.c.b16 %v3530, %v3526
        %v4707 = vpack.c.b16 %v3531, %v3527
        %v4708 = vpack.c.b16 %v3536, %v3532
        %v4709 = vpack.c.b16 %v3537, %v3533
        %v4710 = vpack.c.b16 %v3538, %v3534
        %v4711 = vpack.c.b16 %v3539, %v3535
        %v4712 = vpack.c.b16 %v3544, %v3540
        %v4713 = vpack.c.b16 %v3545, %v3541
        %v4714 = vpack.c.b16 %v3546, %v3542
        %v4715 = vpack.c.b16 %v3547, %v3543
        %v4716 = vpack.c.b16 %v3552, %v3548
        %v4717 = vpack.c.b16 %v3553, %v3549
        %v4718 = vpack.c.b16 %v3554, %v3550
        %v4719 = vpack.c.b16 %v3555, %v3551
        %v4720 = vpack.c.b16 %v3560, %v3556
        %v4721 = vpack.c.b16 %v3561, %v3557
        %v4722 = vpack.c.b16 %v3562, %v3558
        %v4723 = vpack.c.b16 %v3563, %v3559
        %v4724 = vpack.c.b16 %v3568, %v3564
        %v4725 = vpack.c.b16 %v3569, %v3565
        %v4726 = vpack.c.b16 %v3570, %v3566
        %v4727 = vpack.c.b16 %v3571, %v3567
        %v4728 = vpack.c.b16 %v3576, %v3572
        %v4729 = vpack.c.b16 %v3577, %v3573
        %v4730 = vpack.c.b16 %v3578, %v3574
        %v4731 = vpack.c.b16 %v3579, %v3575
        %v4732 = vpack.c.b16 %v3584, %v3580
        %v4733 = vpack.c.b16 %v3585, %v3581
        %v4734 = vpack.c.b16 %v3586, %v3582
        %v4735 = vpack.c.b16 %v3587, %v3583
        %v4736 = vpack.c.b16 %v3592, %v3588
        %v4737 = vpack.c.b16 %v3593, %v3589
        %v4738 = vpack.c.b16 %v3594, %v3590
        %v4739 = vpack.c.b16 %v3595, %v3591
        %v4740 = vpack.c.b16 %v3600, %v3596
        %v4741 = vpack.c.b16 %v3601, %v3597
        %v4742 = vpack.c.b16 %v3602, %v3598
        %v4743 = vpack.c.b16 %v3603, %v3599
        %v4744 = vpack.c.b16 %v3608, %v3604
        %v4745 = vpack.c.b16 %v3609, %v3605
        %v4746 = vpack.c.b16 %v3610, %v3606
        %v4747 = vpack.c.b16 %v3611, %v3607
        %v4748 = vpack.c.b16 %v3616, %v3612
        %v4749 = vpack.c.b16 %v3617, %v3613
        %v4750 = vpack.c.b16 %v3618, %v3614
        %v4751 = vpack.c.b16 %v3619, %v3615
        %v4752 = vpack.c.b16 %v3624, %v3620
        %v4753 = vpack.c.b16 %v3625, %v3621
        %v4754 = vpack.c.b16 %v3626, %v3622
        %v4755 = vpack.c.b16 %v3627, %v3623
        %v4756 = vpack.c.b16 %v3632, %v3628
        %v4757 = vpack.c.b16 %v3633, %v3629
        %v4758 = vpack.c.b16 %v3634, %v3630
        %v4759 = vpack.c.b16 %v3635, %v3631
        %v4760 = vpack.c.b16 %v3640, %v3636
        %v4761 = vpack.c.b16 %v3641, %v3637
        %v4762 = vpack.c.b16 %v3642, %v3638
        %v4763 = vpack.c.b16 %v3643, %v3639
        %v4764 = vpack.c.b16 %v3648, %v3644
        %v4765 = vpack.c.b16 %v3649, %v3645
        %v4766 = vpack.c.b16 %v3650, %v3646
        %v4767 = vpack.c.b16 %v3651, %v3647
        %v4768 = vpack.c.b16 %v3656, %v3652
        %v4769 = vpack.c.b16 %v3657, %v3653
        %v4770 = vpack.c.b16 %v3658, %v3654
        %v4771 = vpack.c.b16 %v3659, %v3655
        %v4772 = vpack.c.b16 %v3664, %v3660
        %v4773 = vpack.c.b16 %v3665, %v3661
        %v4774 = vpack.c.b16 %v3666, %v3662
        %v4775 = vpack.c.b16 %v3667, %v3663
        %v4776 = vpack.c.b16 %v3672, %v3668
        %v4777 = vpack.c.b16 %v3673, %v3669
        %v4778 = vpack.c.b16 %v3674, %v3670
        %v4779 = vpack.c.b16 %v3675, %v3671
        %v4780 = vpack.c.b16 %v3680, %v3676
        %v4781 = vpack.c.b16 %v3681, %v3677
        %v4782 = vpack.c.b16 %v3682, %v3678
        %v4783 = vpack.c.b16 %v3683, %v3679
        %v4784 = vpack.c.b16 %v3688, %v3684
        %v4785 = vpack.c.b16 %v3689, %v3685
        %v4786 = vpack.c.b16 %v3690, %v3686
        %v4787 = vpack.c.b16 %v3691, %v3687
        %v4788 = vpack.c.b16 %v3696, %v3692
        %v4789 = vpack.c.b16 %v3697, %v3693
        %v4790 = vpack.c.b16 %v3698, %v3694
        %v4791 = vpack.c.b16 %v3699, %v3695
        %v4792 = vpack.c.b16 %v3704, %v3700
        %v4793 = vpack.c.b16 %v3705, %v3701
        %v4794 = vpack.c.b16 %v3706, %v3702
        %v4795 = vpack.c.b16 %v3707, %v3703
        %v4796 = vpack.c.b16 %v3712, %v3708
        %v4797 = vpack.c.b16 %v3713, %v3709
        %v4798 = vpack.c.b16 %v3714, %v3710
        %v4799 = vpack.c.b16 %v3715, %v3711
        %v4800 = vpack.c.b16 %v3720, %v3716
        %v4801 = vpack.c.b16 %v3721, %v3717
        %v4802 = vpack.c.b16 %v3722, %v3718
        %v4803 = vpack.c.b16 %v3723, %v3719
        %v4804 = vpack.c.b16 %v3728, %v3724
        %v4805 = vpack.c.b16 %v3729, %v3725
        %v4806 = vpack.c.b16 %v3730, %v3726
        %v4807 = vpack.c.b16 %v3731, %v3727
        %v4808 = vpack.c.b16 %v3736, %v3732
        %v4809 = vpack.c.b16 %v3737, %v3733
        %v4810 = vpack.c.b16 %v3738, %v3734
        %v4811 = vpack.c.b16 %v3739, %v3735
        %v4812 = vpack.c.b16 %v3744, %v3740
        %v4813 = vpack.c.b16 %v3745, %v3741
        %v4814 = vpack.c.b16 %v3746, %v3742
        %v4815 = vpack.c.b16 %v3747, %v3743
        %v4816 = vpack.c.b16 %v3752, %v3748
        %v4817 = vpack.c.b16 %v3753, %v3749
        %v4818 = vpack.c.b16 %v3754, %v3750
        %v4819 = vpack.c.b16 %v3755, %v3751
        %v4820 = vpack.c.b16 %v3760, %v3756
        %v4821 = vpack.c.b16 %v3761, %v3757
        %v4822 = vpack.c.b16 %v3762, %v3758
        %v4823 = vpack.c.b16 %v3763, %v3759
        %v4824 = vpack.c.b16 %v3768, %v3764
        %v4825 = vpack.c.b16 %v3769, %v3765
        %v4826 = vpack.c.b16 %v3770, %v3766
        %v4827 = vpack.c.b16 %v3771, %v3767
        %v4828 = vpack.c.b16 %v3776, %v3772
        %v4829 = vpack.c.b16 %v3777, %v3773
        %v4830 = vpack.c.b16 %v3778, %v3774
        %v4831 = vpack.c.b16 %v3779, %v3775
        %v4832 = vpack.c.b16 %v3784, %v3780
        %v4833 = vpack.c.b16 %v3785, %v3781
        %v4834 = vpack.c.b16 %v3786, %v3782
        %v4835 = vpack.c.b16 %v3787, %v3783
        %v4836 = vpack.c.b16 %v3792, %v3788
        %v4837 = vpack.c.b16 %v3793, %v3789
        %v4838 = vpack.c.b16 %v3794, %v3790
        %v4839 = vpack.c.b16 %v3795, %v3791
        %v4840 = vpack.c.b16 %v3800, %v3796
        %v4841 = vpack.c.b16 %v3801, %v3797
        %v4842 = vpack.c.b16 %v3802, %v3798
        %v4843 = vpack.c.b16 %v3803, %v3799
        %v4844 = vpack.c.b16 %v3808, %v3804
        %v4845 = vpack.c.b16 %v3809, %v3805
        %v4846 = vpack.c.b16 %v3810, %v3806
        %v4847 = vpack.c.b16 %v3811, %v3807
        %v4848 = vpack.c.b16 %v3816, %v3812
        %v4849 = vpack.c.b16 %v3817, %v3813
        %v4850 = vpack.c.b16 %v3818, %v3814
        %v4851 = vpack.c.b16 %v3819, %v3815
        %v4852 = vpack.c.b16 %v3824, %v3820
        %v4853 = vpack.c.b16 %v3825, %v3821
        %v4854 = vpack.c.b16 %v3826, %v3822
        %v4855 = vpack.c.b16 %v3827, %v3823
        %v4856 = vpack.c.b16 %v3832, %v3828
        %v4857 = vpack.c.b16 %v3833, %v3829
        %v4858 = vpack.c.b16 %v3834, %v3830
        %v4859 = vpack.c.b16 %v3835, %v3831
        %v4860 = vpack.c.b16 %v3840, %v3836
        %v4861 = vpack.c.b16 %v3841, %v3837
        %v4862 = vpack.c.b16 %v3842, %v3838
        %v4863 = vpack.c.b16 %v3843, %v3839
        %v4864 = vpack.c.b16 %v3848, %v3844
        %v4865 = vpack.c.b16 %v3849, %v3845
        %v4866 = vpack.c.b16 %v3850, %v3846
        %v4867 = vpack.c.b16 %v3851, %v3847
        %v4868 = vpack.c.b16 %v3856, %v3852
        %v4869 = vpack.c.b16 %v3857, %v3853
        %v4870 = vpack.c.b16 %v3858, %v3854
        %v4871 = vpack.c.b16 %v3859, %v3855
        %v4872 = vpack.c.b16 %v3864, %v3860
        %v4873 = vpack.c.b16 %v3865, %v3861
        %v4874 = vpack.c.b16 %v3866, %v3862
        %v4875 = vpack.c.b16 %v3867, %v3863
        %v4876 = vpack.c.b16 %v3872, %v3868
        %v4877 = vpack.c.b16 %v3873, %v3869
        %v4878 = vpack.c.b16 %v3874, %v3870
        %v4879 = vpack.c.b16 %v3875, %v3871
        %v4880 = vpack.c.b16 %v3880, %v3876
        %v4881 = vpack.c.b16 %v3881, %v3877
        %v4882 = vpack.c.b16 %v3882, %v3878
        %v4883 = vpack.c.b16 %v3883, %v3879
        %v4884 = vpack.c.b16 %v3888, %v3884
        %v4885 = vpack.c.b16 %v3889, %v3885
        %v4886 = vpack.c.b16 %v3890, %v3886
        %v4887 = vpack.c.b16 %v3891, %v3887
        %v4888 = vpack.c.b16 %v3896, %v3892
        %v4889 = vpack.c.b16 %v3897, %v3893
        %v4890 = vpack.c.b16 %v3898, %v3894
        %v4891 = vpack.c.b16 %v3899, %v3895
        %v4892 = vpack.c.b16 %v3904, %v3900
        %v4893 = vpack.c.b16 %v3905, %v3901
        %v4894 = vpack.c.b16 %v3906, %v3902
        %v4895 = vpack.c.b16 %v3907, %v3903
        %v4896 = vpack.c.b16 %v3912, %v3908
        %v4897 = vpack.c.b16 %v3913, %v3909
        %v4898 = vpack.c.b16 %v3914, %v3910
        %v4899 = vpack.c.b16 %v3915, %v3911
        %v4900 = vpack.c.b16 %v3920, %v3916
        %v4901 = vpack.c.b16 %v3921, %v3917
        %v4902 = vpack.c.b16 %v3922, %v3918
        %v4903 = vpack.c.b16 %v3923, %v3919
        %v4904 = vpack.c.b16 %v3928, %v3924
        %v4905 = vpack.c.b16 %v3929, %v3925
        %v4906 = vpack.c.b16 %v3930, %v3926
        %v4907 = vpack.c.b16 %v3931, %v3927
        %v4908 = vpack.c.b16 %v3936, %v3932
        %v4909 = vpack.c.b16 %v3937, %v3933
        %v4910 = vpack.c.b16 %v3938, %v3934
        %v4911 = vpack.c.b16 %v3939, %v3935
        %v4912 = vpack.c.b16 %v3944, %v3940
        %v4913 = vpack.c.b16 %v3945, %v3941
        %v4914 = vpack.c.b16 %v3946, %v3942
        %v4915 = vpack.c.b16 %v3947, %v3943
        %v4916 = vpack.c.b16 %v3952, %v3948
        %v4917 = vpack.c.b16 %v3953, %v3949
        %v4918 = vpack.c.b16 %v3954, %v3950
        %v4919 = vpack.c.b16 %v3955, %v3951
        %v4920 = vpack.c.b16 %v3960, %v3956
        %v4921 = vpack.c.b16 %v3961, %v3957
        %v4922 = vpack.c.b16 %v3962, %v3958
        %v4923 = vpack.c.b16 %v3963, %v3959
        %v4924 = vpack.c.b16 %v3968, %v3964
        %v4925 = vpack.c.b16 %v3969, %v3965
        %v4926 = vpack.c.b16 %v3970, %v3966
        %v4927 = vpack.c.b16 %v3971, %v3967
        %v4928 = vpack.c.b16 %v3976, %v3972
        %v4929 = vpack.c.b16 %v3977, %v3973
        %v4930 = vpack.c.b16 %v3978, %v3974
        %v4931 = vpack.c.b16 %v3979, %v3975
        %v4932 = vpack.c.b16 %v3984, %v3980
        %v4933 = vpack.c.b16 %v3985, %v3981
        %v4934 = vpack.c.b16 %v3986, %v3982
        %v4935 = vpack.c.b16 %v3987, %v3983
        %v4936 = vpack.c.b16 %v3992, %v3988
        %v4937 = vpack.c.b16 %v3993, %v3989
        %v4938 = vpack.c.b16 %v3994, %v3990
        %v4939 = vpack.c.b16 %v3995, %v3991
        %v4940 = vpack.c.b16 %v4000, %v3996
        %v4941 = vpack.c.b16 %v4001, %v3997
        %v4942 = vpack.c.b16 %v4002, %v3998
        %v4943 = vpack.c.b16 %v4003, %v3999
        %v4944 = vpack.c.b16 %v4008, %v4004
        %v4945 = vpack.c.b16 %v4009, %v4005
        %v4946 = vpack.c.b16 %v4010, %v4006
        %v4947 = vpack.c.b16 %v4011, %v4007
        %v4948 = vpack.c.b16 %v4016, %v4012
        %v4949 = vpack.c.b16 %v4017, %v4013
        %v4950 = vpack.c.b16 %v4018, %v4014
        %v4951 = vpack.c.b16 %v4019, %v4015
        %v4952 = vpack.c.b16 %v4024, %v4020
        %v4953 = vpack.c.b16 %v4025, %v4021
        %v4954 = vpack.c.b16 %v4026, %v4022
        %v4955 = vpack.c.b16 %v4027, %v4023
        %v4956 = vpack.c.b16 %v4032, %v4028
        %v4957 = vpack.c.b16 %v4033, %v4029
        %v4958 = vpack.c.b16 %v4034, %v4030
        %v4959 = vpack.c.b16 %v4035, %v4031
        %v4960 = vpack.c.b16 %v4040, %v4036
        %v4961 = vpack.c.b16 %v4041, %v4037
        %v4962 = vpack.c.b16 %v4042, %v4038
        %v4963 = vpack.c.b16 %v4043, %v4039
        %v4964 = vpack.c.b16 %v4048, %v4044
        %v4965 = vpack.c.b16 %v4049, %v4045
        %v4966 = vpack.c.b16 %v4050, %v4046
        %v4967 = vpack.c.b16 %v4051, %v4047
        %v4968 = vpack.c.b16 %v4056, %v4052
        %v4969 = vpack.c.b16 %v4057, %v4053
        %v4970 = vpack.c.b16 %v4058, %v4054
        %v4971 = vpack.c.b16 %v4059, %v4055
        %v4972 = vpack.c.b16 %v4064, %v4060
        %v4973 = vpack.c.b16 %v4065, %v4061
        %v4974 = vpack.c.b16 %v4066, %v4062
        %v4975 = vpack.c.b16 %v4067, %v4063
        %v4976 = vpack.c.b16 %v4072, %v4068
        %v4977 = vpack.c.b16 %v4073, %v4069
        %v4978 = vpack.c.b16 %v4074, %v4070
        %v4979 = vpack.c.b16 %v4075, %v4071
        %v4980 = vpack.c.b16 %v4080, %v4076
        %v4981 = vpack.c.b16 %v4081, %v4077
        %v4982 = vpack.c.b16 %v4082, %v4078
        %v4983 = vpack.c.b16 %v4083, %v4079
        %v4984 = vpack.c.b16 %v4088, %v4084
        %v4985 = vpack.c.b16 %v4089, %v4085
        %v4986 = vpack.c.b16 %v4090, %v4086
        %v4987 = vpack.c.b16 %v4091, %v4087
        %5884 = vmatprep.subr.bf16.mxu0 %v4121
        %5885 = vmatpush1.bf16.msra.mxu0 %v4120
        %5886 = vmatprep.subr.bf16.mxu0 %v4117
        %5887 = vmatpush1.bf16.msra.mxu0 %v4116
        %5888 = vmatprep.subr.bf16.mxu0 %v4113
        %5889 = vmatpush1.bf16.msra.mxu0 %v4112
        %5890 = vmatprep.subr.bf16.mxu0 %v4109
        %5891 = vmatpush1.bf16.msra.mxu0 %v4108
        %5892 = vmatprep.subr.bf16.mxu0 %v4105
        %5893 = vmatpush1.bf16.msra.mxu0 %v4104
        %5894 = vmatprep.subr.bf16.mxu0 %v4101
        %5895 = vmatpush1.bf16.msra.mxu0 %v4100
        %5896 = vmatprep.subr.bf16.mxu0 %v4097
        %5897 = vmatpush1.bf16.msra.mxu0 %v4096
        %5898 = vmatprep.subr.bf16.mxu0 %v4093
        %5899 = vmatpush1.bf16.msra.mxu0 %v4092
        %5900 = vmatprep.subr.bf16.mxu0 %v4153
        %5901 = vmatpush2.bf16.msra.mxu0 %v4152
        %5902 = vmatprep.subr.bf16.mxu0 %v4149
        %5903 = vmatpush2.bf16.msra.mxu0 %v4148
        %5904 = vmatprep.subr.bf16.mxu0 %v4145
        %5905 = vmatpush2.bf16.msra.mxu0 %v4144
        %5906 = vmatprep.subr.bf16.mxu0 %v4141
        %5907 = vmatpush2.bf16.msra.mxu0 %v4140
        %5908 = vmatprep.subr.bf16.mxu0 %v4137
        %5909 = vmatpush2.bf16.msra.mxu0 %v4136
        %5910 = vmatprep.subr.bf16.mxu0 %v4133
        %5911 = vmatpush2.bf16.msra.mxu0 %v4132
        %5912 = vmatprep.subr.bf16.mxu0 %v4129
        %5913 = vmatpush2.bf16.msra.mxu0 %v4128
        %5914 = vmatprep.subr.bf16.mxu0 %v4125
        %5915 = vmatpush2.bf16.msra.mxu0 %v4124
        %5916 = vmatprep.mubr.bf16.mxu0 %v1242
        %5917 = vmatmul.mubr.bf16.gmra.mxu0 %v1228
        %v5918 = vpop.f32.mrf.mxu0
        %v5919 = vadd.f32 0.0, %v5918
        %v5920 = vpop.f32.mrf.mxu0
        %v5921 = vadd.f32 0.0, %v5920
        %v5922 = vpop.f32.mrf.mxu0
        %v5923 = vpop.f32.mrf.mxu0
        %5924 = vdwg.mxu0
        %5925 = vmatprep.subr.bf16.mxu0 %v4185
        %5926 = vmatpush1.bf16.msra.mxu0 %v4184
        %5927 = vmatprep.subr.bf16.mxu0 %v4181
        %5928 = vmatpush1.bf16.msra.mxu0 %v4180
        %5929 = vmatprep.subr.bf16.mxu0 %v4177
        %5930 = vmatpush1.bf16.msra.mxu0 %v4176
        %5931 = vmatprep.subr.bf16.mxu0 %v4173
        %5932 = vmatpush1.bf16.msra.mxu0 %v4172
        %5933 = vmatprep.subr.bf16.mxu0 %v4169
        %5934 = vmatpush1.bf16.msra.mxu0 %v4168
        %5935 = vmatprep.subr.bf16.mxu0 %v4165
        %5936 = vmatpush1.bf16.msra.mxu0 %v4164
        %5937 = vmatprep.subr.bf16.mxu0 %v4161
        %5938 = vmatpush1.bf16.msra.mxu0 %v4160
        %5939 = vmatprep.subr.bf16.mxu0 %v4157
        %5940 = vmatpush1.bf16.msra.mxu0 %v4156
        %5941 = vmatprep.subr.bf16.mxu0 %v4217
        %5942 = vmatpush2.bf16.msra.mxu0 %v4216
        %5943 = vmatprep.subr.bf16.mxu0 %v4213
        %5944 = vmatpush2.bf16.msra.mxu0 %v4212
        %5945 = vmatprep.subr.bf16.mxu0 %v4209
        %5946 = vmatpush2.bf16.msra.mxu0 %v4208
        %5947 = vmatprep.subr.bf16.mxu0 %v4205
        %5948 = vmatpush2.bf16.msra.mxu0 %v4204
        %5949 = vmatprep.subr.bf16.mxu0 %v4201
        %5950 = vmatpush2.bf16.msra.mxu0 %v4200
        %5951 = vmatprep.subr.bf16.mxu0 %v4197
        %5952 = vmatpush2.bf16.msra.mxu0 %v4196
        %5953 = vmatprep.subr.bf16.mxu0 %v4193
        %5954 = vmatpush2.bf16.msra.mxu0 %v4192
        %5955 = vmatprep.subr.bf16.mxu0 %v4189
        %5956 = vmatpush2.bf16.msra.mxu0 %v4188
        %5957 = vmatprep.mubr.bf16.mxu0 %v1252
        %5958 = vmatmul.mubr.bf16.gmra.mxu0 %v1250
        %v5959 = vpop.f32.mrf.mxu0
        %v5960 = vadd.f32 %v5919, %v5959
        %v5961 = vpop.f32.mrf.mxu0
        %v5962 = vadd.f32 %v5921, %v5961
        %v5963 = vpop.f32.mrf.mxu0
        %v5964 = vpop.f32.mrf.mxu0
        %5965 = vdwg.mxu0
        %5966 = vmatprep.subr.bf16.mxu0 %v4249
        %5967 = vmatpush1.bf16.msra.mxu0 %v4248
        %5968 = vmatprep.subr.bf16.mxu0 %v4245
        %5969 = vmatpush1.bf16.msra.mxu0 %v4244
        %5970 = vmatprep.subr.bf16.mxu0 %v4241
        %5971 = vmatpush1.bf16.msra.mxu0 %v4240
        %5972 = vmatprep.subr.bf16.mxu0 %v4237
        %5973 = vmatpush1.bf16.msra.mxu0 %v4236
        %5974 = vmatprep.subr.bf16.mxu0 %v4233
        %5975 = vmatpush1.bf16.msra.mxu0 %v4232
        %5976 = vmatprep.subr.bf16.mxu0 %v4229
        %5977 = vmatpush1.bf16.msra.mxu0 %v4228
        %5978 = vmatprep.subr.bf16.mxu0 %v4225
        %5979 = vmatpush1.bf16.msra.mxu0 %v4224
        %5980 = vmatprep.subr.bf16.mxu0 %v4221
        %5981 = vmatpush1.bf16.msra.mxu0 %v4220
        %5982 = vmatprep.subr.bf16.mxu0 %v4281
        %5983 = vmatpush2.bf16.msra.mxu0 %v4280
        %5984 = vmatprep.subr.bf16.mxu0 %v4277
        %5985 = vmatpush2.bf16.msra.mxu0 %v4276
        %5986 = vmatprep.subr.bf16.mxu0 %v4273
        %5987 = vmatpush2.bf16.msra.mxu0 %v4272
        %5988 = vmatprep.subr.bf16.mxu0 %v4269
        %5989 = vmatpush2.bf16.msra.mxu0 %v4268
        %5990 = vmatprep.subr.bf16.mxu0 %v4265
        %5991 = vmatpush2.bf16.msra.mxu0 %v4264
        %5992 = vmatprep.subr.bf16.mxu0 %v4261
        %5993 = vmatpush2.bf16.msra.mxu0 %v4260
        %5994 = vmatprep.subr.bf16.mxu0 %v4257
        %5995 = vmatpush2.bf16.msra.mxu0 %v4256
        %5996 = vmatprep.subr.bf16.mxu0 %v4253
        %5997 = vmatpush2.bf16.msra.mxu0 %v4252
        %5998 = vmatprep.mubr.bf16.mxu0 %v1249
        %5999 = vmatmul.mubr.bf16.gmra.mxu0 %v1235
        %v6000 = vpop.f32.mrf.mxu0
        %v6001 = vadd.f32 %v5960, %v6000
        %v6002 = vpop.f32.mrf.mxu0
        %v6003 = vadd.f32 %v5962, %v6002
        %v6004 = vpop.f32.mrf.mxu0
        %v6005 = vpop.f32.mrf.mxu0
        %6006 = vdwg.mxu0
        %6007 = vmatprep.subr.bf16.mxu0 %v4313
        %6008 = vmatpush1.bf16.msra.mxu0 %v4312
        %6009 = vmatprep.subr.bf16.mxu0 %v4309
        %6010 = vmatpush1.bf16.msra.mxu0 %v4308
        %6011 = vmatprep.subr.bf16.mxu0 %v4305
        %6012 = vmatpush1.bf16.msra.mxu0 %v4304
        %6013 = vmatprep.subr.bf16.mxu0 %v4301
        %6014 = vmatpush1.bf16.msra.mxu0 %v4300
        %6015 = vmatprep.subr.bf16.mxu0 %v4297
        %6016 = vmatpush1.bf16.msra.mxu0 %v4296
        %6017 = vmatprep.subr.bf16.mxu0 %v4293
        %6018 = vmatpush1.bf16.msra.mxu0 %v4292
        %6019 = vmatprep.subr.bf16.mxu0 %v4289
        %6020 = vmatpush1.bf16.msra.mxu0 %v4288
        %6021 = vmatprep.subr.bf16.mxu0 %v4285
        %6022 = vmatpush1.bf16.msra.mxu0 %v4284
        %6023 = vmatprep.subr.bf16.mxu0 %v4345
        %6024 = vmatpush2.bf16.msra.mxu0 %v4344
        %6025 = vmatprep.subr.bf16.mxu0 %v4341
        %6026 = vmatpush2.bf16.msra.mxu0 %v4340
        %6027 = vmatprep.subr.bf16.mxu0 %v4337
        %6028 = vmatpush2.bf16.msra.mxu0 %v4336
        %6029 = vmatprep.subr.bf16.mxu0 %v4333
        %6030 = vmatpush2.bf16.msra.mxu0 %v4332
        %6031 = vmatprep.subr.bf16.mxu0 %v4329
        %6032 = vmatpush2.bf16.msra.mxu0 %v4328
        %6033 = vmatprep.subr.bf16.mxu0 %v4325
        %6034 = vmatpush2.bf16.msra.mxu0 %v4324
        %6035 = vmatprep.subr.bf16.mxu0 %v4321
        %6036 = vmatpush2.bf16.msra.mxu0 %v4320
        %6037 = vmatprep.subr.bf16.mxu0 %v4317
        %6038 = vmatpush2.bf16.msra.mxu0 %v4316
        %6039 = vmatprep.mubr.bf16.mxu0 %v1253
        %6040 = vmatmul.mubr.bf16.gmra.mxu0 %v1251
        %v6041 = vpop.f32.mrf.mxu0
        %v6042 = vadd.f32 %v6001, %v6041
        %v6043 = vpop.f32.mrf.mxu0
        %v6044 = vadd.f32 %v6003, %v6043
        %v6045 = vpop.f32.mrf.mxu0
        %v6046 = vpop.f32.mrf.mxu0
        %6047 = vdwg.mxu0
        %6048 = vmatprep.subr.bf16.mxu0 %v4377
        %6049 = vmatpush1.bf16.msra.mxu0 %v4376
        %6050 = vmatprep.subr.bf16.mxu0 %v4373
        %6051 = vmatpush1.bf16.msra.mxu0 %v4372
        %6052 = vmatprep.subr.bf16.mxu0 %v4369
        %6053 = vmatpush1.bf16.msra.mxu0 %v4368
        %6054 = vmatprep.subr.bf16.mxu0 %v4365
        %6055 = vmatpush1.bf16.msra.mxu0 %v4364
        %6056 = vmatprep.subr.bf16.mxu0 %v4361
        %6057 = vmatpush1.bf16.msra.mxu0 %v4360
        %6058 = vmatprep.subr.bf16.mxu0 %v4357
        %6059 = vmatpush1.bf16.msra.mxu0 %v4356
        %6060 = vmatprep.subr.bf16.mxu0 %v4353
        %6061 = vmatpush1.bf16.msra.mxu0 %v4352
        %6062 = vmatprep.subr.bf16.mxu0 %v4349
        %6063 = vmatpush1.bf16.msra.mxu0 %v4348
        %6064 = vmatprep.subr.bf16.mxu0 %v4409
        %6065 = vmatpush2.bf16.msra.mxu0 %v4408
        %6066 = vmatprep.subr.bf16.mxu0 %v4405
        %6067 = vmatpush2.bf16.msra.mxu0 %v4404
        %6068 = vmatprep.subr.bf16.mxu0 %v4401
        %6069 = vmatpush2.bf16.msra.mxu0 %v4400
        %6070 = vmatprep.subr.bf16.mxu0 %v4397
        %6071 = vmatpush2.bf16.msra.mxu0 %v4396
        %6072 = vmatprep.subr.bf16.mxu0 %v4393
        %6073 = vmatpush2.bf16.msra.mxu0 %v4392
        %6074 = vmatprep.subr.bf16.mxu0 %v4389
        %6075 = vmatpush2.bf16.msra.mxu0 %v4388
        %6076 = vmatprep.subr.bf16.mxu0 %v4385
        %6077 = vmatpush2.bf16.msra.mxu0 %v4384
        %6078 = vmatprep.subr.bf16.mxu0 %v4381
        %6079 = vmatpush2.bf16.msra.mxu0 %v4380
        %6080 = vmatprep.mubr.bf16.mxu0 %v1291
        %6081 = vmatmul.mubr.bf16.gmra.mxu0 %v1277
        %v6082 = vpop.f32.mrf.mxu0
        %v6083 = vadd.f32 %v6042, %v6082
        %v6084 = vpop.f32.mrf.mxu0
        %v6085 = vadd.f32 %v6044, %v6084
        %v6086 = vpop.f32.mrf.mxu0
        %v6087 = vpop.f32.mrf.mxu0
        %6088 = vdwg.mxu0
        %6089 = vmatprep.subr.bf16.mxu0 %v4441
        %6090 = vmatpush1.bf16.msra.mxu0 %v4440
        %6091 = vmatprep.subr.bf16.mxu0 %v4437
        %6092 = vmatpush1.bf16.msra.mxu0 %v4436
        %6093 = vmatprep.subr.bf16.mxu0 %v4433
        %6094 = vmatpush1.bf16.msra.mxu0 %v4432
        %6095 = vmatprep.subr.bf16.mxu0 %v4429
        %6096 = vmatpush1.bf16.msra.mxu0 %v4428
        %6097 = vmatprep.subr.bf16.mxu0 %v4425
        %6098 = vmatpush1.bf16.msra.mxu0 %v4424
        %6099 = vmatprep.subr.bf16.mxu0 %v4421
        %6100 = vmatpush1.bf16.msra.mxu0 %v4420
        %6101 = vmatprep.subr.bf16.mxu0 %v4417
        %6102 = vmatpush1.bf16.msra.mxu0 %v4416
        %6103 = vmatprep.subr.bf16.mxu0 %v4413
        %6104 = vmatpush1.bf16.msra.mxu0 %v4412
        %6105 = vmatprep.subr.bf16.mxu0 %v4473
        %6106 = vmatpush2.bf16.msra.mxu0 %v4472
        %6107 = vmatprep.subr.bf16.mxu0 %v4469
        %6108 = vmatpush2.bf16.msra.mxu0 %v4468
        %6109 = vmatprep.subr.bf16.mxu0 %v4465
        %6110 = vmatpush2.bf16.msra.mxu0 %v4464
        %6111 = vmatprep.subr.bf16.mxu0 %v4461
        %6112 = vmatpush2.bf16.msra.mxu0 %v4460
        %6113 = vmatprep.subr.bf16.mxu0 %v4457
        %6114 = vmatpush2.bf16.msra.mxu0 %v4456
        %6115 = vmatprep.subr.bf16.mxu0 %v4453
        %6116 = vmatpush2.bf16.msra.mxu0 %v4452
        %6117 = vmatprep.subr.bf16.mxu0 %v4449
        %6118 = vmatpush2.bf16.msra.mxu0 %v4448
        %6119 = vmatprep.subr.bf16.mxu0 %v4445
        %6120 = vmatpush2.bf16.msra.mxu0 %v4444
        %6121 = vmatprep.mubr.bf16.mxu0 %v1301
        %6122 = vmatmul.mubr.bf16.gmra.mxu0 %v1299
        %v6123 = vpop.f32.mrf.mxu0
        %v6124 = vadd.f32 %v6083, %v6123
        %v6125 = vpop.f32.mrf.mxu0
        %v6126 = vadd.f32 %v6085, %v6125
        %v6127 = vpop.f32.mrf.mxu0
        %v6128 = vpop.f32.mrf.mxu0
        %6129 = vdwg.mxu0
        %6130 = vmatprep.subr.bf16.mxu0 %v4505
        %6131 = vmatpush1.bf16.msra.mxu0 %v4504
        %6132 = vmatprep.subr.bf16.mxu0 %v4501
        %6133 = vmatpush1.bf16.msra.mxu0 %v4500
        %6134 = vmatprep.subr.bf16.mxu0 %v4497
        %6135 = vmatpush1.bf16.msra.mxu0 %v4496
        %6136 = vmatprep.subr.bf16.mxu0 %v4493
        %6137 = vmatpush1.bf16.msra.mxu0 %v4492
        %6138 = vmatprep.subr.bf16.mxu0 %v4489
        %6139 = vmatpush1.bf16.msra.mxu0 %v4488
        %6140 = vmatprep.subr.bf16.mxu0 %v4485
        %6141 = vmatpush1.bf16.msra.mxu0 %v4484
        %6142 = vmatprep.subr.bf16.mxu0 %v4481
        %6143 = vmatpush1.bf16.msra.mxu0 %v4480
        %6144 = vmatprep.subr.bf16.mxu0 %v4477
        %6145 = vmatpush1.bf16.msra.mxu0 %v4476
        %6146 = vmatprep.subr.bf16.mxu0 %v4537
        %6147 = vmatpush2.bf16.msra.mxu0 %v4536
        %6148 = vmatprep.subr.bf16.mxu0 %v4533
        %6149 = vmatpush2.bf16.msra.mxu0 %v4532
        %6150 = vmatprep.subr.bf16.mxu0 %v4529
        %6151 = vmatpush2.bf16.msra.mxu0 %v4528
        %6152 = vmatprep.subr.bf16.mxu0 %v4525
        %6153 = vmatpush2.bf16.msra.mxu0 %v4524
        %6154 = vmatprep.subr.bf16.mxu0 %v4521
        %6155 = vmatpush2.bf16.msra.mxu0 %v4520
        %6156 = vmatprep.subr.bf16.mxu0 %v4517
        %6157 = vmatpush2.bf16.msra.mxu0 %v4516
        %6158 = vmatprep.subr.bf16.mxu0 %v4513
        %6159 = vmatpush2.bf16.msra.mxu0 %v4512
        %6160 = vmatprep.subr.bf16.mxu0 %v4509
        %6161 = vmatpush2.bf16.msra.mxu0 %v4508
        %6162 = vmatprep.mubr.bf16.mxu0 %v1298
        %6163 = vmatmul.mubr.bf16.gmra.mxu0 %v1284
        %v6164 = vpop.f32.mrf.mxu0
        %v6165 = vadd.f32 %v6124, %v6164
        %v6166 = vpop.f32.mrf.mxu0
        %v6167 = vadd.f32 %v6126, %v6166
        %v6168 = vpop.f32.mrf.mxu0
        %v6169 = vpop.f32.mrf.mxu0
        %6170 = vdwg.mxu0
        %6171 = vmatprep.subr.bf16.mxu0 %v4569
        %6172 = vmatpush1.bf16.msra.mxu0 %v4568
        %6173 = vmatprep.subr.bf16.mxu0 %v4565
        %6174 = vmatpush1.bf16.msra.mxu0 %v4564
        %6175 = vmatprep.subr.bf16.mxu0 %v4561
        %6176 = vmatpush1.bf16.msra.mxu0 %v4560
        %6177 = vmatprep.subr.bf16.mxu0 %v4557
        %6178 = vmatpush1.bf16.msra.mxu0 %v4556
        %6179 = vmatprep.subr.bf16.mxu0 %v4553
        %6180 = vmatpush1.bf16.msra.mxu0 %v4552
        %6181 = vmatprep.subr.bf16.mxu0 %v4549
        %6182 = vmatpush1.bf16.msra.mxu0 %v4548
        %6183 = vmatprep.subr.bf16.mxu0 %v4545
        %6184 = vmatpush1.bf16.msra.mxu0 %v4544
        %6185 = vmatprep.subr.bf16.mxu0 %v4541
        %6186 = vmatpush1.bf16.msra.mxu0 %v4540
        %6187 = vmatprep.subr.bf16.mxu0 %v4601
        %6188 = vmatpush2.bf16.msra.mxu0 %v4600
        %6189 = vmatprep.subr.bf16.mxu0 %v4597
        %6190 = vmatpush2.bf16.msra.mxu0 %v4596
        %6191 = vmatprep.subr.bf16.mxu0 %v4593
        %6192 = vmatpush2.bf16.msra.mxu0 %v4592
        %6193 = vmatprep.subr.bf16.mxu0 %v4589
        %6194 = vmatpush2.bf16.msra.mxu0 %v4588
        %6195 = vmatprep.subr.bf16.mxu0 %v4585
        %6196 = vmatpush2.bf16.msra.mxu0 %v4584
        %6197 = vmatprep.subr.bf16.mxu0 %v4581
        %6198 = vmatpush2.bf16.msra.mxu0 %v4580
        %6199 = vmatprep.subr.bf16.mxu0 %v4577
        %6200 = vmatpush2.bf16.msra.mxu0 %v4576
        %6201 = vmatprep.subr.bf16.mxu0 %v4573
        %6202 = vmatpush2.bf16.msra.mxu0 %v4572
        %6203 = vmatprep.mubr.bf16.mxu0 %v1302
        %6204 = vmatmul.mubr.bf16.gmra.mxu0 %v1300
        %v6205 = vpop.f32.mrf.mxu0
        %v6206 = vadd.f32 %v6165, %v6205
        %v6207 = vpop.f32.mrf.mxu0
        %v6208 = vadd.f32 %v6167, %v6207
        %v6209 = vpop.f32.mrf.mxu0
        %v6210 = vpop.f32.mrf.mxu0
        %6211 = vdwg.mxu0
        %6212 = vmatprep.subr.bf16.mxu0 %v4633
        %6213 = vmatpush1.bf16.msra.mxu0 %v4632
        %6214 = vmatprep.subr.bf16.mxu0 %v4629
        %6215 = vmatpush1.bf16.msra.mxu0 %v4628
        %6216 = vmatprep.subr.bf16.mxu0 %v4625
        %6217 = vmatpush1.bf16.msra.mxu0 %v4624
        %6218 = vmatprep.subr.bf16.mxu0 %v4621
        %6219 = vmatpush1.bf16.msra.mxu0 %v4620
        %6220 = vmatprep.subr.bf16.mxu0 %v4617
        %6221 = vmatpush1.bf16.msra.mxu0 %v4616
        %6222 = vmatprep.subr.bf16.mxu0 %v4613
        %6223 = vmatpush1.bf16.msra.mxu0 %v4612
        %6224 = vmatprep.subr.bf16.mxu0 %v4609
        %6225 = vmatpush1.bf16.msra.mxu0 %v4608
        %6226 = vmatprep.subr.bf16.mxu0 %v4605
        %6227 = vmatpush1.bf16.msra.mxu0 %v4604
        %6228 = vmatprep.subr.bf16.mxu0 %v4665
        %6229 = vmatpush2.bf16.msra.mxu0 %v4664
        %6230 = vmatprep.subr.bf16.mxu0 %v4661
        %6231 = vmatpush2.bf16.msra.mxu0 %v4660
        %6232 = vmatprep.subr.bf16.mxu0 %v4657
        %6233 = vmatpush2.bf16.msra.mxu0 %v4656
        %6234 = vmatprep.subr.bf16.mxu0 %v4653
        %6235 = vmatpush2.bf16.msra.mxu0 %v4652
        %6236 = vmatprep.subr.bf16.mxu0 %v4649
        %6237 = vmatpush2.bf16.msra.mxu0 %v4648
        %6238 = vmatprep.subr.bf16.mxu0 %v4645
        %6239 = vmatpush2.bf16.msra.mxu0 %v4644
        %6240 = vmatprep.subr.bf16.mxu0 %v4641
        %6241 = vmatpush2.bf16.msra.mxu0 %v4640
        %6242 = vmatprep.subr.bf16.mxu0 %v4637
        %6243 = vmatpush2.bf16.msra.mxu0 %v4636
        %6244 = vmatprep.mubr.bf16.mxu0 %v1340
        %6245 = vmatmul.mubr.bf16.gmra.mxu0 %v1326
        %v6246 = vpop.f32.mrf.mxu0
        %v6247 = vadd.f32 %v6206, %v6246
        %v6248 = vpop.f32.mrf.mxu0
        %v6249 = vadd.f32 %v6208, %v6248
        %v6250 = vpop.f32.mrf.mxu0
        %v6251 = vpop.f32.mrf.mxu0
        %6252 = vdwg.mxu0
        %6253 = vmatprep.subr.bf16.mxu0 %v4697
        %6254 = vmatpush1.bf16.msra.mxu0 %v4696
        %6255 = vmatprep.subr.bf16.mxu0 %v4693
        %6256 = vmatpush1.bf16.msra.mxu0 %v4692
        %6257 = vmatprep.subr.bf16.mxu0 %v4689
        %6258 = vmatpush1.bf16.msra.mxu0 %v4688
        %6259 = vmatprep.subr.bf16.mxu0 %v4685
        %6260 = vmatpush1.bf16.msra.mxu0 %v4684
        %6261 = vmatprep.subr.bf16.mxu0 %v4681
        %6262 = vmatpush1.bf16.msra.mxu0 %v4680
        %6263 = vmatprep.subr.bf16.mxu0 %v4677
        %6264 = vmatpush1.bf16.msra.mxu0 %v4676
        %6265 = vmatprep.subr.bf16.mxu0 %v4673
        %6266 = vmatpush1.bf16.msra.mxu0 %v4672
        %6267 = vmatprep.subr.bf16.mxu0 %v4669
        %6268 = vmatpush1.bf16.msra.mxu0 %v4668
        %6269 = vmatprep.subr.bf16.mxu0 %v4729
        %6270 = vmatpush2.bf16.msra.mxu0 %v4728
        %6271 = vmatprep.subr.bf16.mxu0 %v4725
        %6272 = vmatpush2.bf16.msra.mxu0 %v4724
        %6273 = vmatprep.subr.bf16.mxu0 %v4721
        %6274 = vmatpush2.bf16.msra.mxu0 %v4720
        %6275 = vmatprep.subr.bf16.mxu0 %v4717
        %6276 = vmatpush2.bf16.msra.mxu0 %v4716
        %6277 = vmatprep.subr.bf16.mxu0 %v4713
        %6278 = vmatpush2.bf16.msra.mxu0 %v4712
        %6279 = vmatprep.subr.bf16.mxu0 %v4709
        %6280 = vmatpush2.bf16.msra.mxu0 %v4708
        %6281 = vmatprep.subr.bf16.mxu0 %v4705
        %6282 = vmatpush2.bf16.msra.mxu0 %v4704
        %6283 = vmatprep.subr.bf16.mxu0 %v4701
        %6284 = vmatpush2.bf16.msra.mxu0 %v4700
        %6285 = vmatprep.mubr.bf16.mxu0 %v1350
        %6286 = vmatmul.mubr.bf16.gmra.mxu0 %v1348
        %v6287 = vpop.f32.mrf.mxu0
        %v6288 = vadd.f32 %v6247, %v6287
        %v6289 = vpop.f32.mrf.mxu0
        %v6290 = vadd.f32 %v6249, %v6289
        %v6291 = vpop.f32.mrf.mxu0
        %v6292 = vpop.f32.mrf.mxu0
        %6293 = vdwg.mxu0
        %6294 = vmatprep.subr.bf16.mxu0 %v4761
        %6295 = vmatpush1.bf16.msra.mxu0 %v4760
        %6296 = vmatprep.subr.bf16.mxu0 %v4757
        %6297 = vmatpush1.bf16.msra.mxu0 %v4756
        %6298 = vmatprep.subr.bf16.mxu0 %v4753
        %6299 = vmatpush1.bf16.msra.mxu0 %v4752
        %6300 = vmatprep.subr.bf16.mxu0 %v4749
        %6301 = vmatpush1.bf16.msra.mxu0 %v4748
        %6302 = vmatprep.subr.bf16.mxu0 %v4745
        %6303 = vmatpush1.bf16.msra.mxu0 %v4744
        %6304 = vmatprep.subr.bf16.mxu0 %v4741
        %6305 = vmatpush1.bf16.msra.mxu0 %v4740
        %6306 = vmatprep.subr.bf16.mxu0 %v4737
        %6307 = vmatpush1.bf16.msra.mxu0 %v4736
        %6308 = vmatprep.subr.bf16.mxu0 %v4733
        %6309 = vmatpush1.bf16.msra.mxu0 %v4732
        %6310 = vmatprep.subr.bf16.mxu0 %v4793
        %6311 = vmatpush2.bf16.msra.mxu0 %v4792
        %6312 = vmatprep.subr.bf16.mxu0 %v4789
        %6313 = vmatpush2.bf16.msra.mxu0 %v4788
        %6314 = vmatprep.subr.bf16.mxu0 %v4785
        %6315 = vmatpush2.bf16.msra.mxu0 %v4784
        %6316 = vmatprep.subr.bf16.mxu0 %v4781
        %6317 = vmatpush2.bf16.msra.mxu0 %v4780
        %6318 = vmatprep.subr.bf16.mxu0 %v4777
        %6319 = vmatpush2.bf16.msra.mxu0 %v4776
        %6320 = vmatprep.subr.bf16.mxu0 %v4773
        %6321 = vmatpush2.bf16.msra.mxu0 %v4772
        %6322 = vmatprep.subr.bf16.mxu0 %v4769
        %6323 = vmatpush2.bf16.msra.mxu0 %v4768
        %6324 = vmatprep.subr.bf16.mxu0 %v4765
        %6325 = vmatpush2.bf16.msra.mxu0 %v4764
        %6326 = vmatprep.mubr.bf16.mxu0 %v1347
        %6327 = vmatmul.mubr.bf16.gmra.mxu0 %v1333
        %v6328 = vpop.f32.mrf.mxu0
        %v6329 = vadd.f32 %v6288, %v6328
        %v6330 = vpop.f32.mrf.mxu0
        %v6331 = vadd.f32 %v6290, %v6330
        %v6332 = vpop.f32.mrf.mxu0
        %v6333 = vpop.f32.mrf.mxu0
        %6334 = vdwg.mxu0
        %6335 = vmatprep.subr.bf16.mxu0 %v4825
        %6336 = vmatpush1.bf16.msra.mxu0 %v4824
        %6337 = vmatprep.subr.bf16.mxu0 %v4821
        %6338 = vmatpush1.bf16.msra.mxu0 %v4820
        %6339 = vmatprep.subr.bf16.mxu0 %v4817
        %6340 = vmatpush1.bf16.msra.mxu0 %v4816
        %6341 = vmatprep.subr.bf16.mxu0 %v4813
        %6342 = vmatpush1.bf16.msra.mxu0 %v4812
        %6343 = vmatprep.subr.bf16.mxu0 %v4809
        %6344 = vmatpush1.bf16.msra.mxu0 %v4808
        %6345 = vmatprep.subr.bf16.mxu0 %v4805
        %6346 = vmatpush1.bf16.msra.mxu0 %v4804
        %6347 = vmatprep.subr.bf16.mxu0 %v4801
        %6348 = vmatpush1.bf16.msra.mxu0 %v4800
        %6349 = vmatprep.subr.bf16.mxu0 %v4797
        %6350 = vmatpush1.bf16.msra.mxu0 %v4796
        %6351 = vmatprep.subr.bf16.mxu0 %v4857
        %6352 = vmatpush2.bf16.msra.mxu0 %v4856
        %6353 = vmatprep.subr.bf16.mxu0 %v4853
        %6354 = vmatpush2.bf16.msra.mxu0 %v4852
        %6355 = vmatprep.subr.bf16.mxu0 %v4849
        %6356 = vmatpush2.bf16.msra.mxu0 %v4848
        %6357 = vmatprep.subr.bf16.mxu0 %v4845
        %6358 = vmatpush2.bf16.msra.mxu0 %v4844
        %6359 = vmatprep.subr.bf16.mxu0 %v4841
        %6360 = vmatpush2.bf16.msra.mxu0 %v4840
        %6361 = vmatprep.subr.bf16.mxu0 %v4837
        %6362 = vmatpush2.bf16.msra.mxu0 %v4836
        %6363 = vmatprep.subr.bf16.mxu0 %v4833
        %6364 = vmatpush2.bf16.msra.mxu0 %v4832
        %6365 = vmatprep.subr.bf16.mxu0 %v4829
        %6366 = vmatpush2.bf16.msra.mxu0 %v4828
        %6367 = vmatprep.mubr.bf16.mxu0 %v1351
        %6368 = vmatmul.mubr.bf16.gmra.mxu0 %v1349
        %v6369 = vpop.f32.mrf.mxu0
        %v6370 = vadd.f32 %v6329, %v6369
        %v6371 = vpop.f32.mrf.mxu0
        %v6372 = vadd.f32 %v6331, %v6371
        %v6373 = vpop.f32.mrf.mxu0
        %v6374 = vpop.f32.mrf.mxu0
        %6375 = vdwg.mxu0
        %6376 = vmatprep.subr.bf16.mxu0 %v4889
        %6377 = vmatpush1.bf16.msra.mxu0 %v4888
        %6378 = vmatprep.subr.bf16.mxu0 %v4885
        %6379 = vmatpush1.bf16.msra.mxu0 %v4884
        %6380 = vmatprep.subr.bf16.mxu0 %v4881
        %6381 = vmatpush1.bf16.msra.mxu0 %v4880
        %6382 = vmatprep.subr.bf16.mxu0 %v4877
        %6383 = vmatpush1.bf16.msra.mxu0 %v4876
        %6384 = vmatprep.subr.bf16.mxu0 %v4873
        %6385 = vmatpush1.bf16.msra.mxu0 %v4872
        %6386 = vmatprep.subr.bf16.mxu0 %v4869
        %6387 = vmatpush1.bf16.msra.mxu0 %v4868
        %6388 = vmatprep.subr.bf16.mxu0 %v4865
        %6389 = vmatpush1.bf16.msra.mxu0 %v4864
        %6390 = vmatprep.subr.bf16.mxu0 %v4861
        %6391 = vmatpush1.bf16.msra.mxu0 %v4860
        %6392 = vmatprep.subr.bf16.mxu0 %v4921
        %6393 = vmatpush2.bf16.msra.mxu0 %v4920
        %6394 = vmatprep.subr.bf16.mxu0 %v4917
        %6395 = vmatpush2.bf16.msra.mxu0 %v4916
        %6396 = vmatprep.subr.bf16.mxu0 %v4913
        %6397 = vmatpush2.bf16.msra.mxu0 %v4912
        %6398 = vmatprep.subr.bf16.mxu0 %v4909
        %6399 = vmatpush2.bf16.msra.mxu0 %v4908
        %6400 = vmatprep.subr.bf16.mxu0 %v4905
        %6401 = vmatpush2.bf16.msra.mxu0 %v4904
        %6402 = vmatprep.subr.bf16.mxu0 %v4901
        %6403 = vmatpush2.bf16.msra.mxu0 %v4900
        %6404 = vmatprep.subr.bf16.mxu0 %v4897
        %6405 = vmatpush2.bf16.msra.mxu0 %v4896
        %6406 = vmatprep.subr.bf16.mxu0 %v4893
        %6407 = vmatpush2.bf16.msra.mxu0 %v4892
        %6408 = vmatprep.mubr.bf16.mxu0 %v1373
        %6409 = vmatmul.mubr.bf16.gmra.mxu0 %v1366
        %v6410 = vpop.f32.mrf.mxu0
        %v6411 = vadd.f32 %v6370, %v6410
        %v6412 = vpop.f32.mrf.mxu0
        %v6413 = vadd.f32 %v6372, %v6412
        %v6414 = vpop.f32.mrf.mxu0
        %v6415 = vpop.f32.mrf.mxu0
        %6416 = vdwg.mxu0
        %6417 = vmatprep.subr.bf16.mxu0 %v4953
        %6418 = vmatpush1.bf16.msra.mxu0 %v4952
        %6419 = vmatprep.subr.bf16.mxu0 %v4949
        %6420 = vmatpush1.bf16.msra.mxu0 %v4948
        %6421 = vmatprep.subr.bf16.mxu0 %v4945
        %6422 = vmatpush1.bf16.msra.mxu0 %v4944
        %6423 = vmatprep.subr.bf16.mxu0 %v4941
        %6424 = vmatpush1.bf16.msra.mxu0 %v4940
        %6425 = vmatprep.subr.bf16.mxu0 %v4937
        %6426 = vmatpush1.bf16.msra.mxu0 %v4936
        %6427 = vmatprep.subr.bf16.mxu0 %v4933
        %6428 = vmatpush1.bf16.msra.mxu0 %v4932
        %6429 = vmatprep.subr.bf16.mxu0 %v4929
        %6430 = vmatpush1.bf16.msra.mxu0 %v4928
        %6431 = vmatprep.subr.bf16.mxu0 %v4925
        %6432 = vmatpush1.bf16.msra.mxu0 %v4924
        %6433 = vmatprep.subr.bf16.mxu0 %v4985
        %6434 = vmatpush2.bf16.msra.mxu0 %v4984
        %6435 = vmatprep.subr.bf16.mxu0 %v4981
        %6436 = vmatpush2.bf16.msra.mxu0 %v4980
        %6437 = vmatprep.subr.bf16.mxu0 %v4977
        %6438 = vmatpush2.bf16.msra.mxu0 %v4976
        %6439 = vmatprep.subr.bf16.mxu0 %v4973
        %6440 = vmatpush2.bf16.msra.mxu0 %v4972
        %6441 = vmatprep.subr.bf16.mxu0 %v4969
        %6442 = vmatpush2.bf16.msra.mxu0 %v4968
        %6443 = vmatprep.subr.bf16.mxu0 %v4965
        %6444 = vmatpush2.bf16.msra.mxu0 %v4964
        %6445 = vmatprep.subr.bf16.mxu0 %v4961
        %6446 = vmatpush2.bf16.msra.mxu0 %v4960
        %6447 = vmatprep.subr.bf16.mxu0 %v4957
        %6448 = vmatpush2.bf16.msra.mxu0 %v4956
        %6449 = vmatprep.mubr.bf16.mxu0 %v1375
        %6450 = vmatmul.mubr.bf16.gmra.mxu0 %v1374
        %v6451 = vpop.f32.mrf.mxu0
        %v6452 = vadd.f32 %v6411, %v6451
        %v6453 = vpop.f32.mrf.mxu0
        %v6454 = vadd.f32 %v6413, %v6453
        %v6455 = vpop.f32.mrf.mxu0
        %v6456 = vpop.f32.mrf.mxu0
        %6457 = vdwg.mxu0
        %6458 = vmatprep.subr.bf16.mxu0 %v4123
        %6459 = vmatpush1.bf16.msra.mxu0 %v4122
        %6460 = vmatprep.subr.bf16.mxu0 %v4119
        %6461 = vmatpush1.bf16.msra.mxu0 %v4118
        %6462 = vmatprep.subr.bf16.mxu0 %v4115
        %6463 = vmatpush1.bf16.msra.mxu0 %v4114
        %6464 = vmatprep.subr.bf16.mxu0 %v4111
        %6465 = vmatpush1.bf16.msra.mxu0 %v4110
        %6466 = vmatprep.subr.bf16.mxu0 %v4107
        %6467 = vmatpush1.bf16.msra.mxu0 %v4106
        %6468 = vmatprep.subr.bf16.mxu0 %v4103
        %6469 = vmatpush1.bf16.msra.mxu0 %v4102
        %6470 = vmatprep.subr.bf16.mxu0 %v4099
        %6471 = vmatpush1.bf16.msra.mxu0 %v4098
        %6472 = vmatprep.subr.bf16.mxu0 %v4095
        %6473 = vmatpush1.bf16.msra.mxu0 %v4094
        %6474 = vmatprep.subr.bf16.mxu0 %v4155
        %6475 = vmatpush2.bf16.msra.mxu0 %v4154
        %6476 = vmatprep.subr.bf16.mxu0 %v4151
        %6477 = vmatpush2.bf16.msra.mxu0 %v4150
        %6478 = vmatprep.subr.bf16.mxu0 %v4147
        %6479 = vmatpush2.bf16.msra.mxu0 %v4146
        %6480 = vmatprep.subr.bf16.mxu0 %v4143
        %6481 = vmatpush2.bf16.msra.mxu0 %v4142
        %6482 = vmatprep.subr.bf16.mxu0 %v4139
        %6483 = vmatpush2.bf16.msra.mxu0 %v4138
        %6484 = vmatprep.subr.bf16.mxu0 %v4135
        %6485 = vmatpush2.bf16.msra.mxu0 %v4134
        %6486 = vmatprep.subr.bf16.mxu0 %v4131
        %6487 = vmatpush2.bf16.msra.mxu0 %v4130
        %6488 = vmatprep.subr.bf16.mxu0 %v4127
        %6489 = vmatpush2.bf16.msra.mxu0 %v4126
        %6490 = vmatprep.mubr.bf16.mxu0 %v1242
        %6491 = vmatmul.mubr.bf16.gmra.mxu0 %v1228
        %v6492 = vpop.f32.mrf.mxu0
        %v6493 = vadd.f32 0.0, %v6492
        %v6494 = vpop.f32.mrf.mxu0
        %v6495 = vadd.f32 0.0, %v6494
        %v6496 = vpop.f32.mrf.mxu0
        %v6497 = vpop.f32.mrf.mxu0
        %6498 = vdwg.mxu0
        %6499 = vmatprep.subr.bf16.mxu0 %v4187
        %6500 = vmatpush1.bf16.msra.mxu0 %v4186
        %6501 = vmatprep.subr.bf16.mxu0 %v4183
        %6502 = vmatpush1.bf16.msra.mxu0 %v4182
        %6503 = vmatprep.subr.bf16.mxu0 %v4179
        %6504 = vmatpush1.bf16.msra.mxu0 %v4178
        %6505 = vmatprep.subr.bf16.mxu0 %v4175
        %6506 = vmatpush1.bf16.msra.mxu0 %v4174
        %6507 = vmatprep.subr.bf16.mxu0 %v4171
        %6508 = vmatpush1.bf16.msra.mxu0 %v4170
        %6509 = vmatprep.subr.bf16.mxu0 %v4167
        %6510 = vmatpush1.bf16.msra.mxu0 %v4166
        %6511 = vmatprep.subr.bf16.mxu0 %v4163
        %6512 = vmatpush1.bf16.msra.mxu0 %v4162
        %6513 = vmatprep.subr.bf16.mxu0 %v4159
        %6514 = vmatpush1.bf16.msra.mxu0 %v4158
        %6515 = vmatprep.subr.bf16.mxu0 %v4219
        %6516 = vmatpush2.bf16.msra.mxu0 %v4218
        %6517 = vmatprep.subr.bf16.mxu0 %v4215
        %6518 = vmatpush2.bf16.msra.mxu0 %v4214
        %6519 = vmatprep.subr.bf16.mxu0 %v4211
        %6520 = vmatpush2.bf16.msra.mxu0 %v4210
        %6521 = vmatprep.subr.bf16.mxu0 %v4207
        %6522 = vmatpush2.bf16.msra.mxu0 %v4206
        %6523 = vmatprep.subr.bf16.mxu0 %v4203
        %6524 = vmatpush2.bf16.msra.mxu0 %v4202
        %6525 = vmatprep.subr.bf16.mxu0 %v4199
        %6526 = vmatpush2.bf16.msra.mxu0 %v4198
        %6527 = vmatprep.subr.bf16.mxu0 %v4195
        %6528 = vmatpush2.bf16.msra.mxu0 %v4194
        %6529 = vmatprep.subr.bf16.mxu0 %v4191
        %6530 = vmatpush2.bf16.msra.mxu0 %v4190
        %6531 = vmatprep.mubr.bf16.mxu0 %v1252
        %6532 = vmatmul.mubr.bf16.gmra.mxu0 %v1250
        %v6533 = vpop.f32.mrf.mxu0
        %v6534 = vadd.f32 %v6493, %v6533
        %v6535 = vpop.f32.mrf.mxu0
        %v6536 = vadd.f32 %v6495, %v6535
        %v6537 = vpop.f32.mrf.mxu0
        %v6538 = vpop.f32.mrf.mxu0
        %6539 = vdwg.mxu0
        %6540 = vmatprep.subr.bf16.mxu0 %v4251
        %6541 = vmatpush1.bf16.msra.mxu0 %v4250
        %6542 = vmatprep.subr.bf16.mxu0 %v4247
        %6543 = vmatpush1.bf16.msra.mxu0 %v4246
        %6544 = vmatprep.subr.bf16.mxu0 %v4243
        %6545 = vmatpush1.bf16.msra.mxu0 %v4242
        %6546 = vmatprep.subr.bf16.mxu0 %v4239
        %6547 = vmatpush1.bf16.msra.mxu0 %v4238
        %6548 = vmatprep.subr.bf16.mxu0 %v4235
        %6549 = vmatpush1.bf16.msra.mxu0 %v4234
        %6550 = vmatprep.subr.bf16.mxu0 %v4231
        %6551 = vmatpush1.bf16.msra.mxu0 %v4230
        %6552 = vmatprep.subr.bf16.mxu0 %v4227
        %6553 = vmatpush1.bf16.msra.mxu0 %v4226
        %6554 = vmatprep.subr.bf16.mxu0 %v4223
        %6555 = vmatpush1.bf16.msra.mxu0 %v4222
        %6556 = vmatprep.subr.bf16.mxu0 %v4283
        %6557 = vmatpush2.bf16.msra.mxu0 %v4282
        %6558 = vmatprep.subr.bf16.mxu0 %v4279
        %6559 = vmatpush2.bf16.msra.mxu0 %v4278
        %6560 = vmatprep.subr.bf16.mxu0 %v4275
        %6561 = vmatpush2.bf16.msra.mxu0 %v4274
        %6562 = vmatprep.subr.bf16.mxu0 %v4271
        %6563 = vmatpush2.bf16.msra.mxu0 %v4270
        %6564 = vmatprep.subr.bf16.mxu0 %v4267
        %6565 = vmatpush2.bf16.msra.mxu0 %v4266
        %6566 = vmatprep.subr.bf16.mxu0 %v4263
        %6567 = vmatpush2.bf16.msra.mxu0 %v4262
        %6568 = vmatprep.subr.bf16.mxu0 %v4259
        %6569 = vmatpush2.bf16.msra.mxu0 %v4258
        %6570 = vmatprep.subr.bf16.mxu0 %v4255
        %6571 = vmatpush2.bf16.msra.mxu0 %v4254
        %6572 = vmatprep.mubr.bf16.mxu0 %v1249
        %6573 = vmatmul.mubr.bf16.gmra.mxu0 %v1235
        %v6574 = vpop.f32.mrf.mxu0
        %v6575 = vadd.f32 %v6534, %v6574
        %v6576 = vpop.f32.mrf.mxu0
        %v6577 = vadd.f32 %v6536, %v6576
        %v6578 = vpop.f32.mrf.mxu0
        %v6579 = vpop.f32.mrf.mxu0
        %6580 = vdwg.mxu0
        %6581 = vmatprep.subr.bf16.mxu0 %v4315
        %6582 = vmatpush1.bf16.msra.mxu0 %v4314
        %6583 = vmatprep.subr.bf16.mxu0 %v4311
        %6584 = vmatpush1.bf16.msra.mxu0 %v4310
        %6585 = vmatprep.subr.bf16.mxu0 %v4307
        %6586 = vmatpush1.bf16.msra.mxu0 %v4306
        %6587 = vmatprep.subr.bf16.mxu0 %v4303
        %6588 = vmatpush1.bf16.msra.mxu0 %v4302
        %6589 = vmatprep.subr.bf16.mxu0 %v4299
        %6590 = vmatpush1.bf16.msra.mxu0 %v4298
        %6591 = vmatprep.subr.bf16.mxu0 %v4295
        %6592 = vmatpush1.bf16.msra.mxu0 %v4294
        %6593 = vmatprep.subr.bf16.mxu0 %v4291
        %6594 = vmatpush1.bf16.msra.mxu0 %v4290
        %6595 = vmatprep.subr.bf16.mxu0 %v4287
        %6596 = vmatpush1.bf16.msra.mxu0 %v4286
        %6597 = vmatprep.subr.bf16.mxu0 %v4347
        %6598 = vmatpush2.bf16.msra.mxu0 %v4346
        %6599 = vmatprep.subr.bf16.mxu0 %v4343
        %6600 = vmatpush2.bf16.msra.mxu0 %v4342
        %6601 = vmatprep.subr.bf16.mxu0 %v4339
        %6602 = vmatpush2.bf16.msra.mxu0 %v4338
        %6603 = vmatprep.subr.bf16.mxu0 %v4335
        %6604 = vmatpush2.bf16.msra.mxu0 %v4334
        %6605 = vmatprep.subr.bf16.mxu0 %v4331
        %6606 = vmatpush2.bf16.msra.mxu0 %v4330
        %6607 = vmatprep.subr.bf16.mxu0 %v4327
        %6608 = vmatpush2.bf16.msra.mxu0 %v4326
        %6609 = vmatprep.subr.bf16.mxu0 %v4323
        %6610 = vmatpush2.bf16.msra.mxu0 %v4322
        %6611 = vmatprep.subr.bf16.mxu0 %v4319
        %6612 = vmatpush2.bf16.msra.mxu0 %v4318
        %6613 = vmatprep.mubr.bf16.mxu0 %v1253
        %6614 = vmatmul.mubr.bf16.gmra.mxu0 %v1251
        %v6615 = vpop.f32.mrf.mxu0
        %v6616 = vadd.f32 %v6575, %v6615
        %v6617 = vpop.f32.mrf.mxu0
        %v6618 = vadd.f32 %v6577, %v6617
        %v6619 = vpop.f32.mrf.mxu0
        %v6620 = vpop.f32.mrf.mxu0
        %6621 = vdwg.mxu0
        %6622 = vmatprep.subr.bf16.mxu0 %v4379
        %6623 = vmatpush1.bf16.msra.mxu0 %v4378
        %6624 = vmatprep.subr.bf16.mxu0 %v4375
        %6625 = vmatpush1.bf16.msra.mxu0 %v4374
        %6626 = vmatprep.subr.bf16.mxu0 %v4371
        %6627 = vmatpush1.bf16.msra.mxu0 %v4370
        %6628 = vmatprep.subr.bf16.mxu0 %v4367
        %6629 = vmatpush1.bf16.msra.mxu0 %v4366
        %6630 = vmatprep.subr.bf16.mxu0 %v4363
        %6631 = vmatpush1.bf16.msra.mxu0 %v4362
        %6632 = vmatprep.subr.bf16.mxu0 %v4359
        %6633 = vmatpush1.bf16.msra.mxu0 %v4358
        %6634 = vmatprep.subr.bf16.mxu0 %v4355
        %6635 = vmatpush1.bf16.msra.mxu0 %v4354
        %6636 = vmatprep.subr.bf16.mxu0 %v4351
        %6637 = vmatpush1.bf16.msra.mxu0 %v4350
        %6638 = vmatprep.subr.bf16.mxu0 %v4411
        %6639 = vmatpush2.bf16.msra.mxu0 %v4410
        %6640 = vmatprep.subr.bf16.mxu0 %v4407
        %6641 = vmatpush2.bf16.msra.mxu0 %v4406
        %6642 = vmatprep.subr.bf16.mxu0 %v4403
        %6643 = vmatpush2.bf16.msra.mxu0 %v4402
        %6644 = vmatprep.subr.bf16.mxu0 %v4399
        %6645 = vmatpush2.bf16.msra.mxu0 %v4398
        %6646 = vmatprep.subr.bf16.mxu0 %v4395
        %6647 = vmatpush2.bf16.msra.mxu0 %v4394
        %6648 = vmatprep.subr.bf16.mxu0 %v4391
        %6649 = vmatpush2.bf16.msra.mxu0 %v4390
        %6650 = vmatprep.subr.bf16.mxu0 %v4387
        %6651 = vmatpush2.bf16.msra.mxu0 %v4386
        %6652 = vmatprep.subr.bf16.mxu0 %v4383
        %6653 = vmatpush2.bf16.msra.mxu0 %v4382
        %6654 = vmatprep.mubr.bf16.mxu0 %v1291
        %6655 = vmatmul.mubr.bf16.gmra.mxu0 %v1277
        %v6656 = vpop.f32.mrf.mxu0
        %v6657 = vadd.f32 %v6616, %v6656
        %v6658 = vpop.f32.mrf.mxu0
        %v6659 = vadd.f32 %v6618, %v6658
        %v6660 = vpop.f32.mrf.mxu0
        %v6661 = vpop.f32.mrf.mxu0
        %6662 = vdwg.mxu0
        %6663 = vmatprep.subr.bf16.mxu0 %v4443
        %6664 = vmatpush1.bf16.msra.mxu0 %v4442
        %6665 = vmatprep.subr.bf16.mxu0 %v4439
        %6666 = vmatpush1.bf16.msra.mxu0 %v4438
        %6667 = vmatprep.subr.bf16.mxu0 %v4435
        %6668 = vmatpush1.bf16.msra.mxu0 %v4434
        %6669 = vmatprep.subr.bf16.mxu0 %v4431
        %6670 = vmatpush1.bf16.msra.mxu0 %v4430
        %6671 = vmatprep.subr.bf16.mxu0 %v4427
        %6672 = vmatpush1.bf16.msra.mxu0 %v4426
        %6673 = vmatprep.subr.bf16.mxu0 %v4423
        %6674 = vmatpush1.bf16.msra.mxu0 %v4422
        %6675 = vmatprep.subr.bf16.mxu0 %v4419
        %6676 = vmatpush1.bf16.msra.mxu0 %v4418
        %6677 = vmatprep.subr.bf16.mxu0 %v4415
        %6678 = vmatpush1.bf16.msra.mxu0 %v4414
        %6679 = vmatprep.subr.bf16.mxu0 %v4475
        %6680 = vmatpush2.bf16.msra.mxu0 %v4474
        %6681 = vmatprep.subr.bf16.mxu0 %v4471
        %6682 = vmatpush2.bf16.msra.mxu0 %v4470
        %6683 = vmatprep.subr.bf16.mxu0 %v4467
        %6684 = vmatpush2.bf16.msra.mxu0 %v4466
        %6685 = vmatprep.subr.bf16.mxu0 %v4463
        %6686 = vmatpush2.bf16.msra.mxu0 %v4462
        %6687 = vmatprep.subr.bf16.mxu0 %v4459
        %6688 = vmatpush2.bf16.msra.mxu0 %v4458
        %6689 = vmatprep.subr.bf16.mxu0 %v4455
        %6690 = vmatpush2.bf16.msra.mxu0 %v4454
        %6691 = vmatprep.subr.bf16.mxu0 %v4451
        %6692 = vmatpush2.bf16.msra.mxu0 %v4450
        %6693 = vmatprep.subr.bf16.mxu0 %v4447
        %6694 = vmatpush2.bf16.msra.mxu0 %v4446
        %6695 = vmatprep.mubr.bf16.mxu0 %v1301
        %6696 = vmatmul.mubr.bf16.gmra.mxu0 %v1299
        %v6697 = vpop.f32.mrf.mxu0
        %v6698 = vadd.f32 %v6657, %v6697
        %v6699 = vpop.f32.mrf.mxu0
        %v6700 = vadd.f32 %v6659, %v6699
        %v6701 = vpop.f32.mrf.mxu0
        %v6702 = vpop.f32.mrf.mxu0
        %6703 = vdwg.mxu0
        %6704 = vmatprep.subr.bf16.mxu0 %v4507
        %6705 = vmatpush1.bf16.msra.mxu0 %v4506
        %6706 = vmatprep.subr.bf16.mxu0 %v4503
        %6707 = vmatpush1.bf16.msra.mxu0 %v4502
        %6708 = vmatprep.subr.bf16.mxu0 %v4499
        %6709 = vmatpush1.bf16.msra.mxu0 %v4498
        %6710 = vmatprep.subr.bf16.mxu0 %v4495
        %6711 = vmatpush1.bf16.msra.mxu0 %v4494
        %6712 = vmatprep.subr.bf16.mxu0 %v4491
        %6713 = vmatpush1.bf16.msra.mxu0 %v4490
        %6714 = vmatprep.subr.bf16.mxu0 %v4487
        %6715 = vmatpush1.bf16.msra.mxu0 %v4486
        %6716 = vmatprep.subr.bf16.mxu0 %v4483
        %6717 = vmatpush1.bf16.msra.mxu0 %v4482
        %6718 = vmatprep.subr.bf16.mxu0 %v4479
        %6719 = vmatpush1.bf16.msra.mxu0 %v4478
        %6720 = vmatprep.subr.bf16.mxu0 %v4539
        %6721 = vmatpush2.bf16.msra.mxu0 %v4538
        %6722 = vmatprep.subr.bf16.mxu0 %v4535
        %6723 = vmatpush2.bf16.msra.mxu0 %v4534
        %6724 = vmatprep.subr.bf16.mxu0 %v4531
        %6725 = vmatpush2.bf16.msra.mxu0 %v4530
        %6726 = vmatprep.subr.bf16.mxu0 %v4527
        %6727 = vmatpush2.bf16.msra.mxu0 %v4526
        %6728 = vmatprep.subr.bf16.mxu0 %v4523
        %6729 = vmatpush2.bf16.msra.mxu0 %v4522
        %6730 = vmatprep.subr.bf16.mxu0 %v4519
        %6731 = vmatpush2.bf16.msra.mxu0 %v4518
        %6732 = vmatprep.subr.bf16.mxu0 %v4515
        %6733 = vmatpush2.bf16.msra.mxu0 %v4514
        %6734 = vmatprep.subr.bf16.mxu0 %v4511
        %6735 = vmatpush2.bf16.msra.mxu0 %v4510
        %6736 = vmatprep.mubr.bf16.mxu0 %v1298
        %6737 = vmatmul.mubr.bf16.gmra.mxu0 %v1284
        %v6738 = vpop.f32.mrf.mxu0
        %v6739 = vadd.f32 %v6698, %v6738
        %v6740 = vpop.f32.mrf.mxu0
        %v6741 = vadd.f32 %v6700, %v6740
        %v6742 = vpop.f32.mrf.mxu0
        %v6743 = vpop.f32.mrf.mxu0
        %6744 = vdwg.mxu0
        %6745 = vmatprep.subr.bf16.mxu0 %v4571
        %6746 = vmatpush1.bf16.msra.mxu0 %v4570
        %6747 = vmatprep.subr.bf16.mxu0 %v4567
        %6748 = vmatpush1.bf16.msra.mxu0 %v4566
        %6749 = vmatprep.subr.bf16.mxu0 %v4563
        %6750 = vmatpush1.bf16.msra.mxu0 %v4562
        %6751 = vmatprep.subr.bf16.mxu0 %v4559
        %6752 = vmatpush1.bf16.msra.mxu0 %v4558
        %6753 = vmatprep.subr.bf16.mxu0 %v4555
        %6754 = vmatpush1.bf16.msra.mxu0 %v4554
        %6755 = vmatprep.subr.bf16.mxu0 %v4551
        %6756 = vmatpush1.bf16.msra.mxu0 %v4550
        %6757 = vmatprep.subr.bf16.mxu0 %v4547
        %6758 = vmatpush1.bf16.msra.mxu0 %v4546
        %6759 = vmatprep.subr.bf16.mxu0 %v4543
        %6760 = vmatpush1.bf16.msra.mxu0 %v4542
        %6761 = vmatprep.subr.bf16.mxu0 %v4603
        %6762 = vmatpush2.bf16.msra.mxu0 %v4602
        %6763 = vmatprep.subr.bf16.mxu0 %v4599
        %6764 = vmatpush2.bf16.msra.mxu0 %v4598
        %6765 = vmatprep.subr.bf16.mxu0 %v4595
        %6766 = vmatpush2.bf16.msra.mxu0 %v4594
        %6767 = vmatprep.subr.bf16.mxu0 %v4591
        %6768 = vmatpush2.bf16.msra.mxu0 %v4590
        %6769 = vmatprep.subr.bf16.mxu0 %v4587
        %6770 = vmatpush2.bf16.msra.mxu0 %v4586
        %6771 = vmatprep.subr.bf16.mxu0 %v4583
        %6772 = vmatpush2.bf16.msra.mxu0 %v4582
        %6773 = vmatprep.subr.bf16.mxu0 %v4579
        %6774 = vmatpush2.bf16.msra.mxu0 %v4578
        %6775 = vmatprep.subr.bf16.mxu0 %v4575
        %6776 = vmatpush2.bf16.msra.mxu0 %v4574
        %6777 = vmatprep.mubr.bf16.mxu0 %v1302
        %6778 = vmatmul.mubr.bf16.gmra.mxu0 %v1300
        %v6779 = vpop.f32.mrf.mxu0
        %v6780 = vadd.f32 %v6739, %v6779
        %v6781 = vpop.f32.mrf.mxu0
        %v6782 = vadd.f32 %v6741, %v6781
        %v6783 = vpop.f32.mrf.mxu0
        %v6784 = vpop.f32.mrf.mxu0
        %6785 = vdwg.mxu0
        %6786 = vmatprep.subr.bf16.mxu0 %v4635
        %6787 = vmatpush1.bf16.msra.mxu0 %v4634
        %6788 = vmatprep.subr.bf16.mxu0 %v4631
        %6789 = vmatpush1.bf16.msra.mxu0 %v4630
        %6790 = vmatprep.subr.bf16.mxu0 %v4627
        %6791 = vmatpush1.bf16.msra.mxu0 %v4626
        %6792 = vmatprep.subr.bf16.mxu0 %v4623
        %6793 = vmatpush1.bf16.msra.mxu0 %v4622
        %6794 = vmatprep.subr.bf16.mxu0 %v4619
        %6795 = vmatpush1.bf16.msra.mxu0 %v4618
        %6796 = vmatprep.subr.bf16.mxu0 %v4615
        %6797 = vmatpush1.bf16.msra.mxu0 %v4614
        %6798 = vmatprep.subr.bf16.mxu0 %v4611
        %6799 = vmatpush1.bf16.msra.mxu0 %v4610
        %6800 = vmatprep.subr.bf16.mxu0 %v4607
        %6801 = vmatpush1.bf16.msra.mxu0 %v4606
        %6802 = vmatprep.subr.bf16.mxu0 %v4667
        %6803 = vmatpush2.bf16.msra.mxu0 %v4666
        %6804 = vmatprep.subr.bf16.mxu0 %v4663
        %6805 = vmatpush2.bf16.msra.mxu0 %v4662
        %6806 = vmatprep.subr.bf16.mxu0 %v4659
        %6807 = vmatpush2.bf16.msra.mxu0 %v4658
        %6808 = vmatprep.subr.bf16.mxu0 %v4655
        %6809 = vmatpush2.bf16.msra.mxu0 %v4654
        %6810 = vmatprep.subr.bf16.mxu0 %v4651
        %6811 = vmatpush2.bf16.msra.mxu0 %v4650
        %6812 = vmatprep.subr.bf16.mxu0 %v4647
        %6813 = vmatpush2.bf16.msra.mxu0 %v4646
        %6814 = vmatprep.subr.bf16.mxu0 %v4643
        %6815 = vmatpush2.bf16.msra.mxu0 %v4642
        %6816 = vmatprep.subr.bf16.mxu0 %v4639
        %6817 = vmatpush2.bf16.msra.mxu0 %v4638
        %6818 = vmatprep.mubr.bf16.mxu0 %v1340
        %6819 = vmatmul.mubr.bf16.gmra.mxu0 %v1326
        %v6820 = vpop.f32.mrf.mxu0
        %v6821 = vadd.f32 %v6780, %v6820
        %v6822 = vpop.f32.mrf.mxu0
        %v6823 = vadd.f32 %v6782, %v6822
        %v6824 = vpop.f32.mrf.mxu0
        %v6825 = vpop.f32.mrf.mxu0
        %6826 = vdwg.mxu0
        %6827 = vmatprep.subr.bf16.mxu0 %v4699
        %6828 = vmatpush1.bf16.msra.mxu0 %v4698
        %6829 = vmatprep.subr.bf16.mxu0 %v4695
        %6830 = vmatpush1.bf16.msra.mxu0 %v4694
        %6831 = vmatprep.subr.bf16.mxu0 %v4691
        %6832 = vmatpush1.bf16.msra.mxu0 %v4690
        %6833 = vmatprep.subr.bf16.mxu0 %v4687
        %6834 = vmatpush1.bf16.msra.mxu0 %v4686
        %6835 = vmatprep.subr.bf16.mxu0 %v4683
        %6836 = vmatpush1.bf16.msra.mxu0 %v4682
        %6837 = vmatprep.subr.bf16.mxu0 %v4679
        %6838 = vmatpush1.bf16.msra.mxu0 %v4678
        %6839 = vmatprep.subr.bf16.mxu0 %v4675
        %6840 = vmatpush1.bf16.msra.mxu0 %v4674
        %6841 = vmatprep.subr.bf16.mxu0 %v4671
        %6842 = vmatpush1.bf16.msra.mxu0 %v4670
        %6843 = vmatprep.subr.bf16.mxu0 %v4731
        %6844 = vmatpush2.bf16.msra.mxu0 %v4730
        %6845 = vmatprep.subr.bf16.mxu0 %v4727
        %6846 = vmatpush2.bf16.msra.mxu0 %v4726
        %6847 = vmatprep.subr.bf16.mxu0 %v4723
        %6848 = vmatpush2.bf16.msra.mxu0 %v4722
        %6849 = vmatprep.subr.bf16.mxu0 %v4719
        %6850 = vmatpush2.bf16.msra.mxu0 %v4718
        %6851 = vmatprep.subr.bf16.mxu0 %v4715
        %6852 = vmatpush2.bf16.msra.mxu0 %v4714
        %6853 = vmatprep.subr.bf16.mxu0 %v4711
        %6854 = vmatpush2.bf16.msra.mxu0 %v4710
        %6855 = vmatprep.subr.bf16.mxu0 %v4707
        %6856 = vmatpush2.bf16.msra.mxu0 %v4706
        %6857 = vmatprep.subr.bf16.mxu0 %v4703
        %6858 = vmatpush2.bf16.msra.mxu0 %v4702
        %6859 = vmatprep.mubr.bf16.mxu0 %v1350
        %6860 = vmatmul.mubr.bf16.gmra.mxu0 %v1348
        %v6861 = vpop.f32.mrf.mxu0
        %v6862 = vadd.f32 %v6821, %v6861
        %v6863 = vpop.f32.mrf.mxu0
        %v6864 = vadd.f32 %v6823, %v6863
        %v6865 = vpop.f32.mrf.mxu0
        %v6866 = vpop.f32.mrf.mxu0
        %6867 = vdwg.mxu0
        %6868 = vmatprep.subr.bf16.mxu0 %v4763
        %6869 = vmatpush1.bf16.msra.mxu0 %v4762
        %6870 = vmatprep.subr.bf16.mxu0 %v4759
        %6871 = vmatpush1.bf16.msra.mxu0 %v4758
        %6872 = vmatprep.subr.bf16.mxu0 %v4755
        %6873 = vmatpush1.bf16.msra.mxu0 %v4754
        %6874 = vmatprep.subr.bf16.mxu0 %v4751
        %6875 = vmatpush1.bf16.msra.mxu0 %v4750
        %6876 = vmatprep.subr.bf16.mxu0 %v4747
        %6877 = vmatpush1.bf16.msra.mxu0 %v4746
        %6878 = vmatprep.subr.bf16.mxu0 %v4743
        %6879 = vmatpush1.bf16.msra.mxu0 %v4742
        %6880 = vmatprep.subr.bf16.mxu0 %v4739
        %6881 = vmatpush1.bf16.msra.mxu0 %v4738
        %6882 = vmatprep.subr.bf16.mxu0 %v4735
        %6883 = vmatpush1.bf16.msra.mxu0 %v4734
        %6884 = vmatprep.subr.bf16.mxu0 %v4795
        %6885 = vmatpush2.bf16.msra.mxu0 %v4794
        %6886 = vmatprep.subr.bf16.mxu0 %v4791
        %6887 = vmatpush2.bf16.msra.mxu0 %v4790
        %6888 = vmatprep.subr.bf16.mxu0 %v4787
        %6889 = vmatpush2.bf16.msra.mxu0 %v4786
        %6890 = vmatprep.subr.bf16.mxu0 %v4783
        %6891 = vmatpush2.bf16.msra.mxu0 %v4782
        %6892 = vmatprep.subr.bf16.mxu0 %v4779
        %6893 = vmatpush2.bf16.msra.mxu0 %v4778
        %6894 = vmatprep.subr.bf16.mxu0 %v4775
        %6895 = vmatpush2.bf16.msra.mxu0 %v4774
        %6896 = vmatprep.subr.bf16.mxu0 %v4771
        %6897 = vmatpush2.bf16.msra.mxu0 %v4770
        %6898 = vmatprep.subr.bf16.mxu0 %v4767
        %6899 = vmatpush2.bf16.msra.mxu0 %v4766
        %6900 = vmatprep.mubr.bf16.mxu0 %v1347
        %6901 = vmatmul.mubr.bf16.gmra.mxu0 %v1333
        %v6902 = vpop.f32.mrf.mxu0
        %v6903 = vadd.f32 %v6862, %v6902
        %v6904 = vpop.f32.mrf.mxu0
        %v6905 = vadd.f32 %v6864, %v6904
        %v6906 = vpop.f32.mrf.mxu0
        %v6907 = vpop.f32.mrf.mxu0
        %6908 = vdwg.mxu0
        %6909 = vmatprep.subr.bf16.mxu0 %v4827
        %6910 = vmatpush1.bf16.msra.mxu0 %v4826
        %6911 = vmatprep.subr.bf16.mxu0 %v4823
        %6912 = vmatpush1.bf16.msra.mxu0 %v4822
        %6913 = vmatprep.subr.bf16.mxu0 %v4819
        %6914 = vmatpush1.bf16.msra.mxu0 %v4818
        %6915 = vmatprep.subr.bf16.mxu0 %v4815
        %6916 = vmatpush1.bf16.msra.mxu0 %v4814
        %6917 = vmatprep.subr.bf16.mxu0 %v4811
        %6918 = vmatpush1.bf16.msra.mxu0 %v4810
        %6919 = vmatprep.subr.bf16.mxu0 %v4807
        %6920 = vmatpush1.bf16.msra.mxu0 %v4806
        %6921 = vmatprep.subr.bf16.mxu0 %v4803
        %6922 = vmatpush1.bf16.msra.mxu0 %v4802
        %6923 = vmatprep.subr.bf16.mxu0 %v4799
        %6924 = vmatpush1.bf16.msra.mxu0 %v4798
        %6925 = vmatprep.subr.bf16.mxu0 %v4859
        %6926 = vmatpush2.bf16.msra.mxu0 %v4858
        %6927 = vmatprep.subr.bf16.mxu0 %v4855
        %6928 = vmatpush2.bf16.msra.mxu0 %v4854
        %6929 = vmatprep.subr.bf16.mxu0 %v4851
        %6930 = vmatpush2.bf16.msra.mxu0 %v4850
        %6931 = vmatprep.subr.bf16.mxu0 %v4847
        %6932 = vmatpush2.bf16.msra.mxu0 %v4846
        %6933 = vmatprep.subr.bf16.mxu0 %v4843
        %6934 = vmatpush2.bf16.msra.mxu0 %v4842
        %6935 = vmatprep.subr.bf16.mxu0 %v4839
        %6936 = vmatpush2.bf16.msra.mxu0 %v4838
        %6937 = vmatprep.subr.bf16.mxu0 %v4835
        %6938 = vmatpush2.bf16.msra.mxu0 %v4834
        %6939 = vmatprep.subr.bf16.mxu0 %v4831
        %6940 = vmatpush2.bf16.msra.mxu0 %v4830
        %6941 = vmatprep.mubr.bf16.mxu0 %v1351
        %6942 = vmatmul.mubr.bf16.gmra.mxu0 %v1349
        %v6943 = vpop.f32.mrf.mxu0
        %v6944 = vadd.f32 %v6903, %v6943
        %v6945 = vpop.f32.mrf.mxu0
        %v6946 = vadd.f32 %v6905, %v6945
        %v6947 = vpop.f32.mrf.mxu0
        %v6948 = vpop.f32.mrf.mxu0
        %6949 = vdwg.mxu0
        %6950 = vmatprep.subr.bf16.mxu0 %v4891
        %6951 = vmatpush1.bf16.msra.mxu0 %v4890
        %6952 = vmatprep.subr.bf16.mxu0 %v4887
        %6953 = vmatpush1.bf16.msra.mxu0 %v4886
        %6954 = vmatprep.subr.bf16.mxu0 %v4883
        %6955 = vmatpush1.bf16.msra.mxu0 %v4882
        %6956 = vmatprep.subr.bf16.mxu0 %v4879
        %6957 = vmatpush1.bf16.msra.mxu0 %v4878
        %6958 = vmatprep.subr.bf16.mxu0 %v4875
        %6959 = vmatpush1.bf16.msra.mxu0 %v4874
        %6960 = vmatprep.subr.bf16.mxu0 %v4871
        %6961 = vmatpush1.bf16.msra.mxu0 %v4870
        %6962 = vmatprep.subr.bf16.mxu0 %v4867
        %6963 = vmatpush1.bf16.msra.mxu0 %v4866
        %6964 = vmatprep.subr.bf16.mxu0 %v4863
        %6965 = vmatpush1.bf16.msra.mxu0 %v4862
        %6966 = vmatprep.subr.bf16.mxu0 %v4923
        %6967 = vmatpush2.bf16.msra.mxu0 %v4922
        %6968 = vmatprep.subr.bf16.mxu0 %v4919
        %6969 = vmatpush2.bf16.msra.mxu0 %v4918
        %6970 = vmatprep.subr.bf16.mxu0 %v4915
        %6971 = vmatpush2.bf16.msra.mxu0 %v4914
        %6972 = vmatprep.subr.bf16.mxu0 %v4911
        %6973 = vmatpush2.bf16.msra.mxu0 %v4910
        %6974 = vmatprep.subr.bf16.mxu0 %v4907
        %6975 = vmatpush2.bf16.msra.mxu0 %v4906
        %6976 = vmatprep.subr.bf16.mxu0 %v4903
        %6977 = vmatpush2.bf16.msra.mxu0 %v4902
        %6978 = vmatprep.subr.bf16.mxu0 %v4899
        %6979 = vmatpush2.bf16.msra.mxu0 %v4898
        %6980 = vmatprep.subr.bf16.mxu0 %v4895
        %6981 = vmatpush2.bf16.msra.mxu0 %v4894
        %6982 = vmatprep.mubr.bf16.mxu0 %v1373
        %6983 = vmatmul.mubr.bf16.gmra.mxu0 %v1366
        %v6984 = vpop.f32.mrf.mxu0
        %v6985 = vadd.f32 %v6944, %v6984
        %v6986 = vpop.f32.mrf.mxu0
        %v6987 = vadd.f32 %v6946, %v6986
        %v6988 = vpop.f32.mrf.mxu0
        %v6989 = vpop.f32.mrf.mxu0
        %6990 = vdwg.mxu0
        %6991 = vmatprep.subr.bf16.mxu0 %v4955
        %6992 = vmatpush1.bf16.msra.mxu0 %v4954
        %6993 = vmatprep.subr.bf16.mxu0 %v4951
        %6994 = vmatpush1.bf16.msra.mxu0 %v4950
        %6995 = vmatprep.subr.bf16.mxu0 %v4947
        %6996 = vmatpush1.bf16.msra.mxu0 %v4946
        %6997 = vmatprep.subr.bf16.mxu0 %v4943
        %6998 = vmatpush1.bf16.msra.mxu0 %v4942
        %6999 = vmatprep.subr.bf16.mxu0 %v4939
        %7000 = vmatpush1.bf16.msra.mxu0 %v4938
        %7001 = vmatprep.subr.bf16.mxu0 %v4935
        %7002 = vmatpush1.bf16.msra.mxu0 %v4934
        %7003 = vmatprep.subr.bf16.mxu0 %v4931
        %7004 = vmatpush1.bf16.msra.mxu0 %v4930
        %7005 = vmatprep.subr.bf16.mxu0 %v4927
        %7006 = vmatpush1.bf16.msra.mxu0 %v4926
        %7007 = vmatprep.subr.bf16.mxu0 %v4987
        %7008 = vmatpush2.bf16.msra.mxu0 %v4986
        %7009 = vmatprep.subr.bf16.mxu0 %v4983
        %7010 = vmatpush2.bf16.msra.mxu0 %v4982
        %7011 = vmatprep.subr.bf16.mxu0 %v4979
        %7012 = vmatpush2.bf16.msra.mxu0 %v4978
        %7013 = vmatprep.subr.bf16.mxu0 %v4975
        %7014 = vmatpush2.bf16.msra.mxu0 %v4974
        %7015 = vmatprep.subr.bf16.mxu0 %v4971
        %7016 = vmatpush2.bf16.msra.mxu0 %v4970
        %7017 = vmatprep.subr.bf16.mxu0 %v4967
        %7018 = vmatpush2.bf16.msra.mxu0 %v4966
        %7019 = vmatprep.subr.bf16.mxu0 %v4963
        %7020 = vmatpush2.bf16.msra.mxu0 %v4962
        %7021 = vmatprep.subr.bf16.mxu0 %v4959
        %7022 = vmatpush2.bf16.msra.mxu0 %v4958
        %7023 = vmatprep.mubr.bf16.mxu0 %v1375
        %7024 = vmatmul.mubr.bf16.gmra.mxu0 %v1374
        %v7025 = vpop.f32.mrf.mxu0
        %v7026 = vadd.f32 %v6985, %v7025
        %v7027 = vpop.f32.mrf.mxu0
        %v7028 = vadd.f32 %v6987, %v7027
        %v7029 = vpop.f32.mrf.mxu0
        %v7030 = vpop.f32.mrf.mxu0
        %7031 = vdwg.mxu0
        %v7036 = vcombine.low %v6452, %v6454
        %v7037 = vcombine.low %v7026, %v7028
        %v7039 = vunpack.c.l.s4 1983009808
        %v7040 = vunpack.c.0.s8 %v7039
        %v7041 = vlaneseq
        %v7042 = vshrl.u32 %v7041, 7
        %v7043 = vsub.s32 %v7040, %v7042
        %v7044 = vrot.slane %v7036, %v7043
        %v7046 = vunpack.c.l.s4 1983009808
        %v7047 = vunpack.c.0.s8 %v7046
        %v7048 = vlaneseq
        %v7049 = vshrl.u32 %v7048, 7
        %v7050 = vsub.s32 %v7047, %v7049
        %v7051 = vrot.slane %v7037, %v7050
        %v7052 = vcombine.low %v7044, %v7051
        %v7054 = vadd.f32 %v300, %v7052
        %7055 = vst [vmem:[#allocation2] sm:$0xff] %v7054
        %p7056 = scmp.eq.s32.totalorder %s23, 6
        // Predicated region
        $region45: #{model_forward.5} parent=35 // pred_check
          %p7057 = pneg %p7056
        $region46: #{model_forward.5} parent=35 // pred_check_branch
          %7059 = sbr.rel (%p7057) target = $region48
        $region47: #{model_forward.5} parent=35 // pred_region
          %v7060 = vld [vmem:[#allocation2] sm:$0xff]
          %v7061 = vld [vmem:[%s283] sm:$0xf]
          %v7063 = vlaneseq
          %v7064 = vshrl.u32 %v7063, 7
          %v7065 = vsub.s32 0, %v7064
          %v7066 = vrot.slane %v7061, %v7065
          %v7067 = vlaneseq
          %v7068 = vshrl.u32 %v7067, 7
          %v7069 = vsub.s32 1, %v7068
          %v7070 = vrot.slane %v7061, %v7069
          %v7071 = vlaneseq
          %v7072 = vshrl.u32 %v7071, 7
          %v7073 = vsub.s32 2, %v7072
          %v7074 = vrot.slane %v7061, %v7073
          %v7075 = vlaneseq
          %v7076 = vshrl.u32 %v7075, 7
          %v7077 = vsub.s32 3, %v7076
          %v7078 = vrot.slane %v7061, %v7077
          %v7079 = vcombine.low %v7066, %v7070
          %v7080 = vcombine.low %v7074, %v7078
          %v7082 = vunpack.c.l.s4 1983009808
          %v7083 = vunpack.c.0.s8 %v7082
          %v7084 = vlaneseq
          %v7085 = vshrl.u32 %v7084, 7
          %v7086 = vsub.s32 %v7083, %v7085
          %v7087 = vrot.slane %v7079, %v7086
          %v7089 = vunpack.c.l.s4 1983009808
          %v7090 = vunpack.c.0.s8 %v7089
          %v7091 = vlaneseq
          %v7092 = vshrl.u32 %v7091, 7
          %v7093 = vsub.s32 %v7090, %v7092
          %v7094 = vrot.slane %v7080, %v7093
          %v7095 = vcombine.low %v7087, %v7094
          %v7097 = vadd.f32 %v7060, %v7095
          %v7098 = vmax.f32 %v7097, 0.0
          %v7099 = vld [vmem:[%s289] sm:$0xff]
          %v7100 = vld [vmem:[%s289 + $0x8] sm:$0xff]
          %v7101 = vld [vmem:[%s289 + $0x10] sm:$0xff]
          %v7102 = vld [vmem:[%s289 + $0x18] sm:$0xff]
          %v7103 = vld [vmem:[%s289 + $0x20] sm:$0xff]
          %v7104 = vld [vmem:[%s289 + $0x28] sm:$0xff]
          %v7105 = vld [vmem:[%s289 + $0x30] sm:$0xff]
          %v7106 = vld [vmem:[%s289 + $0x38] sm:$0xff]
          %v7107 = vld [vmem:[%s289 + $0x40] sm:$0xff]
          %v7108 = vld [vmem:[%s289 + $0x48] sm:$0xff]
          %v7109 = vld [vmem:[%s289 + $0x50] sm:$0xff]
          %v7110 = vld [vmem:[%s289 + $0x58] sm:$0xff]
          %v7111 = vld [vmem:[%s289 + $0x60] sm:$0xff]
          %v7112 = vld [vmem:[%s289 + $0x68] sm:$0xff]
          %v7113 = vld [vmem:[%s289 + $0x70] sm:$0xff]
          %v7114 = vld [vmem:[%s289 + $0x78] sm:$0xff]
          %v7115 = vld [vmem:[%s289 + $0x80] sm:$0xff]
          %v7116 = vld [vmem:[%s289 + $0x88] sm:$0xff]
          %v7117 = vld [vmem:[%s289 + $0x90] sm:$0xff]
          %v7118 = vld [vmem:[%s289 + $0x98] sm:$0xff]
          %v7119 = vld [vmem:[%s289 + $0xa0] sm:$0xff]
          %v7120 = vld [vmem:[%s289 + $0xa8] sm:$0xff]
          %v7121 = vld [vmem:[%s289 + $0xb0] sm:$0xff]
          %v7122 = vld [vmem:[%s289 + $0xb8] sm:$0xff]
          %v7123 = vld [vmem:[%s289 + $0xc0] sm:$0xff]
          %v7124 = vld [vmem:[%s289 + $0xc8] sm:$0xff]
          %v7125 = vld [vmem:[%s289 + $0xd0] sm:$0xff]
          %v7126 = vld [vmem:[%s289 + $0xd8] sm:$0xff]
          %v7127 = vld [vmem:[%s289 + $0xe0] sm:$0xff]
          %v7128 = vld [vmem:[%s289 + $0xe8] sm:$0xff]
          %v7129 = vld [vmem:[%s289 + $0xf0] sm:$0xff]
          %v7130 = vld [vmem:[%s289 + $0xf8] sm:$0xff]
          %v7131 = vld [vmem:[%s289 + $0x100] sm:$0xff]
          %v7132 = vld [vmem:[%s289 + $0x108] sm:$0xff]
          %v7133 = vld [vmem:[%s289 + $0x110] sm:$0xff]
          %v7134 = vld [vmem:[%s289 + $0x118] sm:$0xff]
          %v7135 = vld [vmem:[%s289 + $0x120] sm:$0xff]
          %v7136 = vld [vmem:[%s289 + $0x128] sm:$0xff]
          %v7137 = vld [vmem:[%s289 + $0x130] sm:$0xff]
          %v7138 = vld [vmem:[%s289 + $0x138] sm:$0xff]
          %v7139 = vld [vmem:[%s289 + $0x140] sm:$0xff]
          %v7140 = vld [vmem:[%s289 + $0x148] sm:$0xff]
          %v7141 = vld [vmem:[%s289 + $0x150] sm:$0xff]
          %v7142 = vld [vmem:[%s289 + $0x158] sm:$0xff]
          %v7143 = vld [vmem:[%s289 + $0x160] sm:$0xff]
          %v7144 = vld [vmem:[%s289 + $0x168] sm:$0xff]
          %v7145 = vld [vmem:[%s289 + $0x170] sm:$0xff]
          %v7146 = vld [vmem:[%s289 + $0x178] sm:$0xff]
          %v7147 = vld [vmem:[%s289 + $0x180] sm:$0xff]
          %v7148 = vld [vmem:[%s289 + $0x188] sm:$0xff]
          %v7149 = vld [vmem:[%s289 + $0x190] sm:$0xff]
          %v7150 = vld [vmem:[%s289 + $0x198] sm:$0xff]
          %v7151 = vld [vmem:[%s289 + $0x1a0] sm:$0xff]
          %v7152 = vld [vmem:[%s289 + $0x1a8] sm:$0xff]
          %v7153 = vld [vmem:[%s289 + $0x1b0] sm:$0xff]
          %v7154 = vld [vmem:[%s289 + $0x1b8] sm:$0xff]
          %v7155 = vld [vmem:[%s289 + $0x1c0] sm:$0xff]
          %v7156 = vld [vmem:[%s289 + $0x1c8] sm:$0xff]
          %v7157 = vld [vmem:[%s289 + $0x1d0] sm:$0xff]
          %v7158 = vld [vmem:[%s289 + $0x1d8] sm:$0xff]
          %v7159 = vld [vmem:[%s289 + $0x1e0] sm:$0xff]
          %v7160 = vld [vmem:[%s289 + $0x1e8] sm:$0xff]
          %v7161 = vld [vmem:[%s289 + $0x1f0] sm:$0xff]
          %v7162 = vld [vmem:[%s289 + $0x1f8] sm:$0xff]
          %v7164 = vcombine.high %v7098, %v7098
          %v7166 = vunpack.c.l.s4 1983009808
          %v7167 = vunpack.c.0.s8 %v7166
          %v7168 = vlaneseq
          %v7169 = vshrl.u32 %v7168, 7
          %v7170 = vsub.s32 %v7167, %v7169
          %v7171 = vrot.slane %v7098, %v7170
          %v7173 = vunpack.c.l.s4 1983009808
          %v7174 = vunpack.c.0.s8 %v7173
          %v7175 = vlaneseq
          %v7176 = vshrl.u32 %v7175, 7
          %v7177 = vsub.s32 %v7174, %v7176
          %v7178 = vrot.slane %v7164, %v7177
          %v7179 = vcombine.high %v7171, %v7171
          %v7180 = vcombine.high %v7178, %v7178
          %7185 = vmatprep.subr.mxu0 0.0
          %7186 = vmatpush1.msra.mxu0 %v7114
          %7187 = vmatprep.subr.mxu0 0.0
          %7188 = vmatpush1.msra.mxu0 %v7113
          %7189 = vmatprep.subr.mxu0 0.0
          %7190 = vmatpush1.msra.mxu0 %v7112
          %7191 = vmatprep.subr.mxu0 0.0
          %7192 = vmatpush1.msra.mxu0 %v7111
          %7193 = vmatprep.subr.mxu0 0.0
          %7194 = vmatpush1.msra.mxu0 %v7110
          %7195 = vmatprep.subr.mxu0 0.0
          %7196 = vmatpush1.msra.mxu0 %v7109
          %7197 = vmatprep.subr.mxu0 0.0
          %7198 = vmatpush1.msra.mxu0 %v7108
          %7199 = vmatprep.subr.mxu0 0.0
          %7200 = vmatpush1.msra.mxu0 %v7107
          %7201 = vmatprep.subr.mxu0 0.0
          %7202 = vmatpush1.msra.mxu0 %v7106
          %7203 = vmatprep.subr.mxu0 0.0
          %7204 = vmatpush1.msra.mxu0 %v7105
          %7205 = vmatprep.subr.mxu0 0.0
          %7206 = vmatpush1.msra.mxu0 %v7104
          %7207 = vmatprep.subr.mxu0 0.0
          %7208 = vmatpush1.msra.mxu0 %v7103
          %7209 = vmatprep.subr.mxu0 0.0
          %7210 = vmatpush1.msra.mxu0 %v7102
          %7211 = vmatprep.subr.mxu0 0.0
          %7212 = vmatpush1.msra.mxu0 %v7101
          %7213 = vmatprep.subr.mxu0 0.0
          %7214 = vmatpush1.msra.mxu0 %v7100
          %7215 = vmatprep.subr.mxu0 0.0
          %7216 = vmatpush1.msra.mxu0 %v7099
          %7217 = vmatprep.subr.mxu0 0.0
          %7218 = vmatpush2.msra.mxu0 %v7130
          %7219 = vmatprep.subr.mxu0 0.0
          %7220 = vmatpush2.msra.mxu0 %v7129
          %7221 = vmatprep.subr.mxu0 0.0
          %7222 = vmatpush2.msra.mxu0 %v7128
          %7223 = vmatprep.subr.mxu0 0.0
          %7224 = vmatpush2.msra.mxu0 %v7127
          %7225 = vmatprep.subr.mxu0 0.0
          %7226 = vmatpush2.msra.mxu0 %v7126
          %7227 = vmatprep.subr.mxu0 0.0
          %7228 = vmatpush2.msra.mxu0 %v7125
          %7229 = vmatprep.subr.mxu0 0.0
          %7230 = vmatpush2.msra.mxu0 %v7124
          %7231 = vmatprep.subr.mxu0 0.0
          %7232 = vmatpush2.msra.mxu0 %v7123
          %7233 = vmatprep.subr.mxu0 0.0
          %7234 = vmatpush2.msra.mxu0 %v7122
          %7235 = vmatprep.subr.mxu0 0.0
          %7236 = vmatpush2.msra.mxu0 %v7121
          %7237 = vmatprep.subr.mxu0 0.0
          %7238 = vmatpush2.msra.mxu0 %v7120
          %7239 = vmatprep.subr.mxu0 0.0
          %7240 = vmatpush2.msra.mxu0 %v7119
          %7241 = vmatprep.subr.mxu0 0.0
          %7242 = vmatpush2.msra.mxu0 %v7118
          %7243 = vmatprep.subr.mxu0 0.0
          %7244 = vmatpush2.msra.mxu0 %v7117
          %7245 = vmatprep.subr.mxu0 0.0
          %7246 = vmatpush2.msra.mxu0 %v7116
          %7247 = vmatprep.subr.mxu0 0.0
          %7248 = vmatpush2.msra.mxu0 %v7115
          %7249 = vmatprep.mubr.f32.mxu0 %v7179
          %7250 = vmatmul.mubr.f32.gmra.mxu0 %v7171
          %v7251 = vpop.f32.mrf.mxu0
          %v7252 = vadd.f32 0.0, %v7251
          %v7253 = vpop.f32.mrf.mxu0
          %7254 = vdwg.mxu0
          %7255 = vmatprep.subr.mxu0 0.0
          %7256 = vmatpush1.msra.mxu0 %v7146
          %7257 = vmatprep.subr.mxu0 0.0
          %7258 = vmatpush1.msra.mxu0 %v7145
          %7259 = vmatprep.subr.mxu0 0.0
          %7260 = vmatpush1.msra.mxu0 %v7144
          %7261 = vmatprep.subr.mxu0 0.0
          %7262 = vmatpush1.msra.mxu0 %v7143
          %7263 = vmatprep.subr.mxu0 0.0
          %7264 = vmatpush1.msra.mxu0 %v7142
          %7265 = vmatprep.subr.mxu0 0.0
          %7266 = vmatpush1.msra.mxu0 %v7141
          %7267 = vmatprep.subr.mxu0 0.0
          %7268 = vmatpush1.msra.mxu0 %v7140
          %7269 = vmatprep.subr.mxu0 0.0
          %7270 = vmatpush1.msra.mxu0 %v7139
          %7271 = vmatprep.subr.mxu0 0.0
          %7272 = vmatpush1.msra.mxu0 %v7138
          %7273 = vmatprep.subr.mxu0 0.0
          %7274 = vmatpush1.msra.mxu0 %v7137
          %7275 = vmatprep.subr.mxu0 0.0
          %7276 = vmatpush1.msra.mxu0 %v7136
          %7277 = vmatprep.subr.mxu0 0.0
          %7278 = vmatpush1.msra.mxu0 %v7135
          %7279 = vmatprep.subr.mxu0 0.0
          %7280 = vmatpush1.msra.mxu0 %v7134
          %7281 = vmatprep.subr.mxu0 0.0
          %7282 = vmatpush1.msra.mxu0 %v7133
          %7283 = vmatprep.subr.mxu0 0.0
          %7284 = vmatpush1.msra.mxu0 %v7132
          %7285 = vmatprep.subr.mxu0 0.0
          %7286 = vmatpush1.msra.mxu0 %v7131
          %7287 = vmatprep.subr.mxu0 0.0
          %7288 = vmatpush2.msra.mxu0 %v7162
          %7289 = vmatprep.subr.mxu0 0.0
          %7290 = vmatpush2.msra.mxu0 %v7161
          %7291 = vmatprep.subr.mxu0 0.0
          %7292 = vmatpush2.msra.mxu0 %v7160
          %7293 = vmatprep.subr.mxu0 0.0
          %7294 = vmatpush2.msra.mxu0 %v7159
          %7295 = vmatprep.subr.mxu0 0.0
          %7296 = vmatpush2.msra.mxu0 %v7158
          %7297 = vmatprep.subr.mxu0 0.0
          %7298 = vmatpush2.msra.mxu0 %v7157
          %7299 = vmatprep.subr.mxu0 0.0
          %7300 = vmatpush2.msra.mxu0 %v7156
          %7301 = vmatprep.subr.mxu0 0.0
          %7302 = vmatpush2.msra.mxu0 %v7155
          %7303 = vmatprep.subr.mxu0 0.0
          %7304 = vmatpush2.msra.mxu0 %v7154
          %7305 = vmatprep.subr.mxu0 0.0
          %7306 = vmatpush2.msra.mxu0 %v7153
          %7307 = vmatprep.subr.mxu0 0.0
          %7308 = vmatpush2.msra.mxu0 %v7152
          %7309 = vmatprep.subr.mxu0 0.0
          %7310 = vmatpush2.msra.mxu0 %v7151
          %7311 = vmatprep.subr.mxu0 0.0
          %7312 = vmatpush2.msra.mxu0 %v7150
          %7313 = vmatprep.subr.mxu0 0.0
          %7314 = vmatpush2.msra.mxu0 %v7149
          %7315 = vmatprep.subr.mxu0 0.0
          %7316 = vmatpush2.msra.mxu0 %v7148
          %7317 = vmatprep.subr.mxu0 0.0
          %7318 = vmatpush2.msra.mxu0 %v7147
          %7319 = vmatprep.mubr.f32.mxu0 %v7180
          %7320 = vmatmul.mubr.f32.gmra.mxu0 %v7178
          %v7321 = vpop.f32.mrf.mxu0
          %v7322 = vadd.f32 %v7252, %v7321
          %v7323 = vpop.f32.mrf.mxu0
          %7324 = vdwg.mxu0
          %7325 = vst [vmem:[%s294] sm:$0x3] %v7322
        $region48: #{model_forward.5} parent=35 // pred_fallthru
          _
        %p7326 = scmp.lt.s32.totalorder %s22, 1
        %s7327 = scalar_select %p7326, %s22, 1
        %s7328 = smul.addr %s7327, 2
        %s7329 = scalar_lea.vmem %s4, %s7328
        // Predicated region
        $region49: #{model_forward.5} parent=35 // pred_check
          %p7330 = pneg %p154
        $region50: #{model_forward.5} parent=35 // pred_check_branch
          %7332 = sbr.rel (%p7330) target = $region52
        $region51: #{model_forward.5} parent=35 // pred_region
          _
        $region52: #{model_forward.5} parent=35 // pred_fallthru
          _
      $region36: #{model_forward.5} parent=5 // pred_fallthru
        _
      %p7333 = scmp.le.s32.totalorder 2, %s13
      // Predicated region
      $region53: #{model_forward.5} parent=5 // pred_check
        %p7334 = pneg %p7333
      $region54: #{model_forward.5} parent=5 // pred_check_branch
        %7336 = sbr.rel (%p7334) target = $region56
      $region55: #{model_forward.5} parent=5 // pred_region
        %s7337 = ssub.s32 %s13, 2
        // Predicated region
        $region57: #{model_forward.5} parent=55 // pred_check
          %p7338 = pneg %p160
        $region58: #{model_forward.5} parent=55 // pred_check_branch
          %7340 = sbr.rel (%p7338) target = $region60
        $region59: #{model_forward.5} parent=55 // pred_region
          %p7341 = scmp.lt.s32.totalorder %s24, 1
          %s7342 = scalar_select %p7341, %s24, 1
          %s7343 = smul.addr %s7342, 2
          %s7344 = scalar_lea.vmem %s4, %s7343
        $region60: #{model_forward.5} parent=55 // pred_fallthru
          _
      $region56: #{model_forward.5} parent=5 // pred_fallthru
        _
    $region6: #{model_forward.5} parent=1 // loop_footer
      %s17 = sadd.s32 1, %s13
    $region7: #{model_forward.5} parent=1 // loop_footer_branch
      %12 = sbr.rel target = $region3
    $region8: #{model_forward.5} parent=1 // loop_exit
      _
    %7345 = vsyncpa [#allocation4], 1
    %s7346 = scalar_lea.sflag [#allocation4], 1
    %7347 = vsyncpa %s7346, 1

</llo_original>
